<compile_context>
chip_gen: v7x
topology: tpu7x:2x2x1
jax: 0.10.0
libtpu: 0.0.40
codegen_flags: <defaults>
</compile_context>

<pallas_src>
import math
import functools

import jax
import jax.numpy as jnp
from jax import lax
from jax.experimental import pallas as pl
from jax.experimental.pallas import tpu as pltpu

# ----------------------------- configuration ------------------------------ #
D_MODEL = 32
D_FF = 64
FEATURE_SZ = 8           # h = w = H = W
NUM_TRAIN_IMS = 2
GAP = 5
NUM_MAX_FRAMES = 20
BATCH = 2
NUM_TESTS = 1
T_MAX = NUM_TRAIN_IMS * GAP + NUM_MAX_FRAMES + 1  # frames in the 3D pos table

# Order in which weight tensors are passed to the fused kernel (must match the
# kernel's positional unpack order exactly).
_WEIGHT_ORDER = (
    "fg_token", "test_token",
    "box_w1", "box_b1", "box_w2", "box_b2", "box_w3", "box_b3",
    "enc_wqk", "enc_bqk", "enc_wv", "enc_bv", "enc_wo", "enc_bo",
    "enc_ln1_g", "enc_ln1_b", "enc_w1", "enc_b1", "enc_w2", "enc_b2",
    "enc_ln2_g", "enc_ln2_b",
    "dec_wq", "dec_bq", "dec_wk", "dec_bk", "dec_wv", "dec_bv",
    "dec_wo", "dec_bo", "dec_ln1_g", "dec_ln1_b",
    "dec_w1", "dec_b1", "dec_w2", "dec_b2", "dec_ln2_g", "dec_ln2_b",
)


# ------------------------------ fused kernel ------------------------------- #
def _fused_forward_kernel(
    # per-batch activations (blocks of (1, L, D))
    train_feat_ref, test_feat_ref, train_label_ref, box_in_ref, pos_ref,
    # learned tokens
    fg_tok_ref, test_tok_ref,
    # box-encoding MLP (BatchNorm folded, eval mode)
    bw1_ref, bb1_ref, bw2_ref, bb2_ref, bw3_ref, bb3_ref,
    # encoder layer
    e_wqk_ref, e_bqk_ref, e_wv_ref, e_bv_ref, e_wo_ref, e_bo_ref,
    e_ln1g_ref, e_ln1b_ref, e_w1_ref, e_b1_ref, e_w2_ref, e_b2_ref,
    e_ln2g_ref, e_ln2b_ref,
    # decoder layer
    d_wq_ref, d_bq_ref, d_wk_ref, d_bk_ref, d_wv_ref, d_bv_ref,
    d_wo_ref, d_bo_ref, d_ln1g_ref, d_ln1b_ref,
    d_w1_ref, d_b1_ref, d_w2_ref, d_b2_ref, d_ln2g_ref, d_ln2b_ref,
    # outputs
    dec_ref, enc_ref,
    *, hw):
  d = train_feat_ref.shape[-1]
  scale = 1.0 / math.sqrt(d)
  f32 = jnp.float32

  def ln(x, g_ref, b_ref):
    mu = jnp.mean(x, axis=-1, keepdims=True)
    c = x - mu
    var = jnp.mean(c * c, axis=-1, keepdims=True)
    return c * lax.rsqrt(var + 1e-5) * g_ref[...] + b_ref[...]

  def attend(q, k, v):
    # scores via dot_general contracting D axes (no explicit k.T)
    s = lax.dot_general(q, k, (((1,), (1,)), ((), ())),
                        preferred_element_type=f32) * scale
    s = s - jnp.max(s, axis=-1, keepdims=True)
    p = jnp.exp(s)
    p = p * pl.reciprocal(jnp.sum(p, axis=-1, keepdims=True), approx=True)
    return jnp.dot(p, v, preferred_element_type=f32)

  # ---- box-encoding MLP (1x1 Conv1d stack; BN folded into weights) ----
  x = box_in_ref[0]                                                 # (Ltr, 4)
  h1 = jnp.maximum(
      jnp.dot(x, bw1_ref[...], preferred_element_type=f32) + bb1_ref[...], 0.0)
  h2 = jnp.maximum(
      jnp.dot(h1, bw2_ref[...], preferred_element_type=f32) + bb2_ref[...], 0.0)
  ltrb_enc = jnp.dot(h2, bw3_ref[...], preferred_element_type=f32) + bb3_ref[...]

  # ---- token fusion + sequence concat (train ++ test) ----
  feat_train = train_feat_ref[0] + fg_tok_ref[...] * train_label_ref[0] + ltrb_enc
  feat_test = test_feat_ref[0] + test_tok_ref[...]          # feat + test_token
  src = jnp.concatenate([feat_train, feat_test], axis=0)            # (S, D)
  pos = pos_ref[0]                                                  # (S, D)

  # ---- encoder layer (post-norm; pos added to q/k; fused q|k projection) ----
  qk = jnp.dot(src + pos, e_wqk_ref[...], preferred_element_type=f32) + e_bqk_ref[...]
  q = qk[:, :d]
  k = qk[:, d:]
  v = jnp.dot(src, e_wv_ref[...], preferred_element_type=f32) + e_bv_ref[...]
  att = attend(q, k, v)
  att = jnp.dot(att, e_wo_ref[...], preferred_element_type=f32) + e_bo_ref[...]
  src = ln(src + att, e_ln1g_ref, e_ln1b_ref)
  ff = jnp.maximum(
      jnp.dot(src, e_w1_ref[...], preferred_element_type=f32) + e_b1_ref[...], 0.0)
  ff = jnp.dot(ff, e_w2_ref[...], preferred_element_type=f32) + e_b2_ref[...]
  memory = ln(src + ff, e_ln2g_ref, e_ln2b_ref)                     # (S, D)

  # ---- decoder layer (single query; cross-attention; tgt starts at 0) ----
  dq = jnp.dot(fg_tok_ref[...], d_wq_ref[...], preferred_element_type=f32) + d_bq_ref[...]
  dk = jnp.dot(memory + pos, d_wk_ref[...], preferred_element_type=f32) + d_bk_ref[...]
  dv = jnp.dot(memory, d_wv_ref[...], preferred_element_type=f32) + d_bv_ref[...]
  datt = attend(dq, dk, dv)                                         # (1, D)
  datt = jnp.dot(datt, d_wo_ref[...], preferred_element_type=f32) + d_bo_ref[...]
  tgt = ln(datt, d_ln1g_ref, d_ln1b_ref)                 # residual w/ tgt == 0
  dff = jnp.maximum(
      jnp.dot(tgt, d_w1_ref[...], preferred_element_type=f32) + d_b1_ref[...], 0.0)
  dff = jnp.dot(dff, d_w2_ref[...], preferred_element_type=f32) + d_b2_ref[...]
  hs = ln(tgt + dff, d_ln2g_ref, d_ln2b_ref)                        # (1, D)

  dec_ref[0] = hs
  enc_ref[0] = memory[memory.shape[0] - hw:, :]                     # last h*w rows


def _fused_forward(inputs_b, weights, *, hw):
  train_feat_b = inputs_b["train_feat"]
  b, _, d = train_feat_b.shape
  batched = [inputs_b["train_feat"], inputs_b["test_feat"],
             inputs_b["train_label"], inputs_b["box_in"], inputs_b["pos"]]
  rep = [weights[k] for k in _WEIGHT_ORDER]

  def bspec(a):
    nd = a.ndim
    return pl.BlockSpec((1,) + a.shape[1:],
                        lambda i, _nd=nd: (i,) + (0,) * (_nd - 1))

  def rspec(a):
    nd = a.ndim
    return pl.BlockSpec(a.shape, lambda i, _nd=nd: (0,) * _nd)

  in_specs = [bspec(a) for a in batched] + [rspec(a) for a in rep]
  out_specs = [
      pl.BlockSpec((1, 1, d), lambda i: (i, 0, 0)),
      pl.BlockSpec((1, hw, d), lambda i: (i, 0, 0)),
  ]
  out_shape = (
      jax.ShapeDtypeStruct((b, 1, d), jnp.float32),
      jax.ShapeDtypeStruct((b, hw, d), jnp.float32),
  )
  kern = functools.partial(_fused_forward_kernel, hw=hw)
  return pl.pallas_call(
      kern,
      grid=(b,),
      in_specs=in_specs,
      out_specs=out_specs,
      out_shape=out_shape,
      compiler_params=pltpu.CompilerParams(
          dimension_semantics=("parallel",)),
  )(*batched, *rep)


# ------------------------ positional encoding (glue) ----------------------- #
def build_pos_embs_3d(nframes, batch, h, w, d_model, max_res):
  # TODO(synk): PositionEmbeddingSine3D source is not provided; this is an
  # equivalent deterministic lin-sine 3D encoding (spatial y/x halves + a
  # temporal sinusoid added across channels), anti-aliased by max_res.
  max_h, max_w, max_t = max_res
  npf = d_model // 2
  scale = 2.0 * math.pi

  def enc(pos, max_p, nfeat):
    freqs = jnp.arange(1, nfeat // 2 + 1, dtype=jnp.float32)
    ang = pos[:, None] * freqs[None, :] * scale / max_p
    return jnp.stack([jnp.sin(ang), jnp.cos(ang)], axis=-1).reshape(pos.shape[0], nfeat)

  y = jnp.arange(1, h + 1, dtype=jnp.float32)
  x = jnp.arange(1, w + 1, dtype=jnp.float32)
  t = jnp.arange(1, nframes + 1, dtype=jnp.float32)
  pe_y = enc(y, max_h, npf)                       # (h, npf)
  pe_x = enc(x, max_w, npf)                       # (w, npf)
  pe_t = enc(t, max_t, d_model)                   # (T, D)
  spatial = jnp.concatenate(
      [jnp.broadcast_to(pe_y[:, None, :], (h, w, npf)),
       jnp.broadcast_to(pe_x[None, :, :], (h, w, npf))], axis=-1)   # (h, w, D)
  pos = spatial[None] + pe_t[:, None, None, :]                      # (T, h, w, D)
  pos = jnp.broadcast_to(pos[:, None], (nframes, batch, h, w, d_model))
  return pos.astype(jnp.float32)


# ----------------------------- parameter init ------------------------------ #
def init_params(key):
  keys = jax.random.split(key, 64)
  ki = iter(keys)

  def nrm(shape, scale=1.0):
    return jax.random.normal(next(ki), shape, jnp.float32) * scale

  d = D_MODEL
  d4 = d // 4
  sc = 1.0 / math.sqrt(d)

  def bn_fold(wmat, bia, ch):
    # eval-mode BatchNorm folded into the preceding 1x1 conv
    gamma = 1.0 + 0.1 * nrm((1, ch))
    beta = 0.1 * nrm((1, ch))
    mean = 0.1 * nrm((1, ch))
    var = 1.0 + 0.05 * jnp.abs(nrm((1, ch)))
    s = gamma * lax.rsqrt(var + 1e-5)
    t = beta - mean * s
    return wmat * s, bia * s + t

  w = {}
  # box_encoding = MLP([4, d/4, d, d])
  bw1, bb1 = nrm((4, d4), 0.5), 0.1 * nrm((1, d4))
  w["box_w1"], w["box_b1"] = bn_fold(bw1, bb1, d4)
  bw2, bb2 = nrm((d4, d), 0.3), 0.1 * nrm((1, d))
  w["box_w2"], w["box_b2"] = bn_fold(bw2, bb2, d)
  w["box_w3"], w["box_b3"] = nrm((d, d), 0.2), 0.1 * nrm((1, d))

  # encoder layer (q|k fused)
  w["enc_wqk"] = nrm((d, 2 * d), sc); w["enc_bqk"] = jnp.zeros((1, 2 * d), jnp.float32)
  w["enc_wv"] = nrm((d, d), sc);      w["enc_bv"] = jnp.zeros((1, d), jnp.float32)
  w["enc_wo"] = nrm((d, d), sc);      w["enc_bo"] = jnp.zeros((1, d), jnp.float32)
  w["enc_ln1_g"] = jnp.ones((1, d), jnp.float32)
  w["enc_ln1_b"] = jnp.zeros((1, d), jnp.float32)
  w["enc_w1"] = nrm((d, D_FF), sc);   w["enc_b1"] = jnp.zeros((1, D_FF), jnp.float32)
  w["enc_w2"] = nrm((D_FF, d), 1.0 / math.sqrt(D_FF))
  w["enc_b2"] = jnp.zeros((1, d), jnp.float32)
  w["enc_ln2_g"] = jnp.ones((1, d), jnp.float32)
  w["enc_ln2_b"] = jnp.zeros((1, d), jnp.float32)

  # decoder layer (k uses memory+pos, v uses memory -> kept as separate mats)
  w["dec_wq"] = nrm((d, d), sc); w["dec_bq"] = jnp.zeros((1, d), jnp.float32)
  w["dec_wk"] = nrm((d, d), sc); w["dec_bk"] = jnp.zeros((1, d), jnp.float32)
  w["dec_wv"] = nrm((d, d), sc); w["dec_bv"] = jnp.zeros((1, d), jnp.float32)
  w["dec_wo"] = nrm((d, d), sc); w["dec_bo"] = jnp.zeros((1, d), jnp.float32)
  w["dec_ln1_g"] = jnp.ones((1, d), jnp.float32)
  w["dec_ln1_b"] = jnp.zeros((1, d), jnp.float32)
  w["dec_w1"] = nrm((d, D_FF), sc); w["dec_b1"] = jnp.zeros((1, D_FF), jnp.float32)
  w["dec_w2"] = nrm((D_FF, d), 1.0 / math.sqrt(D_FF))
  w["dec_b2"] = jnp.zeros((1, d), jnp.float32)
  w["dec_ln2_g"] = jnp.ones((1, d), jnp.float32)
  w["dec_ln2_b"] = jnp.zeros((1, d), jnp.float32)

  # learned tokens (query_embed_fg doubles as decoder query embedding)
  w["fg_token"] = nrm((1, d), 0.5)
  w["test_token"] = nrm((1, d), 0.5)

  return {
      "w": w,
      "pos_embs": build_pos_embs_3d(T_MAX, BATCH, FEATURE_SZ, FEATURE_SZ, d,
                                    (FEATURE_SZ, FEATURE_SZ, T_MAX)),
  }


# --------------------------- predict_filter (fwd) --------------------------- #
def filter_predictor_forward(params, train_feat, test_feat, train_label,
                             train_ltrb_target, temporal_features=None):
  # TODO(synk): temporal_features branch uses a data-dependent boolean-mask
  # gather (ragged per-batch lengths) — not expressible as a static Pallas
  # block pattern; only the temporal_features=None path is implemented.
  assert temporal_features is None

  if train_feat.ndim == 4:
    train_feat = train_feat[:, None]
  if test_feat.ndim == 4:
    test_feat = test_feat[:, None]
  if train_ltrb_target.ndim == 4:
    train_ltrb_target = train_ltrb_target[:, None]

  nf, b, c, hh, ww = train_feat.shape
  nt, _, _, h, w = test_feat.shape
  d = c
  ltr = nf * hh * ww
  lte = nt * h * w
  hw = h * w

  # sequence-ification into the single (B, L, D) layout feeding the fused
  # kernel (equivalent to the PyTorch permute/flatten chain).
  train_feat_b = jnp.transpose(train_feat, (1, 0, 3, 4, 2)).reshape(b, ltr, c)
  test_feat_b = jnp.transpose(test_feat, (1, 0, 3, 4, 2)).reshape(b, lte, c)
  train_label_b = jnp.transpose(train_label, (1, 0, 2, 3)).reshape(b, ltr, 1)
  box_in_b = jnp.transpose(train_ltrb_target, (1, 0, 3, 4, 2)).reshape(b, ltr, 4)

  # positional encodings from the cached 3D table
  pos_embs = params["pos_embs"]                              # (T, B, h, w, D)
  test_pos = jnp.broadcast_to(pos_embs[-1][:b][None], (nt, b, h, w, d))
  test_pos_b = jnp.transpose(test_pos, (1, 0, 2, 3, 4)).reshape(b, lte, d)
  train_idx = jnp.array([i * GAP for i in range(nf)], jnp.int32)
  train_pos_b = jnp.transpose(pos_embs[train_idx][:, :b],
                              (1, 0, 2, 3, 4)).reshape(b, ltr, d)
  pos_b = jnp.concatenate([train_pos_b, test_pos_b], axis=1)        # (B, S, D)

  inputs_b = {"train_feat": train_feat_b, "test_feat": test_feat_b,
              "train_label": train_label_b, "box_in": box_in_b, "pos": pos_b}

  dec, enc = _fused_forward(inputs_b, params["w"], hw=hw)
  # dec: (B, 1, D)  (== output_embed[0] transposed);  enc: (B, hw, D)

  dec_opt = jnp.transpose(dec, (1, 2, 0))                    # (1, D, B)
  dec_out = dec_opt.reshape(b, -1, 1, 1)                     # torch reshape semantics
  enc_out = jnp.transpose(enc, (0, 2, 1)).reshape(test_feat.shape)
  return dec_out, enc_out


# ----------------------------------- main ----------------------------------- #
if __name__ == "__main__":
  key = jax.random.PRNGKey(0)
  k_in = jax.random.split(key, 5)
  params = init_params(k_in[0])

  train_feat = jax.random.normal(
      k_in[1], (NUM_TRAIN_IMS, BATCH, D_MODEL, FEATURE_SZ, FEATURE_SZ), jnp.float32)
  test_feat = jax.random.normal(
      k_in[2], (NUM_TESTS, BATCH, D_MODEL, FEATURE_SZ, FEATURE_SZ), jnp.float32)
  train_label = jax.random.uniform(
      k_in[3], (NUM_TRAIN_IMS, BATCH, FEATURE_SZ, FEATURE_SZ), jnp.float32)
  train_ltrb_target = jax.random.uniform(
      k_in[4], (NUM_TRAIN_IMS, BATCH, 4, FEATURE_SZ, FEATURE_SZ), jnp.float32)

  fwd = jax.jit(functools.partial(filter_predictor_forward, params))
  dec_out, enc_out = fwd(train_feat, test_feat, train_label, train_ltrb_target)
  jax.block_until_ready((dec_out, enc_out))

  assert dec_out.shape == (BATCH, D_MODEL, 1, 1)
  assert enc_out.shape == (NUM_TESTS, BATCH, D_MODEL, FEATURE_SZ, FEATURE_SZ)
  assert jnp.all(jnp.isfinite(dec_out)) and jnp.all(jnp.isfinite(enc_out))
  print("KERNEL_OK")
</pallas_src>

<mosaic_0001>
module attributes {stable_mosaic.version = 11 : i64} {
  func.func @_fused_forward_kernel(%arg0: i32, %arg1: memref<1x128x32xf32, #tpu.memory_space<vmem>>, %arg2: memref<1x64x32xf32, #tpu.memory_space<vmem>>, %arg3: memref<1x128x1xf32, #tpu.memory_space<vmem>>, %arg4: memref<1x128x4xf32, #tpu.memory_space<vmem>>, %arg5: memref<1x192x32xf32, #tpu.memory_space<vmem>>, %arg6: memref<1x32xf32, #tpu.memory_space<vmem>>, %arg7: memref<1x32xf32, #tpu.memory_space<vmem>>, %arg8: memref<4x8xf32, #tpu.memory_space<vmem>>, %arg9: memref<1x8xf32, #tpu.memory_space<vmem>>, %arg10: memref<8x32xf32, #tpu.memory_space<vmem>>, %arg11: memref<1x32xf32, #tpu.memory_space<vmem>>, %arg12: memref<32x32xf32, #tpu.memory_space<vmem>>, %arg13: memref<1x32xf32, #tpu.memory_space<vmem>>, %arg14: memref<32x64xf32, #tpu.memory_space<vmem>>, %arg15: memref<1x64xf32, #tpu.memory_space<vmem>>, %arg16: memref<32x32xf32, #tpu.memory_space<vmem>>, %arg17: memref<1x32xf32, #tpu.memory_space<vmem>>, %arg18: memref<32x32xf32, #tpu.memory_space<vmem>>, %arg19: memref<1x32xf32, #tpu.memory_space<vmem>>, %arg20: memref<1x32xf32, #tpu.memory_space<vmem>>, %arg21: memref<1x32xf32, #tpu.memory_space<vmem>>, %arg22: memref<32x64xf32, #tpu.memory_space<vmem>>, %arg23: memref<1x64xf32, #tpu.memory_space<vmem>>, %arg24: memref<64x32xf32, #tpu.memory_space<vmem>>, %arg25: memref<1x32xf32, #tpu.memory_space<vmem>>, %arg26: memref<1x32xf32, #tpu.memory_space<vmem>>, %arg27: memref<1x32xf32, #tpu.memory_space<vmem>>, %arg28: memref<32x32xf32, #tpu.memory_space<vmem>>, %arg29: memref<1x32xf32, #tpu.memory_space<vmem>>, %arg30: memref<32x32xf32, #tpu.memory_space<vmem>>, %arg31: memref<1x32xf32, #tpu.memory_space<vmem>>, %arg32: memref<32x32xf32, #tpu.memory_space<vmem>>, %arg33: memref<1x32xf32, #tpu.memory_space<vmem>>, %arg34: memref<32x32xf32, #tpu.memory_space<vmem>>, %arg35: memref<1x32xf32, #tpu.memory_space<vmem>>, %arg36: memref<1x32xf32, #tpu.memory_space<vmem>>, %arg37: memref<1x32xf32, #tpu.memory_space<vmem>>, %arg38: memref<32x64xf32, #tpu.memory_space<vmem>>, %arg39: memref<1x64xf32, #tpu.memory_space<vmem>>, %arg40: memref<64x32xf32, #tpu.memory_space<vmem>>, %arg41: memref<1x32xf32, #tpu.memory_space<vmem>>, %arg42: memref<1x32xf32, #tpu.memory_space<vmem>>, %arg43: memref<1x32xf32, #tpu.memory_space<vmem>>, %arg44: memref<1x1x32xf32, #tpu.memory_space<vmem>>, %arg45: memref<1x64x32xf32, #tpu.memory_space<vmem>>) attributes {dimension_semantics = [#tpu.dimension_semantics<parallel>], iteration_bounds = array<i64: 2>, scalar_prefetch = 0 : i64, scratch_operands = 0 : i64, tpu.core_type = #tpu.core_type<tc>, window_params = [{transform_indices = @transform_0, window_bounds = array<i64: 1, 128, 32>}, {transform_indices = @transform_1, window_bounds = array<i64: 1, 64, 32>}, {transform_indices = @transform_2, window_bounds = array<i64: 1, 128, 1>}, {transform_indices = @transform_3, window_bounds = array<i64: 1, 128, 4>}, {transform_indices = @transform_4, window_bounds = array<i64: 1, 192, 32>}, {pipeline_mode = #tpu.pipeline_mode<synchronous>, transform_indices = @transform_5, window_bounds = array<i64: 1, 32>}, {pipeline_mode = #tpu.pipeline_mode<synchronous>, transform_indices = @transform_6, window_bounds = array<i64: 1, 32>}, {pipeline_mode = #tpu.pipeline_mode<synchronous>, transform_indices = @transform_7, window_bounds = array<i64: 4, 8>}, {pipeline_mode = #tpu.pipeline_mode<synchronous>, transform_indices = @transform_8, window_bounds = array<i64: 1, 8>}, {pipeline_mode = #tpu.pipeline_mode<synchronous>, transform_indices = @transform_9, window_bounds = array<i64: 8, 32>}, {pipeline_mode = #tpu.pipeline_mode<synchronous>, transform_indices = @transform_10, window_bounds = array<i64: 1, 32>}, {pipeline_mode = #tpu.pipeline_mode<synchronous>, transform_indices = @transform_11, window_bounds = array<i64: 32, 32>}, {pipeline_mode = #tpu.pipeline_mode<synchronous>, transform_indices = @transform_12, window_bounds = array<i64: 1, 32>}, {pipeline_mode = #tpu.pipeline_mode<synchronous>, transform_indices = @transform_13, window_bounds = array<i64: 32, 64>}, {pipeline_mode = #tpu.pipeline_mode<synchronous>, transform_indices = @transform_14, window_bounds = array<i64: 1, 64>}, {pipeline_mode = #tpu.pipeline_mode<synchronous>, transform_indices = @transform_15, window_bounds = array<i64: 32, 32>}, {pipeline_mode = #tpu.pipeline_mode<synchronous>, transform_indices = @transform_16, window_bounds = array<i64: 1, 32>}, {pipeline_mode = #tpu.pipeline_mode<synchronous>, transform_indices = @transform_17, window_bounds = array<i64: 32, 32>}, {pipeline_mode = #tpu.pipeline_mode<synchronous>, transform_indices = @transform_18, window_bounds = array<i64: 1, 32>}, {pipeline_mode = #tpu.pipeline_mode<synchronous>, transform_indices = @transform_19, window_bounds = array<i64: 1, 32>}, {pipeline_mode = #tpu.pipeline_mode<synchronous>, transform_indices = @transform_20, window_bounds = array<i64: 1, 32>}, {pipeline_mode = #tpu.pipeline_mode<synchronous>, transform_indices = @transform_21, window_bounds = array<i64: 32, 64>}, {pipeline_mode = #tpu.pipeline_mode<synchronous>, transform_indices = @transform_22, window_bounds = array<i64: 1, 64>}, {pipeline_mode = #tpu.pipeline_mode<synchronous>, transform_indices = @transform_23, window_bounds = array<i64: 64, 32>}, {pipeline_mode = #tpu.pipeline_mode<synchronous>, transform_indices = @transform_24, window_bounds = array<i64: 1, 32>}, {pipeline_mode = #tpu.pipeline_mode<synchronous>, transform_indices = @transform_25, window_bounds = array<i64: 1, 32>}, {pipeline_mode = #tpu.pipeline_mode<synchronous>, transform_indices = @transform_26, window_bounds = array<i64: 1, 32>}, {pipeline_mode = #tpu.pipeline_mode<synchronous>, transform_indices = @transform_27, window_bounds = array<i64: 32, 32>}, {pipeline_mode = #tpu.pipeline_mode<synchronous>, transform_indices = @transform_28, window_bounds = array<i64: 1, 32>}, {pipeline_mode = #tpu.pipeline_mode<synchronous>, transform_indices = @transform_29, window_bounds = array<i64: 32, 32>}, {pipeline_mode = #tpu.pipeline_mode<synchronous>, transform_indices = @transform_30, window_bounds = array<i64: 1, 32>}, {pipeline_mode = #tpu.pipeline_mode<synchronous>, transform_indices = @transform_31, window_bounds = array<i64: 32, 32>}, {pipeline_mode = #tpu.pipeline_mode<synchronous>, transform_indices = @transform_32, window_bounds = array<i64: 1, 32>}, {pipeline_mode = #tpu.pipeline_mode<synchronous>, transform_indices = @transform_33, window_bounds = array<i64: 32, 32>}, {pipeline_mode = #tpu.pipeline_mode<synchronous>, transform_indices = @transform_34, window_bounds = array<i64: 1, 32>}, {pipeline_mode = #tpu.pipeline_mode<synchronous>, transform_indices = @transform_35, window_bounds = array<i64: 1, 32>}, {pipeline_mode = #tpu.pipeline_mode<synchronous>, transform_indices = @transform_36, window_bounds = array<i64: 1, 32>}, {pipeline_mode = #tpu.pipeline_mode<synchronous>, transform_indices = @transform_37, window_bounds = array<i64: 32, 64>}, {pipeline_mode = #tpu.pipeline_mode<synchronous>, transform_indices = @transform_38, window_bounds = array<i64: 1, 64>}, {pipeline_mode = #tpu.pipeline_mode<synchronous>, transform_indices = @transform_39, window_bounds = array<i64: 64, 32>}, {pipeline_mode = #tpu.pipeline_mode<synchronous>, transform_indices = @transform_40, window_bounds = array<i64: 1, 32>}, {pipeline_mode = #tpu.pipeline_mode<synchronous>, transform_indices = @transform_41, window_bounds = array<i64: 1, 32>}, {pipeline_mode = #tpu.pipeline_mode<synchronous>, transform_indices = @transform_42, window_bounds = array<i64: 1, 32>}, {transform_indices = @transform_43, window_bounds = array<i64: 1, 1, 32>}, {transform_indices = @transform_44, window_bounds = array<i64: 1, 64, 32>}]} {
    %c0 = arith.constant 0 : index
    %c0_0 = arith.constant 0 : index
    %c0_1 = arith.constant 0 : index
    %0 = vector.load %arg4[%c0, %c0_0, %c0_1] : memref<1x128x4xf32, #tpu.memory_space<vmem>>, vector<1x128x4xf32>
    %1 = vector.shape_cast %0 : vector<1x128x4xf32> to vector<128x4xf32>
    %c0_2 = arith.constant 0 : index
    %c0_3 = arith.constant 0 : index
    %2 = vector.load %arg8[%c0_2, %c0_3] : memref<4x8xf32, #tpu.memory_space<vmem>>, vector<4x8xf32>
    %cst = arith.constant dense<0.000000e+00> : vector<128x8xf32>
    %3 = tpu.matmul %1, %2, %cst {dimension_numbers = #tpu.dot_dimension_numbers<[1], [0], [0], [1], [0, 0, 1, 1], [], []>} : vector<128x4xf32>, vector<4x8xf32>, vector<128x8xf32> -> vector<128x8xf32>
    %c0_4 = arith.constant 0 : index
    %c0_5 = arith.constant 0 : index
    %4 = vector.load %arg9[%c0_4, %c0_5] : memref<1x8xf32, #tpu.memory_space<vmem>>, vector<1x8xf32>
    %5 = vector.broadcast %4 : vector<1x8xf32> to vector<128x8xf32>
    %6 = arith.addf %3, %5 : vector<128x8xf32>
    %cst_6 = arith.constant 0.000000e+00 : f32
    %7 = vector.broadcast %cst_6 : f32 to vector<128x8xf32>
    %8 = arith.maximumf %6, %7 : vector<128x8xf32>
    %c0_7 = arith.constant 0 : index
    %c0_8 = arith.constant 0 : index
    %9 = vector.load %arg10[%c0_7, %c0_8] : memref<8x32xf32, #tpu.memory_space<vmem>>, vector<8x32xf32>
    %cst_9 = arith.constant dense<0.000000e+00> : vector<128x32xf32>
    %10 = tpu.matmul %8, %9, %cst_9 {dimension_numbers = #tpu.dot_dimension_numbers<[1], [0], [0], [1], [0, 0, 1, 1], [], []>} : vector<128x8xf32>, vector<8x32xf32>, vector<128x32xf32> -> vector<128x32xf32>
    %c0_10 = arith.constant 0 : index
    %c0_11 = arith.constant 0 : index
    %11 = vector.load %arg11[%c0_10, %c0_11] : memref<1x32xf32, #tpu.memory_space<vmem>>, vector<1x32xf32>
    %12 = vector.broadcast %11 : vector<1x32xf32> to vector<128x32xf32>
    %13 = arith.addf %10, %12 : vector<128x32xf32>
    %cst_12 = arith.constant 0.000000e+00 : f32
    %14 = vector.broadcast %cst_12 : f32 to vector<128x32xf32>
    %15 = arith.maximumf %13, %14 : vector<128x32xf32>
    %c0_13 = arith.constant 0 : index
    %c0_14 = arith.constant 0 : index
    %16 = vector.load %arg12[%c0_13, %c0_14] : memref<32x32xf32, #tpu.memory_space<vmem>>, vector<32x32xf32>
    %cst_15 = arith.constant dense<0.000000e+00> : vector<128x32xf32>
    %17 = tpu.matmul %15, %16, %cst_15 {dimension_numbers = #tpu.dot_dimension_numbers<[1], [0], [0], [1], [0, 0, 1, 1], [], []>} : vector<128x32xf32>, vector<32x32xf32>, vector<128x32xf32> -> vector<128x32xf32>
    %c0_16 = arith.constant 0 : index
    %c0_17 = arith.constant 0 : index
    %18 = vector.load %arg13[%c0_16, %c0_17] : memref<1x32xf32, #tpu.memory_space<vmem>>, vector<1x32xf32>
    %19 = vector.broadcast %18 : vector<1x32xf32> to vector<128x32xf32>
    %20 = arith.addf %17, %19 : vector<128x32xf32>
    %c0_18 = arith.constant 0 : index
    %c0_19 = arith.constant 0 : index
    %c0_20 = arith.constant 0 : index
    %21 = vector.load %arg1[%c0_18, %c0_19, %c0_20] : memref<1x128x32xf32, #tpu.memory_space<vmem>>, vector<1x128x32xf32>
    %22 = vector.shape_cast %21 : vector<1x128x32xf32> to vector<128x32xf32>
    %c0_21 = arith.constant 0 : index
    %c0_22 = arith.constant 0 : index
    %23 = vector.load %arg6[%c0_21, %c0_22] : memref<1x32xf32, #tpu.memory_space<vmem>>, vector<1x32xf32>
    %c0_23 = arith.constant 0 : index
    %c0_24 = arith.constant 0 : index
    %c0_25 = arith.constant 0 : index
    %24 = vector.load %arg3[%c0_23, %c0_24, %c0_25] : memref<1x128x1xf32, #tpu.memory_space<vmem>>, vector<1x128x1xf32>
    %25 = vector.shape_cast %24 : vector<1x128x1xf32> to vector<128x1xf32>
    %26 = vector.broadcast %23 : vector<1x32xf32> to vector<128x32xf32>
    %27 = vector.broadcast %25 : vector<128x1xf32> to vector<128x32xf32>
    %28 = arith.mulf %26, %27 : vector<128x32xf32>
    %29 = arith.addf %22, %28 : vector<128x32xf32>
    %30 = arith.addf %29, %20 : vector<128x32xf32>
    %c0_26 = arith.constant 0 : index
    %c0_27 = arith.constant 0 : index
    %c0_28 = arith.constant 0 : index
    %31 = vector.load %arg2[%c0_26, %c0_27, %c0_28] : memref<1x64x32xf32, #tpu.memory_space<vmem>>, vector<1x64x32xf32>
    %32 = vector.shape_cast %31 : vector<1x64x32xf32> to vector<64x32xf32>
    %c0_29 = arith.constant 0 : index
    %c0_30 = arith.constant 0 : index
    %33 = vector.load %arg7[%c0_29, %c0_30] : memref<1x32xf32, #tpu.memory_space<vmem>>, vector<1x32xf32>
    %34 = vector.broadcast %33 : vector<1x32xf32> to vector<64x32xf32>
    %35 = arith.addf %32, %34 : vector<64x32xf32>
    %36 = tpu.concatenate %30, %35 in 0 : vector<128x32xf32>, vector<64x32xf32> -> vector<192x32xf32>
    %c0_31 = arith.constant 0 : index
    %c0_32 = arith.constant 0 : index
    %c0_33 = arith.constant 0 : index
    %37 = vector.load %arg5[%c0_31, %c0_32, %c0_33] : memref<1x192x32xf32, #tpu.memory_space<vmem>>, vector<1x192x32xf32>
    %38 = vector.shape_cast %37 : vector<1x192x32xf32> to vector<192x32xf32>
    %39 = arith.addf %36, %38 : vector<192x32xf32>
    %c0_34 = arith.constant 0 : index
    %c0_35 = arith.constant 0 : index
    %40 = vector.load %arg14[%c0_34, %c0_35] : memref<32x64xf32, #tpu.memory_space<vmem>>, vector<32x64xf32>
    %cst_36 = arith.constant dense<0.000000e+00> : vector<192x64xf32>
    %41 = tpu.matmul %39, %40, %cst_36 {dimension_numbers = #tpu.dot_dimension_numbers<[1], [0], [0], [1], [0, 0, 1, 1], [], []>} : vector<192x32xf32>, vector<32x64xf32>, vector<192x64xf32> -> vector<192x64xf32>
    %c0_37 = arith.constant 0 : index
    %c0_38 = arith.constant 0 : index
    %42 = vector.load %arg15[%c0_37, %c0_38] : memref<1x64xf32, #tpu.memory_space<vmem>>, vector<1x64xf32>
    %43 = vector.broadcast %42 : vector<1x64xf32> to vector<192x64xf32>
    %44 = arith.addf %41, %43 : vector<192x64xf32>
    %45 = vector.extract_strided_slice %44 {offsets = [0, 0], sizes = [192, 32], strides = [1, 1]} : vector<192x64xf32> to vector<192x32xf32>
    %46 = vector.extract_strided_slice %44 {offsets = [0, 32], sizes = [192, 32], strides = [1, 1]} : vector<192x64xf32> to vector<192x32xf32>
    %c0_39 = arith.constant 0 : index
    %c0_40 = arith.constant 0 : index
    %47 = vector.load %arg16[%c0_39, %c0_40] : memref<32x32xf32, #tpu.memory_space<vmem>>, vector<32x32xf32>
    %cst_41 = arith.constant dense<0.000000e+00> : vector<192x32xf32>
    %48 = tpu.matmul %36, %47, %cst_41 {dimension_numbers = #tpu.dot_dimension_numbers<[1], [0], [0], [1], [0, 0, 1, 1], [], []>} : vector<192x32xf32>, vector<32x32xf32>, vector<192x32xf32> -> vector<192x32xf32>
    %c0_42 = arith.constant 0 : index
    %c0_43 = arith.constant 0 : index
    %49 = vector.load %arg17[%c0_42, %c0_43] : memref<1x32xf32, #tpu.memory_space<vmem>>, vector<1x32xf32>
    %50 = vector.broadcast %49 : vector<1x32xf32> to vector<192x32xf32>
    %51 = arith.addf %48, %50 : vector<192x32xf32>
    %cst_44 = arith.constant dense<0.000000e+00> : vector<192x192xf32>
    %52 = tpu.matmul %45, %46, %cst_44 {dimension_numbers = #tpu.dot_dimension_numbers<[1], [1], [0], [0], [0, 0, 1, 0], [], []>} : vector<192x32xf32>, vector<192x32xf32>, vector<192x192xf32> -> vector<192x192xf32>
    %cst_45 = arith.constant 0.176776692 : f32
    %53 = vector.broadcast %cst_45 : f32 to vector<192x192xf32>
    %54 = arith.mulf %52, %53 : vector<192x192xf32>
    %cst_46 = arith.constant dense<0xFF800000> : vector<192xf32>
    %55 = vector.multi_reduction <maximumf>, %54, %cst_46 [1] : vector<192x192xf32> to vector<192xf32>
    %56 = vector.shape_cast %55 : vector<192xf32> to vector<192x1xf32>
    %57 = vector.broadcast %56 : vector<192x1xf32> to vector<192x192xf32>
    %58 = arith.subf %54, %57 : vector<192x192xf32>
    %59 = math.exp %58 : vector<192x192xf32>
    %cst_47 = arith.constant dense<0.000000e+00> : vector<192xf32>
    %60 = vector.multi_reduction <add>, %59, %cst_47 [1] : vector<192x192xf32> to vector<192xf32>
    %61 = vector.shape_cast %60 : vector<192xf32> to vector<192x1xf32>
    %62 = tpu.reciprocal %61 {approx = true} : vector<192x1xf32> -> vector<192x1xf32>
    %63 = vector.broadcast %62 : vector<192x1xf32> to vector<192x192xf32>
    %64 = arith.mulf %59, %63 : vector<192x192xf32>
    %cst_48 = arith.constant dense<0.000000e+00> : vector<192x32xf32>
    %65 = tpu.matmul %64, %51, %cst_48 {dimension_numbers = #tpu.dot_dimension_numbers<[1], [0], [0], [1], [0, 0, 1, 1], [], []>} : vector<192x192xf32>, vector<192x32xf32>, vector<192x32xf32> -> vector<192x32xf32>
    %c0_49 = arith.constant 0 : index
    %c0_50 = arith.constant 0 : index
    %66 = vector.load %arg18[%c0_49, %c0_50] : memref<32x32xf32, #tpu.memory_space<vmem>>, vector<32x32xf32>
    %cst_51 = arith.constant dense<0.000000e+00> : vector<192x32xf32>
    %67 = tpu.matmul %65, %66, %cst_51 {dimension_numbers = #tpu.dot_dimension_numbers<[1], [0], [0], [1], [0, 0, 1, 1], [], []>} : vector<192x32xf32>, vector<32x32xf32>, vector<192x32xf32> -> vector<192x32xf32>
    %c0_52 = arith.constant 0 : index
    %c0_53 = arith.constant 0 : index
    %68 = vector.load %arg19[%c0_52, %c0_53] : memref<1x32xf32, #tpu.memory_space<vmem>>, vector<1x32xf32>
    %69 = vector.broadcast %68 : vector<1x32xf32> to vector<192x32xf32>
    %70 = arith.addf %67, %69 : vector<192x32xf32>
    %71 = arith.addf %36, %70 : vector<192x32xf32>
    %cst_54 = arith.constant dense<0.000000e+00> : vector<192xf32>
    %72 = vector.multi_reduction <add>, %71, %cst_54 [1] : vector<192x32xf32> to vector<192xf32>
    %73 = vector.shape_cast %72 : vector<192xf32> to vector<192x1xf32>
    %cst_55 = arith.constant 3.200000e+01 : f32
    %74 = vector.broadcast %cst_55 : f32 to vector<192x1xf32>
    %75 = arith.divf %73, %74 : vector<192x1xf32>
    %76 = vector.broadcast %75 : vector<192x1xf32> to vector<192x32xf32>
    %77 = arith.subf %71, %76 : vector<192x32xf32>
    %78 = arith.mulf %77, %77 : vector<192x32xf32>
    %cst_56 = arith.constant dense<0.000000e+00> : vector<192xf32>
    %79 = vector.multi_reduction <add>, %78, %cst_56 [1] : vector<192x32xf32> to vector<192xf32>
    %80 = vector.shape_cast %79 : vector<192xf32> to vector<192x1xf32>
    %cst_57 = arith.constant 3.200000e+01 : f32
    %81 = vector.broadcast %cst_57 : f32 to vector<192x1xf32>
    %82 = arith.divf %80, %81 : vector<192x1xf32>
    %cst_58 = arith.constant 9.99999974E-6 : f32
    %83 = vector.broadcast %cst_58 : f32 to vector<192x1xf32>
    %84 = arith.addf %82, %83 : vector<192x1xf32>
    %85 = math.rsqrt %84 : vector<192x1xf32>
    %86 = vector.broadcast %85 : vector<192x1xf32> to vector<192x32xf32>
    %87 = arith.mulf %77, %86 : vector<192x32xf32>
    %c0_59 = arith.constant 0 : index
    %c0_60 = arith.constant 0 : index
    %88 = vector.load %arg20[%c0_59, %c0_60] : memref<1x32xf32, #tpu.memory_space<vmem>>, vector<1x32xf32>
    %89 = vector.broadcast %88 : vector<1x32xf32> to vector<192x32xf32>
    %90 = arith.mulf %87, %89 : vector<192x32xf32>
    %c0_61 = arith.constant 0 : index
    %c0_62 = arith.constant 0 : index
    %91 = vector.load %arg21[%c0_61, %c0_62] : memref<1x32xf32, #tpu.memory_space<vmem>>, vector<1x32xf32>
    %92 = vector.broadcast %91 : vector<1x32xf32> to vector<192x32xf32>
    %93 = arith.addf %90, %92 : vector<192x32xf32>
    %c0_63 = arith.constant 0 : index
    %c0_64 = arith.constant 0 : index
    %94 = vector.load %arg22[%c0_63, %c0_64] : memref<32x64xf32, #tpu.memory_space<vmem>>, vector<32x64xf32>
    %cst_65 = arith.constant dense<0.000000e+00> : vector<192x64xf32>
    %95 = tpu.matmul %93, %94, %cst_65 {dimension_numbers = #tpu.dot_dimension_numbers<[1], [0], [0], [1], [0, 0, 1, 1], [], []>} : vector<192x32xf32>, vector<32x64xf32>, vector<192x64xf32> -> vector<192x64xf32>
    %c0_66 = arith.constant 0 : index
    %c0_67 = arith.constant 0 : index
    %96 = vector.load %arg23[%c0_66, %c0_67] : memref<1x64xf32, #tpu.memory_space<vmem>>, vector<1x64xf32>
    %97 = vector.broadcast %96 : vector<1x64xf32> to vector<192x64xf32>
    %98 = arith.addf %95, %97 : vector<192x64xf32>
    %cst_68 = arith.constant 0.000000e+00 : f32
    %99 = vector.broadcast %cst_68 : f32 to vector<192x64xf32>
    %100 = arith.maximumf %98, %99 : vector<192x64xf32>
    %c0_69 = arith.constant 0 : index
    %c0_70 = arith.constant 0 : index
    %101 = vector.load %arg24[%c0_69, %c0_70] : memref<64x32xf32, #tpu.memory_space<vmem>>, vector<64x32xf32>
    %cst_71 = arith.constant dense<0.000000e+00> : vector<192x32xf32>
    %102 = tpu.matmul %100, %101, %cst_71 {dimension_numbers = #tpu.dot_dimension_numbers<[1], [0], [0], [1], [0, 0, 1, 1], [], []>} : vector<192x64xf32>, vector<64x32xf32>, vector<192x32xf32> -> vector<192x32xf32>
    %c0_72 = arith.constant 0 : index
    %c0_73 = arith.constant 0 : index
    %103 = vector.load %arg25[%c0_72, %c0_73] : memref<1x32xf32, #tpu.memory_space<vmem>>, vector<1x32xf32>
    %104 = vector.broadcast %103 : vector<1x32xf32> to vector<192x32xf32>
    %105 = arith.addf %102, %104 : vector<192x32xf32>
    %106 = arith.addf %93, %105 : vector<192x32xf32>
    %cst_74 = arith.constant dense<0.000000e+00> : vector<192xf32>
    %107 = vector.multi_reduction <add>, %106, %cst_74 [1] : vector<192x32xf32> to vector<192xf32>
    %108 = vector.shape_cast %107 : vector<192xf32> to vector<192x1xf32>
    %cst_75 = arith.constant 3.200000e+01 : f32
    %109 = vector.broadcast %cst_75 : f32 to vector<192x1xf32>
    %110 = arith.divf %108, %109 : vector<192x1xf32>
    %111 = vector.broadcast %110 : vector<192x1xf32> to vector<192x32xf32>
    %112 = arith.subf %106, %111 : vector<192x32xf32>
    %113 = arith.mulf %112, %112 : vector<192x32xf32>
    %cst_76 = arith.constant dense<0.000000e+00> : vector<192xf32>
    %114 = vector.multi_reduction <add>, %113, %cst_76 [1] : vector<192x32xf32> to vector<192xf32>
    %115 = vector.shape_cast %114 : vector<192xf32> to vector<192x1xf32>
    %cst_77 = arith.constant 3.200000e+01 : f32
    %116 = vector.broadcast %cst_77 : f32 to vector<192x1xf32>
    %117 = arith.divf %115, %116 : vector<192x1xf32>
    %cst_78 = arith.constant 9.99999974E-6 : f32
    %118 = vector.broadcast %cst_78 : f32 to vector<192x1xf32>
    %119 = arith.addf %117, %118 : vector<192x1xf32>
    %120 = math.rsqrt %119 : vector<192x1xf32>
    %121 = vector.broadcast %120 : vector<192x1xf32> to vector<192x32xf32>
    %122 = arith.mulf %112, %121 : vector<192x32xf32>
    %c0_79 = arith.constant 0 : index
    %c0_80 = arith.constant 0 : index
    %123 = vector.load %arg26[%c0_79, %c0_80] : memref<1x32xf32, #tpu.memory_space<vmem>>, vector<1x32xf32>
    %124 = vector.broadcast %123 : vector<1x32xf32> to vector<192x32xf32>
    %125 = arith.mulf %122, %124 : vector<192x32xf32>
    %c0_81 = arith.constant 0 : index
    %c0_82 = arith.constant 0 : index
    %126 = vector.load %arg27[%c0_81, %c0_82] : memref<1x32xf32, #tpu.memory_space<vmem>>, vector<1x32xf32>
    %127 = vector.broadcast %126 : vector<1x32xf32> to vector<192x32xf32>
    %128 = arith.addf %125, %127 : vector<192x32xf32>
    %c0_83 = arith.constant 0 : index
    %c0_84 = arith.constant 0 : index
    %129 = vector.load %arg6[%c0_83, %c0_84] : memref<1x32xf32, #tpu.memory_space<vmem>>, vector<1x32xf32>
    %c0_85 = arith.constant 0 : index
    %c0_86 = arith.constant 0 : index
    %130 = vector.load %arg28[%c0_85, %c0_86] : memref<32x32xf32, #tpu.memory_space<vmem>>, vector<32x32xf32>
    %cst_87 = arith.constant dense<0.000000e+00> : vector<1x32xf32>
    %131 = tpu.matmul %129, %130, %cst_87 {dimension_numbers = #tpu.dot_dimension_numbers<[1], [0], [0], [1], [0, 0, 1, 1], [], []>} : vector<1x32xf32>, vector<32x32xf32>, vector<1x32xf32> -> vector<1x32xf32>
    %c0_88 = arith.constant 0 : index
    %c0_89 = arith.constant 0 : index
    %132 = vector.load %arg29[%c0_88, %c0_89] : memref<1x32xf32, #tpu.memory_space<vmem>>, vector<1x32xf32>
    %133 = arith.addf %131, %132 : vector<1x32xf32>
    %134 = arith.addf %128, %38 : vector<192x32xf32>
    %c0_90 = arith.constant 0 : index
    %c0_91 = arith.constant 0 : index
    %135 = vector.load %arg30[%c0_90, %c0_91] : memref<32x32xf32, #tpu.memory_space<vmem>>, vector<32x32xf32>
    %cst_92 = arith.constant dense<0.000000e+00> : vector<192x32xf32>
    %136 = tpu.matmul %134, %135, %cst_92 {dimension_numbers = #tpu.dot_dimension_numbers<[1], [0], [0], [1], [0, 0, 1, 1], [], []>} : vector<192x32xf32>, vector<32x32xf32>, vector<192x32xf32> -> vector<192x32xf32>
    %c0_93 = arith.constant 0 : index
    %c0_94 = arith.constant 0 : index
    %137 = vector.load %arg31[%c0_93, %c0_94] : memref<1x32xf32, #tpu.memory_space<vmem>>, vector<1x32xf32>
    %138 = vector.broadcast %137 : vector<1x32xf32> to vector<192x32xf32>
    %139 = arith.addf %136, %138 : vector<192x32xf32>
    %c0_95 = arith.constant 0 : index
    %c0_96 = arith.constant 0 : index
    %140 = vector.load %arg32[%c0_95, %c0_96] : memref<32x32xf32, #tpu.memory_space<vmem>>, vector<32x32xf32>
    %cst_97 = arith.constant dense<0.000000e+00> : vector<192x32xf32>
    %141 = tpu.matmul %128, %140, %cst_97 {dimension_numbers = #tpu.dot_dimension_numbers<[1], [0], [0], [1], [0, 0, 1, 1], [], []>} : vector<192x32xf32>, vector<32x32xf32>, vector<192x32xf32> -> vector<192x32xf32>
    %c0_98 = arith.constant 0 : index
    %c0_99 = arith.constant 0 : index
    %142 = vector.load %arg33[%c0_98, %c0_99] : memref<1x32xf32, #tpu.memory_space<vmem>>, vector<1x32xf32>
    %143 = vector.broadcast %142 : vector<1x32xf32> to vector<192x32xf32>
    %144 = arith.addf %141, %143 : vector<192x32xf32>
    %cst_100 = arith.constant dense<0.000000e+00> : vector<1x192xf32>
    %145 = tpu.matmul %133, %139, %cst_100 {dimension_numbers = #tpu.dot_dimension_numbers<[1], [1], [0], [0], [0, 0, 1, 0], [], []>} : vector<1x32xf32>, vector<192x32xf32>, vector<1x192xf32> -> vector<1x192xf32>
    %cst_101 = arith.constant 0.176776692 : f32
    %146 = vector.broadcast %cst_101 : f32 to vector<1x192xf32>
    %147 = arith.mulf %145, %146 : vector<1x192xf32>
    %cst_102 = arith.constant dense<0xFF800000> : vector<1xf32>
    %148 = vector.multi_reduction <maximumf>, %147, %cst_102 [1] : vector<1x192xf32> to vector<1xf32>
    %149 = vector.shape_cast %148 : vector<1xf32> to vector<1x1xf32>
    %150 = vector.broadcast %149 : vector<1x1xf32> to vector<1x192xf32>
    %151 = arith.subf %147, %150 : vector<1x192xf32>
    %152 = math.exp %151 : vector<1x192xf32>
    %cst_103 = arith.constant dense<0.000000e+00> : vector<1xf32>
    %153 = vector.multi_reduction <add>, %152, %cst_103 [1] : vector<1x192xf32> to vector<1xf32>
    %154 = vector.shape_cast %153 : vector<1xf32> to vector<1x1xf32>
    %155 = tpu.reciprocal %154 {approx = true} : vector<1x1xf32> -> vector<1x1xf32>
    %156 = vector.broadcast %155 : vector<1x1xf32> to vector<1x192xf32>
    %157 = arith.mulf %152, %156 : vector<1x192xf32>
    %cst_104 = arith.constant dense<0.000000e+00> : vector<1x32xf32>
    %158 = tpu.matmul %157, %144, %cst_104 {dimension_numbers = #tpu.dot_dimension_numbers<[1], [0], [0], [1], [0, 0, 1, 1], [], []>} : vector<1x192xf32>, vector<192x32xf32>, vector<1x32xf32> -> vector<1x32xf32>
    %c0_105 = arith.constant 0 : index
    %c0_106 = arith.constant 0 : index
    %159 = vector.load %arg34[%c0_105, %c0_106] : memref<32x32xf32, #tpu.memory_space<vmem>>, vector<32x32xf32>
    %cst_107 = arith.constant dense<0.000000e+00> : vector<1x32xf32>
    %160 = tpu.matmul %158, %159, %cst_107 {dimension_numbers = #tpu.dot_dimension_numbers<[1], [0], [0], [1], [0, 0, 1, 1], [], []>} : vector<1x32xf32>, vector<32x32xf32>, vector<1x32xf32> -> vector<1x32xf32>
    %c0_108 = arith.constant 0 : index
    %c0_109 = arith.constant 0 : index
    %161 = vector.load %arg35[%c0_108, %c0_109] : memref<1x32xf32, #tpu.memory_space<vmem>>, vector<1x32xf32>
    %162 = arith.addf %160, %161 : vector<1x32xf32>
    %cst_110 = arith.constant dense<0.000000e+00> : vector<1xf32>
    %163 = vector.multi_reduction <add>, %162, %cst_110 [1] : vector<1x32xf32> to vector<1xf32>
    %164 = vector.shape_cast %163 : vector<1xf32> to vector<1x1xf32>
    %cst_111 = arith.constant 3.200000e+01 : f32
    %165 = vector.broadcast %cst_111 : f32 to vector<1x1xf32>
    %166 = arith.divf %164, %165 : vector<1x1xf32>
    %167 = vector.broadcast %166 : vector<1x1xf32> to vector<1x32xf32>
    %168 = arith.subf %162, %167 : vector<1x32xf32>
    %169 = arith.mulf %168, %168 : vector<1x32xf32>
    %cst_112 = arith.constant dense<0.000000e+00> : vector<1xf32>
    %170 = vector.multi_reduction <add>, %169, %cst_112 [1] : vector<1x32xf32> to vector<1xf32>
    %171 = vector.shape_cast %170 : vector<1xf32> to vector<1x1xf32>
    %cst_113 = arith.constant 3.200000e+01 : f32
    %172 = vector.broadcast %cst_113 : f32 to vector<1x1xf32>
    %173 = arith.divf %171, %172 : vector<1x1xf32>
    %cst_114 = arith.constant 9.99999974E-6 : f32
    %174 = vector.broadcast %cst_114 : f32 to vector<1x1xf32>
    %175 = arith.addf %173, %174 : vector<1x1xf32>
    %176 = math.rsqrt %175 : vector<1x1xf32>
    %177 = vector.broadcast %176 : vector<1x1xf32> to vector<1x32xf32>
    %178 = arith.mulf %168, %177 : vector<1x32xf32>
    %c0_115 = arith.constant 0 : index
    %c0_116 = arith.constant 0 : index
    %179 = vector.load %arg36[%c0_115, %c0_116] : memref<1x32xf32, #tpu.memory_space<vmem>>, vector<1x32xf32>
    %180 = arith.mulf %178, %179 : vector<1x32xf32>
    %c0_117 = arith.constant 0 : index
    %c0_118 = arith.constant 0 : index
    %181 = vector.load %arg37[%c0_117, %c0_118] : memref<1x32xf32, #tpu.memory_space<vmem>>, vector<1x32xf32>
    %182 = arith.addf %180, %181 : vector<1x32xf32>
    %c0_119 = arith.constant 0 : index
    %c0_120 = arith.constant 0 : index
    %183 = vector.load %arg38[%c0_119, %c0_120] : memref<32x64xf32, #tpu.memory_space<vmem>>, vector<32x64xf32>
    %cst_121 = arith.constant dense<0.000000e+00> : vector<1x64xf32>
    %184 = tpu.matmul %182, %183, %cst_121 {dimension_numbers = #tpu.dot_dimension_numbers<[1], [0], [0], [1], [0, 0, 1, 1], [], []>} : vector<1x32xf32>, vector<32x64xf32>, vector<1x64xf32> -> vector<1x64xf32>
    %c0_122 = arith.constant 0 : index
    %c0_123 = arith.constant 0 : index
    %185 = vector.load %arg39[%c0_122, %c0_123] : memref<1x64xf32, #tpu.memory_space<vmem>>, vector<1x64xf32>
    %186 = arith.addf %184, %185 : vector<1x64xf32>
    %cst_124 = arith.constant 0.000000e+00 : f32
    %187 = vector.broadcast %cst_124 : f32 to vector<1x64xf32>
    %188 = arith.maximumf %186, %187 : vector<1x64xf32>
    %c0_125 = arith.constant 0 : index
    %c0_126 = arith.constant 0 : index
    %189 = vector.load %arg40[%c0_125, %c0_126] : memref<64x32xf32, #tpu.memory_space<vmem>>, vector<64x32xf32>
    %cst_127 = arith.constant dense<0.000000e+00> : vector<1x32xf32>
    %190 = tpu.matmul %188, %189, %cst_127 {dimension_numbers = #tpu.dot_dimension_numbers<[1], [0], [0], [1], [0, 0, 1, 1], [], []>} : vector<1x64xf32>, vector<64x32xf32>, vector<1x32xf32> -> vector<1x32xf32>
    %c0_128 = arith.constant 0 : index
    %c0_129 = arith.constant 0 : index
    %191 = vector.load %arg41[%c0_128, %c0_129] : memref<1x32xf32, #tpu.memory_space<vmem>>, vector<1x32xf32>
    %192 = arith.addf %190, %191 : vector<1x32xf32>
    %193 = arith.addf %182, %192 : vector<1x32xf32>
    %cst_130 = arith.constant dense<0.000000e+00> : vector<1xf32>
    %194 = vector.multi_reduction <add>, %193, %cst_130 [1] : vector<1x32xf32> to vector<1xf32>
    %195 = vector.shape_cast %194 : vector<1xf32> to vector<1x1xf32>
    %cst_131 = arith.constant 3.200000e+01 : f32
    %196 = vector.broadcast %cst_131 : f32 to vector<1x1xf32>
    %197 = arith.divf %195, %196 : vector<1x1xf32>
    %198 = vector.broadcast %197 : vector<1x1xf32> to vector<1x32xf32>
    %199 = arith.subf %193, %198 : vector<1x32xf32>
    %200 = arith.mulf %199, %199 : vector<1x32xf32>
    %cst_132 = arith.constant dense<0.000000e+00> : vector<1xf32>
    %201 = vector.multi_reduction <add>, %200, %cst_132 [1] : vector<1x32xf32> to vector<1xf32>
    %202 = vector.shape_cast %201 : vector<1xf32> to vector<1x1xf32>
    %cst_133 = arith.constant 3.200000e+01 : f32
    %203 = vector.broadcast %cst_133 : f32 to vector<1x1xf32>
    %204 = arith.divf %202, %203 : vector<1x1xf32>
    %cst_134 = arith.constant 9.99999974E-6 : f32
    %205 = vector.broadcast %cst_134 : f32 to vector<1x1xf32>
    %206 = arith.addf %204, %205 : vector<1x1xf32>
    %207 = math.rsqrt %206 : vector<1x1xf32>
    %208 = vector.broadcast %207 : vector<1x1xf32> to vector<1x32xf32>
    %209 = arith.mulf %199, %208 : vector<1x32xf32>
    %c0_135 = arith.constant 0 : index
    %c0_136 = arith.constant 0 : index
    %210 = vector.load %arg42[%c0_135, %c0_136] : memref<1x32xf32, #tpu.memory_space<vmem>>, vector<1x32xf32>
    %211 = arith.mulf %209, %210 : vector<1x32xf32>
    %c0_137 = arith.constant 0 : index
    %c0_138 = arith.constant 0 : index
    %212 = vector.load %arg43[%c0_137, %c0_138] : memref<1x32xf32, #tpu.memory_space<vmem>>, vector<1x32xf32>
    %213 = arith.addf %211, %212 : vector<1x32xf32>
    %c0_139 = arith.constant 0 : index
    %c0_140 = arith.constant 0 : index
    %c0_141 = arith.constant 0 : index
    %214 = vector.load %arg44[%c0_139, %c0_140, %c0_141] : memref<1x1x32xf32, #tpu.memory_space<vmem>>, vector<1x1x32xf32>
    %215 = vector.shape_cast %214 : vector<1x1x32xf32> to vector<1x32xf32>
    %216 = vector.shape_cast %213 : vector<1x32xf32> to vector<1x1x32xf32>
    tpu.vector_store %arg44[%c0_139, %c0_140, %c0_141], %216 {strides = array<i32>} : memref<1x1x32xf32, #tpu.memory_space<vmem>>, vector<1x1x32xf32>,
    %217 = vector.extract_strided_slice %128 {offsets = [128, 0], sizes = [64, 32], strides = [1, 1]} : vector<192x32xf32> to vector<64x32xf32>
    %c0_142 = arith.constant 0 : index
    %c0_143 = arith.constant 0 : index
    %c0_144 = arith.constant 0 : index
    %218 = vector.load %arg45[%c0_142, %c0_143, %c0_144] : memref<1x64x32xf32, #tpu.memory_space<vmem>>, vector<1x64x32xf32>
    %219 = vector.shape_cast %218 : vector<1x64x32xf32> to vector<64x32xf32>
    %220 = vector.shape_cast %217 : vector<64x32xf32> to vector<1x64x32xf32>
    tpu.vector_store %arg45[%c0_142, %c0_143, %c0_144], %220 {strides = array<i32>} : memref<1x64x32xf32, #tpu.memory_space<vmem>>, vector<1x64x32xf32>,
    return
  }
  func.func @transform_0(%arg0: i32) -> (i32, i32, i32) {
    %c0_i32 = arith.constant 0 : i32
    %c0_i32_0 = arith.constant 0 : i32
    %c0_i32_1 = arith.constant 0 : i32
    return %arg0, %c0_i32, %c0_i32_0 : i32, i32, i32
  }
  func.func @transform_1(%arg0: i32) -> (i32, i32, i32) {
    %c0_i32 = arith.constant 0 : i32
    %c0_i32_0 = arith.constant 0 : i32
    %c0_i32_1 = arith.constant 0 : i32
    return %arg0, %c0_i32, %c0_i32_0 : i32, i32, i32
  }
  func.func @transform_2(%arg0: i32) -> (i32, i32, i32) {
    %c0_i32 = arith.constant 0 : i32
    %c0_i32_0 = arith.constant 0 : i32
    %c0_i32_1 = arith.constant 0 : i32
    return %arg0, %c0_i32, %c0_i32_0 : i32, i32, i32
  }
  func.func @transform_3(%arg0: i32) -> (i32, i32, i32) {
    %c0_i32 = arith.constant 0 : i32
    %c0_i32_0 = arith.constant 0 : i32
    %c0_i32_1 = arith.constant 0 : i32
    return %arg0, %c0_i32, %c0_i32_0 : i32, i32, i32
  }
  func.func @transform_4(%arg0: i32) -> (i32, i32, i32) {
    %c0_i32 = arith.constant 0 : i32
    %c0_i32_0 = arith.constant 0 : i32
    %c0_i32_1 = arith.constant 0 : i32
    return %arg0, %c0_i32, %c0_i32_0 : i32, i32, i32
  }
  func.func @transform_5(%arg0: i32) -> (i32, i32) {
    %c0_i32 = arith.constant 0 : i32
    %c0_i32_0 = arith.constant 0 : i32
    %c0_i32_1 = arith.constant 0 : i32
    return %c0_i32, %c0_i32_0 : i32, i32
  }
  func.func @transform_6(%arg0: i32) -> (i32, i32) {
    %c0_i32 = arith.constant 0 : i32
    %c0_i32_0 = arith.constant 0 : i32
    %c0_i32_1 = arith.constant 0 : i32
    return %c0_i32, %c0_i32_0 : i32, i32
  }
  func.func @transform_7(%arg0: i32) -> (i32, i32) {
    %c0_i32 = arith.constant 0 : i32
    %c0_i32_0 = arith.constant 0 : i32
    %c0_i32_1 = arith.constant 0 : i32
    return %c0_i32, %c0_i32_0 : i32, i32
  }
  func.func @transform_8(%arg0: i32) -> (i32, i32) {
    %c0_i32 = arith.constant 0 : i32
    %c0_i32_0 = arith.constant 0 : i32
    %c0_i32_1 = arith.constant 0 : i32
    return %c0_i32, %c0_i32_0 : i32, i32
  }
  func.func @transform_9(%arg0: i32) -> (i32, i32) {
    %c0_i32 = arith.constant 0 : i32
    %c0_i32_0 = arith.constant 0 : i32
    %c0_i32_1 = arith.constant 0 : i32
    return %c0_i32, %c0_i32_0 : i32, i32
  }
  func.func @transform_10(%arg0: i32) -> (i32, i32) {
    %c0_i32 = arith.constant 0 : i32
    %c0_i32_0 = arith.constant 0 : i32
    %c0_i32_1 = arith.constant 0 : i32
    return %c0_i32, %c0_i32_0 : i32, i32
  }
  func.func @transform_11(%arg0: i32) -> (i32, i32) {
    %c0_i32 = arith.constant 0 : i32
    %c0_i32_0 = arith.constant 0 : i32
    %c0_i32_1 = arith.constant 0 : i32
    return %c0_i32, %c0_i32_0 : i32, i32
  }
  func.func @transform_12(%arg0: i32) -> (i32, i32) {
    %c0_i32 = arith.constant 0 : i32
    %c0_i32_0 = arith.constant 0 : i32
    %c0_i32_1 = arith.constant 0 : i32
    return %c0_i32, %c0_i32_0 : i32, i32
  }
  func.func @transform_13(%arg0: i32) -> (i32, i32) {
    %c0_i32 = arith.constant 0 : i32
    %c0_i32_0 = arith.constant 0 : i32
    %c0_i32_1 = arith.constant 0 : i32
    return %c0_i32, %c0_i32_0 : i32, i32
  }
  func.func @transform_14(%arg0: i32) -> (i32, i32) {
    %c0_i32 = arith.constant 0 : i32
    %c0_i32_0 = arith.constant 0 : i32
    %c0_i32_1 = arith.constant 0 : i32
    return %c0_i32, %c0_i32_0 : i32, i32
  }
  func.func @transform_15(%arg0: i32) -> (i32, i32) {
    %c0_i32 = arith.constant 0 : i32
    %c0_i32_0 = arith.constant 0 : i32
    %c0_i32_1 = arith.constant 0 : i32
    return %c0_i32, %c0_i32_0 : i32, i32
  }
  func.func @transform_16(%arg0: i32) -> (i32, i32) {
    %c0_i32 = arith.constant 0 : i32
    %c0_i32_0 = arith.constant 0 : i32
    %c0_i32_1 = arith.constant 0 : i32
    return %c0_i32, %c0_i32_0 : i32, i32
  }
  func.func @transform_17(%arg0: i32) -> (i32, i32) {
    %c0_i32 = arith.constant 0 : i32
    %c0_i32_0 = arith.constant 0 : i32
    %c0_i32_1 = arith.constant 0 : i32
    return %c0_i32, %c0_i32_0 : i32, i32
  }
  func.func @transform_18(%arg0: i32) -> (i32, i32) {
    %c0_i32 = arith.constant 0 : i32
    %c0_i32_0 = arith.constant 0 : i32
    %c0_i32_1 = arith.constant 0 : i32
    return %c0_i32, %c0_i32_0 : i32, i32
  }
  func.func @transform_19(%arg0: i32) -> (i32, i32) {
    %c0_i32 = arith.constant 0 : i32
    %c0_i32_0 = arith.constant 0 : i32
    %c0_i32_1 = arith.constant 0 : i32
    return %c0_i32, %c0_i32_0 : i32, i32
  }
  func.func @transform_20(%arg0: i32) -> (i32, i32) {
    %c0_i32 = arith.constant 0 : i32
    %c0_i32_0 = arith.constant 0 : i32
    %c0_i32_1 = arith.constant 0 : i32
    return %c0_i32, %c0_i32_0 : i32, i32
  }
  func.func @transform_21(%arg0: i32) -> (i32, i32) {
    %c0_i32 = arith.constant 0 : i32
    %c0_i32_0 = arith.constant 0 : i32
    %c0_i32_1 = arith.constant 0 : i32
    return %c0_i32, %c0_i32_0 : i32, i32
  }
  func.func @transform_22(%arg0: i32) -> (i32, i32) {
    %c0_i32 = arith.constant 0 : i32
    %c0_i32_0 = arith.constant 0 : i32
    %c0_i32_1 = arith.constant 0 : i32
    return %c0_i32, %c0_i32_0 : i32, i32
  }
  func.func @transform_23(%arg0: i32) -> (i32, i32) {
    %c0_i32 = arith.constant 0 : i32
    %c0_i32_0 = arith.constant 0 : i32
    %c0_i32_1 = arith.constant 0 : i32
    return %c0_i32, %c0_i32_0 : i32, i32
  }
  func.func @transform_24(%arg0: i32) -> (i32, i32) {
    %c0_i32 = arith.constant 0 : i32
    %c0_i32_0 = arith.constant 0 : i32
    %c0_i32_1 = arith.constant 0 : i32
    return %c0_i32, %c0_i32_0 : i32, i32
  }
  func.func @transform_25(%arg0: i32) -> (i32, i32) {
    %c0_i32 = arith.constant 0 : i32
    %c0_i32_0 = arith.constant 0 : i32
    %c0_i32_1 = arith.constant 0 : i32
    return %c0_i32, %c0_i32_0 : i32, i32
  }
  func.func @transform_26(%arg0: i32) -> (i32, i32) {
    %c0_i32 = arith.constant 0 : i32
    %c0_i32_0 = arith.constant 0 : i32
    %c0_i32_1 = arith.constant 0 : i32
    return %c0_i32, %c0_i32_0 : i32, i32
  }
  func.func @transform_27(%arg0: i32) -> (i32, i32) {
    %c0_i32 = arith.constant 0 : i32
    %c0_i32_0 = arith.constant 0 : i32
    %c0_i32_1 = arith.constant 0 : i32
    return %c0_i32, %c0_i32_0 : i32, i32
  }
  func.func @transform_28(%arg0: i32) -> (i32, i32) {
    %c0_i32 = arith.constant 0 : i32
    %c0_i32_0 = arith.constant 0 : i32
    %c0_i32_1 = arith.constant 0 : i32
    return %c0_i32, %c0_i32_0 : i32, i32
  }
  func.func @transform_29(%arg0: i32) -> (i32, i32) {
    %c0_i32 = arith.constant 0 : i32
    %c0_i32_0 = arith.constant 0 : i32
    %c0_i32_1 = arith.constant 0 : i32
    return %c0_i32, %c0_i32_0 : i32, i32
  }
  func.func @transform_30(%arg0: i32) -> (i32, i32) {
    %c0_i32 = arith.constant 0 : i32
    %c0_i32_0 = arith.constant 0 : i32
    %c0_i32_1 = arith.constant 0 : i32
    return %c0_i32, %c0_i32_0 : i32, i32
  }
  func.func @transform_31(%arg0: i32) -> (i32, i32) {
    %c0_i32 = arith.constant 0 : i32
    %c0_i32_0 = arith.constant 0 : i32
    %c0_i32_1 = arith.constant 0 : i32
    return %c0_i32, %c0_i32_0 : i32, i32
  }
  func.func @transform_32(%arg0: i32) -> (i32, i32) {
    %c0_i32 = arith.constant 0 : i32
    %c0_i32_0 = arith.constant 0 : i32
    %c0_i32_1 = arith.constant 0 : i32
    return %c0_i32, %c0_i32_0 : i32, i32
  }
  func.func @transform_33(%arg0: i32) -> (i32, i32) {
    %c0_i32 = arith.constant 0 : i32
    %c0_i32_0 = arith.constant 0 : i32
    %c0_i32_1 = arith.constant 0 : i32
    return %c0_i32, %c0_i32_0 : i32, i32
  }
  func.func @transform_34(%arg0: i32) -> (i32, i32) {
    %c0_i32 = arith.constant 0 : i32
    %c0_i32_0 = arith.constant 0 : i32
    %c0_i32_1 = arith.constant 0 : i32
    return %c0_i32, %c0_i32_0 : i32, i32
  }
  func.func @transform_35(%arg0: i32) -> (i32, i32) {
    %c0_i32 = arith.constant 0 : i32
    %c0_i32_0 = arith.constant 0 : i32
    %c0_i32_1 = arith.constant 0 : i32
    return %c0_i32, %c0_i32_0 : i32, i32
  }
  func.func @transform_36(%arg0: i32) -> (i32, i32) {
    %c0_i32 = arith.constant 0 : i32
    %c0_i32_0 = arith.constant 0 : i32
    %c0_i32_1 = arith.constant 0 : i32
    return %c0_i32, %c0_i32_0 : i32, i32
  }
  func.func @transform_37(%arg0: i32) -> (i32, i32) {
    %c0_i32 = arith.constant 0 : i32
    %c0_i32_0 = arith.constant 0 : i32
    %c0_i32_1 = arith.constant 0 : i32
    return %c0_i32, %c0_i32_0 : i32, i32
  }
  func.func @transform_38(%arg0: i32) -> (i32, i32) {
    %c0_i32 = arith.constant 0 : i32
    %c0_i32_0 = arith.constant 0 : i32
    %c0_i32_1 = arith.constant 0 : i32
    return %c0_i32, %c0_i32_0 : i32, i32
  }
  func.func @transform_39(%arg0: i32) -> (i32, i32) {
    %c0_i32 = arith.constant 0 : i32
    %c0_i32_0 = arith.constant 0 : i32
    %c0_i32_1 = arith.constant 0 : i32
    return %c0_i32, %c0_i32_0 : i32, i32
  }
  func.func @transform_40(%arg0: i32) -> (i32, i32) {
    %c0_i32 = arith.constant 0 : i32
    %c0_i32_0 = arith.constant 0 : i32
    %c0_i32_1 = arith.constant 0 : i32
    return %c0_i32, %c0_i32_0 : i32, i32
  }
  func.func @transform_41(%arg0: i32) -> (i32, i32) {
    %c0_i32 = arith.constant 0 : i32
    %c0_i32_0 = arith.constant 0 : i32
    %c0_i32_1 = arith.constant 0 : i32
    return %c0_i32, %c0_i32_0 : i32, i32
  }
  func.func @transform_42(%arg0: i32) -> (i32, i32) {
    %c0_i32 = arith.constant 0 : i32
    %c0_i32_0 = arith.constant 0 : i32
    %c0_i32_1 = arith.constant 0 : i32
    return %c0_i32, %c0_i32_0 : i32, i32
  }
  func.func @transform_43(%arg0: i32) -> (i32, i32, i32) {
    %c0_i32 = arith.constant 0 : i32
    %c0_i32_0 = arith.constant 0 : i32
    %c0_i32_1 = arith.constant 0 : i32
    return %arg0, %c0_i32, %c0_i32_0 : i32, i32, i32
  }
  func.func @transform_44(%arg0: i32) -> (i32, i32, i32) {
    %c0_i32 = arith.constant 0 : i32
    %c0_i32_0 = arith.constant 0 : i32
    %c0_i32_1 = arith.constant 0 : i32
    return %arg0, %c0_i32, %c0_i32_0 : i32, i32, i32
  }
}

</mosaic_0001>

<llo_original>
// kernel: filter_predictor_forward.1
$region0: #{filter_predictor_forward.1}
  #allocation0 [shape = 'u32[]', space=smem, size = 0x4, offset = 0x4, fixed_abs, tag = 'smem constant byte address 0x4 - core index']
  #allocation1 [shape = 'u32[144,128]{1,0:T(1,128)}', space=vmem, size = 0x12000, scoped, tag = 'internal scratch']
  %s0 = inlined_call_operand.smem [shape: u32[45], index: -1, kind: input, shape index: {}]
  %s1 = sld [smem:[%s0]]
  %s2 = scalar_lea.smem %s0, 1
  %s3 = sld [smem:[%s2]]
  %s4 = scalar_lea.smem %s0, 2
  %s5 = sld [smem:[%s4]]
  %s6 = scalar_lea.smem %s0, 3
  %s7 = sld [smem:[%s6]]
  %s8 = scalar_lea.smem %s0, 4
  %s9 = sld [smem:[%s8]]
  %s10 = scalar_lea.smem %s0, 5
  %s11 = sld [smem:[%s10]]
  %s12 = scalar_lea.smem %s0, 6
  %s13 = sld [smem:[%s12]]
  %s14 = scalar_lea.smem %s0, 7
  %s15 = sld [smem:[%s14]]
  %s16 = scalar_lea.smem %s0, 8
  %s17 = sld [smem:[%s16]]
  %s18 = scalar_lea.smem %s0, 9
  %s19 = sld [smem:[%s18]]
  %s20 = scalar_lea.smem %s0, 10
  %s21 = sld [smem:[%s20]]
  %s22 = scalar_lea.smem %s0, 11
  %s23 = sld [smem:[%s22]]
  %s24 = scalar_lea.smem %s0, 12
  %s25 = sld [smem:[%s24]]
  %s26 = scalar_lea.smem %s0, 13
  %s27 = sld [smem:[%s26]]
  %s28 = scalar_lea.smem %s0, 14
  %s29 = sld [smem:[%s28]]
  %s30 = scalar_lea.smem %s0, 15
  %s31 = sld [smem:[%s30]]
  %s32 = scalar_lea.smem %s0, 16
  %s33 = sld [smem:[%s32]]
  %s34 = scalar_lea.smem %s0, 17
  %s35 = sld [smem:[%s34]]
  %s36 = scalar_lea.smem %s0, 18
  %s37 = sld [smem:[%s36]]
  %s38 = scalar_lea.smem %s0, 19
  %s39 = sld [smem:[%s38]]
  %s40 = scalar_lea.smem %s0, 20
  %s41 = sld [smem:[%s40]]
  %s42 = scalar_lea.smem %s0, 21
  %s43 = sld [smem:[%s42]]
  %s44 = scalar_lea.smem %s0, 22
  %s45 = sld [smem:[%s44]]
  %s46 = scalar_lea.smem %s0, 23
  %s47 = sld [smem:[%s46]]
  %s48 = scalar_lea.smem %s0, 24
  %s49 = sld [smem:[%s48]]
  %s50 = scalar_lea.smem %s0, 25
  %s51 = sld [smem:[%s50]]
  %s52 = scalar_lea.smem %s0, 26
  %s53 = sld [smem:[%s52]]
  %s54 = scalar_lea.smem %s0, 27
  %s55 = sld [smem:[%s54]]
  %s56 = scalar_lea.smem %s0, 28
  %s57 = sld [smem:[%s56]]
  %s58 = scalar_lea.smem %s0, 29
  %s59 = sld [smem:[%s58]]
  %s60 = scalar_lea.smem %s0, 30
  %s61 = sld [smem:[%s60]]
  %s62 = scalar_lea.smem %s0, 31
  %s63 = sld [smem:[%s62]]
  %s64 = scalar_lea.smem %s0, 32
  %s65 = sld [smem:[%s64]]
  %s66 = scalar_lea.smem %s0, 33
  %s67 = sld [smem:[%s66]]
  %s68 = scalar_lea.smem %s0, 34
  %s69 = sld [smem:[%s68]]
  %s70 = scalar_lea.smem %s0, 35
  %s71 = sld [smem:[%s70]]
  %s72 = scalar_lea.smem %s0, 36
  %s73 = sld [smem:[%s72]]
  %s74 = scalar_lea.smem %s0, 37
  %s75 = sld [smem:[%s74]]
  %s76 = scalar_lea.smem %s0, 38
  %s77 = sld [smem:[%s76]]
  %s78 = scalar_lea.smem %s0, 39
  %s79 = sld [smem:[%s78]]
  %s80 = scalar_lea.smem %s0, 40
  %s81 = sld [smem:[%s80]]
  %s82 = scalar_lea.smem %s0, 41
  %s83 = sld [smem:[%s82]]
  %s84 = scalar_lea.smem %s0, 42
  %s85 = sld [smem:[%s84]]
  %s86 = scalar_lea.smem %s0, 43
  %s87 = sld [smem:[%s86]]
  %s88 = scalar_lea.smem %s0, 44
  %s89 = sld [smem:[%s88]]
  %90 = xla_tuple %s87, %s89
  %s91 = sld [smem:[#allocation0]]
  $region225: #{filter_predictor_forward.1} parent=0
    _
  %s93 = ssub.s32 1, %s91
  %s94 = scalar_select 0, %s93, %s91
  $region1: #{filter_predictor_forward.1} parent=0
    #allocation2 [shape = 'u8[512]{0}', space=vmem, size = 0x400, scoped, tag = 'input window, operand 5, single buffered']
    #allocation3 [shape = 's32[2]{0}', space=sflag, size = 0x8, scoped, tag = 'scoped memory for filter_predictor_forward.1']
    #allocation4 [shape = 's32[2]{0}', space=sflag, size = 0x8, scoped, tag = 'scoped memory for filter_predictor_forward.1']
    #allocation5 [shape = 'u8[512]{0}', space=vmem, size = 0x400, scoped, tag = 'input window, operand 6, single buffered']
    #allocation6 [shape = 's32[1]{0}', space=sflag, size = 0x4, scoped, tag = 'scoped memory for filter_predictor_forward.1']
    #allocation7 [shape = 'u8[16384]{0}', space=vmem, size = 0x4000, scoped, tag = 'input window, operand 11, single buffered']
    #allocation8 [shape = 'u8[65536]{0}', space=vmem, size = 0x10000, scoped, tag = 'output window, operand 1']
    %95 = vsyncpa [#allocation3], 0
    %96 = vsyncpa [#allocation6], 0
    %97 = vsyncpa [#allocation4], 0
    %s98 = scalar_lea.sflag [#allocation4], 1
    %99 = vsyncpa %s98, 0
    loop: start=0, step=1, limit=4
    $region2: #{filter_predictor_forward.1} parent=1 // loop_pre_header
      _
    $region3: #{filter_predictor_forward.1} parent=1 // loop_header
      %s101 = sphi 0, %s105
      %p102 = scmp.ge.s32.totalorder %s101, 4
      %s111 = sphi 0, %s113
      %s114 = sphi 0, %s111
      %s115 = sphi 0, %s114
      %s131 = sphi 0, %s115
      %s137 = sphi 0, %s139
      %s140 = sphi 0, %s137
      %s141 = sphi 0, %s140
      %s157 = sphi 0, %s141
      %s163 = sphi 0, %s165
      %s166 = sphi 0, %s163
      %s167 = sphi 0, %s166
      %s183 = sphi 0, %s167
      %s189 = sphi 0, %s191
      %s192 = sphi 0, %s189
      %s193 = sphi 0, %s192
      %s209 = sphi 0, %s193
      %s215 = sphi 0, %s217
      %s218 = sphi 0, %s215
      %s219 = sphi 0, %s218
      %s235 = sphi 0, %s219
      %s239 = sphi 0, %s239
      %s241 = sphi 0, %s239
      %s242 = sphi 0, %s241
      %s256 = sphi 0, %s242
      %s260 = sphi 0, %s260
      %s262 = sphi 0, %s260
      %s263 = sphi 0, %s262
      %s277 = sphi 0, %s263
      %s281 = sphi 0, %s281
      %s283 = sphi 0, %s281
      %s284 = sphi 0, %s283
      %s298 = sphi 0, %s284
      %s302 = sphi 0, %s302
      %s304 = sphi 0, %s302
      %s305 = sphi 0, %s304
      %s319 = sphi 0, %s305
      %s323 = sphi 0, %s323
      %s325 = sphi 0, %s323
      %s326 = sphi 0, %s325
      %s340 = sphi 0, %s326
      %s344 = sphi 0, %s344
      %s346 = sphi 0, %s344
      %s347 = sphi 0, %s346
      %s361 = sphi 0, %s347
      %s365 = sphi 0, %s365
      %s367 = sphi 0, %s365
      %s368 = sphi 0, %s367
      %s382 = sphi 0, %s368
      %s386 = sphi 0, %s386
      %s388 = sphi 0, %s386
      %s389 = sphi 0, %s388
      %s403 = sphi 0, %s389
      %s407 = sphi 0, %s407
      %s409 = sphi 0, %s407
      %s410 = sphi 0, %s409
      %s424 = sphi 0, %s410
      %s428 = sphi 0, %s428
      %s430 = sphi 0, %s428
      %s431 = sphi 0, %s430
      %s445 = sphi 0, %s431
      %s449 = sphi 0, %s449
      %s451 = sphi 0, %s449
      %s452 = sphi 0, %s451
      %s466 = sphi 0, %s452
      %s470 = sphi 0, %s470
      %s472 = sphi 0, %s470
      %s473 = sphi 0, %s472
      %s487 = sphi 0, %s473
      %s491 = sphi 0, %s491
      %s493 = sphi 0, %s491
      %s494 = sphi 0, %s493
      %s508 = sphi 0, %s494
      %s512 = sphi 0, %s512
      %s514 = sphi 0, %s512
      %s515 = sphi 0, %s514
      %s529 = sphi 0, %s515
      %s533 = sphi 0, %s533
      %s535 = sphi 0, %s533
      %s536 = sphi 0, %s535
      %s550 = sphi 0, %s536
      %s554 = sphi 0, %s554
      %s556 = sphi 0, %s554
      %s557 = sphi 0, %s556
      %s571 = sphi 0, %s557
      %s575 = sphi 0, %s575
      %s577 = sphi 0, %s575
      %s578 = sphi 0, %s577
      %s592 = sphi 0, %s578
      %s596 = sphi 0, %s596
      %s598 = sphi 0, %s596
      %s599 = sphi 0, %s598
      %s613 = sphi 0, %s599
      %s617 = sphi 0, %s617
      %s619 = sphi 0, %s617
      %s620 = sphi 0, %s619
      %s634 = sphi 0, %s620
      %s638 = sphi 0, %s638
      %s640 = sphi 0, %s638
      %s641 = sphi 0, %s640
      %s655 = sphi 0, %s641
      %s659 = sphi 0, %s659
      %s661 = sphi 0, %s659
      %s662 = sphi 0, %s661
      %s676 = sphi 0, %s662
      %s680 = sphi 0, %s680
      %s682 = sphi 0, %s680
      %s683 = sphi 0, %s682
      %s697 = sphi 0, %s683
      %s701 = sphi 0, %s701
      %s703 = sphi 0, %s701
      %s704 = sphi 0, %s703
      %s718 = sphi 0, %s704
      %s722 = sphi 0, %s722
      %s724 = sphi 0, %s722
      %s725 = sphi 0, %s724
      %s739 = sphi 0, %s725
      %s743 = sphi 0, %s743
      %s745 = sphi 0, %s743
      %s746 = sphi 0, %s745
      %s760 = sphi 0, %s746
      %s764 = sphi 0, %s764
      %s766 = sphi 0, %s764
      %s767 = sphi 0, %s766
      %s781 = sphi 0, %s767
      %s785 = sphi 0, %s785
      %s787 = sphi 0, %s785
      %s788 = sphi 0, %s787
      %s802 = sphi 0, %s788
      %s806 = sphi 0, %s806
      %s808 = sphi 0, %s806
      %s809 = sphi 0, %s808
      %s823 = sphi 0, %s809
      %s827 = sphi 0, %s827
      %s829 = sphi 0, %s827
      %s830 = sphi 0, %s829
      %s844 = sphi 0, %s830
      %s848 = sphi 0, %s848
      %s850 = sphi 0, %s848
      %s851 = sphi 0, %s850
      %s865 = sphi 0, %s851
      %s869 = sphi 0, %s869
      %s871 = sphi 0, %s869
      %s872 = sphi 0, %s871
      %s886 = sphi 0, %s872
      %s890 = sphi 0, %s890
      %s892 = sphi 0, %s890
      %s893 = sphi 0, %s892
      %s907 = sphi 0, %s893
      %s911 = sphi 0, %s911
      %s913 = sphi 0, %s911
      %s914 = sphi 0, %s913
      %s928 = sphi 0, %s914
      %s932 = sphi 0, %s932
      %s934 = sphi 0, %s932
      %s935 = sphi 0, %s934
      %s949 = sphi 0, %s935
      %s953 = sphi 0, %s953
      %s955 = sphi 0, %s953
      %s956 = sphi 0, %s955
      %s970 = sphi 0, %s956
      %s974 = sphi 0, %s974
      %s976 = sphi 0, %s974
      %s977 = sphi 0, %s976
      %s991 = sphi 0, %s977
      %s995 = sphi 0, %s995
      %s997 = sphi 0, %s995
      %s998 = sphi 0, %s997
      %s1012 = sphi 0, %s998
      %s1016 = sphi 0, %s1016
      %s1018 = sphi 0, %s1016
      %s1019 = sphi 0, %s1018
      %s1033 = sphi 0, %s1019
      %s1039 = sphi 0, %s1041
      %s1042 = sphi 0, %s1039
      %s1043 = sphi 0, %s1042
      %s1059 = sphi 0, %s1043
      %s1065 = sphi 0, %s1067
      %s1068 = sphi 0, %s1065
      %s1069 = sphi 0, %s1068
      %s1085 = sphi 0, %s1069
    $region4: #{filter_predictor_forward.1} parent=1 // loop_header_branch
      %104 = sbr.rel (%p102) target = $region8
    $region5: #{filter_predictor_forward.1} parent=1 // loop_body
      %s106 = ssub.s32 %s101, 1
      %s107 = ssub.s32 %s101, 2
      %s108 = sadd.s32 %s101, 1
      %s109 = ssub.s32 %s101, %s108
      %p110 = scmp.eq.s32.totalorder %s109, 0
      %s112 = sadd.s32 %s111, 1
      %s113 = scalar_select %p110, %s111, %s112
      %p116 = pneg %p110
      %p117 = scmp.eq.s32.totalorder %s101, 1
      %p118 = por %p116, %p117
      %p119 = scmp.ne.s32.totalorder %s111, %s114
      %p120 = scmp.eq.s32.totalorder %s101, 0
      %p121 = por %p119, %p120
      %p122 = scmp.ne.s32.totalorder %s111, %s114
      %p123 = scmp.eq.s32.totalorder %s106, 1
      %p124 = por %p122, %p123
      %p125 = scmp.ne.s32.totalorder %s114, %s115
      %p126 = scmp.eq.s32.totalorder %s106, 0
      %p127 = por %p125, %p126
      %p128 = scmp.ne.s32.totalorder %s114, %s115
      %p129 = scmp.eq.s32.totalorder %s107, 1
      %p130 = por %p128, %p129
      %p132 = scmp.ne.s32.totalorder %s115, %s131
      %p133 = scmp.eq.s32.totalorder %s107, 0
      %p134 = por %p132, %p133
      %s135 = ssub.s32 %s101, %s108
      %p136 = scmp.eq.s32.totalorder %s135, 0
      %s138 = sadd.s32 %s137, 1
      %s139 = scalar_select %p136, %s137, %s138
      %p142 = pneg %p136
      %p143 = scmp.eq.s32.totalorder %s101, 1
      %p144 = por %p142, %p143
      %p145 = scmp.ne.s32.totalorder %s137, %s140
      %p146 = scmp.eq.s32.totalorder %s101, 0
      %p147 = por %p145, %p146
      %p148 = scmp.ne.s32.totalorder %s137, %s140
      %p149 = scmp.eq.s32.totalorder %s106, 1
      %p150 = por %p148, %p149
      %p151 = scmp.ne.s32.totalorder %s140, %s141
      %p152 = scmp.eq.s32.totalorder %s106, 0
      %p153 = por %p151, %p152
      %p154 = scmp.ne.s32.totalorder %s140, %s141
      %p155 = scmp.eq.s32.totalorder %s107, 1
      %p156 = por %p154, %p155
      %p158 = scmp.ne.s32.totalorder %s141, %s157
      %p159 = scmp.eq.s32.totalorder %s107, 0
      %p160 = por %p158, %p159
      %s161 = ssub.s32 %s101, %s108
      %p162 = scmp.eq.s32.totalorder %s161, 0
      %s164 = sadd.s32 %s163, 1
      %s165 = scalar_select %p162, %s163, %s164
      %p168 = pneg %p162
      %p169 = scmp.eq.s32.totalorder %s101, 1
      %p170 = por %p168, %p169
      %p171 = scmp.ne.s32.totalorder %s163, %s166
      %p172 = scmp.eq.s32.totalorder %s101, 0
      %p173 = por %p171, %p172
      %p174 = scmp.ne.s32.totalorder %s163, %s166
      %p175 = scmp.eq.s32.totalorder %s106, 1
      %p176 = por %p174, %p175
      %p177 = scmp.ne.s32.totalorder %s166, %s167
      %p178 = scmp.eq.s32.totalorder %s106, 0
      %p179 = por %p177, %p178
      %p180 = scmp.ne.s32.totalorder %s166, %s167
      %p181 = scmp.eq.s32.totalorder %s107, 1
      %p182 = por %p180, %p181
      %p184 = scmp.ne.s32.totalorder %s167, %s183
      %p185 = scmp.eq.s32.totalorder %s107, 0
      %p186 = por %p184, %p185
      %s187 = ssub.s32 %s101, %s108
      %p188 = scmp.eq.s32.totalorder %s187, 0
      %s190 = sadd.s32 %s189, 1
      %s191 = scalar_select %p188, %s189, %s190
      %p194 = pneg %p188
      %p195 = scmp.eq.s32.totalorder %s101, 1
      %p196 = por %p194, %p195
      %p197 = scmp.ne.s32.totalorder %s189, %s192
      %p198 = scmp.eq.s32.totalorder %s101, 0
      %p199 = por %p197, %p198
      %p200 = scmp.ne.s32.totalorder %s189, %s192
      %p201 = scmp.eq.s32.totalorder %s106, 1
      %p202 = por %p200, %p201
      %p203 = scmp.ne.s32.totalorder %s192, %s193
      %p204 = scmp.eq.s32.totalorder %s106, 0
      %p205 = por %p203, %p204
      %p206 = scmp.ne.s32.totalorder %s192, %s193
      %p207 = scmp.eq.s32.totalorder %s107, 1
      %p208 = por %p206, %p207
      %p210 = scmp.ne.s32.totalorder %s193, %s209
      %p211 = scmp.eq.s32.totalorder %s107, 0
      %p212 = por %p210, %p211
      %s213 = ssub.s32 %s101, %s108
      %p214 = scmp.eq.s32.totalorder %s213, 0
      %s216 = sadd.s32 %s215, 1
      %s217 = scalar_select %p214, %s215, %s216
      %p220 = pneg %p214
      %p221 = scmp.eq.s32.totalorder %s101, 1
      %p222 = por %p220, %p221
      %p223 = scmp.ne.s32.totalorder %s215, %s218
      %p224 = scmp.eq.s32.totalorder %s101, 0
      %p225 = por %p223, %p224
      %p226 = scmp.ne.s32.totalorder %s215, %s218
      %p227 = scmp.eq.s32.totalorder %s106, 1
      %p228 = por %p226, %p227
      %p229 = scmp.ne.s32.totalorder %s218, %s219
      %p230 = scmp.eq.s32.totalorder %s106, 0
      %p231 = por %p229, %p230
      %p232 = scmp.ne.s32.totalorder %s218, %s219
      %p233 = scmp.eq.s32.totalorder %s107, 1
      %p234 = por %p232, %p233
      %p236 = scmp.ne.s32.totalorder %s219, %s235
      %p237 = scmp.eq.s32.totalorder %s107, 0
      %p238 = por %p236, %p237
      %s240 = sadd.s32 %s239, 1
      %p243 = scmp.eq.s32.totalorder %s101, 1
      %p244 = scmp.ne.s32.totalorder %s239, %s241
      %p245 = scmp.eq.s32.totalorder %s101, 0
      %p246 = por %p244, %p245
      %p247 = scmp.ne.s32.totalorder %s239, %s241
      %p248 = scmp.eq.s32.totalorder %s106, 1
      %p249 = por %p247, %p248
      %p250 = scmp.ne.s32.totalorder %s241, %s242
      %p251 = scmp.eq.s32.totalorder %s106, 0
      %p252 = por %p250, %p251
      %p253 = scmp.ne.s32.totalorder %s241, %s242
      %p254 = scmp.eq.s32.totalorder %s107, 1
      %p255 = por %p253, %p254
      %p257 = scmp.ne.s32.totalorder %s242, %s256
      %p258 = scmp.eq.s32.totalorder %s107, 0
      %p259 = por %p257, %p258
      %s261 = sadd.s32 %s260, 1
      %p264 = scmp.eq.s32.totalorder %s101, 1
      %p265 = scmp.ne.s32.totalorder %s260, %s262
      %p266 = scmp.eq.s32.totalorder %s101, 0
      %p267 = por %p265, %p266
      %p268 = scmp.ne.s32.totalorder %s260, %s262
      %p269 = scmp.eq.s32.totalorder %s106, 1
      %p270 = por %p268, %p269
      %p271 = scmp.ne.s32.totalorder %s262, %s263
      %p272 = scmp.eq.s32.totalorder %s106, 0
      %p273 = por %p271, %p272
      %p274 = scmp.ne.s32.totalorder %s262, %s263
      %p275 = scmp.eq.s32.totalorder %s107, 1
      %p276 = por %p274, %p275
      %p278 = scmp.ne.s32.totalorder %s263, %s277
      %p279 = scmp.eq.s32.totalorder %s107, 0
      %p280 = por %p278, %p279
      %s282 = sadd.s32 %s281, 1
      %p285 = scmp.eq.s32.totalorder %s101, 1
      %p286 = scmp.ne.s32.totalorder %s281, %s283
      %p287 = scmp.eq.s32.totalorder %s101, 0
      %p288 = por %p286, %p287
      %p289 = scmp.ne.s32.totalorder %s281, %s283
      %p290 = scmp.eq.s32.totalorder %s106, 1
      %p291 = por %p289, %p290
      %p292 = scmp.ne.s32.totalorder %s283, %s284
      %p293 = scmp.eq.s32.totalorder %s106, 0
      %p294 = por %p292, %p293
      %p295 = scmp.ne.s32.totalorder %s283, %s284
      %p296 = scmp.eq.s32.totalorder %s107, 1
      %p297 = por %p295, %p296
      %p299 = scmp.ne.s32.totalorder %s284, %s298
      %p300 = scmp.eq.s32.totalorder %s107, 0
      %p301 = por %p299, %p300
      %s303 = sadd.s32 %s302, 1
      %p306 = scmp.eq.s32.totalorder %s101, 1
      %p307 = scmp.ne.s32.totalorder %s302, %s304
      %p308 = scmp.eq.s32.totalorder %s101, 0
      %p309 = por %p307, %p308
      %p310 = scmp.ne.s32.totalorder %s302, %s304
      %p311 = scmp.eq.s32.totalorder %s106, 1
      %p312 = por %p310, %p311
      %p313 = scmp.ne.s32.totalorder %s304, %s305
      %p314 = scmp.eq.s32.totalorder %s106, 0
      %p315 = por %p313, %p314
      %p316 = scmp.ne.s32.totalorder %s304, %s305
      %p317 = scmp.eq.s32.totalorder %s107, 1
      %p318 = por %p316, %p317
      %p320 = scmp.ne.s32.totalorder %s305, %s319
      %p321 = scmp.eq.s32.totalorder %s107, 0
      %p322 = por %p320, %p321
      %s324 = sadd.s32 %s323, 1
      %p327 = scmp.eq.s32.totalorder %s101, 1
      %p328 = scmp.ne.s32.totalorder %s323, %s325
      %p329 = scmp.eq.s32.totalorder %s101, 0
      %p330 = por %p328, %p329
      %p331 = scmp.ne.s32.totalorder %s323, %s325
      %p332 = scmp.eq.s32.totalorder %s106, 1
      %p333 = por %p331, %p332
      %p334 = scmp.ne.s32.totalorder %s325, %s326
      %p335 = scmp.eq.s32.totalorder %s106, 0
      %p336 = por %p334, %p335
      %p337 = scmp.ne.s32.totalorder %s325, %s326
      %p338 = scmp.eq.s32.totalorder %s107, 1
      %p339 = por %p337, %p338
      %p341 = scmp.ne.s32.totalorder %s326, %s340
      %p342 = scmp.eq.s32.totalorder %s107, 0
      %p343 = por %p341, %p342
      %s345 = sadd.s32 %s344, 1
      %p348 = scmp.eq.s32.totalorder %s101, 1
      %p349 = scmp.ne.s32.totalorder %s344, %s346
      %p350 = scmp.eq.s32.totalorder %s101, 0
      %p351 = por %p349, %p350
      %p352 = scmp.ne.s32.totalorder %s344, %s346
      %p353 = scmp.eq.s32.totalorder %s106, 1
      %p354 = por %p352, %p353
      %p355 = scmp.ne.s32.totalorder %s346, %s347
      %p356 = scmp.eq.s32.totalorder %s106, 0
      %p357 = por %p355, %p356
      %p358 = scmp.ne.s32.totalorder %s346, %s347
      %p359 = scmp.eq.s32.totalorder %s107, 1
      %p360 = por %p358, %p359
      %p362 = scmp.ne.s32.totalorder %s347, %s361
      %p363 = scmp.eq.s32.totalorder %s107, 0
      %p364 = por %p362, %p363
      %s366 = sadd.s32 %s365, 1
      %p369 = scmp.eq.s32.totalorder %s101, 1
      %p370 = scmp.ne.s32.totalorder %s365, %s367
      %p371 = scmp.eq.s32.totalorder %s101, 0
      %p372 = por %p370, %p371
      %p373 = scmp.ne.s32.totalorder %s365, %s367
      %p374 = scmp.eq.s32.totalorder %s106, 1
      %p375 = por %p373, %p374
      %p376 = scmp.ne.s32.totalorder %s367, %s368
      %p377 = scmp.eq.s32.totalorder %s106, 0
      %p378 = por %p376, %p377
      %p379 = scmp.ne.s32.totalorder %s367, %s368
      %p380 = scmp.eq.s32.totalorder %s107, 1
      %p381 = por %p379, %p380
      %p383 = scmp.ne.s32.totalorder %s368, %s382
      %p384 = scmp.eq.s32.totalorder %s107, 0
      %p385 = por %p383, %p384
      %s387 = sadd.s32 %s386, 1
      %p390 = scmp.eq.s32.totalorder %s101, 1
      %p391 = scmp.ne.s32.totalorder %s386, %s388
      %p392 = scmp.eq.s32.totalorder %s101, 0
      %p393 = por %p391, %p392
      %p394 = scmp.ne.s32.totalorder %s386, %s388
      %p395 = scmp.eq.s32.totalorder %s106, 1
      %p396 = por %p394, %p395
      %p397 = scmp.ne.s32.totalorder %s388, %s389
      %p398 = scmp.eq.s32.totalorder %s106, 0
      %p399 = por %p397, %p398
      %p400 = scmp.ne.s32.totalorder %s388, %s389
      %p401 = scmp.eq.s32.totalorder %s107, 1
      %p402 = por %p400, %p401
      %p404 = scmp.ne.s32.totalorder %s389, %s403
      %p405 = scmp.eq.s32.totalorder %s107, 0
      %p406 = por %p404, %p405
      %s408 = sadd.s32 %s407, 1
      %p411 = scmp.eq.s32.totalorder %s101, 1
      %p412 = scmp.ne.s32.totalorder %s407, %s409
      %p413 = scmp.eq.s32.totalorder %s101, 0
      %p414 = por %p412, %p413
      %p415 = scmp.ne.s32.totalorder %s407, %s409
      %p416 = scmp.eq.s32.totalorder %s106, 1
      %p417 = por %p415, %p416
      %p418 = scmp.ne.s32.totalorder %s409, %s410
      %p419 = scmp.eq.s32.totalorder %s106, 0
      %p420 = por %p418, %p419
      %p421 = scmp.ne.s32.totalorder %s409, %s410
      %p422 = scmp.eq.s32.totalorder %s107, 1
      %p423 = por %p421, %p422
      %p425 = scmp.ne.s32.totalorder %s410, %s424
      %p426 = scmp.eq.s32.totalorder %s107, 0
      %p427 = por %p425, %p426
      %s429 = sadd.s32 %s428, 1
      %p432 = scmp.eq.s32.totalorder %s101, 1
      %p433 = scmp.ne.s32.totalorder %s428, %s430
      %p434 = scmp.eq.s32.totalorder %s101, 0
      %p435 = por %p433, %p434
      %p436 = scmp.ne.s32.totalorder %s428, %s430
      %p437 = scmp.eq.s32.totalorder %s106, 1
      %p438 = por %p436, %p437
      %p439 = scmp.ne.s32.totalorder %s430, %s431
      %p440 = scmp.eq.s32.totalorder %s106, 0
      %p441 = por %p439, %p440
      %p442 = scmp.ne.s32.totalorder %s430, %s431
      %p443 = scmp.eq.s32.totalorder %s107, 1
      %p444 = por %p442, %p443
      %p446 = scmp.ne.s32.totalorder %s431, %s445
      %p447 = scmp.eq.s32.totalorder %s107, 0
      %p448 = por %p446, %p447
      %s450 = sadd.s32 %s449, 1
      %p453 = scmp.eq.s32.totalorder %s101, 1
      %p454 = scmp.ne.s32.totalorder %s449, %s451
      %p455 = scmp.eq.s32.totalorder %s101, 0
      %p456 = por %p454, %p455
      %p457 = scmp.ne.s32.totalorder %s449, %s451
      %p458 = scmp.eq.s32.totalorder %s106, 1
      %p459 = por %p457, %p458
      %p460 = scmp.ne.s32.totalorder %s451, %s452
      %p461 = scmp.eq.s32.totalorder %s106, 0
      %p462 = por %p460, %p461
      %p463 = scmp.ne.s32.totalorder %s451, %s452
      %p464 = scmp.eq.s32.totalorder %s107, 1
      %p465 = por %p463, %p464
      %p467 = scmp.ne.s32.totalorder %s452, %s466
      %p468 = scmp.eq.s32.totalorder %s107, 0
      %p469 = por %p467, %p468
      %s471 = sadd.s32 %s470, 1
      %p474 = scmp.eq.s32.totalorder %s101, 1
      %p475 = scmp.ne.s32.totalorder %s470, %s472
      %p476 = scmp.eq.s32.totalorder %s101, 0
      %p477 = por %p475, %p476
      %p478 = scmp.ne.s32.totalorder %s470, %s472
      %p479 = scmp.eq.s32.totalorder %s106, 1
      %p480 = por %p478, %p479
      %p481 = scmp.ne.s32.totalorder %s472, %s473
      %p482 = scmp.eq.s32.totalorder %s106, 0
      %p483 = por %p481, %p482
      %p484 = scmp.ne.s32.totalorder %s472, %s473
      %p485 = scmp.eq.s32.totalorder %s107, 1
      %p486 = por %p484, %p485
      %p488 = scmp.ne.s32.totalorder %s473, %s487
      %p489 = scmp.eq.s32.totalorder %s107, 0
      %p490 = por %p488, %p489
      %s492 = sadd.s32 %s491, 1
      %p495 = scmp.eq.s32.totalorder %s101, 1
      %p496 = scmp.ne.s32.totalorder %s491, %s493
      %p497 = scmp.eq.s32.totalorder %s101, 0
      %p498 = por %p496, %p497
      %p499 = scmp.ne.s32.totalorder %s491, %s493
      %p500 = scmp.eq.s32.totalorder %s106, 1
      %p501 = por %p499, %p500
      %p502 = scmp.ne.s32.totalorder %s493, %s494
      %p503 = scmp.eq.s32.totalorder %s106, 0
      %p504 = por %p502, %p503
      %p505 = scmp.ne.s32.totalorder %s493, %s494
      %p506 = scmp.eq.s32.totalorder %s107, 1
      %p507 = por %p505, %p506
      %p509 = scmp.ne.s32.totalorder %s494, %s508
      %p510 = scmp.eq.s32.totalorder %s107, 0
      %p511 = por %p509, %p510
      %s513 = sadd.s32 %s512, 1
      %p516 = scmp.eq.s32.totalorder %s101, 1
      %p517 = scmp.ne.s32.totalorder %s512, %s514
      %p518 = scmp.eq.s32.totalorder %s101, 0
      %p519 = por %p517, %p518
      %p520 = scmp.ne.s32.totalorder %s512, %s514
      %p521 = scmp.eq.s32.totalorder %s106, 1
      %p522 = por %p520, %p521
      %p523 = scmp.ne.s32.totalorder %s514, %s515
      %p524 = scmp.eq.s32.totalorder %s106, 0
      %p525 = por %p523, %p524
      %p526 = scmp.ne.s32.totalorder %s514, %s515
      %p527 = scmp.eq.s32.totalorder %s107, 1
      %p528 = por %p526, %p527
      %p530 = scmp.ne.s32.totalorder %s515, %s529
      %p531 = scmp.eq.s32.totalorder %s107, 0
      %p532 = por %p530, %p531
      %s534 = sadd.s32 %s533, 1
      %p537 = scmp.eq.s32.totalorder %s101, 1
      %p538 = scmp.ne.s32.totalorder %s533, %s535
      %p539 = scmp.eq.s32.totalorder %s101, 0
      %p540 = por %p538, %p539
      %p541 = scmp.ne.s32.totalorder %s533, %s535
      %p542 = scmp.eq.s32.totalorder %s106, 1
      %p543 = por %p541, %p542
      %p544 = scmp.ne.s32.totalorder %s535, %s536
      %p545 = scmp.eq.s32.totalorder %s106, 0
      %p546 = por %p544, %p545
      %p547 = scmp.ne.s32.totalorder %s535, %s536
      %p548 = scmp.eq.s32.totalorder %s107, 1
      %p549 = por %p547, %p548
      %p551 = scmp.ne.s32.totalorder %s536, %s550
      %p552 = scmp.eq.s32.totalorder %s107, 0
      %p553 = por %p551, %p552
      %s555 = sadd.s32 %s554, 1
      %p558 = scmp.eq.s32.totalorder %s101, 1
      %p559 = scmp.ne.s32.totalorder %s554, %s556
      %p560 = scmp.eq.s32.totalorder %s101, 0
      %p561 = por %p559, %p560
      %p562 = scmp.ne.s32.totalorder %s554, %s556
      %p563 = scmp.eq.s32.totalorder %s106, 1
      %p564 = por %p562, %p563
      %p565 = scmp.ne.s32.totalorder %s556, %s557
      %p566 = scmp.eq.s32.totalorder %s106, 0
      %p567 = por %p565, %p566
      %p568 = scmp.ne.s32.totalorder %s556, %s557
      %p569 = scmp.eq.s32.totalorder %s107, 1
      %p570 = por %p568, %p569
      %p572 = scmp.ne.s32.totalorder %s557, %s571
      %p573 = scmp.eq.s32.totalorder %s107, 0
      %p574 = por %p572, %p573
      %s576 = sadd.s32 %s575, 1
      %p579 = scmp.eq.s32.totalorder %s101, 1
      %p580 = scmp.ne.s32.totalorder %s575, %s577
      %p581 = scmp.eq.s32.totalorder %s101, 0
      %p582 = por %p580, %p581
      %p583 = scmp.ne.s32.totalorder %s575, %s577
      %p584 = scmp.eq.s32.totalorder %s106, 1
      %p585 = por %p583, %p584
      %p586 = scmp.ne.s32.totalorder %s577, %s578
      %p587 = scmp.eq.s32.totalorder %s106, 0
      %p588 = por %p586, %p587
      %p589 = scmp.ne.s32.totalorder %s577, %s578
      %p590 = scmp.eq.s32.totalorder %s107, 1
      %p591 = por %p589, %p590
      %p593 = scmp.ne.s32.totalorder %s578, %s592
      %p594 = scmp.eq.s32.totalorder %s107, 0
      %p595 = por %p593, %p594
      %s597 = sadd.s32 %s596, 1
      %p600 = scmp.eq.s32.totalorder %s101, 1
      %p601 = scmp.ne.s32.totalorder %s596, %s598
      %p602 = scmp.eq.s32.totalorder %s101, 0
      %p603 = por %p601, %p602
      %p604 = scmp.ne.s32.totalorder %s596, %s598
      %p605 = scmp.eq.s32.totalorder %s106, 1
      %p606 = por %p604, %p605
      %p607 = scmp.ne.s32.totalorder %s598, %s599
      %p608 = scmp.eq.s32.totalorder %s106, 0
      %p609 = por %p607, %p608
      %p610 = scmp.ne.s32.totalorder %s598, %s599
      %p611 = scmp.eq.s32.totalorder %s107, 1
      %p612 = por %p610, %p611
      %p614 = scmp.ne.s32.totalorder %s599, %s613
      %p615 = scmp.eq.s32.totalorder %s107, 0
      %p616 = por %p614, %p615
      %s618 = sadd.s32 %s617, 1
      %p621 = scmp.eq.s32.totalorder %s101, 1
      %p622 = scmp.ne.s32.totalorder %s617, %s619
      %p623 = scmp.eq.s32.totalorder %s101, 0
      %p624 = por %p622, %p623
      %p625 = scmp.ne.s32.totalorder %s617, %s619
      %p626 = scmp.eq.s32.totalorder %s106, 1
      %p627 = por %p625, %p626
      %p628 = scmp.ne.s32.totalorder %s619, %s620
      %p629 = scmp.eq.s32.totalorder %s106, 0
      %p630 = por %p628, %p629
      %p631 = scmp.ne.s32.totalorder %s619, %s620
      %p632 = scmp.eq.s32.totalorder %s107, 1
      %p633 = por %p631, %p632
      %p635 = scmp.ne.s32.totalorder %s620, %s634
      %p636 = scmp.eq.s32.totalorder %s107, 0
      %p637 = por %p635, %p636
      %s639 = sadd.s32 %s638, 1
      %p642 = scmp.eq.s32.totalorder %s101, 1
      %p643 = scmp.ne.s32.totalorder %s638, %s640
      %p644 = scmp.eq.s32.totalorder %s101, 0
      %p645 = por %p643, %p644
      %p646 = scmp.ne.s32.totalorder %s638, %s640
      %p647 = scmp.eq.s32.totalorder %s106, 1
      %p648 = por %p646, %p647
      %p649 = scmp.ne.s32.totalorder %s640, %s641
      %p650 = scmp.eq.s32.totalorder %s106, 0
      %p651 = por %p649, %p650
      %p652 = scmp.ne.s32.totalorder %s640, %s641
      %p653 = scmp.eq.s32.totalorder %s107, 1
      %p654 = por %p652, %p653
      %p656 = scmp.ne.s32.totalorder %s641, %s655
      %p657 = scmp.eq.s32.totalorder %s107, 0
      %p658 = por %p656, %p657
      %s660 = sadd.s32 %s659, 1
      %p663 = scmp.eq.s32.totalorder %s101, 1
      %p664 = scmp.ne.s32.totalorder %s659, %s661
      %p665 = scmp.eq.s32.totalorder %s101, 0
      %p666 = por %p664, %p665
      %p667 = scmp.ne.s32.totalorder %s659, %s661
      %p668 = scmp.eq.s32.totalorder %s106, 1
      %p669 = por %p667, %p668
      %p670 = scmp.ne.s32.totalorder %s661, %s662
      %p671 = scmp.eq.s32.totalorder %s106, 0
      %p672 = por %p670, %p671
      %p673 = scmp.ne.s32.totalorder %s661, %s662
      %p674 = scmp.eq.s32.totalorder %s107, 1
      %p675 = por %p673, %p674
      %p677 = scmp.ne.s32.totalorder %s662, %s676
      %p678 = scmp.eq.s32.totalorder %s107, 0
      %p679 = por %p677, %p678
      %s681 = sadd.s32 %s680, 1
      %p684 = scmp.eq.s32.totalorder %s101, 1
      %p685 = scmp.ne.s32.totalorder %s680, %s682
      %p686 = scmp.eq.s32.totalorder %s101, 0
      %p687 = por %p685, %p686
      %p688 = scmp.ne.s32.totalorder %s680, %s682
      %p689 = scmp.eq.s32.totalorder %s106, 1
      %p690 = por %p688, %p689
      %p691 = scmp.ne.s32.totalorder %s682, %s683
      %p692 = scmp.eq.s32.totalorder %s106, 0
      %p693 = por %p691, %p692
      %p694 = scmp.ne.s32.totalorder %s682, %s683
      %p695 = scmp.eq.s32.totalorder %s107, 1
      %p696 = por %p694, %p695
      %p698 = scmp.ne.s32.totalorder %s683, %s697
      %p699 = scmp.eq.s32.totalorder %s107, 0
      %p700 = por %p698, %p699
      %s702 = sadd.s32 %s701, 1
      %p705 = scmp.eq.s32.totalorder %s101, 1
      %p706 = scmp.ne.s32.totalorder %s701, %s703
      %p707 = scmp.eq.s32.totalorder %s101, 0
      %p708 = por %p706, %p707
      %p709 = scmp.ne.s32.totalorder %s701, %s703
      %p710 = scmp.eq.s32.totalorder %s106, 1
      %p711 = por %p709, %p710
      %p712 = scmp.ne.s32.totalorder %s703, %s704
      %p713 = scmp.eq.s32.totalorder %s106, 0
      %p714 = por %p712, %p713
      %p715 = scmp.ne.s32.totalorder %s703, %s704
      %p716 = scmp.eq.s32.totalorder %s107, 1
      %p717 = por %p715, %p716
      %p719 = scmp.ne.s32.totalorder %s704, %s718
      %p720 = scmp.eq.s32.totalorder %s107, 0
      %p721 = por %p719, %p720
      %s723 = sadd.s32 %s722, 1
      %p726 = scmp.eq.s32.totalorder %s101, 1
      %p727 = scmp.ne.s32.totalorder %s722, %s724
      %p728 = scmp.eq.s32.totalorder %s101, 0
      %p729 = por %p727, %p728
      %p730 = scmp.ne.s32.totalorder %s722, %s724
      %p731 = scmp.eq.s32.totalorder %s106, 1
      %p732 = por %p730, %p731
      %p733 = scmp.ne.s32.totalorder %s724, %s725
      %p734 = scmp.eq.s32.totalorder %s106, 0
      %p735 = por %p733, %p734
      %p736 = scmp.ne.s32.totalorder %s724, %s725
      %p737 = scmp.eq.s32.totalorder %s107, 1
      %p738 = por %p736, %p737
      %p740 = scmp.ne.s32.totalorder %s725, %s739
      %p741 = scmp.eq.s32.totalorder %s107, 0
      %p742 = por %p740, %p741
      %s744 = sadd.s32 %s743, 1
      %p747 = scmp.eq.s32.totalorder %s101, 1
      %p748 = scmp.ne.s32.totalorder %s743, %s745
      %p749 = scmp.eq.s32.totalorder %s101, 0
      %p750 = por %p748, %p749
      %p751 = scmp.ne.s32.totalorder %s743, %s745
      %p752 = scmp.eq.s32.totalorder %s106, 1
      %p753 = por %p751, %p752
      %p754 = scmp.ne.s32.totalorder %s745, %s746
      %p755 = scmp.eq.s32.totalorder %s106, 0
      %p756 = por %p754, %p755
      %p757 = scmp.ne.s32.totalorder %s745, %s746
      %p758 = scmp.eq.s32.totalorder %s107, 1
      %p759 = por %p757, %p758
      %p761 = scmp.ne.s32.totalorder %s746, %s760
      %p762 = scmp.eq.s32.totalorder %s107, 0
      %p763 = por %p761, %p762
      %s765 = sadd.s32 %s764, 1
      %p768 = scmp.eq.s32.totalorder %s101, 1
      %p769 = scmp.ne.s32.totalorder %s764, %s766
      %p770 = scmp.eq.s32.totalorder %s101, 0
      %p771 = por %p769, %p770
      %p772 = scmp.ne.s32.totalorder %s764, %s766
      %p773 = scmp.eq.s32.totalorder %s106, 1
      %p774 = por %p772, %p773
      %p775 = scmp.ne.s32.totalorder %s766, %s767
      %p776 = scmp.eq.s32.totalorder %s106, 0
      %p777 = por %p775, %p776
      %p778 = scmp.ne.s32.totalorder %s766, %s767
      %p779 = scmp.eq.s32.totalorder %s107, 1
      %p780 = por %p778, %p779
      %p782 = scmp.ne.s32.totalorder %s767, %s781
      %p783 = scmp.eq.s32.totalorder %s107, 0
      %p784 = por %p782, %p783
      %s786 = sadd.s32 %s785, 1
      %p789 = scmp.eq.s32.totalorder %s101, 1
      %p790 = scmp.ne.s32.totalorder %s785, %s787
      %p791 = scmp.eq.s32.totalorder %s101, 0
      %p792 = por %p790, %p791
      %p793 = scmp.ne.s32.totalorder %s785, %s787
      %p794 = scmp.eq.s32.totalorder %s106, 1
      %p795 = por %p793, %p794
      %p796 = scmp.ne.s32.totalorder %s787, %s788
      %p797 = scmp.eq.s32.totalorder %s106, 0
      %p798 = por %p796, %p797
      %p799 = scmp.ne.s32.totalorder %s787, %s788
      %p800 = scmp.eq.s32.totalorder %s107, 1
      %p801 = por %p799, %p800
      %p803 = scmp.ne.s32.totalorder %s788, %s802
      %p804 = scmp.eq.s32.totalorder %s107, 0
      %p805 = por %p803, %p804
      %s807 = sadd.s32 %s806, 1
      %p810 = scmp.eq.s32.totalorder %s101, 1
      %p811 = scmp.ne.s32.totalorder %s806, %s808
      %p812 = scmp.eq.s32.totalorder %s101, 0
      %p813 = por %p811, %p812
      %p814 = scmp.ne.s32.totalorder %s806, %s808
      %p815 = scmp.eq.s32.totalorder %s106, 1
      %p816 = por %p814, %p815
      %p817 = scmp.ne.s32.totalorder %s808, %s809
      %p818 = scmp.eq.s32.totalorder %s106, 0
      %p819 = por %p817, %p818
      %p820 = scmp.ne.s32.totalorder %s808, %s809
      %p821 = scmp.eq.s32.totalorder %s107, 1
      %p822 = por %p820, %p821
      %p824 = scmp.ne.s32.totalorder %s809, %s823
      %p825 = scmp.eq.s32.totalorder %s107, 0
      %p826 = por %p824, %p825
      %s828 = sadd.s32 %s827, 1
      %p831 = scmp.eq.s32.totalorder %s101, 1
      %p832 = scmp.ne.s32.totalorder %s827, %s829
      %p833 = scmp.eq.s32.totalorder %s101, 0
      %p834 = por %p832, %p833
      %p835 = scmp.ne.s32.totalorder %s827, %s829
      %p836 = scmp.eq.s32.totalorder %s106, 1
      %p837 = por %p835, %p836
      %p838 = scmp.ne.s32.totalorder %s829, %s830
      %p839 = scmp.eq.s32.totalorder %s106, 0
      %p840 = por %p838, %p839
      %p841 = scmp.ne.s32.totalorder %s829, %s830
      %p842 = scmp.eq.s32.totalorder %s107, 1
      %p843 = por %p841, %p842
      %p845 = scmp.ne.s32.totalorder %s830, %s844
      %p846 = scmp.eq.s32.totalorder %s107, 0
      %p847 = por %p845, %p846
      %s849 = sadd.s32 %s848, 1
      %p852 = scmp.eq.s32.totalorder %s101, 1
      %p853 = scmp.ne.s32.totalorder %s848, %s850
      %p854 = scmp.eq.s32.totalorder %s101, 0
      %p855 = por %p853, %p854
      %p856 = scmp.ne.s32.totalorder %s848, %s850
      %p857 = scmp.eq.s32.totalorder %s106, 1
      %p858 = por %p856, %p857
      %p859 = scmp.ne.s32.totalorder %s850, %s851
      %p860 = scmp.eq.s32.totalorder %s106, 0
      %p861 = por %p859, %p860
      %p862 = scmp.ne.s32.totalorder %s850, %s851
      %p863 = scmp.eq.s32.totalorder %s107, 1
      %p864 = por %p862, %p863
      %p866 = scmp.ne.s32.totalorder %s851, %s865
      %p867 = scmp.eq.s32.totalorder %s107, 0
      %p868 = por %p866, %p867
      %s870 = sadd.s32 %s869, 1
      %p873 = scmp.eq.s32.totalorder %s101, 1
      %p874 = scmp.ne.s32.totalorder %s869, %s871
      %p875 = scmp.eq.s32.totalorder %s101, 0
      %p876 = por %p874, %p875
      %p877 = scmp.ne.s32.totalorder %s869, %s871
      %p878 = scmp.eq.s32.totalorder %s106, 1
      %p879 = por %p877, %p878
      %p880 = scmp.ne.s32.totalorder %s871, %s872
      %p881 = scmp.eq.s32.totalorder %s106, 0
      %p882 = por %p880, %p881
      %p883 = scmp.ne.s32.totalorder %s871, %s872
      %p884 = scmp.eq.s32.totalorder %s107, 1
      %p885 = por %p883, %p884
      %p887 = scmp.ne.s32.totalorder %s872, %s886
      %p888 = scmp.eq.s32.totalorder %s107, 0
      %p889 = por %p887, %p888
      %s891 = sadd.s32 %s890, 1
      %p894 = scmp.eq.s32.totalorder %s101, 1
      %p895 = scmp.ne.s32.totalorder %s890, %s892
      %p896 = scmp.eq.s32.totalorder %s101, 0
      %p897 = por %p895, %p896
      %p898 = scmp.ne.s32.totalorder %s890, %s892
      %p899 = scmp.eq.s32.totalorder %s106, 1
      %p900 = por %p898, %p899
      %p901 = scmp.ne.s32.totalorder %s892, %s893
      %p902 = scmp.eq.s32.totalorder %s106, 0
      %p903 = por %p901, %p902
      %p904 = scmp.ne.s32.totalorder %s892, %s893
      %p905 = scmp.eq.s32.totalorder %s107, 1
      %p906 = por %p904, %p905
      %p908 = scmp.ne.s32.totalorder %s893, %s907
      %p909 = scmp.eq.s32.totalorder %s107, 0
      %p910 = por %p908, %p909
      %s912 = sadd.s32 %s911, 1
      %p915 = scmp.eq.s32.totalorder %s101, 1
      %p916 = scmp.ne.s32.totalorder %s911, %s913
      %p917 = scmp.eq.s32.totalorder %s101, 0
      %p918 = por %p916, %p917
      %p919 = scmp.ne.s32.totalorder %s911, %s913
      %p920 = scmp.eq.s32.totalorder %s106, 1
      %p921 = por %p919, %p920
      %p922 = scmp.ne.s32.totalorder %s913, %s914
      %p923 = scmp.eq.s32.totalorder %s106, 0
      %p924 = por %p922, %p923
      %p925 = scmp.ne.s32.totalorder %s913, %s914
      %p926 = scmp.eq.s32.totalorder %s107, 1
      %p927 = por %p925, %p926
      %p929 = scmp.ne.s32.totalorder %s914, %s928
      %p930 = scmp.eq.s32.totalorder %s107, 0
      %p931 = por %p929, %p930
      %s933 = sadd.s32 %s932, 1
      %p936 = scmp.eq.s32.totalorder %s101, 1
      %p937 = scmp.ne.s32.totalorder %s932, %s934
      %p938 = scmp.eq.s32.totalorder %s101, 0
      %p939 = por %p937, %p938
      %p940 = scmp.ne.s32.totalorder %s932, %s934
      %p941 = scmp.eq.s32.totalorder %s106, 1
      %p942 = por %p940, %p941
      %p943 = scmp.ne.s32.totalorder %s934, %s935
      %p944 = scmp.eq.s32.totalorder %s106, 0
      %p945 = por %p943, %p944
      %p946 = scmp.ne.s32.totalorder %s934, %s935
      %p947 = scmp.eq.s32.totalorder %s107, 1
      %p948 = por %p946, %p947
      %p950 = scmp.ne.s32.totalorder %s935, %s949
      %p951 = scmp.eq.s32.totalorder %s107, 0
      %p952 = por %p950, %p951
      %s954 = sadd.s32 %s953, 1
      %p957 = scmp.eq.s32.totalorder %s101, 1
      %p958 = scmp.ne.s32.totalorder %s953, %s955
      %p959 = scmp.eq.s32.totalorder %s101, 0
      %p960 = por %p958, %p959
      %p961 = scmp.ne.s32.totalorder %s953, %s955
      %p962 = scmp.eq.s32.totalorder %s106, 1
      %p963 = por %p961, %p962
      %p964 = scmp.ne.s32.totalorder %s955, %s956
      %p965 = scmp.eq.s32.totalorder %s106, 0
      %p966 = por %p964, %p965
      %p967 = scmp.ne.s32.totalorder %s955, %s956
      %p968 = scmp.eq.s32.totalorder %s107, 1
      %p969 = por %p967, %p968
      %p971 = scmp.ne.s32.totalorder %s956, %s970
      %p972 = scmp.eq.s32.totalorder %s107, 0
      %p973 = por %p971, %p972
      %s975 = sadd.s32 %s974, 1
      %p978 = scmp.eq.s32.totalorder %s101, 1
      %p979 = scmp.ne.s32.totalorder %s974, %s976
      %p980 = scmp.eq.s32.totalorder %s101, 0
      %p981 = por %p979, %p980
      %p982 = scmp.ne.s32.totalorder %s974, %s976
      %p983 = scmp.eq.s32.totalorder %s106, 1
      %p984 = por %p982, %p983
      %p985 = scmp.ne.s32.totalorder %s976, %s977
      %p986 = scmp.eq.s32.totalorder %s106, 0
      %p987 = por %p985, %p986
      %p988 = scmp.ne.s32.totalorder %s976, %s977
      %p989 = scmp.eq.s32.totalorder %s107, 1
      %p990 = por %p988, %p989
      %p992 = scmp.ne.s32.totalorder %s977, %s991
      %p993 = scmp.eq.s32.totalorder %s107, 0
      %p994 = por %p992, %p993
      %s996 = sadd.s32 %s995, 1
      %p999 = scmp.eq.s32.totalorder %s101, 1
      %p1000 = scmp.ne.s32.totalorder %s995, %s997
      %p1001 = scmp.eq.s32.totalorder %s101, 0
      %p1002 = por %p1000, %p1001
      %p1003 = scmp.ne.s32.totalorder %s995, %s997
      %p1004 = scmp.eq.s32.totalorder %s106, 1
      %p1005 = por %p1003, %p1004
      %p1006 = scmp.ne.s32.totalorder %s997, %s998
      %p1007 = scmp.eq.s32.totalorder %s106, 0
      %p1008 = por %p1006, %p1007
      %p1009 = scmp.ne.s32.totalorder %s997, %s998
      %p1010 = scmp.eq.s32.totalorder %s107, 1
      %p1011 = por %p1009, %p1010
      %p1013 = scmp.ne.s32.totalorder %s998, %s1012
      %p1014 = scmp.eq.s32.totalorder %s107, 0
      %p1015 = por %p1013, %p1014
      %s1017 = sadd.s32 %s1016, 1
      %p1020 = scmp.eq.s32.totalorder %s101, 1
      %p1021 = scmp.ne.s32.totalorder %s1016, %s1018
      %p1022 = scmp.eq.s32.totalorder %s101, 0
      %p1023 = por %p1021, %p1022
      %p1024 = scmp.ne.s32.totalorder %s1016, %s1018
      %p1025 = scmp.eq.s32.totalorder %s106, 1
      %p1026 = por %p1024, %p1025
      %p1027 = scmp.ne.s32.totalorder %s1018, %s1019
      %p1028 = scmp.eq.s32.totalorder %s106, 0
      %p1029 = por %p1027, %p1028
      %p1030 = scmp.ne.s32.totalorder %s1018, %s1019
      %p1031 = scmp.eq.s32.totalorder %s107, 1
      %p1032 = por %p1030, %p1031
      %p1034 = scmp.ne.s32.totalorder %s1019, %s1033
      %p1035 = scmp.eq.s32.totalorder %s107, 0
      %p1036 = por %p1034, %p1035
      %s1037 = ssub.s32 %s101, %s108
      %p1038 = scmp.eq.s32.totalorder %s1037, 0
      %s1040 = sadd.s32 %s1039, 1
      %s1041 = scalar_select %p1038, %s1039, %s1040
      %p1044 = pneg %p1038
      %p1045 = scmp.eq.s32.totalorder %s101, 1
      %p1046 = por %p1044, %p1045
      %p1047 = scmp.ne.s32.totalorder %s1039, %s1042
      %p1048 = scmp.eq.s32.totalorder %s101, 0
      %p1049 = por %p1047, %p1048
      %p1050 = scmp.ne.s32.totalorder %s1039, %s1042
      %p1051 = scmp.eq.s32.totalorder %s106, 1
      %p1052 = por %p1050, %p1051
      %p1053 = scmp.ne.s32.totalorder %s1042, %s1043
      %p1054 = scmp.eq.s32.totalorder %s106, 0
      %p1055 = por %p1053, %p1054
      %p1056 = scmp.ne.s32.totalorder %s1042, %s1043
      %p1057 = scmp.eq.s32.totalorder %s107, 1
      %p1058 = por %p1056, %p1057
      %p1060 = scmp.ne.s32.totalorder %s1043, %s1059
      %p1061 = scmp.eq.s32.totalorder %s107, 0
      %p1062 = por %p1060, %p1061
      %s1063 = ssub.s32 %s101, %s108
      %p1064 = scmp.eq.s32.totalorder %s1063, 0
      %s1066 = sadd.s32 %s1065, 1
      %s1067 = scalar_select %p1064, %s1065, %s1066
      %p1070 = pneg %p1064
      %p1071 = scmp.eq.s32.totalorder %s101, 1
      %p1072 = por %p1070, %p1071
      %p1073 = scmp.ne.s32.totalorder %s1065, %s1068
      %p1074 = scmp.eq.s32.totalorder %s101, 0
      %p1075 = por %p1073, %p1074
      %p1076 = scmp.ne.s32.totalorder %s1065, %s1068
      %p1077 = scmp.eq.s32.totalorder %s106, 1
      %p1078 = por %p1076, %p1077
      %p1079 = scmp.ne.s32.totalorder %s1068, %s1069
      %p1080 = scmp.eq.s32.totalorder %s106, 0
      %p1081 = por %p1079, %p1080
      %p1082 = scmp.ne.s32.totalorder %s1068, %s1069
      %p1083 = scmp.eq.s32.totalorder %s107, 1
      %p1084 = por %p1082, %p1083
      %p1086 = scmp.ne.s32.totalorder %s1069, %s1085
      %p1087 = scmp.eq.s32.totalorder %s107, 0
      %p1088 = por %p1086, %p1087
      %p1089 = scmp.le.s32.totalorder 1, %s101
      %p1090 = scmp.lt.s32.totalorder %s101, 3
      %p1091 = pnand %p1089, %p1090
      %p1092 = pneg %p1091
      // Predicated region
      $region9: #{filter_predictor_forward.1} parent=5 // pred_check
        _
      $region10: #{filter_predictor_forward.1} parent=5 // pred_check_branch
        %1094 = sbr.rel (%p1091) target = $region12
      $region11: #{filter_predictor_forward.1} parent=5 // pred_region
        %s1095 = ssub.s32 %s101, 1
        // Predicated region
        $region13: #{filter_predictor_forward.1} parent=11 // pred_check
          %p1096 = pneg %p252
        $region14: #{filter_predictor_forward.1} parent=11 // pred_check_branch
          %1098 = sbr.rel (%p1096) target = $region16
        $region15: #{filter_predictor_forward.1} parent=11 // pred_region
          %s1100 = ssub.s32 16, 16
          %1101 = vsyncadd [#allocation3], %s1100
          %s1103 = sshll.u32 [#allocation2], 4
          %s1104 = int_to_ptr.vmem [resolvable:$true] %s1103
          %1106 = dma.hbm_to_vmem [thread:$0]  %s11, 16, %s1104, [#allocation3]
        $region16: #{filter_predictor_forward.1} parent=11 // pred_fallthru
          _
        // Predicated region
        $region17: #{filter_predictor_forward.1} parent=11 // pred_check
          %p1107 = pneg %p273
        $region18: #{filter_predictor_forward.1} parent=11 // pred_check_branch
          %1109 = sbr.rel (%p1107) target = $region20
        $region19: #{filter_predictor_forward.1} parent=11 // pred_region
          %s1111 = ssub.s32 16, 16
          %1112 = vsyncadd [#allocation6], %s1111
          %s1114 = sshll.u32 [#allocation5], 4
          %s1115 = int_to_ptr.vmem [resolvable:$true] %s1114
          %1117 = dma.hbm_to_vmem [thread:$0]  %s13, 16, %s1115, [#allocation6]
        $region20: #{filter_predictor_forward.1} parent=11 // pred_fallthru
          _
        // Predicated region
        $region21: #{filter_predictor_forward.1} parent=11 // pred_check
          %p1118 = pneg %p294
        $region22: #{filter_predictor_forward.1} parent=11 // pred_check_branch
          %1120 = sbr.rel (%p1118) target = $region24
        $region23: #{filter_predictor_forward.1} parent=11 // pred_region
          _
        $region24: #{filter_predictor_forward.1} parent=11 // pred_fallthru
          _
        // Predicated region
        $region25: #{filter_predictor_forward.1} parent=11 // pred_check
          %p1121 = pneg %p315
        $region26: #{filter_predictor_forward.1} parent=11 // pred_check_branch
          %1123 = sbr.rel (%p1121) target = $region28
        $region27: #{filter_predictor_forward.1} parent=11 // pred_region
          _
        $region28: #{filter_predictor_forward.1} parent=11 // pred_fallthru
          _
        // Predicated region
        $region29: #{filter_predictor_forward.1} parent=11 // pred_check
          %p1124 = pneg %p336
        $region30: #{filter_predictor_forward.1} parent=11 // pred_check_branch
          %1126 = sbr.rel (%p1124) target = $region32
        $region31: #{filter_predictor_forward.1} parent=11 // pred_region
          _
        $region32: #{filter_predictor_forward.1} parent=11 // pred_fallthru
          _
        // Predicated region
        $region33: #{filter_predictor_forward.1} parent=11 // pred_check
          %p1127 = pneg %p357
        $region34: #{filter_predictor_forward.1} parent=11 // pred_check_branch
          %1129 = sbr.rel (%p1127) target = $region36
        $region35: #{filter_predictor_forward.1} parent=11 // pred_region
          _
        $region36: #{filter_predictor_forward.1} parent=11 // pred_fallthru
          _
        // Predicated region
        $region37: #{filter_predictor_forward.1} parent=11 // pred_check
          %p1130 = pneg %p378
        $region38: #{filter_predictor_forward.1} parent=11 // pred_check_branch
          %1132 = sbr.rel (%p1130) target = $region40
        $region39: #{filter_predictor_forward.1} parent=11 // pred_region
          %s1134 = ssub.s32 512, 512
          %1135 = vsyncadd [#allocation6], %s1134
          %s1136 = sshll.u32 [#allocation7], 4
          %s1137 = int_to_ptr.vmem [resolvable:$true] %s1136
          %1142 = dma.hbm_to_vmem [thread:$0]  %s23, 512, %s1137, [#allocation6], 128, 128, 8
        $region40: #{filter_predictor_forward.1} parent=11 // pred_fallthru
          _
        // Predicated region
        $region41: #{filter_predictor_forward.1} parent=11 // pred_check
          %p1143 = pneg %p399
        $region42: #{filter_predictor_forward.1} parent=11 // pred_check_branch
          %1145 = sbr.rel (%p1143) target = $region44
        $region43: #{filter_predictor_forward.1} parent=11 // pred_region
          _
        $region44: #{filter_predictor_forward.1} parent=11 // pred_fallthru
          _
        // Predicated region
        $region45: #{filter_predictor_forward.1} parent=11 // pred_check
          %p1146 = pneg %p420
        $region46: #{filter_predictor_forward.1} parent=11 // pred_check_branch
          %1148 = sbr.rel (%p1146) target = $region48
        $region47: #{filter_predictor_forward.1} parent=11 // pred_region
          _
        $region48: #{filter_predictor_forward.1} parent=11 // pred_fallthru
          _
        // Predicated region
        $region49: #{filter_predictor_forward.1} parent=11 // pred_check
          %p1149 = pneg %p441
        $region50: #{filter_predictor_forward.1} parent=11 // pred_check_branch
          %1151 = sbr.rel (%p1149) target = $region52
        $region51: #{filter_predictor_forward.1} parent=11 // pred_region
          _
        $region52: #{filter_predictor_forward.1} parent=11 // pred_fallthru
          _
        // Predicated region
        $region53: #{filter_predictor_forward.1} parent=11 // pred_check
          %p1152 = pneg %p462
        $region54: #{filter_predictor_forward.1} parent=11 // pred_check_branch
          %1154 = sbr.rel (%p1152) target = $region56
        $region55: #{filter_predictor_forward.1} parent=11 // pred_region
          _
        $region56: #{filter_predictor_forward.1} parent=11 // pred_fallthru
          _
        // Predicated region
        $region57: #{filter_predictor_forward.1} parent=11 // pred_check
          %p1155 = pneg %p483
        $region58: #{filter_predictor_forward.1} parent=11 // pred_check_branch
          %1157 = sbr.rel (%p1155) target = $region60
        $region59: #{filter_predictor_forward.1} parent=11 // pred_region
          _
        $region60: #{filter_predictor_forward.1} parent=11 // pred_fallthru
          _
        // Predicated region
        $region61: #{filter_predictor_forward.1} parent=11 // pred_check
          %p1158 = pneg %p504
        $region62: #{filter_predictor_forward.1} parent=11 // pred_check_branch
          %1160 = sbr.rel (%p1158) target = $region64
        $region63: #{filter_predictor_forward.1} parent=11 // pred_region
          _
        $region64: #{filter_predictor_forward.1} parent=11 // pred_fallthru
          _
        // Predicated region
        $region65: #{filter_predictor_forward.1} parent=11 // pred_check
          %p1161 = pneg %p525
        $region66: #{filter_predictor_forward.1} parent=11 // pred_check_branch
          %1163 = sbr.rel (%p1161) target = $region68
        $region67: #{filter_predictor_forward.1} parent=11 // pred_region
          _
        $region68: #{filter_predictor_forward.1} parent=11 // pred_fallthru
          _
        // Predicated region
        $region69: #{filter_predictor_forward.1} parent=11 // pred_check
          %p1164 = pneg %p546
        $region70: #{filter_predictor_forward.1} parent=11 // pred_check_branch
          %1166 = sbr.rel (%p1164) target = $region72
        $region71: #{filter_predictor_forward.1} parent=11 // pred_region
          _
        $region72: #{filter_predictor_forward.1} parent=11 // pred_fallthru
          _
        // Predicated region
        $region73: #{filter_predictor_forward.1} parent=11 // pred_check
          %p1167 = pneg %p567
        $region74: #{filter_predictor_forward.1} parent=11 // pred_check_branch
          %1169 = sbr.rel (%p1167) target = $region76
        $region75: #{filter_predictor_forward.1} parent=11 // pred_region
          _
        $region76: #{filter_predictor_forward.1} parent=11 // pred_fallthru
          _
        // Predicated region
        $region77: #{filter_predictor_forward.1} parent=11 // pred_check
          %p1170 = pneg %p588
        $region78: #{filter_predictor_forward.1} parent=11 // pred_check_branch
          %1172 = sbr.rel (%p1170) target = $region80
        $region79: #{filter_predictor_forward.1} parent=11 // pred_region
          _
        $region80: #{filter_predictor_forward.1} parent=11 // pred_fallthru
          _
        // Predicated region
        $region81: #{filter_predictor_forward.1} parent=11 // pred_check
          %p1173 = pneg %p609
        $region82: #{filter_predictor_forward.1} parent=11 // pred_check_branch
          %1175 = sbr.rel (%p1173) target = $region84
        $region83: #{filter_predictor_forward.1} parent=11 // pred_region
          _
        $region84: #{filter_predictor_forward.1} parent=11 // pred_fallthru
          _
        // Predicated region
        $region85: #{filter_predictor_forward.1} parent=11 // pred_check
          %p1176 = pneg %p630
        $region86: #{filter_predictor_forward.1} parent=11 // pred_check_branch
          %1178 = sbr.rel (%p1176) target = $region88
        $region87: #{filter_predictor_forward.1} parent=11 // pred_region
          _
        $region88: #{filter_predictor_forward.1} parent=11 // pred_fallthru
          _
        // Predicated region
        $region89: #{filter_predictor_forward.1} parent=11 // pred_check
          %p1179 = pneg %p651
        $region90: #{filter_predictor_forward.1} parent=11 // pred_check_branch
          %1181 = sbr.rel (%p1179) target = $region92
        $region91: #{filter_predictor_forward.1} parent=11 // pred_region
          _
        $region92: #{filter_predictor_forward.1} parent=11 // pred_fallthru
          _
        // Predicated region
        $region93: #{filter_predictor_forward.1} parent=11 // pred_check
          %p1182 = pneg %p672
        $region94: #{filter_predictor_forward.1} parent=11 // pred_check_branch
          %1184 = sbr.rel (%p1182) target = $region96
        $region95: #{filter_predictor_forward.1} parent=11 // pred_region
          _
        $region96: #{filter_predictor_forward.1} parent=11 // pred_fallthru
          _
        // Predicated region
        $region97: #{filter_predictor_forward.1} parent=11 // pred_check
          %p1185 = pneg %p693
        $region98: #{filter_predictor_forward.1} parent=11 // pred_check_branch
          %1187 = sbr.rel (%p1185) target = $region100
        $region99: #{filter_predictor_forward.1} parent=11 // pred_region
          _
        $region100: #{filter_predictor_forward.1} parent=11 // pred_fallthru
          _
        // Predicated region
        $region101: #{filter_predictor_forward.1} parent=11 // pred_check
          %p1188 = pneg %p714
        $region102: #{filter_predictor_forward.1} parent=11 // pred_check_branch
          %1190 = sbr.rel (%p1188) target = $region104
        $region103: #{filter_predictor_forward.1} parent=11 // pred_region
          _
        $region104: #{filter_predictor_forward.1} parent=11 // pred_fallthru
          _
        // Predicated region
        $region105: #{filter_predictor_forward.1} parent=11 // pred_check
          %p1191 = pneg %p735
        $region106: #{filter_predictor_forward.1} parent=11 // pred_check_branch
          %1193 = sbr.rel (%p1191) target = $region108
        $region107: #{filter_predictor_forward.1} parent=11 // pred_region
          _
        $region108: #{filter_predictor_forward.1} parent=11 // pred_fallthru
          _
        // Predicated region
        $region109: #{filter_predictor_forward.1} parent=11 // pred_check
          %p1194 = pneg %p756
        $region110: #{filter_predictor_forward.1} parent=11 // pred_check_branch
          %1196 = sbr.rel (%p1194) target = $region112
        $region111: #{filter_predictor_forward.1} parent=11 // pred_region
          _
        $region112: #{filter_predictor_forward.1} parent=11 // pred_fallthru
          _
        // Predicated region
        $region113: #{filter_predictor_forward.1} parent=11 // pred_check
          %p1197 = pneg %p777
        $region114: #{filter_predictor_forward.1} parent=11 // pred_check_branch
          %1199 = sbr.rel (%p1197) target = $region116
        $region115: #{filter_predictor_forward.1} parent=11 // pred_region
          _
        $region116: #{filter_predictor_forward.1} parent=11 // pred_fallthru
          _
        // Predicated region
        $region117: #{filter_predictor_forward.1} parent=11 // pred_check
          %p1200 = pneg %p798
        $region118: #{filter_predictor_forward.1} parent=11 // pred_check_branch
          %1202 = sbr.rel (%p1200) target = $region120
        $region119: #{filter_predictor_forward.1} parent=11 // pred_region
          _
        $region120: #{filter_predictor_forward.1} parent=11 // pred_fallthru
          _
        // Predicated region
        $region121: #{filter_predictor_forward.1} parent=11 // pred_check
          %p1203 = pneg %p819
        $region122: #{filter_predictor_forward.1} parent=11 // pred_check_branch
          %1205 = sbr.rel (%p1203) target = $region124
        $region123: #{filter_predictor_forward.1} parent=11 // pred_region
          _
        $region124: #{filter_predictor_forward.1} parent=11 // pred_fallthru
          _
        // Predicated region
        $region125: #{filter_predictor_forward.1} parent=11 // pred_check
          %p1206 = pneg %p840
        $region126: #{filter_predictor_forward.1} parent=11 // pred_check_branch
          %1208 = sbr.rel (%p1206) target = $region128
        $region127: #{filter_predictor_forward.1} parent=11 // pred_region
          _
        $region128: #{filter_predictor_forward.1} parent=11 // pred_fallthru
          _
        // Predicated region
        $region129: #{filter_predictor_forward.1} parent=11 // pred_check
          %p1209 = pneg %p861
        $region130: #{filter_predictor_forward.1} parent=11 // pred_check_branch
          %1211 = sbr.rel (%p1209) target = $region132
        $region131: #{filter_predictor_forward.1} parent=11 // pred_region
          _
        $region132: #{filter_predictor_forward.1} parent=11 // pred_fallthru
          _
        // Predicated region
        $region133: #{filter_predictor_forward.1} parent=11 // pred_check
          %p1212 = pneg %p882
        $region134: #{filter_predictor_forward.1} parent=11 // pred_check_branch
          %1214 = sbr.rel (%p1212) target = $region136
        $region135: #{filter_predictor_forward.1} parent=11 // pred_region
          _
        $region136: #{filter_predictor_forward.1} parent=11 // pred_fallthru
          _
        // Predicated region
        $region137: #{filter_predictor_forward.1} parent=11 // pred_check
          %p1215 = pneg %p903
        $region138: #{filter_predictor_forward.1} parent=11 // pred_check_branch
          %1217 = sbr.rel (%p1215) target = $region140
        $region139: #{filter_predictor_forward.1} parent=11 // pred_region
          _
        $region140: #{filter_predictor_forward.1} parent=11 // pred_fallthru
          _
        // Predicated region
        $region141: #{filter_predictor_forward.1} parent=11 // pred_check
          %p1218 = pneg %p924
        $region142: #{filter_predictor_forward.1} parent=11 // pred_check_branch
          %1220 = sbr.rel (%p1218) target = $region144
        $region143: #{filter_predictor_forward.1} parent=11 // pred_region
          _
        $region144: #{filter_predictor_forward.1} parent=11 // pred_fallthru
          _
        // Predicated region
        $region145: #{filter_predictor_forward.1} parent=11 // pred_check
          %p1221 = pneg %p945
        $region146: #{filter_predictor_forward.1} parent=11 // pred_check_branch
          %1223 = sbr.rel (%p1221) target = $region148
        $region147: #{filter_predictor_forward.1} parent=11 // pred_region
          _
        $region148: #{filter_predictor_forward.1} parent=11 // pred_fallthru
          _
        // Predicated region
        $region149: #{filter_predictor_forward.1} parent=11 // pred_check
          %p1224 = pneg %p966
        $region150: #{filter_predictor_forward.1} parent=11 // pred_check_branch
          %1226 = sbr.rel (%p1224) target = $region152
        $region151: #{filter_predictor_forward.1} parent=11 // pred_region
          _
        $region152: #{filter_predictor_forward.1} parent=11 // pred_fallthru
          _
        // Predicated region
        $region153: #{filter_predictor_forward.1} parent=11 // pred_check
          %p1227 = pneg %p987
        $region154: #{filter_predictor_forward.1} parent=11 // pred_check_branch
          %1229 = sbr.rel (%p1227) target = $region156
        $region155: #{filter_predictor_forward.1} parent=11 // pred_region
          _
        $region156: #{filter_predictor_forward.1} parent=11 // pred_fallthru
          _
        // Predicated region
        $region157: #{filter_predictor_forward.1} parent=11 // pred_check
          %p1230 = pneg %p1008
        $region158: #{filter_predictor_forward.1} parent=11 // pred_check_branch
          %1232 = sbr.rel (%p1230) target = $region160
        $region159: #{filter_predictor_forward.1} parent=11 // pred_region
          _
        $region160: #{filter_predictor_forward.1} parent=11 // pred_fallthru
          _
        // Predicated region
        $region161: #{filter_predictor_forward.1} parent=11 // pred_check
          %p1233 = pneg %p1029
        $region162: #{filter_predictor_forward.1} parent=11 // pred_check_branch
          %1235 = sbr.rel (%p1233) target = $region164
        $region163: #{filter_predictor_forward.1} parent=11 // pred_region
          _
        $region164: #{filter_predictor_forward.1} parent=11 // pred_fallthru
          _
      $region12: #{filter_predictor_forward.1} parent=5 // pred_fallthru
        _
      %p1236 = scmp.lt.s32.totalorder %s101, 2
      // Predicated region
      $region165: #{filter_predictor_forward.1} parent=5 // pred_check
        %p1237 = pneg %p1236
      $region166: #{filter_predictor_forward.1} parent=5 // pred_check_branch
        %1239 = sbr.rel (%p1237) target = $region168
      $region167: #{filter_predictor_forward.1} parent=5 // pred_region
        // Predicated region
        $region169: #{filter_predictor_forward.1} parent=167 // pred_check
          %p1240 = pneg %p121
        $region170: #{filter_predictor_forward.1} parent=167 // pred_check_branch
          %1242 = sbr.rel (%p1240) target = $region172
        $region171: #{filter_predictor_forward.1} parent=167 // pred_region
          %p1243 = scmp.lt.s32.totalorder %s101, 1
          %s1244 = scalar_select %p1243, %s101, 1
          %s1245 = smul.addr %s1244, 16
          %s1246 = smul.addr %s1245, 8
          %s1247 = scalar_lea.vmem %s1, %s1246
        $region172: #{filter_predictor_forward.1} parent=167 // pred_fallthru
          _
        // Predicated region
        $region173: #{filter_predictor_forward.1} parent=167 // pred_check
          %p1248 = pneg %p147
        $region174: #{filter_predictor_forward.1} parent=167 // pred_check_branch
          %1250 = sbr.rel (%p1248) target = $region176
        $region175: #{filter_predictor_forward.1} parent=167 // pred_region
          %p1251 = scmp.lt.s32.totalorder %s101, 1
          %s1252 = scalar_select %p1251, %s101, 1
          %s1253 = smul.addr %s1252, 8
          %s1254 = smul.addr %s1253, 8
          %s1255 = scalar_lea.vmem %s3, %s1254
        $region176: #{filter_predictor_forward.1} parent=167 // pred_fallthru
          _
        // Predicated region
        $region177: #{filter_predictor_forward.1} parent=167 // pred_check
          %p1256 = pneg %p173
        $region178: #{filter_predictor_forward.1} parent=167 // pred_check_branch
          %1258 = sbr.rel (%p1256) target = $region180
        $region179: #{filter_predictor_forward.1} parent=167 // pred_region
          %p1259 = scmp.lt.s32.totalorder %s101, 1
          %s1260 = scalar_select %p1259, %s101, 1
          %s1261 = smul.addr %s1260, 16
          %s1262 = smul.addr %s1261, 8
          %s1263 = scalar_lea.vmem %s5, %s1262
        $region180: #{filter_predictor_forward.1} parent=167 // pred_fallthru
          _
        // Predicated region
        $region181: #{filter_predictor_forward.1} parent=167 // pred_check
          %p1264 = pneg %p199
        $region182: #{filter_predictor_forward.1} parent=167 // pred_check_branch
          %1266 = sbr.rel (%p1264) target = $region184
        $region183: #{filter_predictor_forward.1} parent=167 // pred_region
          %p1267 = scmp.lt.s32.totalorder %s101, 1
          %s1268 = scalar_select %p1267, %s101, 1
          %s1269 = smul.addr %s1268, 16
          %s1270 = smul.addr %s1269, 8
          %s1271 = scalar_lea.vmem %s7, %s1270
        $region184: #{filter_predictor_forward.1} parent=167 // pred_fallthru
          _
        // Predicated region
        $region185: #{filter_predictor_forward.1} parent=167 // pred_check
          %p1272 = pneg %p225
        $region186: #{filter_predictor_forward.1} parent=167 // pred_check_branch
          %1274 = sbr.rel (%p1272) target = $region188
        $region187: #{filter_predictor_forward.1} parent=167 // pred_region
          %p1275 = scmp.lt.s32.totalorder %s101, 1
          %s1276 = scalar_select %p1275, %s101, 1
          %s1277 = smul.addr %s1276, 24
          %s1278 = smul.addr %s1277, 8
          %s1279 = scalar_lea.vmem %s9, %s1278
        $region188: #{filter_predictor_forward.1} parent=167 // pred_fallthru
          _
      $region168: #{filter_predictor_forward.1} parent=5 // pred_fallthru
        _
      %p1280 = scmp.le.s32.totalorder 1, %s101
      %p1281 = scmp.lt.s32.totalorder %s101, 3
      %p1282 = pnand %p1280, %p1281
      %p1283 = pneg %p1282
      // Predicated region
      $region189: #{filter_predictor_forward.1} parent=5 // pred_check
        _
      $region190: #{filter_predictor_forward.1} parent=5 // pred_check_branch
        %1285 = sbr.rel (%p1282) target = $region192
      $region191: #{filter_predictor_forward.1} parent=5 // pred_region
        %s1286 = ssub.s32 %s101, 1
        // Predicated region
        $region193: #{filter_predictor_forward.1} parent=191 // pred_check
          %p1287 = pneg %p252
        $region194: #{filter_predictor_forward.1} parent=191 // pred_check_branch
          %1289 = sbr.rel (%p1287) target = $region196
        $region195: #{filter_predictor_forward.1} parent=191 // pred_region
          %1290 = dma.done [#allocation3], 16
        $region196: #{filter_predictor_forward.1} parent=191 // pred_fallthru
          _
        // Predicated region
        $region197: #{filter_predictor_forward.1} parent=191 // pred_check
          %p1291 = pneg %p273
        $region198: #{filter_predictor_forward.1} parent=191 // pred_check_branch
          %1293 = sbr.rel (%p1291) target = $region200
        $region199: #{filter_predictor_forward.1} parent=191 // pred_region
          %1294 = dma.done [#allocation6], 16
        $region200: #{filter_predictor_forward.1} parent=191 // pred_fallthru
          _
        // Predicated region
        $region201: #{filter_predictor_forward.1} parent=191 // pred_check
          %p1295 = pneg %p378
        $region202: #{filter_predictor_forward.1} parent=191 // pred_check_branch
          %1297 = sbr.rel (%p1295) target = $region204
        $region203: #{filter_predictor_forward.1} parent=191 // pred_region
          %1298 = dma.done [#allocation6], 512
        $region204: #{filter_predictor_forward.1} parent=191 // pred_fallthru
          _
        %p1299 = scmp.lt.s32.totalorder %s106, 1
        %s1300 = scalar_select %p1299, %s106, 1
        %s1301 = smul.addr %s1300, 16
        %s1302 = smul.addr %s1301, 8
        %s1303 = scalar_lea.vmem %s1, %s1302
        %p1304 = pneg %p127
        %p1305 = pneg %p124
        %p1306 = scmp.lt.s32.totalorder %s106, 1
        %s1307 = scalar_select %p1306, %s106, 1
        %s1308 = smul.addr %s1307, 8
        %s1309 = smul.addr %s1308, 8
        %s1310 = scalar_lea.vmem %s3, %s1309
        %p1311 = pneg %p153
        %p1312 = pneg %p150
        %p1313 = scmp.lt.s32.totalorder %s106, 1
        %s1314 = scalar_select %p1313, %s106, 1
        %s1315 = smul.addr %s1314, 16
        %s1316 = smul.addr %s1315, 8
        %s1317 = scalar_lea.vmem %s5, %s1316
        %p1318 = pneg %p179
        %p1319 = pneg %p176
        %p1320 = scmp.lt.s32.totalorder %s106, 1
        %s1321 = scalar_select %p1320, %s106, 1
        %s1322 = smul.addr %s1321, 16
        %s1323 = smul.addr %s1322, 8
        %s1324 = scalar_lea.vmem %s7, %s1323
        %p1325 = pneg %p205
        %p1326 = pneg %p202
        %p1327 = scmp.lt.s32.totalorder %s106, 1
        %s1328 = scalar_select %p1327, %s106, 1
        %s1329 = smul.addr %s1328, 24
        %s1330 = smul.addr %s1329, 8
        %s1331 = scalar_lea.vmem %s9, %s1330
        %p1332 = pneg %p231
        %p1333 = pneg %p228
        %p1334 = pneg %p252
        %p1335 = pneg %p249
        %p1336 = pneg %p273
        %p1337 = pneg %p270
        %p1338 = pneg %p294
        %p1339 = pneg %p291
        %p1340 = pneg %p315
        %p1341 = pneg %p312
        %p1342 = pneg %p336
        %p1343 = pneg %p333
        %p1344 = pneg %p357
        %p1345 = pneg %p354
        %p1346 = pneg %p378
        %p1347 = pneg %p375
        %p1348 = pneg %p399
        %p1349 = pneg %p396
        %p1350 = pneg %p420
        %p1351 = pneg %p417
        %p1352 = pneg %p441
        %p1353 = pneg %p438
        %p1354 = pneg %p462
        %p1355 = pneg %p459
        %p1356 = pneg %p483
        %p1357 = pneg %p480
        %p1358 = pneg %p504
        %p1359 = pneg %p501
        %p1360 = pneg %p525
        %p1361 = pneg %p522
        %p1362 = pneg %p546
        %p1363 = pneg %p543
        %p1364 = pneg %p567
        %p1365 = pneg %p564
        %p1366 = pneg %p588
        %p1367 = pneg %p585
        %p1368 = pneg %p609
        %p1369 = pneg %p606
        %p1370 = pneg %p630
        %p1371 = pneg %p627
        %p1372 = pneg %p651
        %p1373 = pneg %p648
        %p1374 = pneg %p672
        %p1375 = pneg %p669
        %p1376 = pneg %p693
        %p1377 = pneg %p690
        %p1378 = pneg %p714
        %p1379 = pneg %p711
        %p1380 = pneg %p735
        %p1381 = pneg %p732
        %p1382 = pneg %p756
        %p1383 = pneg %p753
        %p1384 = pneg %p777
        %p1385 = pneg %p774
        %p1386 = pneg %p798
        %p1387 = pneg %p795
        %p1388 = pneg %p819
        %p1389 = pneg %p816
        %p1390 = pneg %p840
        %p1391 = pneg %p837
        %p1392 = pneg %p861
        %p1393 = pneg %p858
        %p1394 = pneg %p882
        %p1395 = pneg %p879
        %p1396 = pneg %p903
        %p1397 = pneg %p900
        %p1398 = pneg %p924
        %p1399 = pneg %p921
        %p1400 = pneg %p945
        %p1401 = pneg %p942
        %p1402 = pneg %p966
        %p1403 = pneg %p963
        %p1404 = pneg %p987
        %p1405 = pneg %p984
        %p1406 = pneg %p1008
        %p1407 = pneg %p1005
        %p1408 = pneg %p1029
        %p1409 = pneg %p1026
        %p1410 = pneg %p1055
        %p1411 = pneg %p1052
        %p1412 = scmp.lt.s32.totalorder %s106, 1
        %s1413 = scalar_select %p1412, %s106, 1
        %s1414 = scalar_lea.vmem %s87, %s1413
        %p1415 = pneg %p1081
        %p1416 = pneg %p1078
        %s1417 = sand.u32 %s1068, 1
        %s1418 = scalar_lea.sflag [#allocation4], %s1417
        %s1419 = sand.u32 %s1068, 1
        %s1420 = smul.addr %s1419, 64
        %s1421 = scalar_lea.vmem [#allocation8], %s1420
        %p1422 = scmp.lt.s32.totalorder %s106, 1
        %s1423 = scalar_select %p1422, %s106, 1
        %s1424 = smul.addr %s1423, 16
        %s1425 = smul.addr %s1424, 8
        %s1426 = scalar_lea.vmem %s1, %s1425
        %p1427 = scmp.lt.s32.totalorder %s106, 1
        %s1428 = scalar_select %p1427, %s106, 1
        %s1429 = smul.addr %s1428, 8
        %s1430 = smul.addr %s1429, 8
        %s1431 = scalar_lea.vmem %s3, %s1430
        %p1432 = scmp.lt.s32.totalorder %s106, 1
        %s1433 = scalar_select %p1432, %s106, 1
        %s1434 = smul.addr %s1433, 16
        %s1435 = smul.addr %s1434, 8
        %s1436 = scalar_lea.vmem %s5, %s1435
        %p1437 = scmp.lt.s32.totalorder %s106, 1
        %s1438 = scalar_select %p1437, %s106, 1
        %s1439 = smul.addr %s1438, 16
        %s1440 = smul.addr %s1439, 8
        %s1441 = scalar_lea.vmem %s7, %s1440
        %p1442 = scmp.lt.s32.totalorder %s106, 1
        %s1443 = scalar_select %p1442, %s106, 1
        %s1444 = smul.addr %s1443, 24
        %s1445 = smul.addr %s1444, 8
        %s1446 = scalar_lea.vmem %s9, %s1445
        %p1447 = scmp.lt.s32.totalorder %s106, 1
        %s1448 = scalar_select %p1447, %s106, 1
        %s1449 = scalar_lea.vmem %s87, %s1448
        %v1450 = vld [vmem:[%s1441] sm:$0xff]
        %v1451 = vld [vmem:[%s1441 + $0x8] sm:$0xff]
        %v1452 = vld [vmem:[%s1441 + $0x10] sm:$0xff]
        %v1453 = vld [vmem:[%s1441 + $0x18] sm:$0xff]
        %v1454 = vld [vmem:[%s1441 + $0x20] sm:$0xff]
        %v1455 = vld [vmem:[%s1441 + $0x28] sm:$0xff]
        %v1456 = vld [vmem:[%s1441 + $0x30] sm:$0xff]
        %v1457 = vld [vmem:[%s1441 + $0x38] sm:$0xff]
        %v1458 = vld [vmem:[%s1441 + $0x40] sm:$0xff]
        %v1459 = vld [vmem:[%s1441 + $0x48] sm:$0xff]
        %v1460 = vld [vmem:[%s1441 + $0x50] sm:$0xff]
        %v1461 = vld [vmem:[%s1441 + $0x58] sm:$0xff]
        %v1462 = vld [vmem:[%s1441 + $0x60] sm:$0xff]
        %v1463 = vld [vmem:[%s1441 + $0x68] sm:$0xff]
        %v1464 = vld [vmem:[%s1441 + $0x70] sm:$0xff]
        %v1465 = vld [vmem:[%s1441 + $0x78] sm:$0xff]
        %v1466 = vld [vmem:[%s15] sm:$0xf]
        %v1467 = vld [vmem:[%s17] sm:$0x1]
        %v1469 = vlaneseq
        %v1470 = vshrl.u32 %v1469, 7
        %v1471 = vsub.s32 0, %v1470
        %v1472 = vrot.slane %v1467, %v1471
        %vm1474 = vcmask 31744
        %v1476 = vsel %vm1474, %v1450, 0
        %v1479 = vsel %vm1474, %v1451, 0
        %v1482 = vsel %vm1474, %v1452, 0
        %v1485 = vsel %vm1474, %v1453, 0
        %v1488 = vsel %vm1474, %v1454, 0
        %v1491 = vsel %vm1474, %v1455, 0
        %v1494 = vsel %vm1474, %v1456, 0
        %v1497 = vsel %vm1474, %v1457, 0
        %v1500 = vsel %vm1474, %v1458, 0
        %v1503 = vsel %vm1474, %v1459, 0
        %v1506 = vsel %vm1474, %v1460, 0
        %v1509 = vsel %vm1474, %v1461, 0
        %v1512 = vsel %vm1474, %v1462, 0
        %v1515 = vsel %vm1474, %v1463, 0
        %v1518 = vsel %vm1474, %v1464, 0
        %v1521 = vsel %vm1474, %v1465, 0
        %vm1523 = vcmask 1043456
        %v1525 = vsel %vm1523, %v1466, 0
        %1527 = vmatprep.subr.mxu0 0.0
        %1528 = vmatpush1.msra.mxu0 %v1525
        %1529 = vmatprep.subr.mxu0 0.0
        %1530 = vmatpush1.msra.mxu0 0.0
        %1531 = vmatprep.subr.mxu0 0.0
        %1532 = vmatpush1.msra.mxu0 0.0
        %1533 = vmatprep.subr.mxu0 0.0
        %1534 = vmatpush1.msra.mxu0 0.0
        %1535 = vmatprep.subr.mxu0 0.0
        %1536 = vmatpush1.msra.mxu0 0.0
        %1537 = vmatprep.subr.mxu0 0.0
        %1538 = vmatpush1.msra.mxu0 0.0
        %1539 = vmatprep.subr.mxu0 0.0
        %1540 = vmatpush1.msra.mxu0 0.0
        %1541 = vmatprep.subr.mxu0 0.0
        %1542 = vmatpush1.msra.mxu0 0.0
        %1543 = vmatprep.subr.mxu0 0.0
        %1544 = vmatpush1.msra.mxu0 0.0
        %1545 = vmatprep.subr.mxu0 0.0
        %1546 = vmatpush1.msra.mxu0 0.0
        %1547 = vmatprep.subr.mxu0 0.0
        %1548 = vmatpush1.msra.mxu0 0.0
        %1549 = vmatprep.subr.mxu0 0.0
        %1550 = vmatpush1.msra.mxu0 0.0
        %1551 = vmatprep.subr.mxu0 0.0
        %1552 = vmatpush1.msra.mxu0 0.0
        %1553 = vmatprep.subr.mxu0 0.0
        %1554 = vmatpush1.msra.mxu0 0.0
        %1555 = vmatprep.subr.mxu0 0.0
        %1556 = vmatpush1.msra.mxu0 0.0
        %1557 = vmatprep.subr.mxu0 0.0
        %1558 = vmatpush1.msra.mxu0 0.0
        %1559 = vmatprep.subr.mxu0 0.0
        %1560 = vmatpush1.msra.mxu0 0.0
        %1561 = vmatprep.subr.mxu0 0.0
        %1562 = vmatpush1.msra.mxu0 0.0
        %1563 = vmatprep.subr.mxu0 0.0
        %1564 = vmatpush1.msra.mxu0 0.0
        %1565 = vmatprep.subr.mxu0 0.0
        %1566 = vmatpush1.msra.mxu0 0.0
        %1567 = vmatprep.subr.mxu0 0.0
        %1568 = vmatpush1.msra.mxu0 0.0
        %1569 = vmatprep.subr.mxu0 0.0
        %1570 = vmatpush1.msra.mxu0 0.0
        %1571 = vmatprep.subr.mxu0 0.0
        %1572 = vmatpush1.msra.mxu0 0.0
        %1573 = vmatprep.subr.mxu0 0.0
        %1574 = vmatpush1.msra.mxu0 0.0
        %1575 = vmatprep.subr.mxu0 0.0
        %1576 = vmatpush1.msra.mxu0 0.0
        %1577 = vmatprep.subr.mxu0 0.0
        %1578 = vmatpush1.msra.mxu0 0.0
        %1579 = vmatprep.subr.mxu0 0.0
        %1580 = vmatpush1.msra.mxu0 0.0
        %1581 = vmatprep.subr.mxu0 0.0
        %1582 = vmatpush1.msra.mxu0 0.0
        %1583 = vmatprep.subr.mxu0 0.0
        %1584 = vmatpush1.msra.mxu0 0.0
        %1585 = vmatprep.subr.mxu0 0.0
        %1586 = vmatpush1.msra.mxu0 0.0
        %1587 = vmatprep.subr.mxu0 0.0
        %1588 = vmatpush1.msra.mxu0 0.0
        %1589 = vmatprep.subr.mxu0 0.0
        %1590 = vmatpush1.msra.mxu0 0.0
        %1591 = vmatprep.mubr.f32.mxu0 0.0
        %1592 = vmatmul.mubr.f32.gmra.mrb[0].mxu0 %v1476
        %v1593 = vpop.f32.mrb[0].mxu0
        %v1594 = vadd.f32 %v1472, %v1593
        %v1595 = vpop.f32.mrb[0].mxu0
        %1596 = vmatprep.mubr.f32.mxu0 0.0
        %1597 = vmatmul.mubr.f32.gmra.mrb[0].mxu0 %v1479
        %v1598 = vpop.f32.mrb[0].mxu0
        %v1599 = vadd.f32 %v1472, %v1598
        %v1600 = vpop.f32.mrb[0].mxu0
        %1601 = vmatprep.mubr.f32.mxu0 0.0
        %1602 = vmatmul.mubr.f32.gmra.mrb[0].mxu0 %v1482
        %v1603 = vpop.f32.mrb[0].mxu0
        %v1604 = vadd.f32 %v1472, %v1603
        %v1605 = vpop.f32.mrb[0].mxu0
        %1606 = vmatprep.mubr.f32.mxu0 0.0
        %1607 = vmatmul.mubr.f32.gmra.mrb[0].mxu0 %v1485
        %v1608 = vpop.f32.mrb[0].mxu0
        %v1609 = vadd.f32 %v1472, %v1608
        %v1610 = vpop.f32.mrb[0].mxu0
        %1611 = vmatprep.mubr.f32.mxu0 0.0
        %1612 = vmatmul.mubr.f32.gmra.mrb[0].mxu0 %v1488
        %v1613 = vpop.f32.mrb[0].mxu0
        %v1614 = vadd.f32 %v1472, %v1613
        %v1615 = vpop.f32.mrb[0].mxu0
        %1616 = vmatprep.mubr.f32.mxu0 0.0
        %1617 = vmatmul.mubr.f32.gmra.mrb[0].mxu0 %v1491
        %v1618 = vpop.f32.mrb[0].mxu0
        %v1619 = vadd.f32 %v1472, %v1618
        %v1620 = vpop.f32.mrb[0].mxu0
        %1621 = vmatprep.mubr.f32.mxu0 0.0
        %1622 = vmatmul.mubr.f32.gmra.mrb[0].mxu0 %v1494
        %v1623 = vpop.f32.mrb[0].mxu0
        %v1624 = vadd.f32 %v1472, %v1623
        %v1625 = vpop.f32.mrb[0].mxu0
        %1626 = vmatprep.mubr.f32.mxu0 0.0
        %1627 = vmatmul.mubr.f32.gmra.mrb[0].mxu0 %v1497
        %v1628 = vpop.f32.mrb[0].mxu0
        %v1629 = vadd.f32 %v1472, %v1628
        %v1630 = vpop.f32.mrb[0].mxu0
        %1631 = vmatprep.mubr.f32.mxu0 0.0
        %1632 = vmatmul.mubr.f32.gmra.mrb[0].mxu0 %v1500
        %v1633 = vpop.f32.mrb[0].mxu0
        %v1634 = vadd.f32 %v1472, %v1633
        %v1635 = vpop.f32.mrb[0].mxu0
        %1636 = vmatprep.mubr.f32.mxu0 0.0
        %1637 = vmatmul.mubr.f32.gmra.mrb[0].mxu0 %v1503
        %v1638 = vpop.f32.mrb[0].mxu0
        %v1639 = vadd.f32 %v1472, %v1638
        %v1640 = vpop.f32.mrb[0].mxu0
        %1641 = vmatprep.mubr.f32.mxu0 0.0
        %1642 = vmatmul.mubr.f32.gmra.mrb[0].mxu0 %v1506
        %v1643 = vpop.f32.mrb[0].mxu0
        %v1644 = vadd.f32 %v1472, %v1643
        %v1645 = vpop.f32.mrb[0].mxu0
        %1646 = vmatprep.mubr.f32.mxu0 0.0
        %1647 = vmatmul.mubr.f32.gmra.mrb[0].mxu0 %v1509
        %v1648 = vpop.f32.mrb[0].mxu0
        %v1649 = vadd.f32 %v1472, %v1648
        %v1650 = vpop.f32.mrb[0].mxu0
        %1651 = vmatprep.mubr.f32.mxu0 0.0
        %1652 = vmatmul.mubr.f32.gmra.mrb[0].mxu0 %v1512
        %v1653 = vpop.f32.mrb[0].mxu0
        %v1654 = vadd.f32 %v1472, %v1653
        %v1655 = vpop.f32.mrb[0].mxu0
        %1656 = vmatprep.mubr.f32.mxu0 0.0
        %1657 = vmatmul.mubr.f32.gmra.mrb[0].mxu0 %v1515
        %v1658 = vpop.f32.mrb[0].mxu0
        %v1659 = vadd.f32 %v1472, %v1658
        %v1660 = vpop.f32.mrb[0].mxu0
        %1661 = vmatprep.mubr.f32.mxu0 0.0
        %1662 = vmatmul.mubr.f32.gmra.mrb[0].mxu0 %v1518
        %v1663 = vpop.f32.mrb[0].mxu0
        %v1664 = vadd.f32 %v1472, %v1663
        %v1665 = vpop.f32.mrb[0].mxu0
        %1666 = vmatprep.mubr.f32.mxu0 0.0
        %1667 = vmatmul.mubr.f32.gmra.mrb[0].mxu0 %v1521
        %v1668 = vpop.f32.mrb[0].mxu0
        %v1669 = vadd.f32 %v1472, %v1668
        %v1670 = vpop.f32.mrb[0].mxu0
        %1671 = vdwg.mxu0
        %v1672 = vmax.f32 %v1594, 0.0
        %v1673 = vmax.f32 %v1599, 0.0
        %v1674 = vmax.f32 %v1604, 0.0
        %v1675 = vmax.f32 %v1609, 0.0
        %v1676 = vmax.f32 %v1614, 0.0
        %v1677 = vmax.f32 %v1619, 0.0
        %v1678 = vmax.f32 %v1624, 0.0
        %v1679 = vmax.f32 %v1629, 0.0
        %v1680 = vmax.f32 %v1634, 0.0
        %v1681 = vmax.f32 %v1639, 0.0
        %v1682 = vmax.f32 %v1644, 0.0
        %v1683 = vmax.f32 %v1649, 0.0
        %v1684 = vmax.f32 %v1654, 0.0
        %v1685 = vmax.f32 %v1659, 0.0
        %v1686 = vmax.f32 %v1664, 0.0
        %v1687 = vmax.f32 %v1669, 0.0
        %v1688 = vld [vmem:[%s19] sm:$0xff]
        %v1689 = vld [vmem:[%s21] sm:$0x1]
        %v1691 = vlaneseq
        %v1692 = vshrl.u32 %v1691, 7
        %v1693 = vsub.s32 0, %v1692
        %v1694 = vrot.slane %v1689, %v1693
        %vm1696 = vcmask 64512
        %v1698 = vsel %vm1696, %v1672, 0
        %v1701 = vsel %vm1696, %v1673, 0
        %v1704 = vsel %vm1696, %v1674, 0
        %v1707 = vsel %vm1696, %v1675, 0
        %v1710 = vsel %vm1696, %v1676, 0
        %v1713 = vsel %vm1696, %v1677, 0
        %v1716 = vsel %vm1696, %v1678, 0
        %v1719 = vsel %vm1696, %v1679, 0
        %v1722 = vsel %vm1696, %v1680, 0
        %v1725 = vsel %vm1696, %v1681, 0
        %v1728 = vsel %vm1696, %v1682, 0
        %v1731 = vsel %vm1696, %v1683, 0
        %v1734 = vsel %vm1696, %v1684, 0
        %v1737 = vsel %vm1696, %v1685, 0
        %v1740 = vsel %vm1696, %v1686, 0
        %v1743 = vsel %vm1696, %v1687, 0
        %1745 = vmatprep.subr.mxu0 0.0
        %1746 = vmatpush1.msra.mxu0 %v1688
        %1747 = vmatprep.subr.mxu0 0.0
        %1748 = vmatpush1.msra.mxu0 0.0
        %1749 = vmatprep.subr.mxu0 0.0
        %1750 = vmatpush1.msra.mxu0 0.0
        %1751 = vmatprep.subr.mxu0 0.0
        %1752 = vmatpush1.msra.mxu0 0.0
        %1753 = vmatprep.subr.mxu0 0.0
        %1754 = vmatpush1.msra.mxu0 0.0
        %1755 = vmatprep.subr.mxu0 0.0
        %1756 = vmatpush1.msra.mxu0 0.0
        %1757 = vmatprep.subr.mxu0 0.0
        %1758 = vmatpush1.msra.mxu0 0.0
        %1759 = vmatprep.subr.mxu0 0.0
        %1760 = vmatpush1.msra.mxu0 0.0
        %1761 = vmatprep.subr.mxu0 0.0
        %1762 = vmatpush1.msra.mxu0 0.0
        %1763 = vmatprep.subr.mxu0 0.0
        %1764 = vmatpush1.msra.mxu0 0.0
        %1765 = vmatprep.subr.mxu0 0.0
        %1766 = vmatpush1.msra.mxu0 0.0
        %1767 = vmatprep.subr.mxu0 0.0
        %1768 = vmatpush1.msra.mxu0 0.0
        %1769 = vmatprep.subr.mxu0 0.0
        %1770 = vmatpush1.msra.mxu0 0.0
        %1771 = vmatprep.subr.mxu0 0.0
        %1772 = vmatpush1.msra.mxu0 0.0
        %1773 = vmatprep.subr.mxu0 0.0
        %1774 = vmatpush1.msra.mxu0 0.0
        %1775 = vmatprep.subr.mxu0 0.0
        %1776 = vmatpush1.msra.mxu0 0.0
        %1777 = vmatprep.subr.mxu0 0.0
        %1778 = vmatpush1.msra.mxu0 0.0
        %1779 = vmatprep.subr.mxu0 0.0
        %1780 = vmatpush1.msra.mxu0 0.0
        %1781 = vmatprep.subr.mxu0 0.0
        %1782 = vmatpush1.msra.mxu0 0.0
        %1783 = vmatprep.subr.mxu0 0.0
        %1784 = vmatpush1.msra.mxu0 0.0
        %1785 = vmatprep.subr.mxu0 0.0
        %1786 = vmatpush1.msra.mxu0 0.0
        %1787 = vmatprep.subr.mxu0 0.0
        %1788 = vmatpush1.msra.mxu0 0.0
        %1789 = vmatprep.subr.mxu0 0.0
        %1790 = vmatpush1.msra.mxu0 0.0
        %1791 = vmatprep.subr.mxu0 0.0
        %1792 = vmatpush1.msra.mxu0 0.0
        %1793 = vmatprep.subr.mxu0 0.0
        %1794 = vmatpush1.msra.mxu0 0.0
        %1795 = vmatprep.subr.mxu0 0.0
        %1796 = vmatpush1.msra.mxu0 0.0
        %1797 = vmatprep.subr.mxu0 0.0
        %1798 = vmatpush1.msra.mxu0 0.0
        %1799 = vmatprep.subr.mxu0 0.0
        %1800 = vmatpush1.msra.mxu0 0.0
        %1801 = vmatprep.subr.mxu0 0.0
        %1802 = vmatpush1.msra.mxu0 0.0
        %1803 = vmatprep.subr.mxu0 0.0
        %1804 = vmatpush1.msra.mxu0 0.0
        %1805 = vmatprep.subr.mxu0 0.0
        %1806 = vmatpush1.msra.mxu0 0.0
        %1807 = vmatprep.subr.mxu0 0.0
        %1808 = vmatpush1.msra.mxu0 0.0
        %1809 = vmatprep.mubr.f32.mxu0 0.0
        %1810 = vmatmul.mubr.f32.gmra.mrb[0].mxu0 %v1698
        %v1811 = vpop.f32.mrb[0].mxu0
        %v1812 = vadd.f32 %v1694, %v1811
        %v1813 = vpop.f32.mrb[0].mxu0
        %1814 = vmatprep.mubr.f32.mxu0 0.0
        %1815 = vmatmul.mubr.f32.gmra.mrb[0].mxu0 %v1701
        %v1816 = vpop.f32.mrb[0].mxu0
        %v1817 = vadd.f32 %v1694, %v1816
        %v1818 = vpop.f32.mrb[0].mxu0
        %1819 = vmatprep.mubr.f32.mxu0 0.0
        %1820 = vmatmul.mubr.f32.gmra.mrb[0].mxu0 %v1704
        %v1821 = vpop.f32.mrb[0].mxu0
        %v1822 = vadd.f32 %v1694, %v1821
        %v1823 = vpop.f32.mrb[0].mxu0
        %1824 = vmatprep.mubr.f32.mxu0 0.0
        %1825 = vmatmul.mubr.f32.gmra.mrb[0].mxu0 %v1707
        %v1826 = vpop.f32.mrb[0].mxu0
        %v1827 = vadd.f32 %v1694, %v1826
        %v1828 = vpop.f32.mrb[0].mxu0
        %1829 = vmatprep.mubr.f32.mxu0 0.0
        %1830 = vmatmul.mubr.f32.gmra.mrb[0].mxu0 %v1710
        %v1831 = vpop.f32.mrb[0].mxu0
        %v1832 = vadd.f32 %v1694, %v1831
        %v1833 = vpop.f32.mrb[0].mxu0
        %1834 = vmatprep.mubr.f32.mxu0 0.0
        %1835 = vmatmul.mubr.f32.gmra.mrb[0].mxu0 %v1713
        %v1836 = vpop.f32.mrb[0].mxu0
        %v1837 = vadd.f32 %v1694, %v1836
        %v1838 = vpop.f32.mrb[0].mxu0
        %1839 = vmatprep.mubr.f32.mxu0 0.0
        %1840 = vmatmul.mubr.f32.gmra.mrb[0].mxu0 %v1716
        %v1841 = vpop.f32.mrb[0].mxu0
        %v1842 = vadd.f32 %v1694, %v1841
        %v1843 = vpop.f32.mrb[0].mxu0
        %1844 = vmatprep.mubr.f32.mxu0 0.0
        %1845 = vmatmul.mubr.f32.gmra.mrb[0].mxu0 %v1719
        %v1846 = vpop.f32.mrb[0].mxu0
        %v1847 = vadd.f32 %v1694, %v1846
        %v1848 = vpop.f32.mrb[0].mxu0
        %1849 = vmatprep.mubr.f32.mxu0 0.0
        %1850 = vmatmul.mubr.f32.gmra.mrb[0].mxu0 %v1722
        %v1851 = vpop.f32.mrb[0].mxu0
        %v1852 = vadd.f32 %v1694, %v1851
        %v1853 = vpop.f32.mrb[0].mxu0
        %1854 = vmatprep.mubr.f32.mxu0 0.0
        %1855 = vmatmul.mubr.f32.gmra.mrb[0].mxu0 %v1725
        %v1856 = vpop.f32.mrb[0].mxu0
        %v1857 = vadd.f32 %v1694, %v1856
        %v1858 = vpop.f32.mrb[0].mxu0
        %1859 = vmatprep.mubr.f32.mxu0 0.0
        %1860 = vmatmul.mubr.f32.gmra.mrb[0].mxu0 %v1728
        %v1861 = vpop.f32.mrb[0].mxu0
        %v1862 = vadd.f32 %v1694, %v1861
        %v1863 = vpop.f32.mrb[0].mxu0
        %1864 = vmatprep.mubr.f32.mxu0 0.0
        %1865 = vmatmul.mubr.f32.gmra.mrb[0].mxu0 %v1731
        %v1866 = vpop.f32.mrb[0].mxu0
        %v1867 = vadd.f32 %v1694, %v1866
        %v1868 = vpop.f32.mrb[0].mxu0
        %1869 = vmatprep.mubr.f32.mxu0 0.0
        %1870 = vmatmul.mubr.f32.gmra.mrb[0].mxu0 %v1734
        %v1871 = vpop.f32.mrb[0].mxu0
        %v1872 = vadd.f32 %v1694, %v1871
        %v1873 = vpop.f32.mrb[0].mxu0
        %1874 = vmatprep.mubr.f32.mxu0 0.0
        %1875 = vmatmul.mubr.f32.gmra.mrb[0].mxu0 %v1737
        %v1876 = vpop.f32.mrb[0].mxu0
        %v1877 = vadd.f32 %v1694, %v1876
        %v1878 = vpop.f32.mrb[0].mxu0
        %1879 = vmatprep.mubr.f32.mxu0 0.0
        %1880 = vmatmul.mubr.f32.gmra.mrb[0].mxu0 %v1740
        %v1881 = vpop.f32.mrb[0].mxu0
        %v1882 = vadd.f32 %v1694, %v1881
        %v1883 = vpop.f32.mrb[0].mxu0
        %1884 = vmatprep.mubr.f32.mxu0 0.0
        %1885 = vmatmul.mubr.f32.gmra.mrb[0].mxu0 %v1743
        %v1886 = vpop.f32.mrb[0].mxu0
        %v1887 = vadd.f32 %v1694, %v1886
        %v1888 = vpop.f32.mrb[0].mxu0
        %1889 = vdwg.mxu0
        %v1890 = vmax.f32 %v1812, 0.0
        %v1891 = vmax.f32 %v1817, 0.0
        %v1892 = vmax.f32 %v1822, 0.0
        %v1893 = vmax.f32 %v1827, 0.0
        %v1894 = vmax.f32 %v1832, 0.0
        %v1895 = vmax.f32 %v1837, 0.0
        %v1896 = vmax.f32 %v1842, 0.0
        %v1897 = vmax.f32 %v1847, 0.0
        %v1898 = vmax.f32 %v1852, 0.0
        %v1899 = vmax.f32 %v1857, 0.0
        %v1900 = vmax.f32 %v1862, 0.0
        %v1901 = vmax.f32 %v1867, 0.0
        %v1902 = vmax.f32 %v1872, 0.0
        %v1903 = vmax.f32 %v1877, 0.0
        %v1904 = vmax.f32 %v1882, 0.0
        %v1905 = vmax.f32 %v1887, 0.0
        %v1906 = vld [vmem:[#allocation7] sm:$0xff]
        %v1907 = vld [vmem:[#allocation7 + $0x8] sm:$0xff]
        %v1908 = vld [vmem:[#allocation7 + $0x10] sm:$0xff]
        %v1909 = vld [vmem:[#allocation7 + $0x18] sm:$0xff]
        %v1910 = vld [vmem:[%s25] sm:$0x1]
        %v1912 = vlaneseq
        %v1913 = vshrl.u32 %v1912, 7
        %v1914 = vsub.s32 0, %v1913
        %v1915 = vrot.slane %v1910, %v1914
        %vm1917 = vcmask 261120
        %v1919 = vsel %vm1917, %v1890, 0
        %v1922 = vsel %vm1917, %v1891, 0
        %v1925 = vsel %vm1917, %v1892, 0
        %v1928 = vsel %vm1917, %v1893, 0
        %v1931 = vsel %vm1917, %v1894, 0
        %v1934 = vsel %vm1917, %v1895, 0
        %v1937 = vsel %vm1917, %v1896, 0
        %v1940 = vsel %vm1917, %v1897, 0
        %v1943 = vsel %vm1917, %v1898, 0
        %v1946 = vsel %vm1917, %v1899, 0
        %v1949 = vsel %vm1917, %v1900, 0
        %v1952 = vsel %vm1917, %v1901, 0
        %v1955 = vsel %vm1917, %v1902, 0
        %v1958 = vsel %vm1917, %v1903, 0
        %v1961 = vsel %vm1917, %v1904, 0
        %v1964 = vsel %vm1917, %v1905, 0
        %1966 = vmatprep.subr.mxu0 0.0
        %1967 = vmatpush1.msra.mxu0 %v1906
        %1968 = vmatprep.subr.mxu0 0.0
        %1969 = vmatpush1.msra.mxu0 %v1907
        %1970 = vmatprep.subr.mxu0 0.0
        %1971 = vmatpush1.msra.mxu0 %v1908
        %1972 = vmatprep.subr.mxu0 0.0
        %1973 = vmatpush1.msra.mxu0 %v1909
        %1974 = vmatprep.subr.mxu0 0.0
        %1975 = vmatpush1.msra.mxu0 0.0
        %1976 = vmatprep.subr.mxu0 0.0
        %1977 = vmatpush1.msra.mxu0 0.0
        %1978 = vmatprep.subr.mxu0 0.0
        %1979 = vmatpush1.msra.mxu0 0.0
        %1980 = vmatprep.subr.mxu0 0.0
        %1981 = vmatpush1.msra.mxu0 0.0
        %1982 = vmatprep.subr.mxu0 0.0
        %1983 = vmatpush1.msra.mxu0 0.0
        %1984 = vmatprep.subr.mxu0 0.0
        %1985 = vmatpush1.msra.mxu0 0.0
        %1986 = vmatprep.subr.mxu0 0.0
        %1987 = vmatpush1.msra.mxu0 0.0
        %1988 = vmatprep.subr.mxu0 0.0
        %1989 = vmatpush1.msra.mxu0 0.0
        %1990 = vmatprep.subr.mxu0 0.0
        %1991 = vmatpush1.msra.mxu0 0.0
        %1992 = vmatprep.subr.mxu0 0.0
        %1993 = vmatpush1.msra.mxu0 0.0
        %1994 = vmatprep.subr.mxu0 0.0
        %1995 = vmatpush1.msra.mxu0 0.0
        %1996 = vmatprep.subr.mxu0 0.0
        %1997 = vmatpush1.msra.mxu0 0.0
        %1998 = vmatprep.subr.mxu0 0.0
        %1999 = vmatpush1.msra.mxu0 0.0
        %2000 = vmatprep.subr.mxu0 0.0
        %2001 = vmatpush1.msra.mxu0 0.0
        %2002 = vmatprep.subr.mxu0 0.0
        %2003 = vmatpush1.msra.mxu0 0.0
        %2004 = vmatprep.subr.mxu0 0.0
        %2005 = vmatpush1.msra.mxu0 0.0
        %2006 = vmatprep.subr.mxu0 0.0
        %2007 = vmatpush1.msra.mxu0 0.0
        %2008 = vmatprep.subr.mxu0 0.0
        %2009 = vmatpush1.msra.mxu0 0.0
        %2010 = vmatprep.subr.mxu0 0.0
        %2011 = vmatpush1.msra.mxu0 0.0
        %2012 = vmatprep.subr.mxu0 0.0
        %2013 = vmatpush1.msra.mxu0 0.0
        %2014 = vmatprep.subr.mxu0 0.0
        %2015 = vmatpush1.msra.mxu0 0.0
        %2016 = vmatprep.subr.mxu0 0.0
        %2017 = vmatpush1.msra.mxu0 0.0
        %2018 = vmatprep.subr.mxu0 0.0
        %2019 = vmatpush1.msra.mxu0 0.0
        %2020 = vmatprep.subr.mxu0 0.0
        %2021 = vmatpush1.msra.mxu0 0.0
        %2022 = vmatprep.subr.mxu0 0.0
        %2023 = vmatpush1.msra.mxu0 0.0
        %2024 = vmatprep.subr.mxu0 0.0
        %2025 = vmatpush1.msra.mxu0 0.0
        %2026 = vmatprep.subr.mxu0 0.0
        %2027 = vmatpush1.msra.mxu0 0.0
        %2028 = vmatprep.subr.mxu0 0.0
        %2029 = vmatpush1.msra.mxu0 0.0
        %2030 = vmatprep.mubr.f32.mxu0 0.0
        %2031 = vmatmul.mubr.f32.gmra.mrb[0].mxu0 %v1919
        %v2032 = vpop.f32.mrb[0].mxu0
        %v2033 = vadd.f32 %v1915, %v2032
        %v2034 = vpop.f32.mrb[0].mxu0
        %2035 = vmatprep.mubr.f32.mxu0 0.0
        %2036 = vmatmul.mubr.f32.gmra.mrb[0].mxu0 %v1922
        %v2037 = vpop.f32.mrb[0].mxu0
        %v2038 = vadd.f32 %v1915, %v2037
        %v2039 = vpop.f32.mrb[0].mxu0
        %2040 = vmatprep.mubr.f32.mxu0 0.0
        %2041 = vmatmul.mubr.f32.gmra.mrb[0].mxu0 %v1925
        %v2042 = vpop.f32.mrb[0].mxu0
        %v2043 = vadd.f32 %v1915, %v2042
        %v2044 = vpop.f32.mrb[0].mxu0
        %2045 = vmatprep.mubr.f32.mxu0 0.0
        %2046 = vmatmul.mubr.f32.gmra.mrb[0].mxu0 %v1928
        %v2047 = vpop.f32.mrb[0].mxu0
        %v2048 = vadd.f32 %v1915, %v2047
        %v2049 = vpop.f32.mrb[0].mxu0
        %2050 = vmatprep.mubr.f32.mxu0 0.0
        %2051 = vmatmul.mubr.f32.gmra.mrb[0].mxu0 %v1931
        %v2052 = vpop.f32.mrb[0].mxu0
        %v2053 = vadd.f32 %v1915, %v2052
        %v2054 = vpop.f32.mrb[0].mxu0
        %2055 = vmatprep.mubr.f32.mxu0 0.0
        %2056 = vmatmul.mubr.f32.gmra.mrb[0].mxu0 %v1934
        %v2057 = vpop.f32.mrb[0].mxu0
        %v2058 = vadd.f32 %v1915, %v2057
        %v2059 = vpop.f32.mrb[0].mxu0
        %2060 = vmatprep.mubr.f32.mxu0 0.0
        %2061 = vmatmul.mubr.f32.gmra.mrb[0].mxu0 %v1937
        %v2062 = vpop.f32.mrb[0].mxu0
        %v2063 = vadd.f32 %v1915, %v2062
        %v2064 = vpop.f32.mrb[0].mxu0
        %2065 = vmatprep.mubr.f32.mxu0 0.0
        %2066 = vmatmul.mubr.f32.gmra.mrb[0].mxu0 %v1940
        %v2067 = vpop.f32.mrb[0].mxu0
        %v2068 = vadd.f32 %v1915, %v2067
        %v2069 = vpop.f32.mrb[0].mxu0
        %2070 = vmatprep.mubr.f32.mxu0 0.0
        %2071 = vmatmul.mubr.f32.gmra.mrb[0].mxu0 %v1943
        %v2072 = vpop.f32.mrb[0].mxu0
        %v2073 = vadd.f32 %v1915, %v2072
        %v2074 = vpop.f32.mrb[0].mxu0
        %2075 = vmatprep.mubr.f32.mxu0 0.0
        %2076 = vmatmul.mubr.f32.gmra.mrb[0].mxu0 %v1946
        %v2077 = vpop.f32.mrb[0].mxu0
        %v2078 = vadd.f32 %v1915, %v2077
        %v2079 = vpop.f32.mrb[0].mxu0
        %2080 = vmatprep.mubr.f32.mxu0 0.0
        %2081 = vmatmul.mubr.f32.gmra.mrb[0].mxu0 %v1949
        %v2082 = vpop.f32.mrb[0].mxu0
        %v2083 = vadd.f32 %v1915, %v2082
        %v2084 = vpop.f32.mrb[0].mxu0
        %2085 = vmatprep.mubr.f32.mxu0 0.0
        %2086 = vmatmul.mubr.f32.gmra.mrb[0].mxu0 %v1952
        %v2087 = vpop.f32.mrb[0].mxu0
        %v2088 = vadd.f32 %v1915, %v2087
        %v2089 = vpop.f32.mrb[0].mxu0
        %2090 = vmatprep.mubr.f32.mxu0 0.0
        %2091 = vmatmul.mubr.f32.gmra.mrb[0].mxu0 %v1955
        %v2092 = vpop.f32.mrb[0].mxu0
        %v2093 = vadd.f32 %v1915, %v2092
        %v2094 = vpop.f32.mrb[0].mxu0
        %2095 = vmatprep.mubr.f32.mxu0 0.0
        %2096 = vmatmul.mubr.f32.gmra.mrb[0].mxu0 %v1958
        %v2097 = vpop.f32.mrb[0].mxu0
        %v2098 = vadd.f32 %v1915, %v2097
        %v2099 = vpop.f32.mrb[0].mxu0
        %2100 = vmatprep.mubr.f32.mxu0 0.0
        %2101 = vmatmul.mubr.f32.gmra.mrb[0].mxu0 %v1961
        %v2102 = vpop.f32.mrb[0].mxu0
        %v2103 = vadd.f32 %v1915, %v2102
        %v2104 = vpop.f32.mrb[0].mxu0
        %2105 = vmatprep.mubr.f32.mxu0 0.0
        %2106 = vmatmul.mubr.f32.gmra.mrb[0].mxu0 %v1964
        %v2107 = vpop.f32.mrb[0].mxu0
        %v2108 = vadd.f32 %v1915, %v2107
        %v2109 = vpop.f32.mrb[0].mxu0
        %2110 = vdwg.mxu0
        %v2111 = vld [vmem:[%s1426] sm:$0xff]
        %v2112 = vld [vmem:[%s1426 + $0x8] sm:$0xff]
        %v2113 = vld [vmem:[%s1426 + $0x10] sm:$0xff]
        %v2114 = vld [vmem:[%s1426 + $0x18] sm:$0xff]
        %v2115 = vld [vmem:[%s1426 + $0x20] sm:$0xff]
        %v2116 = vld [vmem:[%s1426 + $0x28] sm:$0xff]
        %v2117 = vld [vmem:[%s1426 + $0x30] sm:$0xff]
        %v2118 = vld [vmem:[%s1426 + $0x38] sm:$0xff]
        %v2119 = vld [vmem:[%s1426 + $0x40] sm:$0xff]
        %v2120 = vld [vmem:[%s1426 + $0x48] sm:$0xff]
        %v2121 = vld [vmem:[%s1426 + $0x50] sm:$0xff]
        %v2122 = vld [vmem:[%s1426 + $0x58] sm:$0xff]
        %v2123 = vld [vmem:[%s1426 + $0x60] sm:$0xff]
        %v2124 = vld [vmem:[%s1426 + $0x68] sm:$0xff]
        %v2125 = vld [vmem:[%s1426 + $0x70] sm:$0xff]
        %v2126 = vld [vmem:[%s1426 + $0x78] sm:$0xff]
        %v2127 = vld [vmem:[#allocation2] sm:$0x1]
        %v2128 = vld [vmem:[%s1436] sm:$0xff]
        %v2129 = vld [vmem:[%s1436 + $0x8] sm:$0xff]
        %v2130 = vld [vmem:[%s1436 + $0x10] sm:$0xff]
        %v2131 = vld [vmem:[%s1436 + $0x18] sm:$0xff]
        %v2132 = vld [vmem:[%s1436 + $0x20] sm:$0xff]
        %v2133 = vld [vmem:[%s1436 + $0x28] sm:$0xff]
        %v2134 = vld [vmem:[%s1436 + $0x30] sm:$0xff]
        %v2135 = vld [vmem:[%s1436 + $0x38] sm:$0xff]
        %v2136 = vld [vmem:[%s1436 + $0x40] sm:$0xff]
        %v2137 = vld [vmem:[%s1436 + $0x48] sm:$0xff]
        %v2138 = vld [vmem:[%s1436 + $0x50] sm:$0xff]
        %v2139 = vld [vmem:[%s1436 + $0x58] sm:$0xff]
        %v2140 = vld [vmem:[%s1436 + $0x60] sm:$0xff]
        %v2141 = vld [vmem:[%s1436 + $0x68] sm:$0xff]
        %v2142 = vld [vmem:[%s1436 + $0x70] sm:$0xff]
        %v2143 = vld [vmem:[%s1436 + $0x78] sm:$0xff]
        %v2145 = vlaneseq
        %v2146 = vshrl.u32 %v2145, 7
        %v2147 = vsub.s32 0, %v2146
        %v2148 = vrot.slane %v2127, %v2147
        %2151 = vset.pattern.permute.xlu0 0
        %2152 = vperm.xlu0 %2151, %v2128
        %v2153 = vpop.permute.xlu0 %2152
        %2156 = vset.pattern.permute.xlu0 0
        %2157 = vperm.xlu0 %2156, %v2129
        %v2158 = vpop.permute.xlu0 %2157
        %2161 = vset.pattern.permute.xlu0 0
        %2162 = vperm.xlu0 %2161, %v2130
        %v2163 = vpop.permute.xlu0 %2162
        %2166 = vset.pattern.permute.xlu0 0
        %2167 = vperm.xlu0 %2166, %v2131
        %v2168 = vpop.permute.xlu0 %2167
        %2171 = vset.pattern.permute.xlu0 0
        %2172 = vperm.xlu0 %2171, %v2132
        %v2173 = vpop.permute.xlu0 %2172
        %2176 = vset.pattern.permute.xlu0 0
        %2177 = vperm.xlu0 %2176, %v2133
        %v2178 = vpop.permute.xlu0 %2177
        %2181 = vset.pattern.permute.xlu0 0
        %2182 = vperm.xlu0 %2181, %v2134
        %v2183 = vpop.permute.xlu0 %2182
        %2186 = vset.pattern.permute.xlu0 0
        %2187 = vperm.xlu0 %2186, %v2135
        %v2188 = vpop.permute.xlu0 %2187
        %2191 = vset.pattern.permute.xlu0 0
        %2192 = vperm.xlu0 %2191, %v2136
        %v2193 = vpop.permute.xlu0 %2192
        %2196 = vset.pattern.permute.xlu0 0
        %2197 = vperm.xlu0 %2196, %v2137
        %v2198 = vpop.permute.xlu0 %2197
        %2201 = vset.pattern.permute.xlu0 0
        %2202 = vperm.xlu0 %2201, %v2138
        %v2203 = vpop.permute.xlu0 %2202
        %2206 = vset.pattern.permute.xlu0 0
        %2207 = vperm.xlu0 %2206, %v2139
        %v2208 = vpop.permute.xlu0 %2207
        %2211 = vset.pattern.permute.xlu0 0
        %2212 = vperm.xlu0 %2211, %v2140
        %v2213 = vpop.permute.xlu0 %2212
        %2216 = vset.pattern.permute.xlu0 0
        %2217 = vperm.xlu0 %2216, %v2141
        %v2218 = vpop.permute.xlu0 %2217
        %2221 = vset.pattern.permute.xlu0 0
        %2222 = vperm.xlu0 %2221, %v2142
        %v2223 = vpop.permute.xlu0 %2222
        %2226 = vset.pattern.permute.xlu0 0
        %2227 = vperm.xlu0 %2226, %v2143
        %v2228 = vpop.permute.xlu0 %2227
        %v2230 = vmul.f32 %v2148, %v2153
        %v2231 = vmul.f32 %v2148, %v2158
        %v2232 = vmul.f32 %v2148, %v2163
        %v2233 = vmul.f32 %v2148, %v2168
        %v2234 = vmul.f32 %v2148, %v2173
        %v2235 = vmul.f32 %v2148, %v2178
        %v2236 = vmul.f32 %v2148, %v2183
        %v2237 = vmul.f32 %v2148, %v2188
        %v2238 = vmul.f32 %v2148, %v2193
        %v2239 = vmul.f32 %v2148, %v2198
        %v2240 = vmul.f32 %v2148, %v2203
        %v2241 = vmul.f32 %v2148, %v2208
        %v2242 = vmul.f32 %v2148, %v2213
        %v2243 = vmul.f32 %v2148, %v2218
        %v2244 = vmul.f32 %v2148, %v2223
        %v2245 = vmul.f32 %v2148, %v2228
        %v2246 = vadd.f32 %v2111, %v2230
        %v2247 = vadd.f32 %v2112, %v2231
        %v2248 = vadd.f32 %v2113, %v2232
        %v2249 = vadd.f32 %v2114, %v2233
        %v2250 = vadd.f32 %v2115, %v2234
        %v2251 = vadd.f32 %v2116, %v2235
        %v2252 = vadd.f32 %v2117, %v2236
        %v2253 = vadd.f32 %v2118, %v2237
        %v2254 = vadd.f32 %v2119, %v2238
        %v2255 = vadd.f32 %v2120, %v2239
        %v2256 = vadd.f32 %v2121, %v2240
        %v2257 = vadd.f32 %v2122, %v2241
        %v2258 = vadd.f32 %v2123, %v2242
        %v2259 = vadd.f32 %v2124, %v2243
        %v2260 = vadd.f32 %v2125, %v2244
        %v2261 = vadd.f32 %v2126, %v2245
        %v2262 = vadd.f32 %v2246, %v2033
        %v2263 = vadd.f32 %v2247, %v2038
        %v2264 = vadd.f32 %v2248, %v2043
        %v2265 = vadd.f32 %v2249, %v2048
        %v2266 = vadd.f32 %v2250, %v2053
        %v2267 = vadd.f32 %v2251, %v2058
        %v2268 = vadd.f32 %v2252, %v2063
        %v2269 = vadd.f32 %v2253, %v2068
        %v2270 = vadd.f32 %v2254, %v2073
        %v2271 = vadd.f32 %v2255, %v2078
        %v2272 = vadd.f32 %v2256, %v2083
        %v2273 = vadd.f32 %v2257, %v2088
        %v2274 = vadd.f32 %v2258, %v2093
        %v2275 = vadd.f32 %v2259, %v2098
        %v2276 = vadd.f32 %v2260, %v2103
        %v2277 = vadd.f32 %v2261, %v2108
        %v2278 = vld [vmem:[%s1431] sm:$0xff]
        %v2279 = vld [vmem:[%s1431 + $0x8] sm:$0xff]
        %v2280 = vld [vmem:[%s1431 + $0x10] sm:$0xff]
        %v2281 = vld [vmem:[%s1431 + $0x18] sm:$0xff]
        %v2282 = vld [vmem:[%s1431 + $0x20] sm:$0xff]
        %v2283 = vld [vmem:[%s1431 + $0x28] sm:$0xff]
        %v2284 = vld [vmem:[%s1431 + $0x30] sm:$0xff]
        %v2285 = vld [vmem:[%s1431 + $0x38] sm:$0xff]
        %v2286 = vld [vmem:[#allocation5] sm:$0x1]
        %v2288 = vlaneseq
        %v2289 = vshrl.u32 %v2288, 7
        %v2290 = vsub.s32 0, %v2289
        %v2291 = vrot.slane %v2286, %v2290
        %v2293 = vadd.f32 %v2278, %v2291
        %v2294 = vadd.f32 %v2279, %v2291
        %v2295 = vadd.f32 %v2280, %v2291
        %v2296 = vadd.f32 %v2281, %v2291
        %v2297 = vadd.f32 %v2282, %v2291
        %v2298 = vadd.f32 %v2283, %v2291
        %v2299 = vadd.f32 %v2284, %v2291
        %v2300 = vadd.f32 %v2285, %v2291
        %v2301 = vld [vmem:[%s1446] sm:$0xff]
        %v2302 = vld [vmem:[%s1446 + $0x8] sm:$0xff]
        %v2303 = vld [vmem:[%s1446 + $0x10] sm:$0xff]
        %v2304 = vld [vmem:[%s1446 + $0x18] sm:$0xff]
        %v2305 = vld [vmem:[%s1446 + $0x20] sm:$0xff]
        %v2306 = vld [vmem:[%s1446 + $0x28] sm:$0xff]
        %v2307 = vld [vmem:[%s1446 + $0x30] sm:$0xff]
        %v2308 = vld [vmem:[%s1446 + $0x38] sm:$0xff]
        %v2309 = vld [vmem:[%s1446 + $0x40] sm:$0xff]
        %v2310 = vld [vmem:[%s1446 + $0x48] sm:$0xff]
        %v2311 = vld [vmem:[%s1446 + $0x50] sm:$0xff]
        %v2312 = vld [vmem:[%s1446 + $0x58] sm:$0xff]
        %v2313 = vld [vmem:[%s1446 + $0x60] sm:$0xff]
        %v2314 = vld [vmem:[%s1446 + $0x68] sm:$0xff]
        %v2315 = vld [vmem:[%s1446 + $0x70] sm:$0xff]
        %v2316 = vld [vmem:[%s1446 + $0x78] sm:$0xff]
        %v2317 = vld [vmem:[%s1446 + $0x80] sm:$0xff]
        %v2318 = vld [vmem:[%s1446 + $0x88] sm:$0xff]
        %v2319 = vld [vmem:[%s1446 + $0x90] sm:$0xff]
        %v2320 = vld [vmem:[%s1446 + $0x98] sm:$0xff]
        %v2321 = vld [vmem:[%s1446 + $0xa0] sm:$0xff]
        %v2322 = vld [vmem:[%s1446 + $0xa8] sm:$0xff]
        %v2323 = vld [vmem:[%s1446 + $0xb0] sm:$0xff]
        %v2324 = vld [vmem:[%s1446 + $0xb8] sm:$0xff]
        %v2325 = vadd.f32 %v2262, %v2301
        %v2326 = vadd.f32 %v2263, %v2302
        %v2327 = vadd.f32 %v2264, %v2303
        %v2328 = vadd.f32 %v2265, %v2304
        %v2329 = vadd.f32 %v2266, %v2305
        %v2330 = vadd.f32 %v2267, %v2306
        %v2331 = vadd.f32 %v2268, %v2307
        %v2332 = vadd.f32 %v2269, %v2308
        %v2333 = vadd.f32 %v2270, %v2309
        %v2334 = vadd.f32 %v2271, %v2310
        %v2335 = vadd.f32 %v2272, %v2311
        %v2336 = vadd.f32 %v2273, %v2312
        %v2337 = vadd.f32 %v2274, %v2313
        %v2338 = vadd.f32 %v2275, %v2314
        %v2339 = vadd.f32 %v2276, %v2315
        %v2340 = vadd.f32 %v2277, %v2316
        %v2341 = vadd.f32 %v2293, %v2317
        %v2342 = vadd.f32 %v2294, %v2318
        %v2343 = vadd.f32 %v2295, %v2319
        %v2344 = vadd.f32 %v2296, %v2320
        %v2345 = vadd.f32 %v2297, %v2321
        %v2346 = vadd.f32 %v2298, %v2322
        %v2347 = vadd.f32 %v2299, %v2323
        %v2348 = vadd.f32 %v2300, %v2324
        %v2349 = vld [vmem:[%s27] sm:$0xff]
        %v2350 = vld [vmem:[%s27 + $0x8] sm:$0xff]
        %v2351 = vld [vmem:[%s27 + $0x10] sm:$0xff]
        %v2352 = vld [vmem:[%s27 + $0x18] sm:$0xff]
        %v2353 = vld [vmem:[%s29] sm:$0x1]
        %v2355 = vlaneseq
        %v2356 = vshrl.u32 %v2355, 7
        %v2357 = vsub.s32 0, %v2356
        %v2358 = vrot.slane %v2353, %v2357
        %v2361 = vsel %vm1917, %v2325, 0
        %v2364 = vsel %vm1917, %v2326, 0
        %v2367 = vsel %vm1917, %v2327, 0
        %v2370 = vsel %vm1917, %v2328, 0
        %v2373 = vsel %vm1917, %v2329, 0
        %v2376 = vsel %vm1917, %v2330, 0
        %v2379 = vsel %vm1917, %v2331, 0
        %v2382 = vsel %vm1917, %v2332, 0
        %v2385 = vsel %vm1917, %v2333, 0
        %v2388 = vsel %vm1917, %v2334, 0
        %v2391 = vsel %vm1917, %v2335, 0
        %v2394 = vsel %vm1917, %v2336, 0
        %v2397 = vsel %vm1917, %v2337, 0
        %v2400 = vsel %vm1917, %v2338, 0
        %v2403 = vsel %vm1917, %v2339, 0
        %v2406 = vsel %vm1917, %v2340, 0
        %v2409 = vsel %vm1917, %v2341, 0
        %v2412 = vsel %vm1917, %v2342, 0
        %v2415 = vsel %vm1917, %v2343, 0
        %v2418 = vsel %vm1917, %v2344, 0
        %v2421 = vsel %vm1917, %v2345, 0
        %v2424 = vsel %vm1917, %v2346, 0
        %v2427 = vsel %vm1917, %v2347, 0
        %v2430 = vsel %vm1917, %v2348, 0
        %2432 = vmatprep.subr.mxu0 0.0
        %2433 = vmatpush1.msra.mxu0 %v2349
        %2434 = vmatprep.subr.mxu0 0.0
        %2435 = vmatpush1.msra.mxu0 %v2350
        %2436 = vmatprep.subr.mxu0 0.0
        %2437 = vmatpush1.msra.mxu0 %v2351
        %2438 = vmatprep.subr.mxu0 0.0
        %2439 = vmatpush1.msra.mxu0 %v2352
        %2440 = vmatprep.subr.mxu0 0.0
        %2441 = vmatpush1.msra.mxu0 0.0
        %2442 = vmatprep.subr.mxu0 0.0
        %2443 = vmatpush1.msra.mxu0 0.0
        %2444 = vmatprep.subr.mxu0 0.0
        %2445 = vmatpush1.msra.mxu0 0.0
        %2446 = vmatprep.subr.mxu0 0.0
        %2447 = vmatpush1.msra.mxu0 0.0
        %2448 = vmatprep.subr.mxu0 0.0
        %2449 = vmatpush1.msra.mxu0 0.0
        %2450 = vmatprep.subr.mxu0 0.0
        %2451 = vmatpush1.msra.mxu0 0.0
        %2452 = vmatprep.subr.mxu0 0.0
        %2453 = vmatpush1.msra.mxu0 0.0
        %2454 = vmatprep.subr.mxu0 0.0
        %2455 = vmatpush1.msra.mxu0 0.0
        %2456 = vmatprep.subr.mxu0 0.0
        %2457 = vmatpush1.msra.mxu0 0.0
        %2458 = vmatprep.subr.mxu0 0.0
        %2459 = vmatpush1.msra.mxu0 0.0
        %2460 = vmatprep.subr.mxu0 0.0
        %2461 = vmatpush1.msra.mxu0 0.0
        %2462 = vmatprep.subr.mxu0 0.0
        %2463 = vmatpush1.msra.mxu0 0.0
        %2464 = vmatprep.subr.mxu0 0.0
        %2465 = vmatpush1.msra.mxu0 0.0
        %2466 = vmatprep.subr.mxu0 0.0
        %2467 = vmatpush1.msra.mxu0 0.0
        %2468 = vmatprep.subr.mxu0 0.0
        %2469 = vmatpush1.msra.mxu0 0.0
        %2470 = vmatprep.subr.mxu0 0.0
        %2471 = vmatpush1.msra.mxu0 0.0
        %2472 = vmatprep.subr.mxu0 0.0
        %2473 = vmatpush1.msra.mxu0 0.0
        %2474 = vmatprep.subr.mxu0 0.0
        %2475 = vmatpush1.msra.mxu0 0.0
        %2476 = vmatprep.subr.mxu0 0.0
        %2477 = vmatpush1.msra.mxu0 0.0
        %2478 = vmatprep.subr.mxu0 0.0
        %2479 = vmatpush1.msra.mxu0 0.0
        %2480 = vmatprep.subr.mxu0 0.0
        %2481 = vmatpush1.msra.mxu0 0.0
        %2482 = vmatprep.subr.mxu0 0.0
        %2483 = vmatpush1.msra.mxu0 0.0
        %2484 = vmatprep.subr.mxu0 0.0
        %2485 = vmatpush1.msra.mxu0 0.0
        %2486 = vmatprep.subr.mxu0 0.0
        %2487 = vmatpush1.msra.mxu0 0.0
        %2488 = vmatprep.subr.mxu0 0.0
        %2489 = vmatpush1.msra.mxu0 0.0
        %2490 = vmatprep.subr.mxu0 0.0
        %2491 = vmatpush1.msra.mxu0 0.0
        %2492 = vmatprep.subr.mxu0 0.0
        %2493 = vmatpush1.msra.mxu0 0.0
        %2494 = vmatprep.subr.mxu0 0.0
        %2495 = vmatpush1.msra.mxu0 0.0
        %2496 = vmatprep.mubr.f32.mxu0 0.0
        %2497 = vmatmul.mubr.f32.gmra.mrb[0].mxu0 %v2361
        %v2498 = vpop.f32.mrb[0].mxu0
        %v2499 = vadd.f32 %v2358, %v2498
        %v2500 = vpop.f32.mrb[0].mxu0
        %2501 = vmatprep.mubr.f32.mxu0 0.0
        %2502 = vmatmul.mubr.f32.gmra.mrb[0].mxu0 %v2364
        %v2503 = vpop.f32.mrb[0].mxu0
        %v2504 = vadd.f32 %v2358, %v2503
        %v2505 = vpop.f32.mrb[0].mxu0
        %2506 = vmatprep.mubr.f32.mxu0 0.0
        %2507 = vmatmul.mubr.f32.gmra.mrb[0].mxu0 %v2367
        %v2508 = vpop.f32.mrb[0].mxu0
        %v2509 = vadd.f32 %v2358, %v2508
        %v2510 = vpop.f32.mrb[0].mxu0
        %2511 = vmatprep.mubr.f32.mxu0 0.0
        %2512 = vmatmul.mubr.f32.gmra.mrb[0].mxu0 %v2370
        %v2513 = vpop.f32.mrb[0].mxu0
        %v2514 = vadd.f32 %v2358, %v2513
        %v2515 = vpop.f32.mrb[0].mxu0
        %2516 = vmatprep.mubr.f32.mxu0 0.0
        %2517 = vmatmul.mubr.f32.gmra.mrb[0].mxu0 %v2373
        %v2518 = vpop.f32.mrb[0].mxu0
        %v2519 = vadd.f32 %v2358, %v2518
        %v2520 = vpop.f32.mrb[0].mxu0
        %2521 = vmatprep.mubr.f32.mxu0 0.0
        %2522 = vmatmul.mubr.f32.gmra.mrb[0].mxu0 %v2376
        %v2523 = vpop.f32.mrb[0].mxu0
        %v2524 = vadd.f32 %v2358, %v2523
        %v2525 = vpop.f32.mrb[0].mxu0
        %2526 = vmatprep.mubr.f32.mxu0 0.0
        %2527 = vmatmul.mubr.f32.gmra.mrb[0].mxu0 %v2379
        %v2528 = vpop.f32.mrb[0].mxu0
        %v2529 = vadd.f32 %v2358, %v2528
        %v2530 = vpop.f32.mrb[0].mxu0
        %2531 = vmatprep.mubr.f32.mxu0 0.0
        %2532 = vmatmul.mubr.f32.gmra.mrb[0].mxu0 %v2382
        %v2533 = vpop.f32.mrb[0].mxu0
        %v2534 = vadd.f32 %v2358, %v2533
        %v2535 = vpop.f32.mrb[0].mxu0
        %2536 = vmatprep.mubr.f32.mxu0 0.0
        %2537 = vmatmul.mubr.f32.gmra.mrb[0].mxu0 %v2385
        %v2538 = vpop.f32.mrb[0].mxu0
        %v2539 = vadd.f32 %v2358, %v2538
        %v2540 = vpop.f32.mrb[0].mxu0
        %2541 = vmatprep.mubr.f32.mxu0 0.0
        %2542 = vmatmul.mubr.f32.gmra.mrb[0].mxu0 %v2388
        %v2543 = vpop.f32.mrb[0].mxu0
        %v2544 = vadd.f32 %v2358, %v2543
        %v2545 = vpop.f32.mrb[0].mxu0
        %2546 = vmatprep.mubr.f32.mxu0 0.0
        %2547 = vmatmul.mubr.f32.gmra.mrb[0].mxu0 %v2391
        %v2548 = vpop.f32.mrb[0].mxu0
        %v2549 = vadd.f32 %v2358, %v2548
        %v2550 = vpop.f32.mrb[0].mxu0
        %2551 = vmatprep.mubr.f32.mxu0 0.0
        %2552 = vmatmul.mubr.f32.gmra.mrb[0].mxu0 %v2394
        %v2553 = vpop.f32.mrb[0].mxu0
        %v2554 = vadd.f32 %v2358, %v2553
        %v2555 = vpop.f32.mrb[0].mxu0
        %2556 = vmatprep.mubr.f32.mxu0 0.0
        %2557 = vmatmul.mubr.f32.gmra.mrb[0].mxu0 %v2397
        %v2558 = vpop.f32.mrb[0].mxu0
        %v2559 = vadd.f32 %v2358, %v2558
        %v2560 = vpop.f32.mrb[0].mxu0
        %2561 = vmatprep.mubr.f32.mxu0 0.0
        %2562 = vmatmul.mubr.f32.gmra.mrb[0].mxu0 %v2400
        %v2563 = vpop.f32.mrb[0].mxu0
        %v2564 = vadd.f32 %v2358, %v2563
        %v2565 = vpop.f32.mrb[0].mxu0
        %2566 = vmatprep.mubr.f32.mxu0 0.0
        %2567 = vmatmul.mubr.f32.gmra.mrb[0].mxu0 %v2403
        %v2568 = vpop.f32.mrb[0].mxu0
        %v2569 = vadd.f32 %v2358, %v2568
        %v2570 = vpop.f32.mrb[0].mxu0
        %2571 = vmatprep.mubr.f32.mxu0 0.0
        %2572 = vmatmul.mubr.f32.gmra.mrb[0].mxu0 %v2406
        %v2573 = vpop.f32.mrb[0].mxu0
        %v2574 = vadd.f32 %v2358, %v2573
        %v2575 = vpop.f32.mrb[0].mxu0
        %2576 = vmatprep.mubr.f32.mxu0 0.0
        %2577 = vmatmul.mubr.f32.gmra.mrb[0].mxu0 %v2409
        %v2578 = vpop.f32.mrb[0].mxu0
        %v2579 = vadd.f32 %v2358, %v2578
        %v2580 = vpop.f32.mrb[0].mxu0
        %2581 = vmatprep.mubr.f32.mxu0 0.0
        %2582 = vmatmul.mubr.f32.gmra.mrb[0].mxu0 %v2412
        %v2583 = vpop.f32.mrb[0].mxu0
        %v2584 = vadd.f32 %v2358, %v2583
        %v2585 = vpop.f32.mrb[0].mxu0
        %2586 = vmatprep.mubr.f32.mxu0 0.0
        %2587 = vmatmul.mubr.f32.gmra.mrb[0].mxu0 %v2415
        %v2588 = vpop.f32.mrb[0].mxu0
        %v2589 = vadd.f32 %v2358, %v2588
        %v2590 = vpop.f32.mrb[0].mxu0
        %2591 = vmatprep.mubr.f32.mxu0 0.0
        %2592 = vmatmul.mubr.f32.gmra.mrb[0].mxu0 %v2418
        %v2593 = vpop.f32.mrb[0].mxu0
        %v2594 = vadd.f32 %v2358, %v2593
        %v2595 = vpop.f32.mrb[0].mxu0
        %2596 = vmatprep.mubr.f32.mxu0 0.0
        %2597 = vmatmul.mubr.f32.gmra.mrb[0].mxu0 %v2421
        %v2598 = vpop.f32.mrb[0].mxu0
        %v2599 = vadd.f32 %v2358, %v2598
        %v2600 = vpop.f32.mrb[0].mxu0
        %2601 = vmatprep.mubr.f32.mxu0 0.0
        %2602 = vmatmul.mubr.f32.gmra.mrb[0].mxu0 %v2424
        %v2603 = vpop.f32.mrb[0].mxu0
        %v2604 = vadd.f32 %v2358, %v2603
        %v2605 = vpop.f32.mrb[0].mxu0
        %2606 = vmatprep.mubr.f32.mxu0 0.0
        %2607 = vmatmul.mubr.f32.gmra.mrb[0].mxu0 %v2427
        %v2608 = vpop.f32.mrb[0].mxu0
        %v2609 = vadd.f32 %v2358, %v2608
        %v2610 = vpop.f32.mrb[0].mxu0
        %2611 = vmatprep.mubr.f32.mxu0 0.0
        %2612 = vmatmul.mubr.f32.gmra.mrb[0].mxu0 %v2430
        %v2613 = vpop.f32.mrb[0].mxu0
        %v2614 = vadd.f32 %v2358, %v2613
        %v2615 = vpop.f32.mrb[0].mxu0
        %2616 = vdwg.mxu0
        %v2617 = vld [vmem:[%s31] sm:$0xff]
        %v2618 = vld [vmem:[%s31 + $0x8] sm:$0xff]
        %v2619 = vld [vmem:[%s31 + $0x10] sm:$0xff]
        %v2620 = vld [vmem:[%s31 + $0x18] sm:$0xff]
        %v2621 = vld [vmem:[%s33] sm:$0x1]
        %v2623 = vlaneseq
        %v2624 = vshrl.u32 %v2623, 7
        %v2625 = vsub.s32 0, %v2624
        %v2626 = vrot.slane %v2621, %v2625
        %v2629 = vsel %vm1917, %v2262, 0
        %v2632 = vsel %vm1917, %v2263, 0
        %v2635 = vsel %vm1917, %v2264, 0
        %v2638 = vsel %vm1917, %v2265, 0
        %v2641 = vsel %vm1917, %v2266, 0
        %v2644 = vsel %vm1917, %v2267, 0
        %v2647 = vsel %vm1917, %v2268, 0
        %v2650 = vsel %vm1917, %v2269, 0
        %v2653 = vsel %vm1917, %v2270, 0
        %v2656 = vsel %vm1917, %v2271, 0
        %v2659 = vsel %vm1917, %v2272, 0
        %v2662 = vsel %vm1917, %v2273, 0
        %v2665 = vsel %vm1917, %v2274, 0
        %v2668 = vsel %vm1917, %v2275, 0
        %v2671 = vsel %vm1917, %v2276, 0
        %v2674 = vsel %vm1917, %v2277, 0
        %v2677 = vsel %vm1917, %v2293, 0
        %v2680 = vsel %vm1917, %v2294, 0
        %v2683 = vsel %vm1917, %v2295, 0
        %v2686 = vsel %vm1917, %v2296, 0
        %v2689 = vsel %vm1917, %v2297, 0
        %v2692 = vsel %vm1917, %v2298, 0
        %v2695 = vsel %vm1917, %v2299, 0
        %v2698 = vsel %vm1917, %v2300, 0
        %2700 = vmatprep.subr.mxu0 0.0
        %2701 = vmatpush1.msra.mxu0 %v2617
        %2702 = vmatprep.subr.mxu0 0.0
        %2703 = vmatpush1.msra.mxu0 %v2618
        %2704 = vmatprep.subr.mxu0 0.0
        %2705 = vmatpush1.msra.mxu0 %v2619
        %2706 = vmatprep.subr.mxu0 0.0
        %2707 = vmatpush1.msra.mxu0 %v2620
        %2708 = vmatprep.subr.mxu0 0.0
        %2709 = vmatpush1.msra.mxu0 0.0
        %2710 = vmatprep.subr.mxu0 0.0
        %2711 = vmatpush1.msra.mxu0 0.0
        %2712 = vmatprep.subr.mxu0 0.0
        %2713 = vmatpush1.msra.mxu0 0.0
        %2714 = vmatprep.subr.mxu0 0.0
        %2715 = vmatpush1.msra.mxu0 0.0
        %2716 = vmatprep.subr.mxu0 0.0
        %2717 = vmatpush1.msra.mxu0 0.0
        %2718 = vmatprep.subr.mxu0 0.0
        %2719 = vmatpush1.msra.mxu0 0.0
        %2720 = vmatprep.subr.mxu0 0.0
        %2721 = vmatpush1.msra.mxu0 0.0
        %2722 = vmatprep.subr.mxu0 0.0
        %2723 = vmatpush1.msra.mxu0 0.0
        %2724 = vmatprep.subr.mxu0 0.0
        %2725 = vmatpush1.msra.mxu0 0.0
        %2726 = vmatprep.subr.mxu0 0.0
        %2727 = vmatpush1.msra.mxu0 0.0
        %2728 = vmatprep.subr.mxu0 0.0
        %2729 = vmatpush1.msra.mxu0 0.0
        %2730 = vmatprep.subr.mxu0 0.0
        %2731 = vmatpush1.msra.mxu0 0.0
        %2732 = vmatprep.subr.mxu0 0.0
        %2733 = vmatpush1.msra.mxu0 0.0
        %2734 = vmatprep.subr.mxu0 0.0
        %2735 = vmatpush1.msra.mxu0 0.0
        %2736 = vmatprep.subr.mxu0 0.0
        %2737 = vmatpush1.msra.mxu0 0.0
        %2738 = vmatprep.subr.mxu0 0.0
        %2739 = vmatpush1.msra.mxu0 0.0
        %2740 = vmatprep.subr.mxu0 0.0
        %2741 = vmatpush1.msra.mxu0 0.0
        %2742 = vmatprep.subr.mxu0 0.0
        %2743 = vmatpush1.msra.mxu0 0.0
        %2744 = vmatprep.subr.mxu0 0.0
        %2745 = vmatpush1.msra.mxu0 0.0
        %2746 = vmatprep.subr.mxu0 0.0
        %2747 = vmatpush1.msra.mxu0 0.0
        %2748 = vmatprep.subr.mxu0 0.0
        %2749 = vmatpush1.msra.mxu0 0.0
        %2750 = vmatprep.subr.mxu0 0.0
        %2751 = vmatpush1.msra.mxu0 0.0
        %2752 = vmatprep.subr.mxu0 0.0
        %2753 = vmatpush1.msra.mxu0 0.0
        %2754 = vmatprep.subr.mxu0 0.0
        %2755 = vmatpush1.msra.mxu0 0.0
        %2756 = vmatprep.subr.mxu0 0.0
        %2757 = vmatpush1.msra.mxu0 0.0
        %2758 = vmatprep.subr.mxu0 0.0
        %2759 = vmatpush1.msra.mxu0 0.0
        %2760 = vmatprep.subr.mxu0 0.0
        %2761 = vmatpush1.msra.mxu0 0.0
        %2762 = vmatprep.subr.mxu0 0.0
        %2763 = vmatpush1.msra.mxu0 0.0
        %2764 = vmatprep.mubr.f32.mxu0 0.0
        %2765 = vmatmul.mubr.f32.gmra.mrb[0].mxu0 %v2629
        %v2766 = vpop.f32.mrb[0].mxu0
        %v2767 = vadd.f32 %v2626, %v2766
        %v2768 = vpop.f32.mrb[0].mxu0
        %2769 = vmatprep.mubr.f32.mxu0 0.0
        %2770 = vmatmul.mubr.f32.gmra.mrb[0].mxu0 %v2632
        %v2771 = vpop.f32.mrb[0].mxu0
        %v2772 = vadd.f32 %v2626, %v2771
        %v2773 = vpop.f32.mrb[0].mxu0
        %2774 = vmatprep.mubr.f32.mxu0 0.0
        %2775 = vmatmul.mubr.f32.gmra.mrb[0].mxu0 %v2635
        %v2776 = vpop.f32.mrb[0].mxu0
        %v2777 = vadd.f32 %v2626, %v2776
        %v2778 = vpop.f32.mrb[0].mxu0
        %2779 = vmatprep.mubr.f32.mxu0 0.0
        %2780 = vmatmul.mubr.f32.gmra.mrb[0].mxu0 %v2638
        %v2781 = vpop.f32.mrb[0].mxu0
        %v2782 = vadd.f32 %v2626, %v2781
        %v2783 = vpop.f32.mrb[0].mxu0
        %2784 = vmatprep.mubr.f32.mxu0 0.0
        %2785 = vmatmul.mubr.f32.gmra.mrb[0].mxu0 %v2641
        %v2786 = vpop.f32.mrb[0].mxu0
        %v2787 = vadd.f32 %v2626, %v2786
        %v2788 = vpop.f32.mrb[0].mxu0
        %2789 = vmatprep.mubr.f32.mxu0 0.0
        %2790 = vmatmul.mubr.f32.gmra.mrb[0].mxu0 %v2644
        %v2791 = vpop.f32.mrb[0].mxu0
        %v2792 = vadd.f32 %v2626, %v2791
        %v2793 = vpop.f32.mrb[0].mxu0
        %2794 = vmatprep.mubr.f32.mxu0 0.0
        %2795 = vmatmul.mubr.f32.gmra.mrb[0].mxu0 %v2647
        %v2796 = vpop.f32.mrb[0].mxu0
        %v2797 = vadd.f32 %v2626, %v2796
        %v2798 = vpop.f32.mrb[0].mxu0
        %2799 = vmatprep.mubr.f32.mxu0 0.0
        %2800 = vmatmul.mubr.f32.gmra.mrb[0].mxu0 %v2650
        %v2801 = vpop.f32.mrb[0].mxu0
        %v2802 = vadd.f32 %v2626, %v2801
        %v2803 = vpop.f32.mrb[0].mxu0
        %2804 = vmatprep.mubr.f32.mxu0 0.0
        %2805 = vmatmul.mubr.f32.gmra.mrb[0].mxu0 %v2653
        %v2806 = vpop.f32.mrb[0].mxu0
        %v2807 = vadd.f32 %v2626, %v2806
        %v2808 = vpop.f32.mrb[0].mxu0
        %2809 = vmatprep.mubr.f32.mxu0 0.0
        %2810 = vmatmul.mubr.f32.gmra.mrb[0].mxu0 %v2656
        %v2811 = vpop.f32.mrb[0].mxu0
        %v2812 = vadd.f32 %v2626, %v2811
        %v2813 = vpop.f32.mrb[0].mxu0
        %2814 = vmatprep.mubr.f32.mxu0 0.0
        %2815 = vmatmul.mubr.f32.gmra.mrb[0].mxu0 %v2659
        %v2816 = vpop.f32.mrb[0].mxu0
        %v2817 = vadd.f32 %v2626, %v2816
        %v2818 = vpop.f32.mrb[0].mxu0
        %2819 = vmatprep.mubr.f32.mxu0 0.0
        %2820 = vmatmul.mubr.f32.gmra.mrb[0].mxu0 %v2662
        %v2821 = vpop.f32.mrb[0].mxu0
        %v2822 = vadd.f32 %v2626, %v2821
        %v2823 = vpop.f32.mrb[0].mxu0
        %2824 = vmatprep.mubr.f32.mxu0 0.0
        %2825 = vmatmul.mubr.f32.gmra.mrb[0].mxu0 %v2665
        %v2826 = vpop.f32.mrb[0].mxu0
        %v2827 = vadd.f32 %v2626, %v2826
        %v2828 = vpop.f32.mrb[0].mxu0
        %2829 = vmatprep.mubr.f32.mxu0 0.0
        %2830 = vmatmul.mubr.f32.gmra.mrb[0].mxu0 %v2668
        %v2831 = vpop.f32.mrb[0].mxu0
        %v2832 = vadd.f32 %v2626, %v2831
        %v2833 = vpop.f32.mrb[0].mxu0
        %2834 = vmatprep.mubr.f32.mxu0 0.0
        %2835 = vmatmul.mubr.f32.gmra.mrb[0].mxu0 %v2671
        %v2836 = vpop.f32.mrb[0].mxu0
        %v2837 = vadd.f32 %v2626, %v2836
        %v2838 = vpop.f32.mrb[0].mxu0
        %2839 = vmatprep.mubr.f32.mxu0 0.0
        %2840 = vmatmul.mubr.f32.gmra.mrb[0].mxu0 %v2674
        %v2841 = vpop.f32.mrb[0].mxu0
        %v2842 = vadd.f32 %v2626, %v2841
        %v2843 = vpop.f32.mrb[0].mxu0
        %2844 = vmatprep.mubr.f32.mxu0 0.0
        %2845 = vmatmul.mubr.f32.gmra.mrb[0].mxu0 %v2677
        %v2846 = vpop.f32.mrb[0].mxu0
        %v2847 = vadd.f32 %v2626, %v2846
        %v2848 = vpop.f32.mrb[0].mxu0
        %2849 = vmatprep.mubr.f32.mxu0 0.0
        %2850 = vmatmul.mubr.f32.gmra.mrb[0].mxu0 %v2680
        %v2851 = vpop.f32.mrb[0].mxu0
        %v2852 = vadd.f32 %v2626, %v2851
        %v2853 = vpop.f32.mrb[0].mxu0
        %2854 = vmatprep.mubr.f32.mxu0 0.0
        %2855 = vmatmul.mubr.f32.gmra.mrb[0].mxu0 %v2683
        %v2856 = vpop.f32.mrb[0].mxu0
        %v2857 = vadd.f32 %v2626, %v2856
        %v2858 = vpop.f32.mrb[0].mxu0
        %2859 = vmatprep.mubr.f32.mxu0 0.0
        %2860 = vmatmul.mubr.f32.gmra.mrb[0].mxu0 %v2686
        %v2861 = vpop.f32.mrb[0].mxu0
        %v2862 = vadd.f32 %v2626, %v2861
        %v2863 = vpop.f32.mrb[0].mxu0
        %2864 = vmatprep.mubr.f32.mxu0 0.0
        %2865 = vmatmul.mubr.f32.gmra.mrb[0].mxu0 %v2689
        %v2866 = vpop.f32.mrb[0].mxu0
        %v2867 = vadd.f32 %v2626, %v2866
        %v2868 = vpop.f32.mrb[0].mxu0
        %2869 = vmatprep.mubr.f32.mxu0 0.0
        %2870 = vmatmul.mubr.f32.gmra.mrb[0].mxu0 %v2692
        %v2871 = vpop.f32.mrb[0].mxu0
        %v2872 = vadd.f32 %v2626, %v2871
        %v2873 = vpop.f32.mrb[0].mxu0
        %2874 = vmatprep.mubr.f32.mxu0 0.0
        %2875 = vmatmul.mubr.f32.gmra.mrb[0].mxu0 %v2695
        %v2876 = vpop.f32.mrb[0].mxu0
        %v2877 = vadd.f32 %v2626, %v2876
        %v2878 = vpop.f32.mrb[0].mxu0
        %2879 = vmatprep.mubr.f32.mxu0 0.0
        %2880 = vmatmul.mubr.f32.gmra.mrb[0].mxu0 %v2698
        %v2881 = vpop.f32.mrb[0].mxu0
        %v2882 = vadd.f32 %v2626, %v2881
        %v2883 = vpop.f32.mrb[0].mxu0
        %2884 = vdwg.mxu0
        %2909 = vrot.lane.b32.xlu0 %v2499, 96
        %v2910 = vpop.permute.xlu0 %2909
        %2911 = vrot.lane.b32.xlu0 %v2504, 96
        %v2912 = vpop.permute.xlu0 %2911
        %2913 = vrot.lane.b32.xlu0 %v2509, 96
        %v2914 = vpop.permute.xlu0 %2913
        %2915 = vrot.lane.b32.xlu0 %v2514, 96
        %v2916 = vpop.permute.xlu0 %2915
        %2917 = vrot.lane.b32.xlu0 %v2519, 96
        %v2918 = vpop.permute.xlu0 %2917
        %2919 = vrot.lane.b32.xlu0 %v2524, 96
        %v2920 = vpop.permute.xlu0 %2919
        %2921 = vrot.lane.b32.xlu0 %v2529, 96
        %v2922 = vpop.permute.xlu0 %2921
        %2923 = vrot.lane.b32.xlu0 %v2534, 96
        %v2924 = vpop.permute.xlu0 %2923
        %2925 = vrot.lane.b32.xlu0 %v2539, 96
        %v2926 = vpop.permute.xlu0 %2925
        %2927 = vrot.lane.b32.xlu0 %v2544, 96
        %v2928 = vpop.permute.xlu0 %2927
        %2929 = vrot.lane.b32.xlu0 %v2549, 96
        %v2930 = vpop.permute.xlu0 %2929
        %2931 = vrot.lane.b32.xlu0 %v2554, 96
        %v2932 = vpop.permute.xlu0 %2931
        %2933 = vrot.lane.b32.xlu0 %v2559, 96
        %v2934 = vpop.permute.xlu0 %2933
        %2935 = vrot.lane.b32.xlu0 %v2564, 96
        %v2936 = vpop.permute.xlu0 %2935
        %2937 = vrot.lane.b32.xlu0 %v2569, 96
        %v2938 = vpop.permute.xlu0 %2937
        %2939 = vrot.lane.b32.xlu0 %v2574, 96
        %v2940 = vpop.permute.xlu0 %2939
        %2941 = vrot.lane.b32.xlu0 %v2579, 96
        %v2942 = vpop.permute.xlu0 %2941
        %2943 = vrot.lane.b32.xlu0 %v2584, 96
        %v2944 = vpop.permute.xlu0 %2943
        %2945 = vrot.lane.b32.xlu0 %v2589, 96
        %v2946 = vpop.permute.xlu0 %2945
        %2947 = vrot.lane.b32.xlu0 %v2594, 96
        %v2948 = vpop.permute.xlu0 %2947
        %2949 = vrot.lane.b32.xlu0 %v2599, 96
        %v2950 = vpop.permute.xlu0 %2949
        %2951 = vrot.lane.b32.xlu0 %v2604, 96
        %v2952 = vpop.permute.xlu0 %2951
        %2953 = vrot.lane.b32.xlu0 %v2609, 96
        %v2954 = vpop.permute.xlu0 %2953
        %2955 = vrot.lane.b32.xlu0 %v2614, 96
        %v2956 = vpop.permute.xlu0 %2955
        %v2957 = vsel %vm1917, %v2499, 0
        %v2959 = vsel %vm1917, %v2504, 0
        %v2961 = vsel %vm1917, %v2509, 0
        %v2963 = vsel %vm1917, %v2514, 0
        %v2965 = vsel %vm1917, %v2519, 0
        %v2967 = vsel %vm1917, %v2524, 0
        %v2969 = vsel %vm1917, %v2529, 0
        %v2971 = vsel %vm1917, %v2534, 0
        %v2973 = vsel %vm1917, %v2539, 0
        %v2975 = vsel %vm1917, %v2544, 0
        %v2977 = vsel %vm1917, %v2549, 0
        %v2979 = vsel %vm1917, %v2554, 0
        %v2981 = vsel %vm1917, %v2559, 0
        %v2983 = vsel %vm1917, %v2564, 0
        %v2985 = vsel %vm1917, %v2569, 0
        %v2987 = vsel %vm1917, %v2574, 0
        %v2989 = vsel %vm1917, %v2579, 0
        %v2991 = vsel %vm1917, %v2584, 0
        %v2993 = vsel %vm1917, %v2589, 0
        %v2995 = vsel %vm1917, %v2594, 0
        %v2997 = vsel %vm1917, %v2599, 0
        %v2999 = vsel %vm1917, %v2604, 0
        %v3001 = vsel %vm1917, %v2609, 0
        %v3003 = vsel %vm1917, %v2614, 0
        %v3005 = vsel %vm1917, %v2910, 0
        %v3007 = vsel %vm1917, %v2912, 0
        %v3009 = vsel %vm1917, %v2914, 0
        %v3011 = vsel %vm1917, %v2916, 0
        %v3013 = vsel %vm1917, %v2918, 0
        %v3015 = vsel %vm1917, %v2920, 0
        %v3017 = vsel %vm1917, %v2922, 0
        %v3019 = vsel %vm1917, %v2924, 0
        %v3021 = vsel %vm1917, %v2926, 0
        %v3023 = vsel %vm1917, %v2928, 0
        %v3025 = vsel %vm1917, %v2930, 0
        %v3027 = vsel %vm1917, %v2932, 0
        %v3029 = vsel %vm1917, %v2934, 0
        %v3031 = vsel %vm1917, %v2936, 0
        %v3033 = vsel %vm1917, %v2938, 0
        %v3035 = vsel %vm1917, %v2940, 0
        %v3037 = vsel %vm1917, %v2942, 0
        %v3039 = vsel %vm1917, %v2944, 0
        %v3041 = vsel %vm1917, %v2946, 0
        %v3043 = vsel %vm1917, %v2948, 0
        %v3045 = vsel %vm1917, %v2950, 0
        %v3047 = vsel %vm1917, %v2952, 0
        %v3049 = vsel %vm1917, %v2954, 0
        %v3051 = vsel %vm1917, %v2956, 0
        %3053 = vmatprep.subr.mxu0 0.0
        %3054 = vmatpush1.xpose.msra.mxu0 %v3005
        %3055 = vmatprep.subr.mxu0 0.0
        %3056 = vmatpush1.xpose.msra.mxu0 %v3007
        %3057 = vmatprep.subr.mxu0 0.0
        %3058 = vmatpush1.xpose.msra.mxu0 %v3009
        %3059 = vmatprep.subr.mxu0 0.0
        %3060 = vmatpush1.xpose.msra.mxu0 %v3011
        %3061 = vmatprep.subr.mxu0 0.0
        %3062 = vmatpush1.xpose.msra.mxu0 %v3013
        %3063 = vmatprep.subr.mxu0 0.0
        %3064 = vmatpush1.xpose.msra.mxu0 %v3015
        %3065 = vmatprep.subr.mxu0 0.0
        %3066 = vmatpush1.xpose.msra.mxu0 %v3017
        %3067 = vmatprep.subr.mxu0 0.0
        %3068 = vmatpush1.xpose.msra.mxu0 %v3019
        %3069 = vmatprep.subr.mxu0 0.0
        %3070 = vmatpush1.xpose.msra.mxu0 %v3021
        %3071 = vmatprep.subr.mxu0 0.0
        %3072 = vmatpush1.xpose.msra.mxu0 %v3023
        %3073 = vmatprep.subr.mxu0 0.0
        %3074 = vmatpush1.xpose.msra.mxu0 %v3025
        %3075 = vmatprep.subr.mxu0 0.0
        %3076 = vmatpush1.xpose.msra.mxu0 %v3027
        %3077 = vmatprep.subr.mxu0 0.0
        %3078 = vmatpush1.xpose.msra.mxu0 %v3029
        %3079 = vmatprep.subr.mxu0 0.0
        %3080 = vmatpush1.xpose.msra.mxu0 %v3031
        %3081 = vmatprep.subr.mxu0 0.0
        %3082 = vmatpush1.xpose.msra.mxu0 %v3033
        %3083 = vmatprep.subr.mxu0 0.0
        %3084 = vmatpush1.xpose.msra.mxu0 %v3035
        %3085 = vmatprep.subr.mxu0 0.0
        %3086 = vmatpush1.xpose.msra.mxu0 %v3037
        %3087 = vmatprep.subr.mxu0 0.0
        %3088 = vmatpush1.xpose.msra.mxu0 %v3039
        %3089 = vmatprep.subr.mxu0 0.0
        %3090 = vmatpush1.xpose.msra.mxu0 %v3041
        %3091 = vmatprep.subr.mxu0 0.0
        %3092 = vmatpush1.xpose.msra.mxu0 %v3043
        %3093 = vmatprep.subr.mxu0 0.0
        %3094 = vmatpush1.xpose.msra.mxu0 %v3045
        %3095 = vmatprep.subr.mxu0 0.0
        %3096 = vmatpush1.xpose.msra.mxu0 %v3047
        %3097 = vmatprep.subr.mxu0 0.0
        %3098 = vmatpush1.xpose.msra.mxu0 %v3049
        %3099 = vmatprep.subr.mxu0 0.0
        %3100 = vmatpush1.xpose.msra.mxu0 %v3051
        %3101 = vmatprep.subr.mxu0 0.0
        %3102 = vmatpush1.xpose.msra.mxu0 0.0
        %3103 = vmatprep.subr.mxu0 0.0
        %3104 = vmatpush1.xpose.msra.mxu0 0.0
        %3105 = vmatprep.subr.mxu0 0.0
        %3106 = vmatpush1.xpose.msra.mxu0 0.0
        %3107 = vmatprep.subr.mxu0 0.0
        %3108 = vmatpush1.xpose.msra.mxu0 0.0
        %3109 = vmatprep.subr.mxu0 0.0
        %3110 = vmatpush1.xpose.msra.mxu0 0.0
        %3111 = vmatprep.subr.mxu0 0.0
        %3112 = vmatpush1.xpose.msra.mxu0 0.0
        %3113 = vmatprep.subr.mxu0 0.0
        %3114 = vmatpush1.xpose.msra.mxu0 0.0
        %3115 = vmatprep.subr.mxu0 0.0
        %3116 = vmatpush1.xpose.msra.mxu0 0.0
        %3117 = vmatprep.mubr.f32.mxu0 0.0
        %3118 = vmatmul.mubr.f32.gmra.mrb[0].mxu0 %v2957
        %v3119 = vpop.f32.mrb[0].mxu0
        %v3120 = vadd.f32 0.0, %v3119
        %v3121 = vpop.f32.mrb[0].mxu0
        %v3122 = vadd.f32 0.0, %v3121
        %3123 = vmatprep.mubr.f32.mxu0 0.0
        %3124 = vmatmul.mubr.f32.gmra.mrb[0].mxu0 %v2959
        %v3125 = vpop.f32.mrb[0].mxu0
        %v3126 = vadd.f32 0.0, %v3125
        %v3127 = vpop.f32.mrb[0].mxu0
        %v3128 = vadd.f32 0.0, %v3127
        %3129 = vmatprep.mubr.f32.mxu0 0.0
        %3130 = vmatmul.mubr.f32.gmra.mrb[0].mxu0 %v2961
        %v3131 = vpop.f32.mrb[0].mxu0
        %v3132 = vadd.f32 0.0, %v3131
        %v3133 = vpop.f32.mrb[0].mxu0
        %v3134 = vadd.f32 0.0, %v3133
        %3135 = vmatprep.mubr.f32.mxu0 0.0
        %3136 = vmatmul.mubr.f32.gmra.mrb[0].mxu0 %v2963
        %v3137 = vpop.f32.mrb[0].mxu0
        %v3138 = vadd.f32 0.0, %v3137
        %v3139 = vpop.f32.mrb[0].mxu0
        %v3140 = vadd.f32 0.0, %v3139
        %3141 = vmatprep.mubr.f32.mxu0 0.0
        %3142 = vmatmul.mubr.f32.gmra.mrb[0].mxu0 %v2965
        %v3143 = vpop.f32.mrb[0].mxu0
        %v3144 = vadd.f32 0.0, %v3143
        %v3145 = vpop.f32.mrb[0].mxu0
        %v3146 = vadd.f32 0.0, %v3145
        %3147 = vmatprep.mubr.f32.mxu0 0.0
        %3148 = vmatmul.mubr.f32.gmra.mrb[0].mxu0 %v2967
        %v3149 = vpop.f32.mrb[0].mxu0
        %v3150 = vadd.f32 0.0, %v3149
        %v3151 = vpop.f32.mrb[0].mxu0
        %v3152 = vadd.f32 0.0, %v3151
        %3153 = vmatprep.mubr.f32.mxu0 0.0
        %3154 = vmatmul.mubr.f32.gmra.mrb[0].mxu0 %v2969
        %v3155 = vpop.f32.mrb[0].mxu0
        %v3156 = vadd.f32 0.0, %v3155
        %v3157 = vpop.f32.mrb[0].mxu0
        %v3158 = vadd.f32 0.0, %v3157
        %3159 = vmatprep.mubr.f32.mxu0 0.0
        %3160 = vmatmul.mubr.f32.gmra.mrb[0].mxu0 %v2971
        %v3161 = vpop.f32.mrb[0].mxu0
        %v3162 = vadd.f32 0.0, %v3161
        %v3163 = vpop.f32.mrb[0].mxu0
        %v3164 = vadd.f32 0.0, %v3163
        %3165 = vmatprep.mubr.f32.mxu0 0.0
        %3166 = vmatmul.mubr.f32.gmra.mrb[0].mxu0 %v2973
        %v3167 = vpop.f32.mrb[0].mxu0
        %v3168 = vadd.f32 0.0, %v3167
        %v3169 = vpop.f32.mrb[0].mxu0
        %v3170 = vadd.f32 0.0, %v3169
        %3171 = vmatprep.mubr.f32.mxu0 0.0
        %3172 = vmatmul.mubr.f32.gmra.mrb[0].mxu0 %v2975
        %v3173 = vpop.f32.mrb[0].mxu0
        %v3174 = vadd.f32 0.0, %v3173
        %v3175 = vpop.f32.mrb[0].mxu0
        %v3176 = vadd.f32 0.0, %v3175
        %3177 = vmatprep.mubr.f32.mxu0 0.0
        %3178 = vmatmul.mubr.f32.gmra.mrb[0].mxu0 %v2977
        %v3179 = vpop.f32.mrb[0].mxu0
        %v3180 = vadd.f32 0.0, %v3179
        %v3181 = vpop.f32.mrb[0].mxu0
        %v3182 = vadd.f32 0.0, %v3181
        %3183 = vmatprep.mubr.f32.mxu0 0.0
        %3184 = vmatmul.mubr.f32.gmra.mrb[0].mxu0 %v2979
        %v3185 = vpop.f32.mrb[0].mxu0
        %v3186 = vadd.f32 0.0, %v3185
        %v3187 = vpop.f32.mrb[0].mxu0
        %v3188 = vadd.f32 0.0, %v3187
        %3189 = vmatprep.mubr.f32.mxu0 0.0
        %3190 = vmatmul.mubr.f32.gmra.mrb[0].mxu0 %v2981
        %v3191 = vpop.f32.mrb[0].mxu0
        %v3192 = vadd.f32 0.0, %v3191
        %v3193 = vpop.f32.mrb[0].mxu0
        %v3194 = vadd.f32 0.0, %v3193
        %3195 = vmatprep.mubr.f32.mxu0 0.0
        %3196 = vmatmul.mubr.f32.gmra.mrb[0].mxu0 %v2983
        %v3197 = vpop.f32.mrb[0].mxu0
        %v3198 = vadd.f32 0.0, %v3197
        %v3199 = vpop.f32.mrb[0].mxu0
        %v3200 = vadd.f32 0.0, %v3199
        %3201 = vmatprep.mubr.f32.mxu0 0.0
        %3202 = vmatmul.mubr.f32.gmra.mrb[0].mxu0 %v2985
        %v3203 = vpop.f32.mrb[0].mxu0
        %v3204 = vadd.f32 0.0, %v3203
        %v3205 = vpop.f32.mrb[0].mxu0
        %v3206 = vadd.f32 0.0, %v3205
        %3207 = vmatprep.mubr.f32.mxu0 0.0
        %3208 = vmatmul.mubr.f32.gmra.mrb[0].mxu0 %v2987
        %v3209 = vpop.f32.mrb[0].mxu0
        %v3210 = vadd.f32 0.0, %v3209
        %v3211 = vpop.f32.mrb[0].mxu0
        %v3212 = vadd.f32 0.0, %v3211
        %3213 = vmatprep.mubr.f32.mxu0 0.0
        %3214 = vmatmul.mubr.f32.gmra.mrb[0].mxu0 %v2989
        %v3215 = vpop.f32.mrb[0].mxu0
        %v3216 = vadd.f32 0.0, %v3215
        %v3217 = vpop.f32.mrb[0].mxu0
        %v3218 = vadd.f32 0.0, %v3217
        %3219 = vmatprep.mubr.f32.mxu0 0.0
        %3220 = vmatmul.mubr.f32.gmra.mrb[0].mxu0 %v2991
        %v3221 = vpop.f32.mrb[0].mxu0
        %v3222 = vadd.f32 0.0, %v3221
        %v3223 = vpop.f32.mrb[0].mxu0
        %v3224 = vadd.f32 0.0, %v3223
        %3225 = vmatprep.mubr.f32.mxu0 0.0
        %3226 = vmatmul.mubr.f32.gmra.mrb[0].mxu0 %v2993
        %v3227 = vpop.f32.mrb[0].mxu0
        %v3228 = vadd.f32 0.0, %v3227
        %v3229 = vpop.f32.mrb[0].mxu0
        %v3230 = vadd.f32 0.0, %v3229
        %3231 = vmatprep.mubr.f32.mxu0 0.0
        %3232 = vmatmul.mubr.f32.gmra.mrb[0].mxu0 %v2995
        %v3233 = vpop.f32.mrb[0].mxu0
        %v3234 = vadd.f32 0.0, %v3233
        %v3235 = vpop.f32.mrb[0].mxu0
        %v3236 = vadd.f32 0.0, %v3235
        %3237 = vmatprep.mubr.f32.mxu0 0.0
        %3238 = vmatmul.mubr.f32.gmra.mrb[0].mxu0 %v2997
        %v3239 = vpop.f32.mrb[0].mxu0
        %v3240 = vadd.f32 0.0, %v3239
        %v3241 = vpop.f32.mrb[0].mxu0
        %v3242 = vadd.f32 0.0, %v3241
        %3243 = vmatprep.mubr.f32.mxu0 0.0
        %3244 = vmatmul.mubr.f32.gmra.mrb[0].mxu0 %v2999
        %v3245 = vpop.f32.mrb[0].mxu0
        %v3246 = vadd.f32 0.0, %v3245
        %v3247 = vpop.f32.mrb[0].mxu0
        %v3248 = vadd.f32 0.0, %v3247
        %3249 = vmatprep.mubr.f32.mxu0 0.0
        %3250 = vmatmul.mubr.f32.gmra.mrb[0].mxu0 %v3001
        %v3251 = vpop.f32.mrb[0].mxu0
        %v3252 = vadd.f32 0.0, %v3251
        %v3253 = vpop.f32.mrb[0].mxu0
        %v3254 = vadd.f32 0.0, %v3253
        %3255 = vmatprep.mubr.f32.mxu0 0.0
        %3256 = vmatmul.mubr.f32.gmra.mrb[0].mxu0 %v3003
        %v3257 = vpop.f32.mrb[0].mxu0
        %v3258 = vadd.f32 0.0, %v3257
        %v3259 = vpop.f32.mrb[0].mxu0
        %v3260 = vadd.f32 0.0, %v3259
        %3261 = vdwg.mxu0
        %v3262 = vmul.f32 %v3120, 0.17677669
        %v3263 = vmul.f32 %v3122, 0.17677669
        %v3264 = vmul.f32 %v3126, 0.17677669
        %v3265 = vmul.f32 %v3128, 0.17677669
        %v3266 = vmul.f32 %v3132, 0.17677669
        %v3267 = vmul.f32 %v3134, 0.17677669
        %v3268 = vmul.f32 %v3138, 0.17677669
        %v3269 = vmul.f32 %v3140, 0.17677669
        %v3270 = vmul.f32 %v3144, 0.17677669
        %v3271 = vmul.f32 %v3146, 0.17677669
        %v3272 = vmul.f32 %v3150, 0.17677669
        %v3273 = vmul.f32 %v3152, 0.17677669
        %v3274 = vmul.f32 %v3156, 0.17677669
        %v3275 = vmul.f32 %v3158, 0.17677669
        %v3276 = vmul.f32 %v3162, 0.17677669
        %v3277 = vmul.f32 %v3164, 0.17677669
        %v3278 = vmul.f32 %v3168, 0.17677669
        %v3279 = vmul.f32 %v3170, 0.17677669
        %v3280 = vmul.f32 %v3174, 0.17677669
        %v3281 = vmul.f32 %v3176, 0.17677669
        %v3282 = vmul.f32 %v3180, 0.17677669
        %v3283 = vmul.f32 %v3182, 0.17677669
        %v3284 = vmul.f32 %v3186, 0.17677669
        %v3285 = vmul.f32 %v3188, 0.17677669
        %v3286 = vmul.f32 %v3192, 0.17677669
        %v3287 = vmul.f32 %v3194, 0.17677669
        %v3288 = vmul.f32 %v3198, 0.17677669
        %v3289 = vmul.f32 %v3200, 0.17677669
        %v3290 = vmul.f32 %v3204, 0.17677669
        %v3291 = vmul.f32 %v3206, 0.17677669
        %v3292 = vmul.f32 %v3210, 0.17677669
        %v3293 = vmul.f32 %v3212, 0.17677669
        %v3294 = vmul.f32 %v3216, 0.17677669
        %v3295 = vmul.f32 %v3218, 0.17677669
        %v3296 = vmul.f32 %v3222, 0.17677669
        %v3297 = vmul.f32 %v3224, 0.17677669
        %v3298 = vmul.f32 %v3228, 0.17677669
        %v3299 = vmul.f32 %v3230, 0.17677669
        %v3300 = vmul.f32 %v3234, 0.17677669
        %v3301 = vmul.f32 %v3236, 0.17677669
        %v3302 = vmul.f32 %v3240, 0.17677669
        %v3303 = vmul.f32 %v3242, 0.17677669
        %v3304 = vmul.f32 %v3246, 0.17677669
        %v3305 = vmul.f32 %v3248, 0.17677669
        %v3306 = vmul.f32 %v3252, 0.17677669
        %v3307 = vmul.f32 %v3254, 0.17677669
        %v3308 = vmul.f32 %v3258, 0.17677669
        %v3309 = vmul.f32 %v3260, 0.17677669
        %vm3310 = vcmask 523264
        %v3311 = vsel %vm3310, %v3263, -inf
        %v3312 = vmax.f32 %v3262, %v3311
        %3313 = vmax.xlane.f32.xlu0 %v3312
        %v3314 = vpop.xlane.xlu0 %3313
        %v3315 = vsel %vm3310, %v3265, -inf
        %v3316 = vmax.f32 %v3264, %v3315
        %3317 = vmax.xlane.f32.xlu0 %v3316
        %v3318 = vpop.xlane.xlu0 %3317
        %v3319 = vsel %vm3310, %v3267, -inf
        %v3320 = vmax.f32 %v3266, %v3319
        %3321 = vmax.xlane.f32.xlu0 %v3320
        %v3322 = vpop.xlane.xlu0 %3321
        %v3323 = vsel %vm3310, %v3269, -inf
        %v3324 = vmax.f32 %v3268, %v3323
        %3325 = vmax.xlane.f32.xlu0 %v3324
        %v3326 = vpop.xlane.xlu0 %3325
        %v3327 = vsel %vm3310, %v3271, -inf
        %v3328 = vmax.f32 %v3270, %v3327
        %3329 = vmax.xlane.f32.xlu0 %v3328
        %v3330 = vpop.xlane.xlu0 %3329
        %v3331 = vsel %vm3310, %v3273, -inf
        %v3332 = vmax.f32 %v3272, %v3331
        %3333 = vmax.xlane.f32.xlu0 %v3332
        %v3334 = vpop.xlane.xlu0 %3333
        %v3335 = vsel %vm3310, %v3275, -inf
        %v3336 = vmax.f32 %v3274, %v3335
        %3337 = vmax.xlane.f32.xlu0 %v3336
        %v3338 = vpop.xlane.xlu0 %3337
        %v3339 = vsel %vm3310, %v3277, -inf
        %v3340 = vmax.f32 %v3276, %v3339
        %3341 = vmax.xlane.f32.xlu0 %v3340
        %v3342 = vpop.xlane.xlu0 %3341
        %v3343 = vsel %vm3310, %v3279, -inf
        %v3344 = vmax.f32 %v3278, %v3343
        %3345 = vmax.xlane.f32.xlu0 %v3344
        %v3346 = vpop.xlane.xlu0 %3345
        %v3347 = vsel %vm3310, %v3281, -inf
        %v3348 = vmax.f32 %v3280, %v3347
        %3349 = vmax.xlane.f32.xlu0 %v3348
        %v3350 = vpop.xlane.xlu0 %3349
        %v3351 = vsel %vm3310, %v3283, -inf
        %v3352 = vmax.f32 %v3282, %v3351
        %3353 = vmax.xlane.f32.xlu0 %v3352
        %v3354 = vpop.xlane.xlu0 %3353
        %v3355 = vsel %vm3310, %v3285, -inf
        %v3356 = vmax.f32 %v3284, %v3355
        %3357 = vmax.xlane.f32.xlu0 %v3356
        %v3358 = vpop.xlane.xlu0 %3357
        %v3359 = vsel %vm3310, %v3287, -inf
        %v3360 = vmax.f32 %v3286, %v3359
        %3361 = vmax.xlane.f32.xlu0 %v3360
        %v3362 = vpop.xlane.xlu0 %3361
        %v3363 = vsel %vm3310, %v3289, -inf
        %v3364 = vmax.f32 %v3288, %v3363
        %3365 = vmax.xlane.f32.xlu0 %v3364
        %v3366 = vpop.xlane.xlu0 %3365
        %v3367 = vsel %vm3310, %v3291, -inf
        %v3368 = vmax.f32 %v3290, %v3367
        %3369 = vmax.xlane.f32.xlu0 %v3368
        %v3370 = vpop.xlane.xlu0 %3369
        %v3371 = vsel %vm3310, %v3293, -inf
        %v3372 = vmax.f32 %v3292, %v3371
        %3373 = vmax.xlane.f32.xlu0 %v3372
        %v3374 = vpop.xlane.xlu0 %3373
        %v3375 = vsel %vm3310, %v3295, -inf
        %v3376 = vmax.f32 %v3294, %v3375
        %3377 = vmax.xlane.f32.xlu0 %v3376
        %v3378 = vpop.xlane.xlu0 %3377
        %v3379 = vsel %vm3310, %v3297, -inf
        %v3380 = vmax.f32 %v3296, %v3379
        %3381 = vmax.xlane.f32.xlu0 %v3380
        %v3382 = vpop.xlane.xlu0 %3381
        %v3383 = vsel %vm3310, %v3299, -inf
        %v3384 = vmax.f32 %v3298, %v3383
        %3385 = vmax.xlane.f32.xlu0 %v3384
        %v3386 = vpop.xlane.xlu0 %3385
        %v3387 = vsel %vm3310, %v3301, -inf
        %v3388 = vmax.f32 %v3300, %v3387
        %3389 = vmax.xlane.f32.xlu0 %v3388
        %v3390 = vpop.xlane.xlu0 %3389
        %v3391 = vsel %vm3310, %v3303, -inf
        %v3392 = vmax.f32 %v3302, %v3391
        %3393 = vmax.xlane.f32.xlu0 %v3392
        %v3394 = vpop.xlane.xlu0 %3393
        %v3395 = vsel %vm3310, %v3305, -inf
        %v3396 = vmax.f32 %v3304, %v3395
        %3397 = vmax.xlane.f32.xlu0 %v3396
        %v3398 = vpop.xlane.xlu0 %3397
        %v3399 = vsel %vm3310, %v3307, -inf
        %v3400 = vmax.f32 %v3306, %v3399
        %3401 = vmax.xlane.f32.xlu0 %v3400
        %v3402 = vpop.xlane.xlu0 %3401
        %v3403 = vsel %vm3310, %v3309, -inf
        %v3404 = vmax.f32 %v3308, %v3403
        %3405 = vmax.xlane.f32.xlu0 %v3404
        %v3406 = vpop.xlane.xlu0 %3405
        %v3407 = vsub.f32 %v3262, %v3314
        %v3408 = vsub.f32 %v3263, %v3314
        %v3409 = vsub.f32 %v3264, %v3318
        %v3410 = vsub.f32 %v3265, %v3318
        %v3411 = vsub.f32 %v3266, %v3322
        %v3412 = vsub.f32 %v3267, %v3322
        %v3413 = vsub.f32 %v3268, %v3326
        %v3414 = vsub.f32 %v3269, %v3326
        %v3415 = vsub.f32 %v3270, %v3330
        %v3416 = vsub.f32 %v3271, %v3330
        %v3417 = vsub.f32 %v3272, %v3334
        %v3418 = vsub.f32 %v3273, %v3334
        %v3419 = vsub.f32 %v3274, %v3338
        %v3420 = vsub.f32 %v3275, %v3338
        %v3421 = vsub.f32 %v3276, %v3342
        %v3422 = vsub.f32 %v3277, %v3342
        %v3423 = vsub.f32 %v3278, %v3346
        %v3424 = vsub.f32 %v3279, %v3346
        %v3425 = vsub.f32 %v3280, %v3350
        %v3426 = vsub.f32 %v3281, %v3350
        %v3427 = vsub.f32 %v3282, %v3354
        %v3428 = vsub.f32 %v3283, %v3354
        %v3429 = vsub.f32 %v3284, %v3358
        %v3430 = vsub.f32 %v3285, %v3358
        %v3431 = vsub.f32 %v3286, %v3362
        %v3432 = vsub.f32 %v3287, %v3362
        %v3433 = vsub.f32 %v3288, %v3366
        %v3434 = vsub.f32 %v3289, %v3366
        %v3435 = vsub.f32 %v3290, %v3370
        %v3436 = vsub.f32 %v3291, %v3370
        %v3437 = vsub.f32 %v3292, %v3374
        %v3438 = vsub.f32 %v3293, %v3374
        %v3439 = vsub.f32 %v3294, %v3378
        %v3440 = vsub.f32 %v3295, %v3378
        %v3441 = vsub.f32 %v3296, %v3382
        %v3442 = vsub.f32 %v3297, %v3382
        %v3443 = vsub.f32 %v3298, %v3386
        %v3444 = vsub.f32 %v3299, %v3386
        %v3445 = vsub.f32 %v3300, %v3390
        %v3446 = vsub.f32 %v3301, %v3390
        %v3447 = vsub.f32 %v3302, %v3394
        %v3448 = vsub.f32 %v3303, %v3394
        %v3449 = vsub.f32 %v3304, %v3398
        %v3450 = vsub.f32 %v3305, %v3398
        %v3451 = vsub.f32 %v3306, %v3402
        %v3452 = vsub.f32 %v3307, %v3402
        %v3453 = vsub.f32 %v3308, %v3406
        %v3454 = vsub.f32 %v3309, %v3406
        %v3455 = vmul.f32 %v3407, 1.442695
        %v3456 = vpow.pop %v3455
        %v3457 = vmul.f32 %v3408, 1.442695
        %v3458 = vpow.pop %v3457
        %v3459 = vmul.f32 %v3409, 1.442695
        %v3460 = vpow.pop %v3459
        %v3461 = vmul.f32 %v3410, 1.442695
        %v3462 = vpow.pop %v3461
        %v3463 = vmul.f32 %v3411, 1.442695
        %v3464 = vpow.pop %v3463
        %v3465 = vmul.f32 %v3412, 1.442695
        %v3466 = vpow.pop %v3465
        %v3467 = vmul.f32 %v3413, 1.442695
        %v3468 = vpow.pop %v3467
        %v3469 = vmul.f32 %v3414, 1.442695
        %v3470 = vpow.pop %v3469
        %v3471 = vmul.f32 %v3415, 1.442695
        %v3472 = vpow.pop %v3471
        %v3473 = vmul.f32 %v3416, 1.442695
        %v3474 = vpow.pop %v3473
        %v3475 = vmul.f32 %v3417, 1.442695
        %v3476 = vpow.pop %v3475
        %v3477 = vmul.f32 %v3418, 1.442695
        %v3478 = vpow.pop %v3477
        %v3479 = vmul.f32 %v3419, 1.442695
        %v3480 = vpow.pop %v3479
        %v3481 = vmul.f32 %v3420, 1.442695
        %v3482 = vpow.pop %v3481
        %v3483 = vmul.f32 %v3421, 1.442695
        %v3484 = vpow.pop %v3483
        %v3485 = vmul.f32 %v3422, 1.442695
        %v3486 = vpow.pop %v3485
        %v3487 = vmul.f32 %v3423, 1.442695
        %v3488 = vpow.pop %v3487
        %v3489 = vmul.f32 %v3424, 1.442695
        %v3490 = vpow.pop %v3489
        %v3491 = vmul.f32 %v3425, 1.442695
        %v3492 = vpow.pop %v3491
        %v3493 = vmul.f32 %v3426, 1.442695
        %v3494 = vpow.pop %v3493
        %v3495 = vmul.f32 %v3427, 1.442695
        %v3496 = vpow.pop %v3495
        %v3497 = vmul.f32 %v3428, 1.442695
        %v3498 = vpow.pop %v3497
        %v3499 = vmul.f32 %v3429, 1.442695
        %v3500 = vpow.pop %v3499
        %v3501 = vmul.f32 %v3430, 1.442695
        %v3502 = vpow.pop %v3501
        %v3503 = vmul.f32 %v3431, 1.442695
        %v3504 = vpow.pop %v3503
        %v3505 = vmul.f32 %v3432, 1.442695
        %v3506 = vpow.pop %v3505
        %v3507 = vmul.f32 %v3433, 1.442695
        %v3508 = vpow.pop %v3507
        %v3509 = vmul.f32 %v3434, 1.442695
        %v3510 = vpow.pop %v3509
        %v3511 = vmul.f32 %v3435, 1.442695
        %v3512 = vpow.pop %v3511
        %v3513 = vmul.f32 %v3436, 1.442695
        %v3514 = vpow.pop %v3513
        %v3515 = vmul.f32 %v3437, 1.442695
        %v3516 = vpow.pop %v3515
        %v3517 = vmul.f32 %v3438, 1.442695
        %v3518 = vpow.pop %v3517
        %v3519 = vmul.f32 %v3439, 1.442695
        %v3520 = vpow.pop %v3519
        %v3521 = vmul.f32 %v3440, 1.442695
        %v3522 = vpow.pop %v3521
        %v3523 = vmul.f32 %v3441, 1.442695
        %v3524 = vpow.pop %v3523
        %v3525 = vmul.f32 %v3442, 1.442695
        %v3526 = vpow.pop %v3525
        %v3527 = vmul.f32 %v3443, 1.442695
        %v3528 = vpow.pop %v3527
        %v3529 = vmul.f32 %v3444, 1.442695
        %v3530 = vpow.pop %v3529
        %v3531 = vmul.f32 %v3445, 1.442695
        %v3532 = vpow.pop %v3531
        %v3533 = vmul.f32 %v3446, 1.442695
        %v3534 = vpow.pop %v3533
        %v3535 = vmul.f32 %v3447, 1.442695
        %v3536 = vpow.pop %v3535
        %v3537 = vmul.f32 %v3448, 1.442695
        %v3538 = vpow.pop %v3537
        %v3539 = vmul.f32 %v3449, 1.442695
        %v3540 = vpow.pop %v3539
        %v3541 = vmul.f32 %v3450, 1.442695
        %v3542 = vpow.pop %v3541
        %v3543 = vmul.f32 %v3451, 1.442695
        %v3544 = vpow.pop %v3543
        %v3545 = vmul.f32 %v3452, 1.442695
        %v3546 = vpow.pop %v3545
        %v3547 = vmul.f32 %v3453, 1.442695
        %v3548 = vpow.pop %v3547
        %v3549 = vmul.f32 %v3454, 1.442695
        %v3550 = vpow.pop %v3549
        %v3551 = vsel %vm3310, %v3458, 0.0
        %v3552 = vadd.f32 %v3456, %v3551
        %3553 = vadd.xlane.f32.xlu0 %v3552
        %v3554 = vpop.xlane.xlu0 %3553
        %v3555 = vsel %vm3310, %v3462, 0.0
        %v3556 = vadd.f32 %v3460, %v3555
        %3557 = vadd.xlane.f32.xlu0 %v3556
        %v3558 = vpop.xlane.xlu0 %3557
        %v3559 = vsel %vm3310, %v3466, 0.0
        %v3560 = vadd.f32 %v3464, %v3559
        %3561 = vadd.xlane.f32.xlu0 %v3560
        %v3562 = vpop.xlane.xlu0 %3561
        %v3563 = vsel %vm3310, %v3470, 0.0
        %v3564 = vadd.f32 %v3468, %v3563
        %3565 = vadd.xlane.f32.xlu0 %v3564
        %v3566 = vpop.xlane.xlu0 %3565
        %v3567 = vsel %vm3310, %v3474, 0.0
        %v3568 = vadd.f32 %v3472, %v3567
        %3569 = vadd.xlane.f32.xlu0 %v3568
        %v3570 = vpop.xlane.xlu0 %3569
        %v3571 = vsel %vm3310, %v3478, 0.0
        %v3572 = vadd.f32 %v3476, %v3571
        %3573 = vadd.xlane.f32.xlu0 %v3572
        %v3574 = vpop.xlane.xlu0 %3573
        %v3575 = vsel %vm3310, %v3482, 0.0
        %v3576 = vadd.f32 %v3480, %v3575
        %3577 = vadd.xlane.f32.xlu0 %v3576
        %v3578 = vpop.xlane.xlu0 %3577
        %v3579 = vsel %vm3310, %v3486, 0.0
        %v3580 = vadd.f32 %v3484, %v3579
        %3581 = vadd.xlane.f32.xlu0 %v3580
        %v3582 = vpop.xlane.xlu0 %3581
        %v3583 = vsel %vm3310, %v3490, 0.0
        %v3584 = vadd.f32 %v3488, %v3583
        %3585 = vadd.xlane.f32.xlu0 %v3584
        %v3586 = vpop.xlane.xlu0 %3585
        %v3587 = vsel %vm3310, %v3494, 0.0
        %v3588 = vadd.f32 %v3492, %v3587
        %3589 = vadd.xlane.f32.xlu0 %v3588
        %v3590 = vpop.xlane.xlu0 %3589
        %v3591 = vsel %vm3310, %v3498, 0.0
        %v3592 = vadd.f32 %v3496, %v3591
        %3593 = vadd.xlane.f32.xlu0 %v3592
        %v3594 = vpop.xlane.xlu0 %3593
        %v3595 = vsel %vm3310, %v3502, 0.0
        %v3596 = vadd.f32 %v3500, %v3595
        %3597 = vadd.xlane.f32.xlu0 %v3596
        %v3598 = vpop.xlane.xlu0 %3597
        %v3599 = vsel %vm3310, %v3506, 0.0
        %v3600 = vadd.f32 %v3504, %v3599
        %3601 = vadd.xlane.f32.xlu0 %v3600
        %v3602 = vpop.xlane.xlu0 %3601
        %v3603 = vsel %vm3310, %v3510, 0.0
        %v3604 = vadd.f32 %v3508, %v3603
        %3605 = vadd.xlane.f32.xlu0 %v3604
        %v3606 = vpop.xlane.xlu0 %3605
        %v3607 = vsel %vm3310, %v3514, 0.0
        %v3608 = vadd.f32 %v3512, %v3607
        %3609 = vadd.xlane.f32.xlu0 %v3608
        %v3610 = vpop.xlane.xlu0 %3609
        %v3611 = vsel %vm3310, %v3518, 0.0
        %v3612 = vadd.f32 %v3516, %v3611
        %3613 = vadd.xlane.f32.xlu0 %v3612
        %v3614 = vpop.xlane.xlu0 %3613
        %v3615 = vsel %vm3310, %v3522, 0.0
        %v3616 = vadd.f32 %v3520, %v3615
        %3617 = vadd.xlane.f32.xlu0 %v3616
        %v3618 = vpop.xlane.xlu0 %3617
        %v3619 = vsel %vm3310, %v3526, 0.0
        %v3620 = vadd.f32 %v3524, %v3619
        %3621 = vadd.xlane.f32.xlu0 %v3620
        %v3622 = vpop.xlane.xlu0 %3621
        %v3623 = vsel %vm3310, %v3530, 0.0
        %v3624 = vadd.f32 %v3528, %v3623
        %3625 = vadd.xlane.f32.xlu0 %v3624
        %v3626 = vpop.xlane.xlu0 %3625
        %v3627 = vsel %vm3310, %v3534, 0.0
        %v3628 = vadd.f32 %v3532, %v3627
        %3629 = vadd.xlane.f32.xlu0 %v3628
        %v3630 = vpop.xlane.xlu0 %3629
        %v3631 = vsel %vm3310, %v3538, 0.0
        %v3632 = vadd.f32 %v3536, %v3631
        %3633 = vadd.xlane.f32.xlu0 %v3632
        %v3634 = vpop.xlane.xlu0 %3633
        %v3635 = vsel %vm3310, %v3542, 0.0
        %v3636 = vadd.f32 %v3540, %v3635
        %3637 = vadd.xlane.f32.xlu0 %v3636
        %v3638 = vpop.xlane.xlu0 %3637
        %v3639 = vsel %vm3310, %v3546, 0.0
        %v3640 = vadd.f32 %v3544, %v3639
        %3641 = vadd.xlane.f32.xlu0 %v3640
        %v3642 = vpop.xlane.xlu0 %3641
        %v3643 = vsel %vm3310, %v3550, 0.0
        %v3644 = vadd.f32 %v3548, %v3643
        %3645 = vadd.xlane.f32.xlu0 %v3644
        %v3646 = vpop.xlane.xlu0 %3645
        %v3647 = vrcp.pop %v3554
        %v3648 = vrcp.pop %v3558
        %v3649 = vrcp.pop %v3562
        %v3650 = vrcp.pop %v3566
        %v3651 = vrcp.pop %v3570
        %v3652 = vrcp.pop %v3574
        %v3653 = vrcp.pop %v3578
        %v3654 = vrcp.pop %v3582
        %v3655 = vrcp.pop %v3586
        %v3656 = vrcp.pop %v3590
        %v3657 = vrcp.pop %v3594
        %v3658 = vrcp.pop %v3598
        %v3659 = vrcp.pop %v3602
        %v3660 = vrcp.pop %v3606
        %v3661 = vrcp.pop %v3610
        %v3662 = vrcp.pop %v3614
        %v3663 = vrcp.pop %v3618
        %v3664 = vrcp.pop %v3622
        %v3665 = vrcp.pop %v3626
        %v3666 = vrcp.pop %v3630
        %v3667 = vrcp.pop %v3634
        %v3668 = vrcp.pop %v3638
        %v3669 = vrcp.pop %v3642
        %v3670 = vrcp.pop %v3646
        %v3671 = vmul.f32 %v3456, %v3647
        %v3672 = vmul.f32 %v3458, %v3647
        %v3673 = vmul.f32 %v3460, %v3648
        %v3674 = vmul.f32 %v3462, %v3648
        %v3675 = vmul.f32 %v3464, %v3649
        %v3676 = vmul.f32 %v3466, %v3649
        %v3677 = vmul.f32 %v3468, %v3650
        %v3678 = vmul.f32 %v3470, %v3650
        %v3679 = vmul.f32 %v3472, %v3651
        %v3680 = vmul.f32 %v3474, %v3651
        %v3681 = vmul.f32 %v3476, %v3652
        %v3682 = vmul.f32 %v3478, %v3652
        %v3683 = vmul.f32 %v3480, %v3653
        %v3684 = vmul.f32 %v3482, %v3653
        %v3685 = vmul.f32 %v3484, %v3654
        %v3686 = vmul.f32 %v3486, %v3654
        %v3687 = vmul.f32 %v3488, %v3655
        %v3688 = vmul.f32 %v3490, %v3655
        %v3689 = vmul.f32 %v3492, %v3656
        %v3690 = vmul.f32 %v3494, %v3656
        %v3691 = vmul.f32 %v3496, %v3657
        %v3692 = vmul.f32 %v3498, %v3657
        %v3693 = vmul.f32 %v3500, %v3658
        %v3694 = vmul.f32 %v3502, %v3658
        %v3695 = vmul.f32 %v3504, %v3659
        %v3696 = vmul.f32 %v3506, %v3659
        %v3697 = vmul.f32 %v3508, %v3660
        %v3698 = vmul.f32 %v3510, %v3660
        %v3699 = vmul.f32 %v3512, %v3661
        %v3700 = vmul.f32 %v3514, %v3661
        %v3701 = vmul.f32 %v3516, %v3662
        %v3702 = vmul.f32 %v3518, %v3662
        %v3703 = vmul.f32 %v3520, %v3663
        %v3704 = vmul.f32 %v3522, %v3663
        %v3705 = vmul.f32 %v3524, %v3664
        %v3706 = vmul.f32 %v3526, %v3664
        %v3707 = vmul.f32 %v3528, %v3665
        %v3708 = vmul.f32 %v3530, %v3665
        %v3709 = vmul.f32 %v3532, %v3666
        %v3710 = vmul.f32 %v3534, %v3666
        %v3711 = vmul.f32 %v3536, %v3667
        %v3712 = vmul.f32 %v3538, %v3667
        %v3713 = vmul.f32 %v3540, %v3668
        %v3714 = vmul.f32 %v3542, %v3668
        %v3715 = vmul.f32 %v3544, %v3669
        %v3716 = vmul.f32 %v3546, %v3669
        %v3717 = vmul.f32 %v3548, %v3670
        %v3718 = vmul.f32 %v3550, %v3670
        %v3720 = vsel %vm3310, %v3672, 0
        %v3723 = vsel %vm3310, %v3674, 0
        %v3726 = vsel %vm3310, %v3676, 0
        %v3729 = vsel %vm3310, %v3678, 0
        %v3732 = vsel %vm3310, %v3680, 0
        %v3735 = vsel %vm3310, %v3682, 0
        %v3738 = vsel %vm3310, %v3684, 0
        %v3741 = vsel %vm3310, %v3686, 0
        %v3744 = vsel %vm3310, %v3688, 0
        %v3747 = vsel %vm3310, %v3690, 0
        %v3750 = vsel %vm3310, %v3692, 0
        %v3753 = vsel %vm3310, %v3694, 0
        %v3756 = vsel %vm3310, %v3696, 0
        %v3759 = vsel %vm3310, %v3698, 0
        %v3762 = vsel %vm3310, %v3700, 0
        %v3765 = vsel %vm3310, %v3702, 0
        %v3768 = vsel %vm3310, %v3704, 0
        %v3771 = vsel %vm3310, %v3706, 0
        %v3774 = vsel %vm3310, %v3708, 0
        %v3777 = vsel %vm3310, %v3710, 0
        %v3780 = vsel %vm3310, %v3712, 0
        %v3783 = vsel %vm3310, %v3714, 0
        %v3786 = vsel %vm3310, %v3716, 0
        %v3789 = vsel %vm3310, %v3718, 0
        %3791 = vmatprep.subr.mxu0 0.0
        %3792 = vmatpush1.msra.mxu0 %v2767
        %3793 = vmatprep.subr.mxu0 0.0
        %3794 = vmatpush1.msra.mxu0 %v2772
        %3795 = vmatprep.subr.mxu0 0.0
        %3796 = vmatpush1.msra.mxu0 %v2777
        %3797 = vmatprep.subr.mxu0 0.0
        %3798 = vmatpush1.msra.mxu0 %v2782
        %3799 = vmatprep.subr.mxu0 0.0
        %3800 = vmatpush1.msra.mxu0 %v2787
        %3801 = vmatprep.subr.mxu0 0.0
        %3802 = vmatpush1.msra.mxu0 %v2792
        %3803 = vmatprep.subr.mxu0 0.0
        %3804 = vmatpush1.msra.mxu0 %v2797
        %3805 = vmatprep.subr.mxu0 0.0
        %3806 = vmatpush1.msra.mxu0 %v2802
        %3807 = vmatprep.subr.mxu0 0.0
        %3808 = vmatpush1.msra.mxu0 %v2807
        %3809 = vmatprep.subr.mxu0 0.0
        %3810 = vmatpush1.msra.mxu0 %v2812
        %3811 = vmatprep.subr.mxu0 0.0
        %3812 = vmatpush1.msra.mxu0 %v2817
        %3813 = vmatprep.subr.mxu0 0.0
        %3814 = vmatpush1.msra.mxu0 %v2822
        %3815 = vmatprep.subr.mxu0 0.0
        %3816 = vmatpush1.msra.mxu0 %v2827
        %3817 = vmatprep.subr.mxu0 0.0
        %3818 = vmatpush1.msra.mxu0 %v2832
        %3819 = vmatprep.subr.mxu0 0.0
        %3820 = vmatpush1.msra.mxu0 %v2837
        %3821 = vmatprep.subr.mxu0 0.0
        %3822 = vmatpush1.msra.mxu0 %v2842
        %3823 = vmatprep.subr.mxu0 0.0
        %3824 = vmatpush1.msra.mxu0 %v2847
        %3825 = vmatprep.subr.mxu0 0.0
        %3826 = vmatpush1.msra.mxu0 %v2852
        %3827 = vmatprep.subr.mxu0 0.0
        %3828 = vmatpush1.msra.mxu0 %v2857
        %3829 = vmatprep.subr.mxu0 0.0
        %3830 = vmatpush1.msra.mxu0 %v2862
        %3831 = vmatprep.subr.mxu0 0.0
        %3832 = vmatpush1.msra.mxu0 %v2867
        %3833 = vmatprep.subr.mxu0 0.0
        %3834 = vmatpush1.msra.mxu0 %v2872
        %3835 = vmatprep.subr.mxu0 0.0
        %3836 = vmatpush1.msra.mxu0 %v2877
        %3837 = vmatprep.subr.mxu0 0.0
        %3838 = vmatpush1.msra.mxu0 %v2882
        %3839 = vmatprep.subr.mxu0 0.0
        %3840 = vmatpush1.msra.mxu0 0.0
        %3841 = vmatprep.subr.mxu0 0.0
        %3842 = vmatpush1.msra.mxu0 0.0
        %3843 = vmatprep.subr.mxu0 0.0
        %3844 = vmatpush1.msra.mxu0 0.0
        %3845 = vmatprep.subr.mxu0 0.0
        %3846 = vmatpush1.msra.mxu0 0.0
        %3847 = vmatprep.subr.mxu0 0.0
        %3848 = vmatpush1.msra.mxu0 0.0
        %3849 = vmatprep.subr.mxu0 0.0
        %3850 = vmatpush1.msra.mxu0 0.0
        %3851 = vmatprep.subr.mxu0 0.0
        %3852 = vmatpush1.msra.mxu0 0.0
        %3853 = vmatprep.subr.mxu0 0.0
        %3854 = vmatpush1.msra.mxu0 0.0
        %3855 = vmatprep.mubr.f32.mxu0 %v3720
        %3856 = vmatmul.mubr.f32.gmra.mrb[0].mxu0 %v3671
        %v3857 = vpop.f32.mrb[0].mxu0
        %v3858 = vadd.f32 0.0, %v3857
        %v3859 = vpop.f32.mrb[0].mxu0
        %3860 = vmatprep.mubr.f32.mxu0 %v3723
        %3861 = vmatmul.mubr.f32.gmra.mrb[0].mxu0 %v3673
        %v3862 = vpop.f32.mrb[0].mxu0
        %v3863 = vadd.f32 0.0, %v3862
        %v3864 = vpop.f32.mrb[0].mxu0
        %3865 = vmatprep.mubr.f32.mxu0 %v3726
        %3866 = vmatmul.mubr.f32.gmra.mrb[0].mxu0 %v3675
        %v3867 = vpop.f32.mrb[0].mxu0
        %v3868 = vadd.f32 0.0, %v3867
        %v3869 = vpop.f32.mrb[0].mxu0
        %3870 = vmatprep.mubr.f32.mxu0 %v3729
        %3871 = vmatmul.mubr.f32.gmra.mrb[0].mxu0 %v3677
        %v3872 = vpop.f32.mrb[0].mxu0
        %v3873 = vadd.f32 0.0, %v3872
        %v3874 = vpop.f32.mrb[0].mxu0
        %3875 = vmatprep.mubr.f32.mxu0 %v3732
        %3876 = vmatmul.mubr.f32.gmra.mrb[0].mxu0 %v3679
        %v3877 = vpop.f32.mrb[0].mxu0
        %v3878 = vadd.f32 0.0, %v3877
        %v3879 = vpop.f32.mrb[0].mxu0
        %3880 = vmatprep.mubr.f32.mxu0 %v3735
        %3881 = vmatmul.mubr.f32.gmra.mrb[0].mxu0 %v3681
        %v3882 = vpop.f32.mrb[0].mxu0
        %v3883 = vadd.f32 0.0, %v3882
        %v3884 = vpop.f32.mrb[0].mxu0
        %3885 = vmatprep.mubr.f32.mxu0 %v3738
        %3886 = vmatmul.mubr.f32.gmra.mrb[0].mxu0 %v3683
        %v3887 = vpop.f32.mrb[0].mxu0
        %v3888 = vadd.f32 0.0, %v3887
        %v3889 = vpop.f32.mrb[0].mxu0
        %3890 = vmatprep.mubr.f32.mxu0 %v3741
        %3891 = vmatmul.mubr.f32.gmra.mrb[0].mxu0 %v3685
        %v3892 = vpop.f32.mrb[0].mxu0
        %v3893 = vadd.f32 0.0, %v3892
        %v3894 = vpop.f32.mrb[0].mxu0
        %3895 = vmatprep.mubr.f32.mxu0 %v3744
        %3896 = vmatmul.mubr.f32.gmra.mrb[0].mxu0 %v3687
        %v3897 = vpop.f32.mrb[0].mxu0
        %v3898 = vadd.f32 0.0, %v3897
        %v3899 = vpop.f32.mrb[0].mxu0
        %3900 = vmatprep.mubr.f32.mxu0 %v3747
        %3901 = vmatmul.mubr.f32.gmra.mrb[0].mxu0 %v3689
        %v3902 = vpop.f32.mrb[0].mxu0
        %v3903 = vadd.f32 0.0, %v3902
        %v3904 = vpop.f32.mrb[0].mxu0
        %3905 = vmatprep.mubr.f32.mxu0 %v3750
        %3906 = vmatmul.mubr.f32.gmra.mrb[0].mxu0 %v3691
        %v3907 = vpop.f32.mrb[0].mxu0
        %v3908 = vadd.f32 0.0, %v3907
        %v3909 = vpop.f32.mrb[0].mxu0
        %3910 = vmatprep.mubr.f32.mxu0 %v3753
        %3911 = vmatmul.mubr.f32.gmra.mrb[0].mxu0 %v3693
        %v3912 = vpop.f32.mrb[0].mxu0
        %v3913 = vadd.f32 0.0, %v3912
        %v3914 = vpop.f32.mrb[0].mxu0
        %3915 = vmatprep.mubr.f32.mxu0 %v3756
        %3916 = vmatmul.mubr.f32.gmra.mrb[0].mxu0 %v3695
        %v3917 = vpop.f32.mrb[0].mxu0
        %v3918 = vadd.f32 0.0, %v3917
        %v3919 = vpop.f32.mrb[0].mxu0
        %3920 = vmatprep.mubr.f32.mxu0 %v3759
        %3921 = vmatmul.mubr.f32.gmra.mrb[0].mxu0 %v3697
        %v3922 = vpop.f32.mrb[0].mxu0
        %v3923 = vadd.f32 0.0, %v3922
        %v3924 = vpop.f32.mrb[0].mxu0
        %3925 = vmatprep.mubr.f32.mxu0 %v3762
        %3926 = vmatmul.mubr.f32.gmra.mrb[0].mxu0 %v3699
        %v3927 = vpop.f32.mrb[0].mxu0
        %v3928 = vadd.f32 0.0, %v3927
        %v3929 = vpop.f32.mrb[0].mxu0
        %3930 = vmatprep.mubr.f32.mxu0 %v3765
        %3931 = vmatmul.mubr.f32.gmra.mrb[0].mxu0 %v3701
        %v3932 = vpop.f32.mrb[0].mxu0
        %v3933 = vadd.f32 0.0, %v3932
        %v3934 = vpop.f32.mrb[0].mxu0
        %3935 = vmatprep.mubr.f32.mxu0 %v3768
        %3936 = vmatmul.mubr.f32.gmra.mrb[0].mxu0 %v3703
        %v3937 = vpop.f32.mrb[0].mxu0
        %v3938 = vadd.f32 0.0, %v3937
        %v3939 = vpop.f32.mrb[0].mxu0
        %3940 = vmatprep.mubr.f32.mxu0 %v3771
        %3941 = vmatmul.mubr.f32.gmra.mrb[0].mxu0 %v3705
        %v3942 = vpop.f32.mrb[0].mxu0
        %v3943 = vadd.f32 0.0, %v3942
        %v3944 = vpop.f32.mrb[0].mxu0
        %3945 = vmatprep.mubr.f32.mxu0 %v3774
        %3946 = vmatmul.mubr.f32.gmra.mrb[0].mxu0 %v3707
        %v3947 = vpop.f32.mrb[0].mxu0
        %v3948 = vadd.f32 0.0, %v3947
        %v3949 = vpop.f32.mrb[0].mxu0
        %3950 = vmatprep.mubr.f32.mxu0 %v3777
        %3951 = vmatmul.mubr.f32.gmra.mrb[0].mxu0 %v3709
        %v3952 = vpop.f32.mrb[0].mxu0
        %v3953 = vadd.f32 0.0, %v3952
        %v3954 = vpop.f32.mrb[0].mxu0
        %3955 = vmatprep.mubr.f32.mxu0 %v3780
        %3956 = vmatmul.mubr.f32.gmra.mrb[0].mxu0 %v3711
        %v3957 = vpop.f32.mrb[0].mxu0
        %v3958 = vadd.f32 0.0, %v3957
        %v3959 = vpop.f32.mrb[0].mxu0
        %3960 = vmatprep.mubr.f32.mxu0 %v3783
        %3961 = vmatmul.mubr.f32.gmra.mrb[0].mxu0 %v3713
        %v3962 = vpop.f32.mrb[0].mxu0
        %v3963 = vadd.f32 0.0, %v3962
        %v3964 = vpop.f32.mrb[0].mxu0
        %3965 = vmatprep.mubr.f32.mxu0 %v3786
        %3966 = vmatmul.mubr.f32.gmra.mrb[0].mxu0 %v3715
        %v3967 = vpop.f32.mrb[0].mxu0
        %v3968 = vadd.f32 0.0, %v3967
        %v3969 = vpop.f32.mrb[0].mxu0
        %3970 = vmatprep.mubr.f32.mxu0 %v3789
        %3971 = vmatmul.mubr.f32.gmra.mrb[0].mxu0 %v3717
        %v3972 = vpop.f32.mrb[0].mxu0
        %v3973 = vadd.f32 0.0, %v3972
        %v3974 = vpop.f32.mrb[0].mxu0
        %3975 = vdwg.mxu0
        %v3976 = vld [vmem:[%s35] sm:$0xff]
        %v3977 = vld [vmem:[%s35 + $0x8] sm:$0xff]
        %v3978 = vld [vmem:[%s35 + $0x10] sm:$0xff]
        %v3979 = vld [vmem:[%s35 + $0x18] sm:$0xff]
        %v3980 = vld [vmem:[%s37] sm:$0x1]
        %v3982 = vlaneseq
        %v3983 = vshrl.u32 %v3982, 7
        %v3984 = vsub.s32 0, %v3983
        %v3985 = vrot.slane %v3980, %v3984
        %v3988 = vsel %vm1917, %v3858, 0
        %v3991 = vsel %vm1917, %v3863, 0
        %v3994 = vsel %vm1917, %v3868, 0
        %v3997 = vsel %vm1917, %v3873, 0
        %v4000 = vsel %vm1917, %v3878, 0
        %v4003 = vsel %vm1917, %v3883, 0
        %v4006 = vsel %vm1917, %v3888, 0
        %v4009 = vsel %vm1917, %v3893, 0
        %v4012 = vsel %vm1917, %v3898, 0
        %v4015 = vsel %vm1917, %v3903, 0
        %v4018 = vsel %vm1917, %v3908, 0
        %v4021 = vsel %vm1917, %v3913, 0
        %v4024 = vsel %vm1917, %v3918, 0
        %v4027 = vsel %vm1917, %v3923, 0
        %v4030 = vsel %vm1917, %v3928, 0
        %v4033 = vsel %vm1917, %v3933, 0
        %v4036 = vsel %vm1917, %v3938, 0
        %v4039 = vsel %vm1917, %v3943, 0
        %v4042 = vsel %vm1917, %v3948, 0
        %v4045 = vsel %vm1917, %v3953, 0
        %v4048 = vsel %vm1917, %v3958, 0
        %v4051 = vsel %vm1917, %v3963, 0
        %v4054 = vsel %vm1917, %v3968, 0
        %v4057 = vsel %vm1917, %v3973, 0
        %4059 = vmatprep.subr.mxu0 0.0
        %4060 = vmatpush1.msra.mxu0 %v3976
        %4061 = vmatprep.subr.mxu0 0.0
        %4062 = vmatpush1.msra.mxu0 %v3977
        %4063 = vmatprep.subr.mxu0 0.0
        %4064 = vmatpush1.msra.mxu0 %v3978
        %4065 = vmatprep.subr.mxu0 0.0
        %4066 = vmatpush1.msra.mxu0 %v3979
        %4067 = vmatprep.subr.mxu0 0.0
        %4068 = vmatpush1.msra.mxu0 0.0
        %4069 = vmatprep.subr.mxu0 0.0
        %4070 = vmatpush1.msra.mxu0 0.0
        %4071 = vmatprep.subr.mxu0 0.0
        %4072 = vmatpush1.msra.mxu0 0.0
        %4073 = vmatprep.subr.mxu0 0.0
        %4074 = vmatpush1.msra.mxu0 0.0
        %4075 = vmatprep.subr.mxu0 0.0
        %4076 = vmatpush1.msra.mxu0 0.0
        %4077 = vmatprep.subr.mxu0 0.0
        %4078 = vmatpush1.msra.mxu0 0.0
        %4079 = vmatprep.subr.mxu0 0.0
        %4080 = vmatpush1.msra.mxu0 0.0
        %4081 = vmatprep.subr.mxu0 0.0
        %4082 = vmatpush1.msra.mxu0 0.0
        %4083 = vmatprep.subr.mxu0 0.0
        %4084 = vmatpush1.msra.mxu0 0.0
        %4085 = vmatprep.subr.mxu0 0.0
        %4086 = vmatpush1.msra.mxu0 0.0
        %4087 = vmatprep.subr.mxu0 0.0
        %4088 = vmatpush1.msra.mxu0 0.0
        %4089 = vmatprep.subr.mxu0 0.0
        %4090 = vmatpush1.msra.mxu0 0.0
        %4091 = vmatprep.subr.mxu0 0.0
        %4092 = vmatpush1.msra.mxu0 0.0
        %4093 = vmatprep.subr.mxu0 0.0
        %4094 = vmatpush1.msra.mxu0 0.0
        %4095 = vmatprep.subr.mxu0 0.0
        %4096 = vmatpush1.msra.mxu0 0.0
        %4097 = vmatprep.subr.mxu0 0.0
        %4098 = vmatpush1.msra.mxu0 0.0
        %4099 = vmatprep.subr.mxu0 0.0
        %4100 = vmatpush1.msra.mxu0 0.0
        %4101 = vmatprep.subr.mxu0 0.0
        %4102 = vmatpush1.msra.mxu0 0.0
        %4103 = vmatprep.subr.mxu0 0.0
        %4104 = vmatpush1.msra.mxu0 0.0
        %4105 = vmatprep.subr.mxu0 0.0
        %4106 = vmatpush1.msra.mxu0 0.0
        %4107 = vmatprep.subr.mxu0 0.0
        %4108 = vmatpush1.msra.mxu0 0.0
        %4109 = vmatprep.subr.mxu0 0.0
        %4110 = vmatpush1.msra.mxu0 0.0
        %4111 = vmatprep.subr.mxu0 0.0
        %4112 = vmatpush1.msra.mxu0 0.0
        %4113 = vmatprep.subr.mxu0 0.0
        %4114 = vmatpush1.msra.mxu0 0.0
        %4115 = vmatprep.subr.mxu0 0.0
        %4116 = vmatpush1.msra.mxu0 0.0
        %4117 = vmatprep.subr.mxu0 0.0
        %4118 = vmatpush1.msra.mxu0 0.0
        %4119 = vmatprep.subr.mxu0 0.0
        %4120 = vmatpush1.msra.mxu0 0.0
        %4121 = vmatprep.subr.mxu0 0.0
        %4122 = vmatpush1.msra.mxu0 0.0
        %4123 = vmatprep.mubr.f32.mxu0 0.0
        %4124 = vmatmul.mubr.f32.gmra.mrb[0].mxu0 %v3988
        %v4125 = vpop.f32.mrb[0].mxu0
        %v4126 = vadd.f32 %v3985, %v4125
        %v4127 = vpop.f32.mrb[0].mxu0
        %4128 = vmatprep.mubr.f32.mxu0 0.0
        %4129 = vmatmul.mubr.f32.gmra.mrb[0].mxu0 %v3991
        %v4130 = vpop.f32.mrb[0].mxu0
        %v4131 = vadd.f32 %v3985, %v4130
        %v4132 = vpop.f32.mrb[0].mxu0
        %4133 = vmatprep.mubr.f32.mxu0 0.0
        %4134 = vmatmul.mubr.f32.gmra.mrb[0].mxu0 %v3994
        %v4135 = vpop.f32.mrb[0].mxu0
        %v4136 = vadd.f32 %v3985, %v4135
        %v4137 = vpop.f32.mrb[0].mxu0
        %4138 = vmatprep.mubr.f32.mxu0 0.0
        %4139 = vmatmul.mubr.f32.gmra.mrb[0].mxu0 %v3997
        %v4140 = vpop.f32.mrb[0].mxu0
        %v4141 = vadd.f32 %v3985, %v4140
        %v4142 = vpop.f32.mrb[0].mxu0
        %4143 = vmatprep.mubr.f32.mxu0 0.0
        %4144 = vmatmul.mubr.f32.gmra.mrb[0].mxu0 %v4000
        %v4145 = vpop.f32.mrb[0].mxu0
        %v4146 = vadd.f32 %v3985, %v4145
        %v4147 = vpop.f32.mrb[0].mxu0
        %4148 = vmatprep.mubr.f32.mxu0 0.0
        %4149 = vmatmul.mubr.f32.gmra.mrb[0].mxu0 %v4003
        %v4150 = vpop.f32.mrb[0].mxu0
        %v4151 = vadd.f32 %v3985, %v4150
        %v4152 = vpop.f32.mrb[0].mxu0
        %4153 = vmatprep.mubr.f32.mxu0 0.0
        %4154 = vmatmul.mubr.f32.gmra.mrb[0].mxu0 %v4006
        %v4155 = vpop.f32.mrb[0].mxu0
        %v4156 = vadd.f32 %v3985, %v4155
        %v4157 = vpop.f32.mrb[0].mxu0
        %4158 = vmatprep.mubr.f32.mxu0 0.0
        %4159 = vmatmul.mubr.f32.gmra.mrb[0].mxu0 %v4009
        %v4160 = vpop.f32.mrb[0].mxu0
        %v4161 = vadd.f32 %v3985, %v4160
        %v4162 = vpop.f32.mrb[0].mxu0
        %4163 = vmatprep.mubr.f32.mxu0 0.0
        %4164 = vmatmul.mubr.f32.gmra.mrb[0].mxu0 %v4012
        %v4165 = vpop.f32.mrb[0].mxu0
        %v4166 = vadd.f32 %v3985, %v4165
        %v4167 = vpop.f32.mrb[0].mxu0
        %4168 = vmatprep.mubr.f32.mxu0 0.0
        %4169 = vmatmul.mubr.f32.gmra.mrb[0].mxu0 %v4015
        %v4170 = vpop.f32.mrb[0].mxu0
        %v4171 = vadd.f32 %v3985, %v4170
        %v4172 = vpop.f32.mrb[0].mxu0
        %4173 = vmatprep.mubr.f32.mxu0 0.0
        %4174 = vmatmul.mubr.f32.gmra.mrb[0].mxu0 %v4018
        %v4175 = vpop.f32.mrb[0].mxu0
        %v4176 = vadd.f32 %v3985, %v4175
        %v4177 = vpop.f32.mrb[0].mxu0
        %4178 = vmatprep.mubr.f32.mxu0 0.0
        %4179 = vmatmul.mubr.f32.gmra.mrb[0].mxu0 %v4021
        %v4180 = vpop.f32.mrb[0].mxu0
        %v4181 = vadd.f32 %v3985, %v4180
        %v4182 = vpop.f32.mrb[0].mxu0
        %4183 = vmatprep.mubr.f32.mxu0 0.0
        %4184 = vmatmul.mubr.f32.gmra.mrb[0].mxu0 %v4024
        %v4185 = vpop.f32.mrb[0].mxu0
        %v4186 = vadd.f32 %v3985, %v4185
        %v4187 = vpop.f32.mrb[0].mxu0
        %4188 = vmatprep.mubr.f32.mxu0 0.0
        %4189 = vmatmul.mubr.f32.gmra.mrb[0].mxu0 %v4027
        %v4190 = vpop.f32.mrb[0].mxu0
        %v4191 = vadd.f32 %v3985, %v4190
        %v4192 = vpop.f32.mrb[0].mxu0
        %4193 = vmatprep.mubr.f32.mxu0 0.0
        %4194 = vmatmul.mubr.f32.gmra.mrb[0].mxu0 %v4030
        %v4195 = vpop.f32.mrb[0].mxu0
        %v4196 = vadd.f32 %v3985, %v4195
        %v4197 = vpop.f32.mrb[0].mxu0
        %4198 = vmatprep.mubr.f32.mxu0 0.0
        %4199 = vmatmul.mubr.f32.gmra.mrb[0].mxu0 %v4033
        %v4200 = vpop.f32.mrb[0].mxu0
        %v4201 = vadd.f32 %v3985, %v4200
        %v4202 = vpop.f32.mrb[0].mxu0
        %4203 = vmatprep.mubr.f32.mxu0 0.0
        %4204 = vmatmul.mubr.f32.gmra.mrb[0].mxu0 %v4036
        %v4205 = vpop.f32.mrb[0].mxu0
        %v4206 = vadd.f32 %v3985, %v4205
        %v4207 = vpop.f32.mrb[0].mxu0
        %4208 = vmatprep.mubr.f32.mxu0 0.0
        %4209 = vmatmul.mubr.f32.gmra.mrb[0].mxu0 %v4039
        %v4210 = vpop.f32.mrb[0].mxu0
        %v4211 = vadd.f32 %v3985, %v4210
        %v4212 = vpop.f32.mrb[0].mxu0
        %4213 = vmatprep.mubr.f32.mxu0 0.0
        %4214 = vmatmul.mubr.f32.gmra.mrb[0].mxu0 %v4042
        %v4215 = vpop.f32.mrb[0].mxu0
        %v4216 = vadd.f32 %v3985, %v4215
        %v4217 = vpop.f32.mrb[0].mxu0
        %4218 = vmatprep.mubr.f32.mxu0 0.0
        %4219 = vmatmul.mubr.f32.gmra.mrb[0].mxu0 %v4045
        %v4220 = vpop.f32.mrb[0].mxu0
        %v4221 = vadd.f32 %v3985, %v4220
        %v4222 = vpop.f32.mrb[0].mxu0
        %4223 = vmatprep.mubr.f32.mxu0 0.0
        %4224 = vmatmul.mubr.f32.gmra.mrb[0].mxu0 %v4048
        %v4225 = vpop.f32.mrb[0].mxu0
        %v4226 = vadd.f32 %v3985, %v4225
        %v4227 = vpop.f32.mrb[0].mxu0
        %4228 = vmatprep.mubr.f32.mxu0 0.0
        %4229 = vmatmul.mubr.f32.gmra.mrb[0].mxu0 %v4051
        %v4230 = vpop.f32.mrb[0].mxu0
        %v4231 = vadd.f32 %v3985, %v4230
        %v4232 = vpop.f32.mrb[0].mxu0
        %4233 = vmatprep.mubr.f32.mxu0 0.0
        %4234 = vmatmul.mubr.f32.gmra.mrb[0].mxu0 %v4054
        %v4235 = vpop.f32.mrb[0].mxu0
        %v4236 = vadd.f32 %v3985, %v4235
        %v4237 = vpop.f32.mrb[0].mxu0
        %4238 = vmatprep.mubr.f32.mxu0 0.0
        %4239 = vmatmul.mubr.f32.gmra.mrb[0].mxu0 %v4057
        %v4240 = vpop.f32.mrb[0].mxu0
        %v4241 = vadd.f32 %v3985, %v4240
        %v4242 = vpop.f32.mrb[0].mxu0
        %4243 = vdwg.mxu0
        %v4244 = vadd.f32 %v2262, %v4126
        %v4245 = vadd.f32 %v2263, %v4131
        %v4246 = vadd.f32 %v2264, %v4136
        %v4247 = vadd.f32 %v2265, %v4141
        %v4248 = vadd.f32 %v2266, %v4146
        %v4249 = vadd.f32 %v2267, %v4151
        %v4250 = vadd.f32 %v2268, %v4156
        %v4251 = vadd.f32 %v2269, %v4161
        %v4252 = vadd.f32 %v2270, %v4166
        %v4253 = vadd.f32 %v2271, %v4171
        %v4254 = vadd.f32 %v2272, %v4176
        %v4255 = vadd.f32 %v2273, %v4181
        %v4256 = vadd.f32 %v2274, %v4186
        %v4257 = vadd.f32 %v2275, %v4191
        %v4258 = vadd.f32 %v2276, %v4196
        %v4259 = vadd.f32 %v2277, %v4201
        %v4260 = vadd.f32 %v2293, %v4206
        %v4261 = vadd.f32 %v2294, %v4211
        %v4262 = vadd.f32 %v2295, %v4216
        %v4263 = vadd.f32 %v2296, %v4221
        %v4264 = vadd.f32 %v2297, %v4226
        %v4265 = vadd.f32 %v2298, %v4231
        %v4266 = vadd.f32 %v2299, %v4236
        %v4267 = vadd.f32 %v2300, %v4241
        %v4268 = vsel %vm1917, %v4244, 0.0
        %4269 = vadd.xlane.f32.xlu0 %v4268
        %v4270 = vpop.xlane.xlu0 %4269
        %v4271 = vsel %vm1917, %v4245, 0.0
        %4272 = vadd.xlane.f32.xlu0 %v4271
        %v4273 = vpop.xlane.xlu0 %4272
        %v4274 = vsel %vm1917, %v4246, 0.0
        %4275 = vadd.xlane.f32.xlu0 %v4274
        %v4276 = vpop.xlane.xlu0 %4275
        %v4277 = vsel %vm1917, %v4247, 0.0
        %4278 = vadd.xlane.f32.xlu0 %v4277
        %v4279 = vpop.xlane.xlu0 %4278
        %v4280 = vsel %vm1917, %v4248, 0.0
        %4281 = vadd.xlane.f32.xlu0 %v4280
        %v4282 = vpop.xlane.xlu0 %4281
        %v4283 = vsel %vm1917, %v4249, 0.0
        %4284 = vadd.xlane.f32.xlu0 %v4283
        %v4285 = vpop.xlane.xlu0 %4284
        %v4286 = vsel %vm1917, %v4250, 0.0
        %4287 = vadd.xlane.f32.xlu0 %v4286
        %v4288 = vpop.xlane.xlu0 %4287
        %v4289 = vsel %vm1917, %v4251, 0.0
        %4290 = vadd.xlane.f32.xlu0 %v4289
        %v4291 = vpop.xlane.xlu0 %4290
        %v4292 = vsel %vm1917, %v4252, 0.0
        %4293 = vadd.xlane.f32.xlu0 %v4292
        %v4294 = vpop.xlane.xlu0 %4293
        %v4295 = vsel %vm1917, %v4253, 0.0
        %4296 = vadd.xlane.f32.xlu0 %v4295
        %v4297 = vpop.xlane.xlu0 %4296
        %v4298 = vsel %vm1917, %v4254, 0.0
        %4299 = vadd.xlane.f32.xlu0 %v4298
        %v4300 = vpop.xlane.xlu0 %4299
        %v4301 = vsel %vm1917, %v4255, 0.0
        %4302 = vadd.xlane.f32.xlu0 %v4301
        %v4303 = vpop.xlane.xlu0 %4302
        %v4304 = vsel %vm1917, %v4256, 0.0
        %4305 = vadd.xlane.f32.xlu0 %v4304
        %v4306 = vpop.xlane.xlu0 %4305
        %v4307 = vsel %vm1917, %v4257, 0.0
        %4308 = vadd.xlane.f32.xlu0 %v4307
        %v4309 = vpop.xlane.xlu0 %4308
        %v4310 = vsel %vm1917, %v4258, 0.0
        %4311 = vadd.xlane.f32.xlu0 %v4310
        %v4312 = vpop.xlane.xlu0 %4311
        %v4313 = vsel %vm1917, %v4259, 0.0
        %4314 = vadd.xlane.f32.xlu0 %v4313
        %v4315 = vpop.xlane.xlu0 %4314
        %v4316 = vsel %vm1917, %v4260, 0.0
        %4317 = vadd.xlane.f32.xlu0 %v4316
        %v4318 = vpop.xlane.xlu0 %4317
        %v4319 = vsel %vm1917, %v4261, 0.0
        %4320 = vadd.xlane.f32.xlu0 %v4319
        %v4321 = vpop.xlane.xlu0 %4320
        %v4322 = vsel %vm1917, %v4262, 0.0
        %4323 = vadd.xlane.f32.xlu0 %v4322
        %v4324 = vpop.xlane.xlu0 %4323
        %v4325 = vsel %vm1917, %v4263, 0.0
        %4326 = vadd.xlane.f32.xlu0 %v4325
        %v4327 = vpop.xlane.xlu0 %4326
        %v4328 = vsel %vm1917, %v4264, 0.0
        %4329 = vadd.xlane.f32.xlu0 %v4328
        %v4330 = vpop.xlane.xlu0 %4329
        %v4331 = vsel %vm1917, %v4265, 0.0
        %4332 = vadd.xlane.f32.xlu0 %v4331
        %v4333 = vpop.xlane.xlu0 %4332
        %v4334 = vsel %vm1917, %v4266, 0.0
        %4335 = vadd.xlane.f32.xlu0 %v4334
        %v4336 = vpop.xlane.xlu0 %4335
        %v4337 = vsel %vm1917, %v4267, 0.0
        %4338 = vadd.xlane.f32.xlu0 %v4337
        %v4339 = vpop.xlane.xlu0 %4338
        %v4340 = vrcp.pop 32.0
        %v4341 = vmul.f32 %v4270, %v4340
        %v4342 = vmul.f32 %v4273, %v4340
        %v4343 = vmul.f32 %v4276, %v4340
        %v4344 = vmul.f32 %v4279, %v4340
        %v4345 = vmul.f32 %v4282, %v4340
        %v4346 = vmul.f32 %v4285, %v4340
        %v4347 = vmul.f32 %v4288, %v4340
        %v4348 = vmul.f32 %v4291, %v4340
        %v4349 = vmul.f32 %v4294, %v4340
        %v4350 = vmul.f32 %v4297, %v4340
        %v4351 = vmul.f32 %v4300, %v4340
        %v4352 = vmul.f32 %v4303, %v4340
        %v4353 = vmul.f32 %v4306, %v4340
        %v4354 = vmul.f32 %v4309, %v4340
        %v4355 = vmul.f32 %v4312, %v4340
        %v4356 = vmul.f32 %v4315, %v4340
        %v4357 = vmul.f32 %v4318, %v4340
        %v4358 = vmul.f32 %v4321, %v4340
        %v4359 = vmul.f32 %v4324, %v4340
        %v4360 = vmul.f32 %v4327, %v4340
        %v4361 = vmul.f32 %v4330, %v4340
        %v4362 = vmul.f32 %v4333, %v4340
        %v4363 = vmul.f32 %v4336, %v4340
        %v4364 = vmul.f32 %v4339, %v4340
        %v4365 = vsub.f32 %v4244, %v4341
        %v4366 = vsub.f32 %v4245, %v4342
        %v4367 = vsub.f32 %v4246, %v4343
        %v4368 = vsub.f32 %v4247, %v4344
        %v4369 = vsub.f32 %v4248, %v4345
        %v4370 = vsub.f32 %v4249, %v4346
        %v4371 = vsub.f32 %v4250, %v4347
        %v4372 = vsub.f32 %v4251, %v4348
        %v4373 = vsub.f32 %v4252, %v4349
        %v4374 = vsub.f32 %v4253, %v4350
        %v4375 = vsub.f32 %v4254, %v4351
        %v4376 = vsub.f32 %v4255, %v4352
        %v4377 = vsub.f32 %v4256, %v4353
        %v4378 = vsub.f32 %v4257, %v4354
        %v4379 = vsub.f32 %v4258, %v4355
        %v4380 = vsub.f32 %v4259, %v4356
        %v4381 = vsub.f32 %v4260, %v4357
        %v4382 = vsub.f32 %v4261, %v4358
        %v4383 = vsub.f32 %v4262, %v4359
        %v4384 = vsub.f32 %v4263, %v4360
        %v4385 = vsub.f32 %v4264, %v4361
        %v4386 = vsub.f32 %v4265, %v4362
        %v4387 = vsub.f32 %v4266, %v4363
        %v4388 = vsub.f32 %v4267, %v4364
        %v4389 = vmul.f32 %v4365, %v4365
        %v4390 = vmul.f32 %v4366, %v4366
        %v4391 = vmul.f32 %v4367, %v4367
        %v4392 = vmul.f32 %v4368, %v4368
        %v4393 = vmul.f32 %v4369, %v4369
        %v4394 = vmul.f32 %v4370, %v4370
        %v4395 = vmul.f32 %v4371, %v4371
        %v4396 = vmul.f32 %v4372, %v4372
        %v4397 = vmul.f32 %v4373, %v4373
        %v4398 = vmul.f32 %v4374, %v4374
        %v4399 = vmul.f32 %v4375, %v4375
        %v4400 = vmul.f32 %v4376, %v4376
        %v4401 = vmul.f32 %v4377, %v4377
        %v4402 = vmul.f32 %v4378, %v4378
        %v4403 = vmul.f32 %v4379, %v4379
        %v4404 = vmul.f32 %v4380, %v4380
        %v4405 = vmul.f32 %v4381, %v4381
        %v4406 = vmul.f32 %v4382, %v4382
        %v4407 = vmul.f32 %v4383, %v4383
        %v4408 = vmul.f32 %v4384, %v4384
        %v4409 = vmul.f32 %v4385, %v4385
        %v4410 = vmul.f32 %v4386, %v4386
        %v4411 = vmul.f32 %v4387, %v4387
        %v4412 = vmul.f32 %v4388, %v4388
        %v4413 = vsel %vm1917, %v4389, 0.0
        %4414 = vadd.xlane.f32.xlu0 %v4413
        %v4415 = vpop.xlane.xlu0 %4414
        %v4416 = vsel %vm1917, %v4390, 0.0
        %4417 = vadd.xlane.f32.xlu0 %v4416
        %v4418 = vpop.xlane.xlu0 %4417
        %v4419 = vsel %vm1917, %v4391, 0.0
        %4420 = vadd.xlane.f32.xlu0 %v4419
        %v4421 = vpop.xlane.xlu0 %4420
        %v4422 = vsel %vm1917, %v4392, 0.0
        %4423 = vadd.xlane.f32.xlu0 %v4422
        %v4424 = vpop.xlane.xlu0 %4423
        %v4425 = vsel %vm1917, %v4393, 0.0
        %4426 = vadd.xlane.f32.xlu0 %v4425
        %v4427 = vpop.xlane.xlu0 %4426
        %v4428 = vsel %vm1917, %v4394, 0.0
        %4429 = vadd.xlane.f32.xlu0 %v4428
        %v4430 = vpop.xlane.xlu0 %4429
        %v4431 = vsel %vm1917, %v4395, 0.0
        %4432 = vadd.xlane.f32.xlu0 %v4431
        %v4433 = vpop.xlane.xlu0 %4432
        %v4434 = vsel %vm1917, %v4396, 0.0
        %4435 = vadd.xlane.f32.xlu0 %v4434
        %v4436 = vpop.xlane.xlu0 %4435
        %v4437 = vsel %vm1917, %v4397, 0.0
        %4438 = vadd.xlane.f32.xlu0 %v4437
        %v4439 = vpop.xlane.xlu0 %4438
        %v4440 = vsel %vm1917, %v4398, 0.0
        %4441 = vadd.xlane.f32.xlu0 %v4440
        %v4442 = vpop.xlane.xlu0 %4441
        %v4443 = vsel %vm1917, %v4399, 0.0
        %4444 = vadd.xlane.f32.xlu0 %v4443
        %v4445 = vpop.xlane.xlu0 %4444
        %v4446 = vsel %vm1917, %v4400, 0.0
        %4447 = vadd.xlane.f32.xlu0 %v4446
        %v4448 = vpop.xlane.xlu0 %4447
        %v4449 = vsel %vm1917, %v4401, 0.0
        %4450 = vadd.xlane.f32.xlu0 %v4449
        %v4451 = vpop.xlane.xlu0 %4450
        %v4452 = vsel %vm1917, %v4402, 0.0
        %4453 = vadd.xlane.f32.xlu0 %v4452
        %v4454 = vpop.xlane.xlu0 %4453
        %v4455 = vsel %vm1917, %v4403, 0.0
        %4456 = vadd.xlane.f32.xlu0 %v4455
        %v4457 = vpop.xlane.xlu0 %4456
        %v4458 = vsel %vm1917, %v4404, 0.0
        %4459 = vadd.xlane.f32.xlu0 %v4458
        %v4460 = vpop.xlane.xlu0 %4459
        %v4461 = vsel %vm1917, %v4405, 0.0
        %4462 = vadd.xlane.f32.xlu0 %v4461
        %v4463 = vpop.xlane.xlu0 %4462
        %v4464 = vsel %vm1917, %v4406, 0.0
        %4465 = vadd.xlane.f32.xlu0 %v4464
        %v4466 = vpop.xlane.xlu0 %4465
        %v4467 = vsel %vm1917, %v4407, 0.0
        %4468 = vadd.xlane.f32.xlu0 %v4467
        %v4469 = vpop.xlane.xlu0 %4468
        %v4470 = vsel %vm1917, %v4408, 0.0
        %4471 = vadd.xlane.f32.xlu0 %v4470
        %v4472 = vpop.xlane.xlu0 %4471
        %v4473 = vsel %vm1917, %v4409, 0.0
        %4474 = vadd.xlane.f32.xlu0 %v4473
        %v4475 = vpop.xlane.xlu0 %4474
        %v4476 = vsel %vm1917, %v4410, 0.0
        %4477 = vadd.xlane.f32.xlu0 %v4476
        %v4478 = vpop.xlane.xlu0 %4477
        %v4479 = vsel %vm1917, %v4411, 0.0
        %4480 = vadd.xlane.f32.xlu0 %v4479
        %v4481 = vpop.xlane.xlu0 %4480
        %v4482 = vsel %vm1917, %v4412, 0.0
        %4483 = vadd.xlane.f32.xlu0 %v4482
        %v4484 = vpop.xlane.xlu0 %4483
        %v4485 = vmul.f32 %v4415, %v4340
        %v4486 = vmul.f32 %v4418, %v4340
        %v4487 = vmul.f32 %v4421, %v4340
        %v4488 = vmul.f32 %v4424, %v4340
        %v4489 = vmul.f32 %v4427, %v4340
        %v4490 = vmul.f32 %v4430, %v4340
        %v4491 = vmul.f32 %v4433, %v4340
        %v4492 = vmul.f32 %v4436, %v4340
        %v4493 = vmul.f32 %v4439, %v4340
        %v4494 = vmul.f32 %v4442, %v4340
        %v4495 = vmul.f32 %v4445, %v4340
        %v4496 = vmul.f32 %v4448, %v4340
        %v4497 = vmul.f32 %v4451, %v4340
        %v4498 = vmul.f32 %v4454, %v4340
        %v4499 = vmul.f32 %v4457, %v4340
        %v4500 = vmul.f32 %v4460, %v4340
        %v4501 = vmul.f32 %v4463, %v4340
        %v4502 = vmul.f32 %v4466, %v4340
        %v4503 = vmul.f32 %v4469, %v4340
        %v4504 = vmul.f32 %v4472, %v4340
        %v4505 = vmul.f32 %v4475, %v4340
        %v4506 = vmul.f32 %v4478, %v4340
        %v4507 = vmul.f32 %v4481, %v4340
        %v4508 = vmul.f32 %v4484, %v4340
        %v4509 = vadd.f32 %v4485, 1e-05
        %v4510 = vadd.f32 %v4486, 1e-05
        %v4511 = vadd.f32 %v4487, 1e-05
        %v4512 = vadd.f32 %v4488, 1e-05
        %v4513 = vadd.f32 %v4489, 1e-05
        %v4514 = vadd.f32 %v4490, 1e-05
        %v4515 = vadd.f32 %v4491, 1e-05
        %v4516 = vadd.f32 %v4492, 1e-05
        %v4517 = vadd.f32 %v4493, 1e-05
        %v4518 = vadd.f32 %v4494, 1e-05
        %v4519 = vadd.f32 %v4495, 1e-05
        %v4520 = vadd.f32 %v4496, 1e-05
        %v4521 = vadd.f32 %v4497, 1e-05
        %v4522 = vadd.f32 %v4498, 1e-05
        %v4523 = vadd.f32 %v4499, 1e-05
        %v4524 = vadd.f32 %v4500, 1e-05
        %v4525 = vadd.f32 %v4501, 1e-05
        %v4526 = vadd.f32 %v4502, 1e-05
        %v4527 = vadd.f32 %v4503, 1e-05
        %v4528 = vadd.f32 %v4504, 1e-05
        %v4529 = vadd.f32 %v4505, 1e-05
        %v4530 = vadd.f32 %v4506, 1e-05
        %v4531 = vadd.f32 %v4507, 1e-05
        %v4532 = vadd.f32 %v4508, 1e-05
        %v4533 = vrsqrt.pop %v4509
        %v4534 = vrsqrt.pop %v4510
        %v4535 = vrsqrt.pop %v4511
        %v4536 = vrsqrt.pop %v4512
        %v4537 = vrsqrt.pop %v4513
        %v4538 = vrsqrt.pop %v4514
        %v4539 = vrsqrt.pop %v4515
        %v4540 = vrsqrt.pop %v4516
        %v4541 = vrsqrt.pop %v4517
        %v4542 = vrsqrt.pop %v4518
        %v4543 = vrsqrt.pop %v4519
        %v4544 = vrsqrt.pop %v4520
        %v4545 = vrsqrt.pop %v4521
        %v4546 = vrsqrt.pop %v4522
        %v4547 = vrsqrt.pop %v4523
        %v4548 = vrsqrt.pop %v4524
        %v4549 = vrsqrt.pop %v4525
        %v4550 = vrsqrt.pop %v4526
        %v4551 = vrsqrt.pop %v4527
        %v4552 = vrsqrt.pop %v4528
        %v4553 = vrsqrt.pop %v4529
        %v4554 = vrsqrt.pop %v4530
        %v4555 = vrsqrt.pop %v4531
        %v4556 = vrsqrt.pop %v4532
        %v4557 = vmul.f32 %v4365, %v4533
        %v4558 = vmul.f32 %v4366, %v4534
        %v4559 = vmul.f32 %v4367, %v4535
        %v4560 = vmul.f32 %v4368, %v4536
        %v4561 = vmul.f32 %v4369, %v4537
        %v4562 = vmul.f32 %v4370, %v4538
        %v4563 = vmul.f32 %v4371, %v4539
        %v4564 = vmul.f32 %v4372, %v4540
        %v4565 = vmul.f32 %v4373, %v4541
        %v4566 = vmul.f32 %v4374, %v4542
        %v4567 = vmul.f32 %v4375, %v4543
        %v4568 = vmul.f32 %v4376, %v4544
        %v4569 = vmul.f32 %v4377, %v4545
        %v4570 = vmul.f32 %v4378, %v4546
        %v4571 = vmul.f32 %v4379, %v4547
        %v4572 = vmul.f32 %v4380, %v4548
        %v4573 = vmul.f32 %v4381, %v4549
        %v4574 = vmul.f32 %v4382, %v4550
        %v4575 = vmul.f32 %v4383, %v4551
        %v4576 = vmul.f32 %v4384, %v4552
        %v4577 = vmul.f32 %v4385, %v4553
        %v4578 = vmul.f32 %v4386, %v4554
        %v4579 = vmul.f32 %v4387, %v4555
        %v4580 = vmul.f32 %v4388, %v4556
        %v4581 = vld [vmem:[%s39] sm:$0x1]
        %v4583 = vlaneseq
        %v4584 = vshrl.u32 %v4583, 7
        %v4585 = vsub.s32 0, %v4584
        %v4586 = vrot.slane %v4581, %v4585
        %v4588 = vmul.f32 %v4557, %v4586
        %v4589 = vmul.f32 %v4558, %v4586
        %v4590 = vmul.f32 %v4559, %v4586
        %v4591 = vmul.f32 %v4560, %v4586
        %v4592 = vmul.f32 %v4561, %v4586
        %v4593 = vmul.f32 %v4562, %v4586
        %v4594 = vmul.f32 %v4563, %v4586
        %v4595 = vmul.f32 %v4564, %v4586
        %v4596 = vmul.f32 %v4565, %v4586
        %v4597 = vmul.f32 %v4566, %v4586
        %v4598 = vmul.f32 %v4567, %v4586
        %v4599 = vmul.f32 %v4568, %v4586
        %v4600 = vmul.f32 %v4569, %v4586
        %v4601 = vmul.f32 %v4570, %v4586
        %v4602 = vmul.f32 %v4571, %v4586
        %v4603 = vmul.f32 %v4572, %v4586
        %v4604 = vmul.f32 %v4573, %v4586
        %v4605 = vmul.f32 %v4574, %v4586
        %v4606 = vmul.f32 %v4575, %v4586
        %v4607 = vmul.f32 %v4576, %v4586
        %v4608 = vmul.f32 %v4577, %v4586
        %v4609 = vmul.f32 %v4578, %v4586
        %v4610 = vmul.f32 %v4579, %v4586
        %v4611 = vmul.f32 %v4580, %v4586
        %v4612 = vld [vmem:[%s41] sm:$0x1]
        %v4614 = vlaneseq
        %v4615 = vshrl.u32 %v4614, 7
        %v4616 = vsub.s32 0, %v4615
        %v4617 = vrot.slane %v4612, %v4616
        %v4619 = vadd.f32 %v4588, %v4617
        %v4620 = vadd.f32 %v4589, %v4617
        %v4621 = vadd.f32 %v4590, %v4617
        %v4622 = vadd.f32 %v4591, %v4617
        %v4623 = vadd.f32 %v4592, %v4617
        %v4624 = vadd.f32 %v4593, %v4617
        %v4625 = vadd.f32 %v4594, %v4617
        %v4626 = vadd.f32 %v4595, %v4617
        %v4627 = vadd.f32 %v4596, %v4617
        %v4628 = vadd.f32 %v4597, %v4617
        %v4629 = vadd.f32 %v4598, %v4617
        %v4630 = vadd.f32 %v4599, %v4617
        %v4631 = vadd.f32 %v4600, %v4617
        %v4632 = vadd.f32 %v4601, %v4617
        %v4633 = vadd.f32 %v4602, %v4617
        %v4634 = vadd.f32 %v4603, %v4617
        %v4635 = vadd.f32 %v4604, %v4617
        %v4636 = vadd.f32 %v4605, %v4617
        %v4637 = vadd.f32 %v4606, %v4617
        %v4638 = vadd.f32 %v4607, %v4617
        %v4639 = vadd.f32 %v4608, %v4617
        %v4640 = vadd.f32 %v4609, %v4617
        %v4641 = vadd.f32 %v4610, %v4617
        %v4642 = vadd.f32 %v4611, %v4617
        %v4643 = vld [vmem:[%s43] sm:$0xff]
        %v4644 = vld [vmem:[%s43 + $0x8] sm:$0xff]
        %v4645 = vld [vmem:[%s43 + $0x10] sm:$0xff]
        %v4646 = vld [vmem:[%s43 + $0x18] sm:$0xff]
        %v4647 = vld [vmem:[%s45] sm:$0x1]
        %v4649 = vlaneseq
        %v4650 = vshrl.u32 %v4649, 7
        %v4651 = vsub.s32 0, %v4650
        %v4652 = vrot.slane %v4647, %v4651
        %v4655 = vsel %vm1917, %v4619, 0
        %v4658 = vsel %vm1917, %v4620, 0
        %v4661 = vsel %vm1917, %v4621, 0
        %v4664 = vsel %vm1917, %v4622, 0
        %v4667 = vsel %vm1917, %v4623, 0
        %v4670 = vsel %vm1917, %v4624, 0
        %v4673 = vsel %vm1917, %v4625, 0
        %v4676 = vsel %vm1917, %v4626, 0
        %v4679 = vsel %vm1917, %v4627, 0
        %v4682 = vsel %vm1917, %v4628, 0
        %v4685 = vsel %vm1917, %v4629, 0
        %v4688 = vsel %vm1917, %v4630, 0
        %v4691 = vsel %vm1917, %v4631, 0
        %v4694 = vsel %vm1917, %v4632, 0
        %v4697 = vsel %vm1917, %v4633, 0
        %v4700 = vsel %vm1917, %v4634, 0
        %v4703 = vsel %vm1917, %v4635, 0
        %v4706 = vsel %vm1917, %v4636, 0
        %v4709 = vsel %vm1917, %v4637, 0
        %v4712 = vsel %vm1917, %v4638, 0
        %v4715 = vsel %vm1917, %v4639, 0
        %v4718 = vsel %vm1917, %v4640, 0
        %v4721 = vsel %vm1917, %v4641, 0
        %v4724 = vsel %vm1917, %v4642, 0
        %4726 = vmatprep.subr.mxu0 0.0
        %4727 = vmatpush1.msra.mxu0 %v4643
        %4728 = vmatprep.subr.mxu0 0.0
        %4729 = vmatpush1.msra.mxu0 %v4644
        %4730 = vmatprep.subr.mxu0 0.0
        %4731 = vmatpush1.msra.mxu0 %v4645
        %4732 = vmatprep.subr.mxu0 0.0
        %4733 = vmatpush1.msra.mxu0 %v4646
        %4734 = vmatprep.subr.mxu0 0.0
        %4735 = vmatpush1.msra.mxu0 0.0
        %4736 = vmatprep.subr.mxu0 0.0
        %4737 = vmatpush1.msra.mxu0 0.0
        %4738 = vmatprep.subr.mxu0 0.0
        %4739 = vmatpush1.msra.mxu0 0.0
        %4740 = vmatprep.subr.mxu0 0.0
        %4741 = vmatpush1.msra.mxu0 0.0
        %4742 = vmatprep.subr.mxu0 0.0
        %4743 = vmatpush1.msra.mxu0 0.0
        %4744 = vmatprep.subr.mxu0 0.0
        %4745 = vmatpush1.msra.mxu0 0.0
        %4746 = vmatprep.subr.mxu0 0.0
        %4747 = vmatpush1.msra.mxu0 0.0
        %4748 = vmatprep.subr.mxu0 0.0
        %4749 = vmatpush1.msra.mxu0 0.0
        %4750 = vmatprep.subr.mxu0 0.0
        %4751 = vmatpush1.msra.mxu0 0.0
        %4752 = vmatprep.subr.mxu0 0.0
        %4753 = vmatpush1.msra.mxu0 0.0
        %4754 = vmatprep.subr.mxu0 0.0
        %4755 = vmatpush1.msra.mxu0 0.0
        %4756 = vmatprep.subr.mxu0 0.0
        %4757 = vmatpush1.msra.mxu0 0.0
        %4758 = vmatprep.subr.mxu0 0.0
        %4759 = vmatpush1.msra.mxu0 0.0
        %4760 = vmatprep.subr.mxu0 0.0
        %4761 = vmatpush1.msra.mxu0 0.0
        %4762 = vmatprep.subr.mxu0 0.0
        %4763 = vmatpush1.msra.mxu0 0.0
        %4764 = vmatprep.subr.mxu0 0.0
        %4765 = vmatpush1.msra.mxu0 0.0
        %4766 = vmatprep.subr.mxu0 0.0
        %4767 = vmatpush1.msra.mxu0 0.0
        %4768 = vmatprep.subr.mxu0 0.0
        %4769 = vmatpush1.msra.mxu0 0.0
        %4770 = vmatprep.subr.mxu0 0.0
        %4771 = vmatpush1.msra.mxu0 0.0
        %4772 = vmatprep.subr.mxu0 0.0
        %4773 = vmatpush1.msra.mxu0 0.0
        %4774 = vmatprep.subr.mxu0 0.0
        %4775 = vmatpush1.msra.mxu0 0.0
        %4776 = vmatprep.subr.mxu0 0.0
        %4777 = vmatpush1.msra.mxu0 0.0
        %4778 = vmatprep.subr.mxu0 0.0
        %4779 = vmatpush1.msra.mxu0 0.0
        %4780 = vmatprep.subr.mxu0 0.0
        %4781 = vmatpush1.msra.mxu0 0.0
        %4782 = vmatprep.subr.mxu0 0.0
        %4783 = vmatpush1.msra.mxu0 0.0
        %4784 = vmatprep.subr.mxu0 0.0
        %4785 = vmatpush1.msra.mxu0 0.0
        %4786 = vmatprep.subr.mxu0 0.0
        %4787 = vmatpush1.msra.mxu0 0.0
        %4788 = vmatprep.subr.mxu0 0.0
        %4789 = vmatpush1.msra.mxu0 0.0
        %4790 = vmatprep.mubr.f32.mxu0 0.0
        %4791 = vmatmul.mubr.f32.gmra.mrb[0].mxu0 %v4655
        %v4792 = vpop.f32.mrb[0].mxu0
        %v4793 = vadd.f32 %v4652, %v4792
        %v4794 = vpop.f32.mrb[0].mxu0
        %4795 = vmatprep.mubr.f32.mxu0 0.0
        %4796 = vmatmul.mubr.f32.gmra.mrb[0].mxu0 %v4658
        %v4797 = vpop.f32.mrb[0].mxu0
        %v4798 = vadd.f32 %v4652, %v4797
        %v4799 = vpop.f32.mrb[0].mxu0
        %4800 = vmatprep.mubr.f32.mxu0 0.0
        %4801 = vmatmul.mubr.f32.gmra.mrb[0].mxu0 %v4661
        %v4802 = vpop.f32.mrb[0].mxu0
        %v4803 = vadd.f32 %v4652, %v4802
        %v4804 = vpop.f32.mrb[0].mxu0
        %4805 = vmatprep.mubr.f32.mxu0 0.0
        %4806 = vmatmul.mubr.f32.gmra.mrb[0].mxu0 %v4664
        %v4807 = vpop.f32.mrb[0].mxu0
        %v4808 = vadd.f32 %v4652, %v4807
        %v4809 = vpop.f32.mrb[0].mxu0
        %4810 = vmatprep.mubr.f32.mxu0 0.0
        %4811 = vmatmul.mubr.f32.gmra.mrb[0].mxu0 %v4667
        %v4812 = vpop.f32.mrb[0].mxu0
        %v4813 = vadd.f32 %v4652, %v4812
        %v4814 = vpop.f32.mrb[0].mxu0
        %4815 = vmatprep.mubr.f32.mxu0 0.0
        %4816 = vmatmul.mubr.f32.gmra.mrb[0].mxu0 %v4670
        %v4817 = vpop.f32.mrb[0].mxu0
        %v4818 = vadd.f32 %v4652, %v4817
        %v4819 = vpop.f32.mrb[0].mxu0
        %4820 = vmatprep.mubr.f32.mxu0 0.0
        %4821 = vmatmul.mubr.f32.gmra.mrb[0].mxu0 %v4673
        %v4822 = vpop.f32.mrb[0].mxu0
        %v4823 = vadd.f32 %v4652, %v4822
        %v4824 = vpop.f32.mrb[0].mxu0
        %4825 = vmatprep.mubr.f32.mxu0 0.0
        %4826 = vmatmul.mubr.f32.gmra.mrb[0].mxu0 %v4676
        %v4827 = vpop.f32.mrb[0].mxu0
        %v4828 = vadd.f32 %v4652, %v4827
        %v4829 = vpop.f32.mrb[0].mxu0
        %4830 = vmatprep.mubr.f32.mxu0 0.0
        %4831 = vmatmul.mubr.f32.gmra.mrb[0].mxu0 %v4679
        %v4832 = vpop.f32.mrb[0].mxu0
        %v4833 = vadd.f32 %v4652, %v4832
        %v4834 = vpop.f32.mrb[0].mxu0
        %4835 = vmatprep.mubr.f32.mxu0 0.0
        %4836 = vmatmul.mubr.f32.gmra.mrb[0].mxu0 %v4682
        %v4837 = vpop.f32.mrb[0].mxu0
        %v4838 = vadd.f32 %v4652, %v4837
        %v4839 = vpop.f32.mrb[0].mxu0
        %4840 = vmatprep.mubr.f32.mxu0 0.0
        %4841 = vmatmul.mubr.f32.gmra.mrb[0].mxu0 %v4685
        %v4842 = vpop.f32.mrb[0].mxu0
        %v4843 = vadd.f32 %v4652, %v4842
        %v4844 = vpop.f32.mrb[0].mxu0
        %4845 = vmatprep.mubr.f32.mxu0 0.0
        %4846 = vmatmul.mubr.f32.gmra.mrb[0].mxu0 %v4688
        %v4847 = vpop.f32.mrb[0].mxu0
        %v4848 = vadd.f32 %v4652, %v4847
        %v4849 = vpop.f32.mrb[0].mxu0
        %4850 = vmatprep.mubr.f32.mxu0 0.0
        %4851 = vmatmul.mubr.f32.gmra.mrb[0].mxu0 %v4691
        %v4852 = vpop.f32.mrb[0].mxu0
        %v4853 = vadd.f32 %v4652, %v4852
        %v4854 = vpop.f32.mrb[0].mxu0
        %4855 = vmatprep.mubr.f32.mxu0 0.0
        %4856 = vmatmul.mubr.f32.gmra.mrb[0].mxu0 %v4694
        %v4857 = vpop.f32.mrb[0].mxu0
        %v4858 = vadd.f32 %v4652, %v4857
        %v4859 = vpop.f32.mrb[0].mxu0
        %4860 = vmatprep.mubr.f32.mxu0 0.0
        %4861 = vmatmul.mubr.f32.gmra.mrb[0].mxu0 %v4697
        %v4862 = vpop.f32.mrb[0].mxu0
        %v4863 = vadd.f32 %v4652, %v4862
        %v4864 = vpop.f32.mrb[0].mxu0
        %4865 = vmatprep.mubr.f32.mxu0 0.0
        %4866 = vmatmul.mubr.f32.gmra.mrb[0].mxu0 %v4700
        %v4867 = vpop.f32.mrb[0].mxu0
        %v4868 = vadd.f32 %v4652, %v4867
        %v4869 = vpop.f32.mrb[0].mxu0
        %4870 = vmatprep.mubr.f32.mxu0 0.0
        %4871 = vmatmul.mubr.f32.gmra.mrb[0].mxu0 %v4703
        %v4872 = vpop.f32.mrb[0].mxu0
        %v4873 = vadd.f32 %v4652, %v4872
        %v4874 = vpop.f32.mrb[0].mxu0
        %4875 = vmatprep.mubr.f32.mxu0 0.0
        %4876 = vmatmul.mubr.f32.gmra.mrb[0].mxu0 %v4706
        %v4877 = vpop.f32.mrb[0].mxu0
        %v4878 = vadd.f32 %v4652, %v4877
        %v4879 = vpop.f32.mrb[0].mxu0
        %4880 = vmatprep.mubr.f32.mxu0 0.0
        %4881 = vmatmul.mubr.f32.gmra.mrb[0].mxu0 %v4709
        %v4882 = vpop.f32.mrb[0].mxu0
        %v4883 = vadd.f32 %v4652, %v4882
        %v4884 = vpop.f32.mrb[0].mxu0
        %4885 = vmatprep.mubr.f32.mxu0 0.0
        %4886 = vmatmul.mubr.f32.gmra.mrb[0].mxu0 %v4712
        %v4887 = vpop.f32.mrb[0].mxu0
        %v4888 = vadd.f32 %v4652, %v4887
        %v4889 = vpop.f32.mrb[0].mxu0
        %4890 = vmatprep.mubr.f32.mxu0 0.0
        %4891 = vmatmul.mubr.f32.gmra.mrb[0].mxu0 %v4715
        %v4892 = vpop.f32.mrb[0].mxu0
        %v4893 = vadd.f32 %v4652, %v4892
        %v4894 = vpop.f32.mrb[0].mxu0
        %4895 = vmatprep.mubr.f32.mxu0 0.0
        %4896 = vmatmul.mubr.f32.gmra.mrb[0].mxu0 %v4718
        %v4897 = vpop.f32.mrb[0].mxu0
        %v4898 = vadd.f32 %v4652, %v4897
        %v4899 = vpop.f32.mrb[0].mxu0
        %4900 = vmatprep.mubr.f32.mxu0 0.0
        %4901 = vmatmul.mubr.f32.gmra.mrb[0].mxu0 %v4721
        %v4902 = vpop.f32.mrb[0].mxu0
        %v4903 = vadd.f32 %v4652, %v4902
        %v4904 = vpop.f32.mrb[0].mxu0
        %4905 = vmatprep.mubr.f32.mxu0 0.0
        %4906 = vmatmul.mubr.f32.gmra.mrb[0].mxu0 %v4724
        %v4907 = vpop.f32.mrb[0].mxu0
        %v4908 = vadd.f32 %v4652, %v4907
        %v4909 = vpop.f32.mrb[0].mxu0
        %4910 = vdwg.mxu0
        %v4911 = vmax.f32 %v4793, 0.0
        %v4912 = vmax.f32 %v4798, 0.0
        %v4913 = vmax.f32 %v4803, 0.0
        %v4914 = vmax.f32 %v4808, 0.0
        %v4915 = vmax.f32 %v4813, 0.0
        %v4916 = vmax.f32 %v4818, 0.0
        %v4917 = vmax.f32 %v4823, 0.0
        %v4918 = vmax.f32 %v4828, 0.0
        %v4919 = vmax.f32 %v4833, 0.0
        %v4920 = vmax.f32 %v4838, 0.0
        %v4921 = vmax.f32 %v4843, 0.0
        %v4922 = vmax.f32 %v4848, 0.0
        %v4923 = vmax.f32 %v4853, 0.0
        %v4924 = vmax.f32 %v4858, 0.0
        %v4925 = vmax.f32 %v4863, 0.0
        %v4926 = vmax.f32 %v4868, 0.0
        %v4927 = vmax.f32 %v4873, 0.0
        %v4928 = vmax.f32 %v4878, 0.0
        %v4929 = vmax.f32 %v4883, 0.0
        %v4930 = vmax.f32 %v4888, 0.0
        %v4931 = vmax.f32 %v4893, 0.0
        %v4932 = vmax.f32 %v4898, 0.0
        %v4933 = vmax.f32 %v4903, 0.0
        %v4934 = vmax.f32 %v4908, 0.0
        %v4935 = vld [vmem:[%s47] sm:$0xff]
        %v4936 = vld [vmem:[%s47 + $0x8] sm:$0xff]
        %v4937 = vld [vmem:[%s47 + $0x10] sm:$0xff]
        %v4938 = vld [vmem:[%s47 + $0x18] sm:$0xff]
        %v4939 = vld [vmem:[%s47 + $0x20] sm:$0xff]
        %v4940 = vld [vmem:[%s47 + $0x28] sm:$0xff]
        %v4941 = vld [vmem:[%s47 + $0x30] sm:$0xff]
        %v4942 = vld [vmem:[%s47 + $0x38] sm:$0xff]
        %v4943 = vld [vmem:[%s49] sm:$0x1]
        %v4945 = vlaneseq
        %v4946 = vshrl.u32 %v4945, 7
        %v4947 = vsub.s32 0, %v4946
        %v4948 = vrot.slane %v4943, %v4947
        %v4951 = vsel %vm3310, %v4911, 0
        %v4954 = vsel %vm3310, %v4912, 0
        %v4957 = vsel %vm3310, %v4913, 0
        %v4960 = vsel %vm3310, %v4914, 0
        %v4963 = vsel %vm3310, %v4915, 0
        %v4966 = vsel %vm3310, %v4916, 0
        %v4969 = vsel %vm3310, %v4917, 0
        %v4972 = vsel %vm3310, %v4918, 0
        %v4975 = vsel %vm3310, %v4919, 0
        %v4978 = vsel %vm3310, %v4920, 0
        %v4981 = vsel %vm3310, %v4921, 0
        %v4984 = vsel %vm3310, %v4922, 0
        %v4987 = vsel %vm3310, %v4923, 0
        %v4990 = vsel %vm3310, %v4924, 0
        %v4993 = vsel %vm3310, %v4925, 0
        %v4996 = vsel %vm3310, %v4926, 0
        %v4999 = vsel %vm3310, %v4927, 0
        %v5002 = vsel %vm3310, %v4928, 0
        %v5005 = vsel %vm3310, %v4929, 0
        %v5008 = vsel %vm3310, %v4930, 0
        %v5011 = vsel %vm3310, %v4931, 0
        %v5014 = vsel %vm3310, %v4932, 0
        %v5017 = vsel %vm3310, %v4933, 0
        %v5020 = vsel %vm3310, %v4934, 0
        %5022 = vmatprep.subr.mxu0 0.0
        %5023 = vmatpush1.msra.mxu0 %v4935
        %5024 = vmatprep.subr.mxu0 0.0
        %5025 = vmatpush1.msra.mxu0 %v4936
        %5026 = vmatprep.subr.mxu0 0.0
        %5027 = vmatpush1.msra.mxu0 %v4937
        %5028 = vmatprep.subr.mxu0 0.0
        %5029 = vmatpush1.msra.mxu0 %v4938
        %5030 = vmatprep.subr.mxu0 0.0
        %5031 = vmatpush1.msra.mxu0 %v4939
        %5032 = vmatprep.subr.mxu0 0.0
        %5033 = vmatpush1.msra.mxu0 %v4940
        %5034 = vmatprep.subr.mxu0 0.0
        %5035 = vmatpush1.msra.mxu0 %v4941
        %5036 = vmatprep.subr.mxu0 0.0
        %5037 = vmatpush1.msra.mxu0 %v4942
        %5038 = vmatprep.subr.mxu0 0.0
        %5039 = vmatpush1.msra.mxu0 0.0
        %5040 = vmatprep.subr.mxu0 0.0
        %5041 = vmatpush1.msra.mxu0 0.0
        %5042 = vmatprep.subr.mxu0 0.0
        %5043 = vmatpush1.msra.mxu0 0.0
        %5044 = vmatprep.subr.mxu0 0.0
        %5045 = vmatpush1.msra.mxu0 0.0
        %5046 = vmatprep.subr.mxu0 0.0
        %5047 = vmatpush1.msra.mxu0 0.0
        %5048 = vmatprep.subr.mxu0 0.0
        %5049 = vmatpush1.msra.mxu0 0.0
        %5050 = vmatprep.subr.mxu0 0.0
        %5051 = vmatpush1.msra.mxu0 0.0
        %5052 = vmatprep.subr.mxu0 0.0
        %5053 = vmatpush1.msra.mxu0 0.0
        %5054 = vmatprep.subr.mxu0 0.0
        %5055 = vmatpush1.msra.mxu0 0.0
        %5056 = vmatprep.subr.mxu0 0.0
        %5057 = vmatpush1.msra.mxu0 0.0
        %5058 = vmatprep.subr.mxu0 0.0
        %5059 = vmatpush1.msra.mxu0 0.0
        %5060 = vmatprep.subr.mxu0 0.0
        %5061 = vmatpush1.msra.mxu0 0.0
        %5062 = vmatprep.subr.mxu0 0.0
        %5063 = vmatpush1.msra.mxu0 0.0
        %5064 = vmatprep.subr.mxu0 0.0
        %5065 = vmatpush1.msra.mxu0 0.0
        %5066 = vmatprep.subr.mxu0 0.0
        %5067 = vmatpush1.msra.mxu0 0.0
        %5068 = vmatprep.subr.mxu0 0.0
        %5069 = vmatpush1.msra.mxu0 0.0
        %5070 = vmatprep.subr.mxu0 0.0
        %5071 = vmatpush1.msra.mxu0 0.0
        %5072 = vmatprep.subr.mxu0 0.0
        %5073 = vmatpush1.msra.mxu0 0.0
        %5074 = vmatprep.subr.mxu0 0.0
        %5075 = vmatpush1.msra.mxu0 0.0
        %5076 = vmatprep.subr.mxu0 0.0
        %5077 = vmatpush1.msra.mxu0 0.0
        %5078 = vmatprep.subr.mxu0 0.0
        %5079 = vmatpush1.msra.mxu0 0.0
        %5080 = vmatprep.subr.mxu0 0.0
        %5081 = vmatpush1.msra.mxu0 0.0
        %5082 = vmatprep.subr.mxu0 0.0
        %5083 = vmatpush1.msra.mxu0 0.0
        %5084 = vmatprep.subr.mxu0 0.0
        %5085 = vmatpush1.msra.mxu0 0.0
        %5086 = vmatprep.mubr.f32.mxu0 0.0
        %5087 = vmatmul.mubr.f32.gmra.mrb[0].mxu0 %v4951
        %v5088 = vpop.f32.mrb[0].mxu0
        %v5089 = vadd.f32 %v4948, %v5088
        %v5090 = vpop.f32.mrb[0].mxu0
        %5091 = vmatprep.mubr.f32.mxu0 0.0
        %5092 = vmatmul.mubr.f32.gmra.mrb[0].mxu0 %v4954
        %v5093 = vpop.f32.mrb[0].mxu0
        %v5094 = vadd.f32 %v4948, %v5093
        %v5095 = vpop.f32.mrb[0].mxu0
        %5096 = vmatprep.mubr.f32.mxu0 0.0
        %5097 = vmatmul.mubr.f32.gmra.mrb[0].mxu0 %v4957
        %v5098 = vpop.f32.mrb[0].mxu0
        %v5099 = vadd.f32 %v4948, %v5098
        %v5100 = vpop.f32.mrb[0].mxu0
        %5101 = vmatprep.mubr.f32.mxu0 0.0
        %5102 = vmatmul.mubr.f32.gmra.mrb[0].mxu0 %v4960
        %v5103 = vpop.f32.mrb[0].mxu0
        %v5104 = vadd.f32 %v4948, %v5103
        %v5105 = vpop.f32.mrb[0].mxu0
        %5106 = vmatprep.mubr.f32.mxu0 0.0
        %5107 = vmatmul.mubr.f32.gmra.mrb[0].mxu0 %v4963
        %v5108 = vpop.f32.mrb[0].mxu0
        %v5109 = vadd.f32 %v4948, %v5108
        %v5110 = vpop.f32.mrb[0].mxu0
        %5111 = vmatprep.mubr.f32.mxu0 0.0
        %5112 = vmatmul.mubr.f32.gmra.mrb[0].mxu0 %v4966
        %v5113 = vpop.f32.mrb[0].mxu0
        %v5114 = vadd.f32 %v4948, %v5113
        %v5115 = vpop.f32.mrb[0].mxu0
        %5116 = vmatprep.mubr.f32.mxu0 0.0
        %5117 = vmatmul.mubr.f32.gmra.mrb[0].mxu0 %v4969
        %v5118 = vpop.f32.mrb[0].mxu0
        %v5119 = vadd.f32 %v4948, %v5118
        %v5120 = vpop.f32.mrb[0].mxu0
        %5121 = vmatprep.mubr.f32.mxu0 0.0
        %5122 = vmatmul.mubr.f32.gmra.mrb[0].mxu0 %v4972
        %v5123 = vpop.f32.mrb[0].mxu0
        %v5124 = vadd.f32 %v4948, %v5123
        %v5125 = vpop.f32.mrb[0].mxu0
        %5126 = vmatprep.mubr.f32.mxu0 0.0
        %5127 = vmatmul.mubr.f32.gmra.mrb[0].mxu0 %v4975
        %v5128 = vpop.f32.mrb[0].mxu0
        %v5129 = vadd.f32 %v4948, %v5128
        %v5130 = vpop.f32.mrb[0].mxu0
        %5131 = vmatprep.mubr.f32.mxu0 0.0
        %5132 = vmatmul.mubr.f32.gmra.mrb[0].mxu0 %v4978
        %v5133 = vpop.f32.mrb[0].mxu0
        %v5134 = vadd.f32 %v4948, %v5133
        %v5135 = vpop.f32.mrb[0].mxu0
        %5136 = vmatprep.mubr.f32.mxu0 0.0
        %5137 = vmatmul.mubr.f32.gmra.mrb[0].mxu0 %v4981
        %v5138 = vpop.f32.mrb[0].mxu0
        %v5139 = vadd.f32 %v4948, %v5138
        %v5140 = vpop.f32.mrb[0].mxu0
        %5141 = vmatprep.mubr.f32.mxu0 0.0
        %5142 = vmatmul.mubr.f32.gmra.mrb[0].mxu0 %v4984
        %v5143 = vpop.f32.mrb[0].mxu0
        %v5144 = vadd.f32 %v4948, %v5143
        %v5145 = vpop.f32.mrb[0].mxu0
        %5146 = vmatprep.mubr.f32.mxu0 0.0
        %5147 = vmatmul.mubr.f32.gmra.mrb[0].mxu0 %v4987
        %v5148 = vpop.f32.mrb[0].mxu0
        %v5149 = vadd.f32 %v4948, %v5148
        %v5150 = vpop.f32.mrb[0].mxu0
        %5151 = vmatprep.mubr.f32.mxu0 0.0
        %5152 = vmatmul.mubr.f32.gmra.mrb[0].mxu0 %v4990
        %v5153 = vpop.f32.mrb[0].mxu0
        %v5154 = vadd.f32 %v4948, %v5153
        %v5155 = vpop.f32.mrb[0].mxu0
        %5156 = vmatprep.mubr.f32.mxu0 0.0
        %5157 = vmatmul.mubr.f32.gmra.mrb[0].mxu0 %v4993
        %v5158 = vpop.f32.mrb[0].mxu0
        %v5159 = vadd.f32 %v4948, %v5158
        %v5160 = vpop.f32.mrb[0].mxu0
        %5161 = vmatprep.mubr.f32.mxu0 0.0
        %5162 = vmatmul.mubr.f32.gmra.mrb[0].mxu0 %v4996
        %v5163 = vpop.f32.mrb[0].mxu0
        %v5164 = vadd.f32 %v4948, %v5163
        %v5165 = vpop.f32.mrb[0].mxu0
        %5166 = vmatprep.mubr.f32.mxu0 0.0
        %5167 = vmatmul.mubr.f32.gmra.mrb[0].mxu0 %v4999
        %v5168 = vpop.f32.mrb[0].mxu0
        %v5169 = vadd.f32 %v4948, %v5168
        %v5170 = vpop.f32.mrb[0].mxu0
        %5171 = vmatprep.mubr.f32.mxu0 0.0
        %5172 = vmatmul.mubr.f32.gmra.mrb[0].mxu0 %v5002
        %v5173 = vpop.f32.mrb[0].mxu0
        %v5174 = vadd.f32 %v4948, %v5173
        %v5175 = vpop.f32.mrb[0].mxu0
        %5176 = vmatprep.mubr.f32.mxu0 0.0
        %5177 = vmatmul.mubr.f32.gmra.mrb[0].mxu0 %v5005
        %v5178 = vpop.f32.mrb[0].mxu0
        %v5179 = vadd.f32 %v4948, %v5178
        %v5180 = vpop.f32.mrb[0].mxu0
        %5181 = vmatprep.mubr.f32.mxu0 0.0
        %5182 = vmatmul.mubr.f32.gmra.mrb[0].mxu0 %v5008
        %v5183 = vpop.f32.mrb[0].mxu0
        %v5184 = vadd.f32 %v4948, %v5183
        %v5185 = vpop.f32.mrb[0].mxu0
        %5186 = vmatprep.mubr.f32.mxu0 0.0
        %5187 = vmatmul.mubr.f32.gmra.mrb[0].mxu0 %v5011
        %v5188 = vpop.f32.mrb[0].mxu0
        %v5189 = vadd.f32 %v4948, %v5188
        %v5190 = vpop.f32.mrb[0].mxu0
        %5191 = vmatprep.mubr.f32.mxu0 0.0
        %5192 = vmatmul.mubr.f32.gmra.mrb[0].mxu0 %v5014
        %v5193 = vpop.f32.mrb[0].mxu0
        %v5194 = vadd.f32 %v4948, %v5193
        %v5195 = vpop.f32.mrb[0].mxu0
        %5196 = vmatprep.mubr.f32.mxu0 0.0
        %5197 = vmatmul.mubr.f32.gmra.mrb[0].mxu0 %v5017
        %v5198 = vpop.f32.mrb[0].mxu0
        %v5199 = vadd.f32 %v4948, %v5198
        %v5200 = vpop.f32.mrb[0].mxu0
        %5201 = vmatprep.mubr.f32.mxu0 0.0
        %5202 = vmatmul.mubr.f32.gmra.mrb[0].mxu0 %v5020
        %v5203 = vpop.f32.mrb[0].mxu0
        %v5204 = vadd.f32 %v4948, %v5203
        %v5205 = vpop.f32.mrb[0].mxu0
        %5206 = vdwg.mxu0
        %v5207 = vadd.f32 %v4619, %v5089
        %v5208 = vadd.f32 %v4620, %v5094
        %v5209 = vadd.f32 %v4621, %v5099
        %v5210 = vadd.f32 %v4622, %v5104
        %v5211 = vadd.f32 %v4623, %v5109
        %v5212 = vadd.f32 %v4624, %v5114
        %v5213 = vadd.f32 %v4625, %v5119
        %v5214 = vadd.f32 %v4626, %v5124
        %v5215 = vadd.f32 %v4627, %v5129
        %v5216 = vadd.f32 %v4628, %v5134
        %v5217 = vadd.f32 %v4629, %v5139
        %v5218 = vadd.f32 %v4630, %v5144
        %v5219 = vadd.f32 %v4631, %v5149
        %v5220 = vadd.f32 %v4632, %v5154
        %v5221 = vadd.f32 %v4633, %v5159
        %v5222 = vadd.f32 %v4634, %v5164
        %v5223 = vadd.f32 %v4635, %v5169
        %v5224 = vadd.f32 %v4636, %v5174
        %v5225 = vadd.f32 %v4637, %v5179
        %v5226 = vadd.f32 %v4638, %v5184
        %v5227 = vadd.f32 %v4639, %v5189
        %v5228 = vadd.f32 %v4640, %v5194
        %v5229 = vadd.f32 %v4641, %v5199
        %v5230 = vadd.f32 %v4642, %v5204
        %v5231 = vsel %vm1917, %v5207, 0.0
        %5232 = vadd.xlane.f32.xlu0 %v5231
        %v5233 = vpop.xlane.xlu0 %5232
        %v5234 = vsel %vm1917, %v5208, 0.0
        %5235 = vadd.xlane.f32.xlu0 %v5234
        %v5236 = vpop.xlane.xlu0 %5235
        %v5237 = vsel %vm1917, %v5209, 0.0
        %5238 = vadd.xlane.f32.xlu0 %v5237
        %v5239 = vpop.xlane.xlu0 %5238
        %v5240 = vsel %vm1917, %v5210, 0.0
        %5241 = vadd.xlane.f32.xlu0 %v5240
        %v5242 = vpop.xlane.xlu0 %5241
        %v5243 = vsel %vm1917, %v5211, 0.0
        %5244 = vadd.xlane.f32.xlu0 %v5243
        %v5245 = vpop.xlane.xlu0 %5244
        %v5246 = vsel %vm1917, %v5212, 0.0
        %5247 = vadd.xlane.f32.xlu0 %v5246
        %v5248 = vpop.xlane.xlu0 %5247
        %v5249 = vsel %vm1917, %v5213, 0.0
        %5250 = vadd.xlane.f32.xlu0 %v5249
        %v5251 = vpop.xlane.xlu0 %5250
        %v5252 = vsel %vm1917, %v5214, 0.0
        %5253 = vadd.xlane.f32.xlu0 %v5252
        %v5254 = vpop.xlane.xlu0 %5253
        %v5255 = vsel %vm1917, %v5215, 0.0
        %5256 = vadd.xlane.f32.xlu0 %v5255
        %v5257 = vpop.xlane.xlu0 %5256
        %v5258 = vsel %vm1917, %v5216, 0.0
        %5259 = vadd.xlane.f32.xlu0 %v5258
        %v5260 = vpop.xlane.xlu0 %5259
        %v5261 = vsel %vm1917, %v5217, 0.0
        %5262 = vadd.xlane.f32.xlu0 %v5261
        %v5263 = vpop.xlane.xlu0 %5262
        %v5264 = vsel %vm1917, %v5218, 0.0
        %5265 = vadd.xlane.f32.xlu0 %v5264
        %v5266 = vpop.xlane.xlu0 %5265
        %v5267 = vsel %vm1917, %v5219, 0.0
        %5268 = vadd.xlane.f32.xlu0 %v5267
        %v5269 = vpop.xlane.xlu0 %5268
        %v5270 = vsel %vm1917, %v5220, 0.0
        %5271 = vadd.xlane.f32.xlu0 %v5270
        %v5272 = vpop.xlane.xlu0 %5271
        %v5273 = vsel %vm1917, %v5221, 0.0
        %5274 = vadd.xlane.f32.xlu0 %v5273
        %v5275 = vpop.xlane.xlu0 %5274
        %v5276 = vsel %vm1917, %v5222, 0.0
        %5277 = vadd.xlane.f32.xlu0 %v5276
        %v5278 = vpop.xlane.xlu0 %5277
        %v5279 = vsel %vm1917, %v5223, 0.0
        %5280 = vadd.xlane.f32.xlu0 %v5279
        %v5281 = vpop.xlane.xlu0 %5280
        %v5282 = vsel %vm1917, %v5224, 0.0
        %5283 = vadd.xlane.f32.xlu0 %v5282
        %v5284 = vpop.xlane.xlu0 %5283
        %v5285 = vsel %vm1917, %v5225, 0.0
        %5286 = vadd.xlane.f32.xlu0 %v5285
        %v5287 = vpop.xlane.xlu0 %5286
        %v5288 = vsel %vm1917, %v5226, 0.0
        %5289 = vadd.xlane.f32.xlu0 %v5288
        %v5290 = vpop.xlane.xlu0 %5289
        %v5291 = vsel %vm1917, %v5227, 0.0
        %5292 = vadd.xlane.f32.xlu0 %v5291
        %v5293 = vpop.xlane.xlu0 %5292
        %v5294 = vsel %vm1917, %v5228, 0.0
        %5295 = vadd.xlane.f32.xlu0 %v5294
        %v5296 = vpop.xlane.xlu0 %5295
        %v5297 = vsel %vm1917, %v5229, 0.0
        %5298 = vadd.xlane.f32.xlu0 %v5297
        %v5299 = vpop.xlane.xlu0 %5298
        %v5300 = vsel %vm1917, %v5230, 0.0
        %5301 = vadd.xlane.f32.xlu0 %v5300
        %v5302 = vpop.xlane.xlu0 %5301
        %v5303 = vmul.f32 %v5233, %v4340
        %v5304 = vmul.f32 %v5236, %v4340
        %v5305 = vmul.f32 %v5239, %v4340
        %v5306 = vmul.f32 %v5242, %v4340
        %v5307 = vmul.f32 %v5245, %v4340
        %v5308 = vmul.f32 %v5248, %v4340
        %v5309 = vmul.f32 %v5251, %v4340
        %v5310 = vmul.f32 %v5254, %v4340
        %v5311 = vmul.f32 %v5257, %v4340
        %v5312 = vmul.f32 %v5260, %v4340
        %v5313 = vmul.f32 %v5263, %v4340
        %v5314 = vmul.f32 %v5266, %v4340
        %v5315 = vmul.f32 %v5269, %v4340
        %v5316 = vmul.f32 %v5272, %v4340
        %v5317 = vmul.f32 %v5275, %v4340
        %v5318 = vmul.f32 %v5278, %v4340
        %v5319 = vmul.f32 %v5281, %v4340
        %v5320 = vmul.f32 %v5284, %v4340
        %v5321 = vmul.f32 %v5287, %v4340
        %v5322 = vmul.f32 %v5290, %v4340
        %v5323 = vmul.f32 %v5293, %v4340
        %v5324 = vmul.f32 %v5296, %v4340
        %v5325 = vmul.f32 %v5299, %v4340
        %v5326 = vmul.f32 %v5302, %v4340
        %v5327 = vsub.f32 %v5207, %v5303
        %v5328 = vsub.f32 %v5208, %v5304
        %v5329 = vsub.f32 %v5209, %v5305
        %v5330 = vsub.f32 %v5210, %v5306
        %v5331 = vsub.f32 %v5211, %v5307
        %v5332 = vsub.f32 %v5212, %v5308
        %v5333 = vsub.f32 %v5213, %v5309
        %v5334 = vsub.f32 %v5214, %v5310
        %v5335 = vsub.f32 %v5215, %v5311
        %v5336 = vsub.f32 %v5216, %v5312
        %v5337 = vsub.f32 %v5217, %v5313
        %v5338 = vsub.f32 %v5218, %v5314
        %v5339 = vsub.f32 %v5219, %v5315
        %v5340 = vsub.f32 %v5220, %v5316
        %v5341 = vsub.f32 %v5221, %v5317
        %v5342 = vsub.f32 %v5222, %v5318
        %v5343 = vsub.f32 %v5223, %v5319
        %v5344 = vsub.f32 %v5224, %v5320
        %v5345 = vsub.f32 %v5225, %v5321
        %v5346 = vsub.f32 %v5226, %v5322
        %v5347 = vsub.f32 %v5227, %v5323
        %v5348 = vsub.f32 %v5228, %v5324
        %v5349 = vsub.f32 %v5229, %v5325
        %v5350 = vsub.f32 %v5230, %v5326
        %v5351 = vmul.f32 %v5327, %v5327
        %v5352 = vmul.f32 %v5328, %v5328
        %v5353 = vmul.f32 %v5329, %v5329
        %v5354 = vmul.f32 %v5330, %v5330
        %v5355 = vmul.f32 %v5331, %v5331
        %v5356 = vmul.f32 %v5332, %v5332
        %v5357 = vmul.f32 %v5333, %v5333
        %v5358 = vmul.f32 %v5334, %v5334
        %v5359 = vmul.f32 %v5335, %v5335
        %v5360 = vmul.f32 %v5336, %v5336
        %v5361 = vmul.f32 %v5337, %v5337
        %v5362 = vmul.f32 %v5338, %v5338
        %v5363 = vmul.f32 %v5339, %v5339
        %v5364 = vmul.f32 %v5340, %v5340
        %v5365 = vmul.f32 %v5341, %v5341
        %v5366 = vmul.f32 %v5342, %v5342
        %v5367 = vmul.f32 %v5343, %v5343
        %v5368 = vmul.f32 %v5344, %v5344
        %v5369 = vmul.f32 %v5345, %v5345
        %v5370 = vmul.f32 %v5346, %v5346
        %v5371 = vmul.f32 %v5347, %v5347
        %v5372 = vmul.f32 %v5348, %v5348
        %v5373 = vmul.f32 %v5349, %v5349
        %v5374 = vmul.f32 %v5350, %v5350
        %v5375 = vsel %vm1917, %v5351, 0.0
        %5376 = vadd.xlane.f32.xlu0 %v5375
        %v5377 = vpop.xlane.xlu0 %5376
        %v5378 = vsel %vm1917, %v5352, 0.0
        %5379 = vadd.xlane.f32.xlu0 %v5378
        %v5380 = vpop.xlane.xlu0 %5379
        %v5381 = vsel %vm1917, %v5353, 0.0
        %5382 = vadd.xlane.f32.xlu0 %v5381
        %v5383 = vpop.xlane.xlu0 %5382
        %v5384 = vsel %vm1917, %v5354, 0.0
        %5385 = vadd.xlane.f32.xlu0 %v5384
        %v5386 = vpop.xlane.xlu0 %5385
        %v5387 = vsel %vm1917, %v5355, 0.0
        %5388 = vadd.xlane.f32.xlu0 %v5387
        %v5389 = vpop.xlane.xlu0 %5388
        %v5390 = vsel %vm1917, %v5356, 0.0
        %5391 = vadd.xlane.f32.xlu0 %v5390
        %v5392 = vpop.xlane.xlu0 %5391
        %v5393 = vsel %vm1917, %v5357, 0.0
        %5394 = vadd.xlane.f32.xlu0 %v5393
        %v5395 = vpop.xlane.xlu0 %5394
        %v5396 = vsel %vm1917, %v5358, 0.0
        %5397 = vadd.xlane.f32.xlu0 %v5396
        %v5398 = vpop.xlane.xlu0 %5397
        %v5399 = vsel %vm1917, %v5359, 0.0
        %5400 = vadd.xlane.f32.xlu0 %v5399
        %v5401 = vpop.xlane.xlu0 %5400
        %v5402 = vsel %vm1917, %v5360, 0.0
        %5403 = vadd.xlane.f32.xlu0 %v5402
        %v5404 = vpop.xlane.xlu0 %5403
        %v5405 = vsel %vm1917, %v5361, 0.0
        %5406 = vadd.xlane.f32.xlu0 %v5405
        %v5407 = vpop.xlane.xlu0 %5406
        %v5408 = vsel %vm1917, %v5362, 0.0
        %5409 = vadd.xlane.f32.xlu0 %v5408
        %v5410 = vpop.xlane.xlu0 %5409
        %v5411 = vsel %vm1917, %v5363, 0.0
        %5412 = vadd.xlane.f32.xlu0 %v5411
        %v5413 = vpop.xlane.xlu0 %5412
        %v5414 = vsel %vm1917, %v5364, 0.0
        %5415 = vadd.xlane.f32.xlu0 %v5414
        %v5416 = vpop.xlane.xlu0 %5415
        %v5417 = vsel %vm1917, %v5365, 0.0
        %5418 = vadd.xlane.f32.xlu0 %v5417
        %v5419 = vpop.xlane.xlu0 %5418
        %v5420 = vsel %vm1917, %v5366, 0.0
        %5421 = vadd.xlane.f32.xlu0 %v5420
        %v5422 = vpop.xlane.xlu0 %5421
        %v5423 = vsel %vm1917, %v5367, 0.0
        %5424 = vadd.xlane.f32.xlu0 %v5423
        %v5425 = vpop.xlane.xlu0 %5424
        %v5426 = vsel %vm1917, %v5368, 0.0
        %5427 = vadd.xlane.f32.xlu0 %v5426
        %v5428 = vpop.xlane.xlu0 %5427
        %v5429 = vsel %vm1917, %v5369, 0.0
        %5430 = vadd.xlane.f32.xlu0 %v5429
        %v5431 = vpop.xlane.xlu0 %5430
        %v5432 = vsel %vm1917, %v5370, 0.0
        %5433 = vadd.xlane.f32.xlu0 %v5432
        %v5434 = vpop.xlane.xlu0 %5433
        %v5435 = vsel %vm1917, %v5371, 0.0
        %5436 = vadd.xlane.f32.xlu0 %v5435
        %v5437 = vpop.xlane.xlu0 %5436
        %v5438 = vsel %vm1917, %v5372, 0.0
        %5439 = vadd.xlane.f32.xlu0 %v5438
        %v5440 = vpop.xlane.xlu0 %5439
        %v5441 = vsel %vm1917, %v5373, 0.0
        %5442 = vadd.xlane.f32.xlu0 %v5441
        %v5443 = vpop.xlane.xlu0 %5442
        %v5444 = vsel %vm1917, %v5374, 0.0
        %5445 = vadd.xlane.f32.xlu0 %v5444
        %v5446 = vpop.xlane.xlu0 %5445
        %v5447 = vmul.f32 %v5377, %v4340
        %v5448 = vmul.f32 %v5380, %v4340
        %v5449 = vmul.f32 %v5383, %v4340
        %v5450 = vmul.f32 %v5386, %v4340
        %v5451 = vmul.f32 %v5389, %v4340
        %v5452 = vmul.f32 %v5392, %v4340
        %v5453 = vmul.f32 %v5395, %v4340
        %v5454 = vmul.f32 %v5398, %v4340
        %v5455 = vmul.f32 %v5401, %v4340
        %v5456 = vmul.f32 %v5404, %v4340
        %v5457 = vmul.f32 %v5407, %v4340
        %v5458 = vmul.f32 %v5410, %v4340
        %v5459 = vmul.f32 %v5413, %v4340
        %v5460 = vmul.f32 %v5416, %v4340
        %v5461 = vmul.f32 %v5419, %v4340
        %v5462 = vmul.f32 %v5422, %v4340
        %v5463 = vmul.f32 %v5425, %v4340
        %v5464 = vmul.f32 %v5428, %v4340
        %v5465 = vmul.f32 %v5431, %v4340
        %v5466 = vmul.f32 %v5434, %v4340
        %v5467 = vmul.f32 %v5437, %v4340
        %v5468 = vmul.f32 %v5440, %v4340
        %v5469 = vmul.f32 %v5443, %v4340
        %v5470 = vmul.f32 %v5446, %v4340
        %v5471 = vadd.f32 %v5447, 1e-05
        %v5472 = vadd.f32 %v5448, 1e-05
        %v5473 = vadd.f32 %v5449, 1e-05
        %v5474 = vadd.f32 %v5450, 1e-05
        %v5475 = vadd.f32 %v5451, 1e-05
        %v5476 = vadd.f32 %v5452, 1e-05
        %v5477 = vadd.f32 %v5453, 1e-05
        %v5478 = vadd.f32 %v5454, 1e-05
        %v5479 = vadd.f32 %v5455, 1e-05
        %v5480 = vadd.f32 %v5456, 1e-05
        %v5481 = vadd.f32 %v5457, 1e-05
        %v5482 = vadd.f32 %v5458, 1e-05
        %v5483 = vadd.f32 %v5459, 1e-05
        %v5484 = vadd.f32 %v5460, 1e-05
        %v5485 = vadd.f32 %v5461, 1e-05
        %v5486 = vadd.f32 %v5462, 1e-05
        %v5487 = vadd.f32 %v5463, 1e-05
        %v5488 = vadd.f32 %v5464, 1e-05
        %v5489 = vadd.f32 %v5465, 1e-05
        %v5490 = vadd.f32 %v5466, 1e-05
        %v5491 = vadd.f32 %v5467, 1e-05
        %v5492 = vadd.f32 %v5468, 1e-05
        %v5493 = vadd.f32 %v5469, 1e-05
        %v5494 = vadd.f32 %v5470, 1e-05
        %v5495 = vrsqrt.pop %v5471
        %v5496 = vrsqrt.pop %v5472
        %v5497 = vrsqrt.pop %v5473
        %v5498 = vrsqrt.pop %v5474
        %v5499 = vrsqrt.pop %v5475
        %v5500 = vrsqrt.pop %v5476
        %v5501 = vrsqrt.pop %v5477
        %v5502 = vrsqrt.pop %v5478
        %v5503 = vrsqrt.pop %v5479
        %v5504 = vrsqrt.pop %v5480
        %v5505 = vrsqrt.pop %v5481
        %v5506 = vrsqrt.pop %v5482
        %v5507 = vrsqrt.pop %v5483
        %v5508 = vrsqrt.pop %v5484
        %v5509 = vrsqrt.pop %v5485
        %v5510 = vrsqrt.pop %v5486
        %v5511 = vrsqrt.pop %v5487
        %v5512 = vrsqrt.pop %v5488
        %v5513 = vrsqrt.pop %v5489
        %v5514 = vrsqrt.pop %v5490
        %v5515 = vrsqrt.pop %v5491
        %v5516 = vrsqrt.pop %v5492
        %v5517 = vrsqrt.pop %v5493
        %v5518 = vrsqrt.pop %v5494
        %v5519 = vmul.f32 %v5327, %v5495
        %v5520 = vmul.f32 %v5328, %v5496
        %v5521 = vmul.f32 %v5329, %v5497
        %v5522 = vmul.f32 %v5330, %v5498
        %v5523 = vmul.f32 %v5331, %v5499
        %v5524 = vmul.f32 %v5332, %v5500
        %v5525 = vmul.f32 %v5333, %v5501
        %v5526 = vmul.f32 %v5334, %v5502
        %v5527 = vmul.f32 %v5335, %v5503
        %v5528 = vmul.f32 %v5336, %v5504
        %v5529 = vmul.f32 %v5337, %v5505
        %v5530 = vmul.f32 %v5338, %v5506
        %v5531 = vmul.f32 %v5339, %v5507
        %v5532 = vmul.f32 %v5340, %v5508
        %v5533 = vmul.f32 %v5341, %v5509
        %v5534 = vmul.f32 %v5342, %v5510
        %v5535 = vmul.f32 %v5343, %v5511
        %v5536 = vmul.f32 %v5344, %v5512
        %v5537 = vmul.f32 %v5345, %v5513
        %v5538 = vmul.f32 %v5346, %v5514
        %v5539 = vmul.f32 %v5347, %v5515
        %v5540 = vmul.f32 %v5348, %v5516
        %v5541 = vmul.f32 %v5349, %v5517
        %v5542 = vmul.f32 %v5350, %v5518
        %v5543 = vld [vmem:[%s51] sm:$0x1]
        %v5545 = vlaneseq
        %v5546 = vshrl.u32 %v5545, 7
        %v5547 = vsub.s32 0, %v5546
        %v5548 = vrot.slane %v5543, %v5547
        %v5550 = vmul.f32 %v5519, %v5548
        %v5551 = vmul.f32 %v5520, %v5548
        %v5552 = vmul.f32 %v5521, %v5548
        %v5553 = vmul.f32 %v5522, %v5548
        %v5554 = vmul.f32 %v5523, %v5548
        %v5555 = vmul.f32 %v5524, %v5548
        %v5556 = vmul.f32 %v5525, %v5548
        %v5557 = vmul.f32 %v5526, %v5548
        %v5558 = vmul.f32 %v5527, %v5548
        %v5559 = vmul.f32 %v5528, %v5548
        %v5560 = vmul.f32 %v5529, %v5548
        %v5561 = vmul.f32 %v5530, %v5548
        %v5562 = vmul.f32 %v5531, %v5548
        %v5563 = vmul.f32 %v5532, %v5548
        %v5564 = vmul.f32 %v5533, %v5548
        %v5565 = vmul.f32 %v5534, %v5548
        %v5566 = vmul.f32 %v5535, %v5548
        %v5567 = vmul.f32 %v5536, %v5548
        %v5568 = vmul.f32 %v5537, %v5548
        %v5569 = vmul.f32 %v5538, %v5548
        %v5570 = vmul.f32 %v5539, %v5548
        %v5571 = vmul.f32 %v5540, %v5548
        %v5572 = vmul.f32 %v5541, %v5548
        %v5573 = vmul.f32 %v5542, %v5548
        %v5574 = vld [vmem:[%s53] sm:$0x1]
        %v5576 = vlaneseq
        %v5577 = vshrl.u32 %v5576, 7
        %v5578 = vsub.s32 0, %v5577
        %v5579 = vrot.slane %v5574, %v5578
        %v5581 = vadd.f32 %v5550, %v5579
        %v5582 = vadd.f32 %v5551, %v5579
        %v5583 = vadd.f32 %v5552, %v5579
        %v5584 = vadd.f32 %v5553, %v5579
        %v5585 = vadd.f32 %v5554, %v5579
        %v5586 = vadd.f32 %v5555, %v5579
        %v5587 = vadd.f32 %v5556, %v5579
        %v5588 = vadd.f32 %v5557, %v5579
        %v5589 = vadd.f32 %v5558, %v5579
        %v5590 = vadd.f32 %v5559, %v5579
        %v5591 = vadd.f32 %v5560, %v5579
        %v5592 = vadd.f32 %v5561, %v5579
        %v5593 = vadd.f32 %v5562, %v5579
        %v5594 = vadd.f32 %v5563, %v5579
        %v5595 = vadd.f32 %v5564, %v5579
        %v5596 = vadd.f32 %v5565, %v5579
        %v5597 = vadd.f32 %v5566, %v5579
        %v5598 = vadd.f32 %v5567, %v5579
        %v5599 = vadd.f32 %v5568, %v5579
        %v5600 = vadd.f32 %v5569, %v5579
        %v5601 = vadd.f32 %v5570, %v5579
        %v5602 = vadd.f32 %v5571, %v5579
        %v5603 = vadd.f32 %v5572, %v5579
        %v5604 = vadd.f32 %v5573, %v5579
        %v5605 = vld [vmem:[%s55] sm:$0xff]
        %v5606 = vld [vmem:[%s55 + $0x8] sm:$0xff]
        %v5607 = vld [vmem:[%s55 + $0x10] sm:$0xff]
        %v5608 = vld [vmem:[%s55 + $0x18] sm:$0xff]
        %v5609 = vld [vmem:[%s57] sm:$0x1]
        %v5610 = vsel %vm1917, %v2127, 0
        %5612 = vmatprep.subr.mxu0 0.0
        %5613 = vmatpush1.msra.mxu0 %v5605
        %5614 = vmatprep.subr.mxu0 0.0
        %5615 = vmatpush1.msra.mxu0 %v5606
        %5616 = vmatprep.subr.mxu0 0.0
        %5617 = vmatpush1.msra.mxu0 %v5607
        %5618 = vmatprep.subr.mxu0 0.0
        %5619 = vmatpush1.msra.mxu0 %v5608
        %5620 = vmatprep.subr.mxu0 0.0
        %5621 = vmatpush1.msra.mxu0 0.0
        %5622 = vmatprep.subr.mxu0 0.0
        %5623 = vmatpush1.msra.mxu0 0.0
        %5624 = vmatprep.subr.mxu0 0.0
        %5625 = vmatpush1.msra.mxu0 0.0
        %5626 = vmatprep.subr.mxu0 0.0
        %5627 = vmatpush1.msra.mxu0 0.0
        %5628 = vmatprep.subr.mxu0 0.0
        %5629 = vmatpush1.msra.mxu0 0.0
        %5630 = vmatprep.subr.mxu0 0.0
        %5631 = vmatpush1.msra.mxu0 0.0
        %5632 = vmatprep.subr.mxu0 0.0
        %5633 = vmatpush1.msra.mxu0 0.0
        %5634 = vmatprep.subr.mxu0 0.0
        %5635 = vmatpush1.msra.mxu0 0.0
        %5636 = vmatprep.subr.mxu0 0.0
        %5637 = vmatpush1.msra.mxu0 0.0
        %5638 = vmatprep.subr.mxu0 0.0
        %5639 = vmatpush1.msra.mxu0 0.0
        %5640 = vmatprep.subr.mxu0 0.0
        %5641 = vmatpush1.msra.mxu0 0.0
        %5642 = vmatprep.subr.mxu0 0.0
        %5643 = vmatpush1.msra.mxu0 0.0
        %5644 = vmatprep.subr.mxu0 0.0
        %5645 = vmatpush1.msra.mxu0 0.0
        %5646 = vmatprep.subr.mxu0 0.0
        %5647 = vmatpush1.msra.mxu0 0.0
        %5648 = vmatprep.subr.mxu0 0.0
        %5649 = vmatpush1.msra.mxu0 0.0
        %5650 = vmatprep.subr.mxu0 0.0
        %5651 = vmatpush1.msra.mxu0 0.0
        %5652 = vmatprep.subr.mxu0 0.0
        %5653 = vmatpush1.msra.mxu0 0.0
        %5654 = vmatprep.subr.mxu0 0.0
        %5655 = vmatpush1.msra.mxu0 0.0
        %5656 = vmatprep.subr.mxu0 0.0
        %5657 = vmatpush1.msra.mxu0 0.0
        %5658 = vmatprep.subr.mxu0 0.0
        %5659 = vmatpush1.msra.mxu0 0.0
        %5660 = vmatprep.subr.mxu0 0.0
        %5661 = vmatpush1.msra.mxu0 0.0
        %5662 = vmatprep.subr.mxu0 0.0
        %5663 = vmatpush1.msra.mxu0 0.0
        %5664 = vmatprep.subr.mxu0 0.0
        %5665 = vmatpush1.msra.mxu0 0.0
        %5666 = vmatprep.subr.mxu0 0.0
        %5667 = vmatpush1.msra.mxu0 0.0
        %5668 = vmatprep.subr.mxu0 0.0
        %5669 = vmatpush1.msra.mxu0 0.0
        %5670 = vmatprep.subr.mxu0 0.0
        %5671 = vmatpush1.msra.mxu0 0.0
        %5672 = vmatprep.subr.mxu0 0.0
        %5673 = vmatpush1.msra.mxu0 0.0
        %5674 = vmatprep.subr.mxu0 0.0
        %5675 = vmatpush1.msra.mxu0 0.0
        %5676 = vmatprep.mubr.f32.mxu0 0.0
        %5677 = vmatmul.mubr.f32.gmra.mrb[0].mxu0 %v5610
        %v5678 = vpop.f32.mrb[0].mxu0
        %v5679 = vadd.f32 %v5609, %v5678
        %v5680 = vpop.f32.mrb[0].mxu0
        %5681 = vdwg.mxu0
        %v5682 = vadd.f32 %v5581, %v2301
        %v5683 = vadd.f32 %v5582, %v2302
        %v5684 = vadd.f32 %v5583, %v2303
        %v5685 = vadd.f32 %v5584, %v2304
        %v5686 = vadd.f32 %v5585, %v2305
        %v5687 = vadd.f32 %v5586, %v2306
        %v5688 = vadd.f32 %v5587, %v2307
        %v5689 = vadd.f32 %v5588, %v2308
        %v5690 = vadd.f32 %v5589, %v2309
        %v5691 = vadd.f32 %v5590, %v2310
        %v5692 = vadd.f32 %v5591, %v2311
        %v5693 = vadd.f32 %v5592, %v2312
        %v5694 = vadd.f32 %v5593, %v2313
        %v5695 = vadd.f32 %v5594, %v2314
        %v5696 = vadd.f32 %v5595, %v2315
        %v5697 = vadd.f32 %v5596, %v2316
        %v5698 = vadd.f32 %v5597, %v2317
        %v5699 = vadd.f32 %v5598, %v2318
        %v5700 = vadd.f32 %v5599, %v2319
        %v5701 = vadd.f32 %v5600, %v2320
        %v5702 = vadd.f32 %v5601, %v2321
        %v5703 = vadd.f32 %v5602, %v2322
        %v5704 = vadd.f32 %v5603, %v2323
        %v5705 = vadd.f32 %v5604, %v2324
        %v5706 = vld [vmem:[%s59] sm:$0xff]
        %v5707 = vld [vmem:[%s59 + $0x8] sm:$0xff]
        %v5708 = vld [vmem:[%s59 + $0x10] sm:$0xff]
        %v5709 = vld [vmem:[%s59 + $0x18] sm:$0xff]
        %v5710 = vld [vmem:[%s61] sm:$0x1]
        %v5712 = vlaneseq
        %v5713 = vshrl.u32 %v5712, 7
        %v5714 = vsub.s32 0, %v5713
        %v5715 = vrot.slane %v5710, %v5714
        %v5718 = vsel %vm1917, %v5682, 0
        %v5721 = vsel %vm1917, %v5683, 0
        %v5724 = vsel %vm1917, %v5684, 0
        %v5727 = vsel %vm1917, %v5685, 0
        %v5730 = vsel %vm1917, %v5686, 0
        %v5733 = vsel %vm1917, %v5687, 0
        %v5736 = vsel %vm1917, %v5688, 0
        %v5739 = vsel %vm1917, %v5689, 0
        %v5742 = vsel %vm1917, %v5690, 0
        %v5745 = vsel %vm1917, %v5691, 0
        %v5748 = vsel %vm1917, %v5692, 0
        %v5751 = vsel %vm1917, %v5693, 0
        %v5754 = vsel %vm1917, %v5694, 0
        %v5757 = vsel %vm1917, %v5695, 0
        %v5760 = vsel %vm1917, %v5696, 0
        %v5763 = vsel %vm1917, %v5697, 0
        %v5766 = vsel %vm1917, %v5698, 0
        %v5769 = vsel %vm1917, %v5699, 0
        %v5772 = vsel %vm1917, %v5700, 0
        %v5775 = vsel %vm1917, %v5701, 0
        %v5778 = vsel %vm1917, %v5702, 0
        %v5781 = vsel %vm1917, %v5703, 0
        %v5784 = vsel %vm1917, %v5704, 0
        %v5787 = vsel %vm1917, %v5705, 0
        %5789 = vmatprep.subr.mxu0 0.0
        %5790 = vmatpush1.msra.mxu0 %v5706
        %5791 = vmatprep.subr.mxu0 0.0
        %5792 = vmatpush1.msra.mxu0 %v5707
        %5793 = vmatprep.subr.mxu0 0.0
        %5794 = vmatpush1.msra.mxu0 %v5708
        %5795 = vmatprep.subr.mxu0 0.0
        %5796 = vmatpush1.msra.mxu0 %v5709
        %5797 = vmatprep.subr.mxu0 0.0
        %5798 = vmatpush1.msra.mxu0 0.0
        %5799 = vmatprep.subr.mxu0 0.0
        %5800 = vmatpush1.msra.mxu0 0.0
        %5801 = vmatprep.subr.mxu0 0.0
        %5802 = vmatpush1.msra.mxu0 0.0
        %5803 = vmatprep.subr.mxu0 0.0
        %5804 = vmatpush1.msra.mxu0 0.0
        %5805 = vmatprep.subr.mxu0 0.0
        %5806 = vmatpush1.msra.mxu0 0.0
        %5807 = vmatprep.subr.mxu0 0.0
        %5808 = vmatpush1.msra.mxu0 0.0
        %5809 = vmatprep.subr.mxu0 0.0
        %5810 = vmatpush1.msra.mxu0 0.0
        %5811 = vmatprep.subr.mxu0 0.0
        %5812 = vmatpush1.msra.mxu0 0.0
        %5813 = vmatprep.subr.mxu0 0.0
        %5814 = vmatpush1.msra.mxu0 0.0
        %5815 = vmatprep.subr.mxu0 0.0
        %5816 = vmatpush1.msra.mxu0 0.0
        %5817 = vmatprep.subr.mxu0 0.0
        %5818 = vmatpush1.msra.mxu0 0.0
        %5819 = vmatprep.subr.mxu0 0.0
        %5820 = vmatpush1.msra.mxu0 0.0
        %5821 = vmatprep.subr.mxu0 0.0
        %5822 = vmatpush1.msra.mxu0 0.0
        %5823 = vmatprep.subr.mxu0 0.0
        %5824 = vmatpush1.msra.mxu0 0.0
        %5825 = vmatprep.subr.mxu0 0.0
        %5826 = vmatpush1.msra.mxu0 0.0
        %5827 = vmatprep.subr.mxu0 0.0
        %5828 = vmatpush1.msra.mxu0 0.0
        %5829 = vmatprep.subr.mxu0 0.0
        %5830 = vmatpush1.msra.mxu0 0.0
        %5831 = vmatprep.subr.mxu0 0.0
        %5832 = vmatpush1.msra.mxu0 0.0
        %5833 = vmatprep.subr.mxu0 0.0
        %5834 = vmatpush1.msra.mxu0 0.0
        %5835 = vmatprep.subr.mxu0 0.0
        %5836 = vmatpush1.msra.mxu0 0.0
        %5837 = vmatprep.subr.mxu0 0.0
        %5838 = vmatpush1.msra.mxu0 0.0
        %5839 = vmatprep.subr.mxu0 0.0
        %5840 = vmatpush1.msra.mxu0 0.0
        %5841 = vmatprep.subr.mxu0 0.0
        %5842 = vmatpush1.msra.mxu0 0.0
        %5843 = vmatprep.subr.mxu0 0.0
        %5844 = vmatpush1.msra.mxu0 0.0
        %5845 = vmatprep.subr.mxu0 0.0
        %5846 = vmatpush1.msra.mxu0 0.0
        %5847 = vmatprep.subr.mxu0 0.0
        %5848 = vmatpush1.msra.mxu0 0.0
        %5849 = vmatprep.subr.mxu0 0.0
        %5850 = vmatpush1.msra.mxu0 0.0
        %5851 = vmatprep.subr.mxu0 0.0
        %5852 = vmatpush1.msra.mxu0 0.0
        %5853 = vmatprep.mubr.f32.mxu0 0.0
        %5854 = vmatmul.mubr.f32.gmra.mrb[0].mxu0 %v5718
        %v5855 = vpop.f32.mrb[0].mxu0
        %v5856 = vadd.f32 %v5715, %v5855
        %v5857 = vpop.f32.mrb[0].mxu0
        %5858 = vmatprep.mubr.f32.mxu0 0.0
        %5859 = vmatmul.mubr.f32.gmra.mrb[0].mxu0 %v5721
        %v5860 = vpop.f32.mrb[0].mxu0
        %v5861 = vadd.f32 %v5715, %v5860
        %v5862 = vpop.f32.mrb[0].mxu0
        %5863 = vmatprep.mubr.f32.mxu0 0.0
        %5864 = vmatmul.mubr.f32.gmra.mrb[0].mxu0 %v5724
        %v5865 = vpop.f32.mrb[0].mxu0
        %v5866 = vadd.f32 %v5715, %v5865
        %v5867 = vpop.f32.mrb[0].mxu0
        %5868 = vmatprep.mubr.f32.mxu0 0.0
        %5869 = vmatmul.mubr.f32.gmra.mrb[0].mxu0 %v5727
        %v5870 = vpop.f32.mrb[0].mxu0
        %v5871 = vadd.f32 %v5715, %v5870
        %v5872 = vpop.f32.mrb[0].mxu0
        %5873 = vmatprep.mubr.f32.mxu0 0.0
        %5874 = vmatmul.mubr.f32.gmra.mrb[0].mxu0 %v5730
        %v5875 = vpop.f32.mrb[0].mxu0
        %v5876 = vadd.f32 %v5715, %v5875
        %v5877 = vpop.f32.mrb[0].mxu0
        %5878 = vmatprep.mubr.f32.mxu0 0.0
        %5879 = vmatmul.mubr.f32.gmra.mrb[0].mxu0 %v5733
        %v5880 = vpop.f32.mrb[0].mxu0
        %v5881 = vadd.f32 %v5715, %v5880
        %v5882 = vpop.f32.mrb[0].mxu0
        %5883 = vmatprep.mubr.f32.mxu0 0.0
        %5884 = vmatmul.mubr.f32.gmra.mrb[0].mxu0 %v5736
        %v5885 = vpop.f32.mrb[0].mxu0
        %v5886 = vadd.f32 %v5715, %v5885
        %v5887 = vpop.f32.mrb[0].mxu0
        %5888 = vmatprep.mubr.f32.mxu0 0.0
        %5889 = vmatmul.mubr.f32.gmra.mrb[0].mxu0 %v5739
        %v5890 = vpop.f32.mrb[0].mxu0
        %v5891 = vadd.f32 %v5715, %v5890
        %v5892 = vpop.f32.mrb[0].mxu0
        %5893 = vmatprep.mubr.f32.mxu0 0.0
        %5894 = vmatmul.mubr.f32.gmra.mrb[0].mxu0 %v5742
        %v5895 = vpop.f32.mrb[0].mxu0
        %v5896 = vadd.f32 %v5715, %v5895
        %v5897 = vpop.f32.mrb[0].mxu0
        %5898 = vmatprep.mubr.f32.mxu0 0.0
        %5899 = vmatmul.mubr.f32.gmra.mrb[0].mxu0 %v5745
        %v5900 = vpop.f32.mrb[0].mxu0
        %v5901 = vadd.f32 %v5715, %v5900
        %v5902 = vpop.f32.mrb[0].mxu0
        %5903 = vmatprep.mubr.f32.mxu0 0.0
        %5904 = vmatmul.mubr.f32.gmra.mrb[0].mxu0 %v5748
        %v5905 = vpop.f32.mrb[0].mxu0
        %v5906 = vadd.f32 %v5715, %v5905
        %v5907 = vpop.f32.mrb[0].mxu0
        %5908 = vmatprep.mubr.f32.mxu0 0.0
        %5909 = vmatmul.mubr.f32.gmra.mrb[0].mxu0 %v5751
        %v5910 = vpop.f32.mrb[0].mxu0
        %v5911 = vadd.f32 %v5715, %v5910
        %v5912 = vpop.f32.mrb[0].mxu0
        %5913 = vmatprep.mubr.f32.mxu0 0.0
        %5914 = vmatmul.mubr.f32.gmra.mrb[0].mxu0 %v5754
        %v5915 = vpop.f32.mrb[0].mxu0
        %v5916 = vadd.f32 %v5715, %v5915
        %v5917 = vpop.f32.mrb[0].mxu0
        %5918 = vmatprep.mubr.f32.mxu0 0.0
        %5919 = vmatmul.mubr.f32.gmra.mrb[0].mxu0 %v5757
        %v5920 = vpop.f32.mrb[0].mxu0
        %v5921 = vadd.f32 %v5715, %v5920
        %v5922 = vpop.f32.mrb[0].mxu0
        %5923 = vmatprep.mubr.f32.mxu0 0.0
        %5924 = vmatmul.mubr.f32.gmra.mrb[0].mxu0 %v5760
        %v5925 = vpop.f32.mrb[0].mxu0
        %v5926 = vadd.f32 %v5715, %v5925
        %v5927 = vpop.f32.mrb[0].mxu0
        %5928 = vmatprep.mubr.f32.mxu0 0.0
        %5929 = vmatmul.mubr.f32.gmra.mrb[0].mxu0 %v5763
        %v5930 = vpop.f32.mrb[0].mxu0
        %v5931 = vadd.f32 %v5715, %v5930
        %v5932 = vpop.f32.mrb[0].mxu0
        %5933 = vmatprep.mubr.f32.mxu0 0.0
        %5934 = vmatmul.mubr.f32.gmra.mrb[0].mxu0 %v5766
        %v5935 = vpop.f32.mrb[0].mxu0
        %v5936 = vadd.f32 %v5715, %v5935
        %v5937 = vpop.f32.mrb[0].mxu0
        %5938 = vmatprep.mubr.f32.mxu0 0.0
        %5939 = vmatmul.mubr.f32.gmra.mrb[0].mxu0 %v5769
        %v5940 = vpop.f32.mrb[0].mxu0
        %v5941 = vadd.f32 %v5715, %v5940
        %v5942 = vpop.f32.mrb[0].mxu0
        %5943 = vmatprep.mubr.f32.mxu0 0.0
        %5944 = vmatmul.mubr.f32.gmra.mrb[0].mxu0 %v5772
        %v5945 = vpop.f32.mrb[0].mxu0
        %v5946 = vadd.f32 %v5715, %v5945
        %v5947 = vpop.f32.mrb[0].mxu0
        %5948 = vmatprep.mubr.f32.mxu0 0.0
        %5949 = vmatmul.mubr.f32.gmra.mrb[0].mxu0 %v5775
        %v5950 = vpop.f32.mrb[0].mxu0
        %v5951 = vadd.f32 %v5715, %v5950
        %v5952 = vpop.f32.mrb[0].mxu0
        %5953 = vmatprep.mubr.f32.mxu0 0.0
        %5954 = vmatmul.mubr.f32.gmra.mrb[0].mxu0 %v5778
        %v5955 = vpop.f32.mrb[0].mxu0
        %v5956 = vadd.f32 %v5715, %v5955
        %v5957 = vpop.f32.mrb[0].mxu0
        %5958 = vmatprep.mubr.f32.mxu0 0.0
        %5959 = vmatmul.mubr.f32.gmra.mrb[0].mxu0 %v5781
        %v5960 = vpop.f32.mrb[0].mxu0
        %v5961 = vadd.f32 %v5715, %v5960
        %v5962 = vpop.f32.mrb[0].mxu0
        %5963 = vmatprep.mubr.f32.mxu0 0.0
        %5964 = vmatmul.mubr.f32.gmra.mrb[0].mxu0 %v5784
        %v5965 = vpop.f32.mrb[0].mxu0
        %v5966 = vadd.f32 %v5715, %v5965
        %v5967 = vpop.f32.mrb[0].mxu0
        %5968 = vmatprep.mubr.f32.mxu0 0.0
        %5969 = vmatmul.mubr.f32.gmra.mrb[0].mxu0 %v5787
        %v5970 = vpop.f32.mrb[0].mxu0
        %v5971 = vadd.f32 %v5715, %v5970
        %v5972 = vpop.f32.mrb[0].mxu0
        %5973 = vdwg.mxu0
        %v5974 = vld [vmem:[%s63] sm:$0xff]
        %v5975 = vld [vmem:[%s63 + $0x8] sm:$0xff]
        %v5976 = vld [vmem:[%s63 + $0x10] sm:$0xff]
        %v5977 = vld [vmem:[%s63 + $0x18] sm:$0xff]
        %v5978 = vld [vmem:[%s65] sm:$0x1]
        %v5980 = vlaneseq
        %v5981 = vshrl.u32 %v5980, 7
        %v5982 = vsub.s32 0, %v5981
        %v5983 = vrot.slane %v5978, %v5982
        %v5986 = vsel %vm1917, %v5581, 0
        %v5989 = vsel %vm1917, %v5582, 0
        %v5992 = vsel %vm1917, %v5583, 0
        %v5995 = vsel %vm1917, %v5584, 0
        %v5998 = vsel %vm1917, %v5585, 0
        %v6001 = vsel %vm1917, %v5586, 0
        %v6004 = vsel %vm1917, %v5587, 0
        %v6007 = vsel %vm1917, %v5588, 0
        %v6010 = vsel %vm1917, %v5589, 0
        %v6013 = vsel %vm1917, %v5590, 0
        %v6016 = vsel %vm1917, %v5591, 0
        %v6019 = vsel %vm1917, %v5592, 0
        %v6022 = vsel %vm1917, %v5593, 0
        %v6025 = vsel %vm1917, %v5594, 0
        %v6028 = vsel %vm1917, %v5595, 0
        %v6031 = vsel %vm1917, %v5596, 0
        %v6034 = vsel %vm1917, %v5597, 0
        %v6037 = vsel %vm1917, %v5598, 0
        %v6040 = vsel %vm1917, %v5599, 0
        %v6043 = vsel %vm1917, %v5600, 0
        %v6046 = vsel %vm1917, %v5601, 0
        %v6049 = vsel %vm1917, %v5602, 0
        %v6052 = vsel %vm1917, %v5603, 0
        %v6055 = vsel %vm1917, %v5604, 0
        %6057 = vmatprep.subr.mxu0 0.0
        %6058 = vmatpush1.msra.mxu0 %v5974
        %6059 = vmatprep.subr.mxu0 0.0
        %6060 = vmatpush1.msra.mxu0 %v5975
        %6061 = vmatprep.subr.mxu0 0.0
        %6062 = vmatpush1.msra.mxu0 %v5976
        %6063 = vmatprep.subr.mxu0 0.0
        %6064 = vmatpush1.msra.mxu0 %v5977
        %6065 = vmatprep.subr.mxu0 0.0
        %6066 = vmatpush1.msra.mxu0 0.0
        %6067 = vmatprep.subr.mxu0 0.0
        %6068 = vmatpush1.msra.mxu0 0.0
        %6069 = vmatprep.subr.mxu0 0.0
        %6070 = vmatpush1.msra.mxu0 0.0
        %6071 = vmatprep.subr.mxu0 0.0
        %6072 = vmatpush1.msra.mxu0 0.0
        %6073 = vmatprep.subr.mxu0 0.0
        %6074 = vmatpush1.msra.mxu0 0.0
        %6075 = vmatprep.subr.mxu0 0.0
        %6076 = vmatpush1.msra.mxu0 0.0
        %6077 = vmatprep.subr.mxu0 0.0
        %6078 = vmatpush1.msra.mxu0 0.0
        %6079 = vmatprep.subr.mxu0 0.0
        %6080 = vmatpush1.msra.mxu0 0.0
        %6081 = vmatprep.subr.mxu0 0.0
        %6082 = vmatpush1.msra.mxu0 0.0
        %6083 = vmatprep.subr.mxu0 0.0
        %6084 = vmatpush1.msra.mxu0 0.0
        %6085 = vmatprep.subr.mxu0 0.0
        %6086 = vmatpush1.msra.mxu0 0.0
        %6087 = vmatprep.subr.mxu0 0.0
        %6088 = vmatpush1.msra.mxu0 0.0
        %6089 = vmatprep.subr.mxu0 0.0
        %6090 = vmatpush1.msra.mxu0 0.0
        %6091 = vmatprep.subr.mxu0 0.0
        %6092 = vmatpush1.msra.mxu0 0.0
        %6093 = vmatprep.subr.mxu0 0.0
        %6094 = vmatpush1.msra.mxu0 0.0
        %6095 = vmatprep.subr.mxu0 0.0
        %6096 = vmatpush1.msra.mxu0 0.0
        %6097 = vmatprep.subr.mxu0 0.0
        %6098 = vmatpush1.msra.mxu0 0.0
        %6099 = vmatprep.subr.mxu0 0.0
        %6100 = vmatpush1.msra.mxu0 0.0
        %6101 = vmatprep.subr.mxu0 0.0
        %6102 = vmatpush1.msra.mxu0 0.0
        %6103 = vmatprep.subr.mxu0 0.0
        %6104 = vmatpush1.msra.mxu0 0.0
        %6105 = vmatprep.subr.mxu0 0.0
        %6106 = vmatpush1.msra.mxu0 0.0
        %6107 = vmatprep.subr.mxu0 0.0
        %6108 = vmatpush1.msra.mxu0 0.0
        %6109 = vmatprep.subr.mxu0 0.0
        %6110 = vmatpush1.msra.mxu0 0.0
        %6111 = vmatprep.subr.mxu0 0.0
        %6112 = vmatpush1.msra.mxu0 0.0
        %6113 = vmatprep.subr.mxu0 0.0
        %6114 = vmatpush1.msra.mxu0 0.0
        %6115 = vmatprep.subr.mxu0 0.0
        %6116 = vmatpush1.msra.mxu0 0.0
        %6117 = vmatprep.subr.mxu0 0.0
        %6118 = vmatpush1.msra.mxu0 0.0
        %6119 = vmatprep.subr.mxu0 0.0
        %6120 = vmatpush1.msra.mxu0 0.0
        %6121 = vmatprep.mubr.f32.mxu0 0.0
        %6122 = vmatmul.mubr.f32.gmra.mrb[0].mxu0 %v5986
        %v6123 = vpop.f32.mrb[0].mxu0
        %v6124 = vadd.f32 %v5983, %v6123
        %v6125 = vpop.f32.mrb[0].mxu0
        %6126 = vmatprep.mubr.f32.mxu0 0.0
        %6127 = vmatmul.mubr.f32.gmra.mrb[0].mxu0 %v5989
        %v6128 = vpop.f32.mrb[0].mxu0
        %v6129 = vadd.f32 %v5983, %v6128
        %v6130 = vpop.f32.mrb[0].mxu0
        %6131 = vmatprep.mubr.f32.mxu0 0.0
        %6132 = vmatmul.mubr.f32.gmra.mrb[0].mxu0 %v5992
        %v6133 = vpop.f32.mrb[0].mxu0
        %v6134 = vadd.f32 %v5983, %v6133
        %v6135 = vpop.f32.mrb[0].mxu0
        %6136 = vmatprep.mubr.f32.mxu0 0.0
        %6137 = vmatmul.mubr.f32.gmra.mrb[0].mxu0 %v5995
        %v6138 = vpop.f32.mrb[0].mxu0
        %v6139 = vadd.f32 %v5983, %v6138
        %v6140 = vpop.f32.mrb[0].mxu0
        %6141 = vmatprep.mubr.f32.mxu0 0.0
        %6142 = vmatmul.mubr.f32.gmra.mrb[0].mxu0 %v5998
        %v6143 = vpop.f32.mrb[0].mxu0
        %v6144 = vadd.f32 %v5983, %v6143
        %v6145 = vpop.f32.mrb[0].mxu0
        %6146 = vmatprep.mubr.f32.mxu0 0.0
        %6147 = vmatmul.mubr.f32.gmra.mrb[0].mxu0 %v6001
        %v6148 = vpop.f32.mrb[0].mxu0
        %v6149 = vadd.f32 %v5983, %v6148
        %v6150 = vpop.f32.mrb[0].mxu0
        %6151 = vmatprep.mubr.f32.mxu0 0.0
        %6152 = vmatmul.mubr.f32.gmra.mrb[0].mxu0 %v6004
        %v6153 = vpop.f32.mrb[0].mxu0
        %v6154 = vadd.f32 %v5983, %v6153
        %v6155 = vpop.f32.mrb[0].mxu0
        %6156 = vmatprep.mubr.f32.mxu0 0.0
        %6157 = vmatmul.mubr.f32.gmra.mrb[0].mxu0 %v6007
        %v6158 = vpop.f32.mrb[0].mxu0
        %v6159 = vadd.f32 %v5983, %v6158
        %v6160 = vpop.f32.mrb[0].mxu0
        %6161 = vmatprep.mubr.f32.mxu0 0.0
        %6162 = vmatmul.mubr.f32.gmra.mrb[0].mxu0 %v6010
        %v6163 = vpop.f32.mrb[0].mxu0
        %v6164 = vadd.f32 %v5983, %v6163
        %v6165 = vpop.f32.mrb[0].mxu0
        %6166 = vmatprep.mubr.f32.mxu0 0.0
        %6167 = vmatmul.mubr.f32.gmra.mrb[0].mxu0 %v6013
        %v6168 = vpop.f32.mrb[0].mxu0
        %v6169 = vadd.f32 %v5983, %v6168
        %v6170 = vpop.f32.mrb[0].mxu0
        %6171 = vmatprep.mubr.f32.mxu0 0.0
        %6172 = vmatmul.mubr.f32.gmra.mrb[0].mxu0 %v6016
        %v6173 = vpop.f32.mrb[0].mxu0
        %v6174 = vadd.f32 %v5983, %v6173
        %v6175 = vpop.f32.mrb[0].mxu0
        %6176 = vmatprep.mubr.f32.mxu0 0.0
        %6177 = vmatmul.mubr.f32.gmra.mrb[0].mxu0 %v6019
        %v6178 = vpop.f32.mrb[0].mxu0
        %v6179 = vadd.f32 %v5983, %v6178
        %v6180 = vpop.f32.mrb[0].mxu0
        %6181 = vmatprep.mubr.f32.mxu0 0.0
        %6182 = vmatmul.mubr.f32.gmra.mrb[0].mxu0 %v6022
        %v6183 = vpop.f32.mrb[0].mxu0
        %v6184 = vadd.f32 %v5983, %v6183
        %v6185 = vpop.f32.mrb[0].mxu0
        %6186 = vmatprep.mubr.f32.mxu0 0.0
        %6187 = vmatmul.mubr.f32.gmra.mrb[0].mxu0 %v6025
        %v6188 = vpop.f32.mrb[0].mxu0
        %v6189 = vadd.f32 %v5983, %v6188
        %v6190 = vpop.f32.mrb[0].mxu0
        %6191 = vmatprep.mubr.f32.mxu0 0.0
        %6192 = vmatmul.mubr.f32.gmra.mrb[0].mxu0 %v6028
        %v6193 = vpop.f32.mrb[0].mxu0
        %v6194 = vadd.f32 %v5983, %v6193
        %v6195 = vpop.f32.mrb[0].mxu0
        %6196 = vmatprep.mubr.f32.mxu0 0.0
        %6197 = vmatmul.mubr.f32.gmra.mrb[0].mxu0 %v6031
        %v6198 = vpop.f32.mrb[0].mxu0
        %v6199 = vadd.f32 %v5983, %v6198
        %v6200 = vpop.f32.mrb[0].mxu0
        %6201 = vmatprep.mubr.f32.mxu0 0.0
        %6202 = vmatmul.mubr.f32.gmra.mrb[0].mxu0 %v6034
        %v6203 = vpop.f32.mrb[0].mxu0
        %v6204 = vadd.f32 %v5983, %v6203
        %v6205 = vpop.f32.mrb[0].mxu0
        %6206 = vmatprep.mubr.f32.mxu0 0.0
        %6207 = vmatmul.mubr.f32.gmra.mrb[0].mxu0 %v6037
        %v6208 = vpop.f32.mrb[0].mxu0
        %v6209 = vadd.f32 %v5983, %v6208
        %v6210 = vpop.f32.mrb[0].mxu0
        %6211 = vmatprep.mubr.f32.mxu0 0.0
        %6212 = vmatmul.mubr.f32.gmra.mrb[0].mxu0 %v6040
        %v6213 = vpop.f32.mrb[0].mxu0
        %v6214 = vadd.f32 %v5983, %v6213
        %v6215 = vpop.f32.mrb[0].mxu0
        %6216 = vmatprep.mubr.f32.mxu0 0.0
        %6217 = vmatmul.mubr.f32.gmra.mrb[0].mxu0 %v6043
        %v6218 = vpop.f32.mrb[0].mxu0
        %v6219 = vadd.f32 %v5983, %v6218
        %v6220 = vpop.f32.mrb[0].mxu0
        %6221 = vmatprep.mubr.f32.mxu0 0.0
        %6222 = vmatmul.mubr.f32.gmra.mrb[0].mxu0 %v6046
        %v6223 = vpop.f32.mrb[0].mxu0
        %v6224 = vadd.f32 %v5983, %v6223
        %v6225 = vpop.f32.mrb[0].mxu0
        %6226 = vmatprep.mubr.f32.mxu0 0.0
        %6227 = vmatmul.mubr.f32.gmra.mrb[0].mxu0 %v6049
        %v6228 = vpop.f32.mrb[0].mxu0
        %v6229 = vadd.f32 %v5983, %v6228
        %v6230 = vpop.f32.mrb[0].mxu0
        %6231 = vmatprep.mubr.f32.mxu0 0.0
        %6232 = vmatmul.mubr.f32.gmra.mrb[0].mxu0 %v6052
        %v6233 = vpop.f32.mrb[0].mxu0
        %v6234 = vadd.f32 %v5983, %v6233
        %v6235 = vpop.f32.mrb[0].mxu0
        %6236 = vmatprep.mubr.f32.mxu0 0.0
        %6237 = vmatmul.mubr.f32.gmra.mrb[0].mxu0 %v6055
        %v6238 = vpop.f32.mrb[0].mxu0
        %v6239 = vadd.f32 %v5983, %v6238
        %v6240 = vpop.f32.mrb[0].mxu0
        %6241 = vdwg.mxu0
        %v6243 = vsel %vm1917, %v5679, 0
        %v6246 = vsel %vm1917, %v5856, 0
        %v6249 = vsel %vm1917, %v5861, 0
        %v6252 = vsel %vm1917, %v5866, 0
        %v6255 = vsel %vm1917, %v5871, 0
        %v6258 = vsel %vm1917, %v5876, 0
        %v6261 = vsel %vm1917, %v5881, 0
        %v6264 = vsel %vm1917, %v5886, 0
        %v6267 = vsel %vm1917, %v5891, 0
        %v6270 = vsel %vm1917, %v5896, 0
        %v6273 = vsel %vm1917, %v5901, 0
        %v6276 = vsel %vm1917, %v5906, 0
        %v6279 = vsel %vm1917, %v5911, 0
        %v6282 = vsel %vm1917, %v5916, 0
        %v6285 = vsel %vm1917, %v5921, 0
        %v6288 = vsel %vm1917, %v5926, 0
        %v6291 = vsel %vm1917, %v5931, 0
        %v6294 = vsel %vm1917, %v5936, 0
        %v6297 = vsel %vm1917, %v5941, 0
        %v6300 = vsel %vm1917, %v5946, 0
        %v6303 = vsel %vm1917, %v5951, 0
        %v6306 = vsel %vm1917, %v5956, 0
        %v6309 = vsel %vm1917, %v5961, 0
        %v6312 = vsel %vm1917, %v5966, 0
        %v6315 = vsel %vm1917, %v5971, 0
        %6317 = vmatprep.subr.mxu0 0.0
        %6318 = vmatpush1.xpose.msra.mxu0 %v6246
        %6319 = vmatprep.subr.mxu0 0.0
        %6320 = vmatpush1.xpose.msra.mxu0 %v6249
        %6321 = vmatprep.subr.mxu0 0.0
        %6322 = vmatpush1.xpose.msra.mxu0 %v6252
        %6323 = vmatprep.subr.mxu0 0.0
        %6324 = vmatpush1.xpose.msra.mxu0 %v6255
        %6325 = vmatprep.subr.mxu0 0.0
        %6326 = vmatpush1.xpose.msra.mxu0 %v6258
        %6327 = vmatprep.subr.mxu0 0.0
        %6328 = vmatpush1.xpose.msra.mxu0 %v6261
        %6329 = vmatprep.subr.mxu0 0.0
        %6330 = vmatpush1.xpose.msra.mxu0 %v6264
        %6331 = vmatprep.subr.mxu0 0.0
        %6332 = vmatpush1.xpose.msra.mxu0 %v6267
        %6333 = vmatprep.subr.mxu0 0.0
        %6334 = vmatpush1.xpose.msra.mxu0 %v6270
        %6335 = vmatprep.subr.mxu0 0.0
        %6336 = vmatpush1.xpose.msra.mxu0 %v6273
        %6337 = vmatprep.subr.mxu0 0.0
        %6338 = vmatpush1.xpose.msra.mxu0 %v6276
        %6339 = vmatprep.subr.mxu0 0.0
        %6340 = vmatpush1.xpose.msra.mxu0 %v6279
        %6341 = vmatprep.subr.mxu0 0.0
        %6342 = vmatpush1.xpose.msra.mxu0 %v6282
        %6343 = vmatprep.subr.mxu0 0.0
        %6344 = vmatpush1.xpose.msra.mxu0 %v6285
        %6345 = vmatprep.subr.mxu0 0.0
        %6346 = vmatpush1.xpose.msra.mxu0 %v6288
        %6347 = vmatprep.subr.mxu0 0.0
        %6348 = vmatpush1.xpose.msra.mxu0 %v6291
        %6349 = vmatprep.subr.mxu0 0.0
        %6350 = vmatpush1.xpose.msra.mxu0 %v6294
        %6351 = vmatprep.subr.mxu0 0.0
        %6352 = vmatpush1.xpose.msra.mxu0 %v6297
        %6353 = vmatprep.subr.mxu0 0.0
        %6354 = vmatpush1.xpose.msra.mxu0 %v6300
        %6355 = vmatprep.subr.mxu0 0.0
        %6356 = vmatpush1.xpose.msra.mxu0 %v6303
        %6357 = vmatprep.subr.mxu0 0.0
        %6358 = vmatpush1.xpose.msra.mxu0 %v6306
        %6359 = vmatprep.subr.mxu0 0.0
        %6360 = vmatpush1.xpose.msra.mxu0 %v6309
        %6361 = vmatprep.subr.mxu0 0.0
        %6362 = vmatpush1.xpose.msra.mxu0 %v6312
        %6363 = vmatprep.subr.mxu0 0.0
        %6364 = vmatpush1.xpose.msra.mxu0 %v6315
        %6365 = vmatprep.subr.mxu0 0.0
        %6366 = vmatpush1.xpose.msra.mxu0 0.0
        %6367 = vmatprep.subr.mxu0 0.0
        %6368 = vmatpush1.xpose.msra.mxu0 0.0
        %6369 = vmatprep.subr.mxu0 0.0
        %6370 = vmatpush1.xpose.msra.mxu0 0.0
        %6371 = vmatprep.subr.mxu0 0.0
        %6372 = vmatpush1.xpose.msra.mxu0 0.0
        %6373 = vmatprep.subr.mxu0 0.0
        %6374 = vmatpush1.xpose.msra.mxu0 0.0
        %6375 = vmatprep.subr.mxu0 0.0
        %6376 = vmatpush1.xpose.msra.mxu0 0.0
        %6377 = vmatprep.subr.mxu0 0.0
        %6378 = vmatpush1.xpose.msra.mxu0 0.0
        %6379 = vmatprep.subr.mxu0 0.0
        %6380 = vmatpush1.xpose.msra.mxu0 0.0
        %6381 = vmatprep.mubr.f32.mxu0 0.0
        %6382 = vmatmul.mubr.f32.gmra.mrb[0].mxu0 %v6243
        %v6383 = vpop.f32.mrb[0].mxu0
        %v6384 = vadd.f32 0.0, %v6383
        %v6385 = vpop.f32.mrb[0].mxu0
        %v6386 = vadd.f32 0.0, %v6385
        %6387 = vdwg.mxu0
        %v6388 = vmul.f32 %v6384, 0.17677669
        %v6389 = vmul.f32 %v6386, 0.17677669
        %vm6390 = vcmask 1040384
        %v6391 = vsel %vm6390, %v6388, -inf
        %vm6392 = vcmask 516096
        %v6393 = vsel %vm6392, %v6389, -inf
        %v6394 = vmax.f32 %v6391, %v6393
        %6395 = vmax.xlane.f32.xlu0 %v6394
        %v6396 = vpop.xlane.xlu0 %6395
        %v6397 = vsub.f32 %v6388, %v6396
        %v6398 = vsub.f32 %v6389, %v6396
        %v6399 = vmul.f32 %v6397, 1.442695
        %v6400 = vpow.pop %v6399
        %v6401 = vmul.f32 %v6398, 1.442695
        %v6402 = vpow.pop %v6401
        %v6403 = vsel %vm6390, %v6400, 0.0
        %v6404 = vsel %vm6392, %v6402, 0.0
        %v6405 = vadd.f32 %v6403, %v6404
        %6406 = vadd.xlane.f32.xlu0 %v6405
        %v6407 = vpop.xlane.xlu0 %6406
        %v6408 = vrcp.pop %v6407
        %v6409 = vmul.f32 %v6400, %v6408
        %v6410 = vmul.f32 %v6402, %v6408
        %v6412 = vsel %vm3310, %v6410, 0
        %6414 = vmatprep.subr.mxu0 0.0
        %6415 = vmatpush1.msra.mxu0 %v6124
        %6416 = vmatprep.subr.mxu0 0.0
        %6417 = vmatpush1.msra.mxu0 %v6129
        %6418 = vmatprep.subr.mxu0 0.0
        %6419 = vmatpush1.msra.mxu0 %v6134
        %6420 = vmatprep.subr.mxu0 0.0
        %6421 = vmatpush1.msra.mxu0 %v6139
        %6422 = vmatprep.subr.mxu0 0.0
        %6423 = vmatpush1.msra.mxu0 %v6144
        %6424 = vmatprep.subr.mxu0 0.0
        %6425 = vmatpush1.msra.mxu0 %v6149
        %6426 = vmatprep.subr.mxu0 0.0
        %6427 = vmatpush1.msra.mxu0 %v6154
        %6428 = vmatprep.subr.mxu0 0.0
        %6429 = vmatpush1.msra.mxu0 %v6159
        %6430 = vmatprep.subr.mxu0 0.0
        %6431 = vmatpush1.msra.mxu0 %v6164
        %6432 = vmatprep.subr.mxu0 0.0
        %6433 = vmatpush1.msra.mxu0 %v6169
        %6434 = vmatprep.subr.mxu0 0.0
        %6435 = vmatpush1.msra.mxu0 %v6174
        %6436 = vmatprep.subr.mxu0 0.0
        %6437 = vmatpush1.msra.mxu0 %v6179
        %6438 = vmatprep.subr.mxu0 0.0
        %6439 = vmatpush1.msra.mxu0 %v6184
        %6440 = vmatprep.subr.mxu0 0.0
        %6441 = vmatpush1.msra.mxu0 %v6189
        %6442 = vmatprep.subr.mxu0 0.0
        %6443 = vmatpush1.msra.mxu0 %v6194
        %6444 = vmatprep.subr.mxu0 0.0
        %6445 = vmatpush1.msra.mxu0 %v6199
        %6446 = vmatprep.subr.mxu0 0.0
        %6447 = vmatpush1.msra.mxu0 %v6204
        %6448 = vmatprep.subr.mxu0 0.0
        %6449 = vmatpush1.msra.mxu0 %v6209
        %6450 = vmatprep.subr.mxu0 0.0
        %6451 = vmatpush1.msra.mxu0 %v6214
        %6452 = vmatprep.subr.mxu0 0.0
        %6453 = vmatpush1.msra.mxu0 %v6219
        %6454 = vmatprep.subr.mxu0 0.0
        %6455 = vmatpush1.msra.mxu0 %v6224
        %6456 = vmatprep.subr.mxu0 0.0
        %6457 = vmatpush1.msra.mxu0 %v6229
        %6458 = vmatprep.subr.mxu0 0.0
        %6459 = vmatpush1.msra.mxu0 %v6234
        %6460 = vmatprep.subr.mxu0 0.0
        %6461 = vmatpush1.msra.mxu0 %v6239
        %6462 = vmatprep.subr.mxu0 0.0
        %6463 = vmatpush1.msra.mxu0 0.0
        %6464 = vmatprep.subr.mxu0 0.0
        %6465 = vmatpush1.msra.mxu0 0.0
        %6466 = vmatprep.subr.mxu0 0.0
        %6467 = vmatpush1.msra.mxu0 0.0
        %6468 = vmatprep.subr.mxu0 0.0
        %6469 = vmatpush1.msra.mxu0 0.0
        %6470 = vmatprep.subr.mxu0 0.0
        %6471 = vmatpush1.msra.mxu0 0.0
        %6472 = vmatprep.subr.mxu0 0.0
        %6473 = vmatpush1.msra.mxu0 0.0
        %6474 = vmatprep.subr.mxu0 0.0
        %6475 = vmatpush1.msra.mxu0 0.0
        %6476 = vmatprep.subr.mxu0 0.0
        %6477 = vmatpush1.msra.mxu0 0.0
        %6478 = vmatprep.mubr.f32.mxu0 %v6412
        %6479 = vmatmul.mubr.f32.gmra.mrb[0].mxu0 %v6409
        %v6480 = vpop.f32.mrb[0].mxu0
        %v6481 = vadd.f32 0.0, %v6480
        %v6482 = vpop.f32.mrb[0].mxu0
        %6483 = vdwg.mxu0
        %v6484 = vld [vmem:[%s67] sm:$0xff]
        %v6485 = vld [vmem:[%s67 + $0x8] sm:$0xff]
        %v6486 = vld [vmem:[%s67 + $0x10] sm:$0xff]
        %v6487 = vld [vmem:[%s67 + $0x18] sm:$0xff]
        %v6488 = vld [vmem:[%s69] sm:$0x1]
        %v6490 = vsel %vm1917, %v6481, 0
        %6492 = vmatprep.subr.mxu0 0.0
        %6493 = vmatpush1.msra.mxu0 %v6484
        %6494 = vmatprep.subr.mxu0 0.0
        %6495 = vmatpush1.msra.mxu0 %v6485
        %6496 = vmatprep.subr.mxu0 0.0
        %6497 = vmatpush1.msra.mxu0 %v6486
        %6498 = vmatprep.subr.mxu0 0.0
        %6499 = vmatpush1.msra.mxu0 %v6487
        %6500 = vmatprep.subr.mxu0 0.0
        %6501 = vmatpush1.msra.mxu0 0.0
        %6502 = vmatprep.subr.mxu0 0.0
        %6503 = vmatpush1.msra.mxu0 0.0
        %6504 = vmatprep.subr.mxu0 0.0
        %6505 = vmatpush1.msra.mxu0 0.0
        %6506 = vmatprep.subr.mxu0 0.0
        %6507 = vmatpush1.msra.mxu0 0.0
        %6508 = vmatprep.subr.mxu0 0.0
        %6509 = vmatpush1.msra.mxu0 0.0
        %6510 = vmatprep.subr.mxu0 0.0
        %6511 = vmatpush1.msra.mxu0 0.0
        %6512 = vmatprep.subr.mxu0 0.0
        %6513 = vmatpush1.msra.mxu0 0.0
        %6514 = vmatprep.subr.mxu0 0.0
        %6515 = vmatpush1.msra.mxu0 0.0
        %6516 = vmatprep.subr.mxu0 0.0
        %6517 = vmatpush1.msra.mxu0 0.0
        %6518 = vmatprep.subr.mxu0 0.0
        %6519 = vmatpush1.msra.mxu0 0.0
        %6520 = vmatprep.subr.mxu0 0.0
        %6521 = vmatpush1.msra.mxu0 0.0
        %6522 = vmatprep.subr.mxu0 0.0
        %6523 = vmatpush1.msra.mxu0 0.0
        %6524 = vmatprep.subr.mxu0 0.0
        %6525 = vmatpush1.msra.mxu0 0.0
        %6526 = vmatprep.subr.mxu0 0.0
        %6527 = vmatpush1.msra.mxu0 0.0
        %6528 = vmatprep.subr.mxu0 0.0
        %6529 = vmatpush1.msra.mxu0 0.0
        %6530 = vmatprep.subr.mxu0 0.0
        %6531 = vmatpush1.msra.mxu0 0.0
        %6532 = vmatprep.subr.mxu0 0.0
        %6533 = vmatpush1.msra.mxu0 0.0
        %6534 = vmatprep.subr.mxu0 0.0
        %6535 = vmatpush1.msra.mxu0 0.0
        %6536 = vmatprep.subr.mxu0 0.0
        %6537 = vmatpush1.msra.mxu0 0.0
        %6538 = vmatprep.subr.mxu0 0.0
        %6539 = vmatpush1.msra.mxu0 0.0
        %6540 = vmatprep.subr.mxu0 0.0
        %6541 = vmatpush1.msra.mxu0 0.0
        %6542 = vmatprep.subr.mxu0 0.0
        %6543 = vmatpush1.msra.mxu0 0.0
        %6544 = vmatprep.subr.mxu0 0.0
        %6545 = vmatpush1.msra.mxu0 0.0
        %6546 = vmatprep.subr.mxu0 0.0
        %6547 = vmatpush1.msra.mxu0 0.0
        %6548 = vmatprep.subr.mxu0 0.0
        %6549 = vmatpush1.msra.mxu0 0.0
        %6550 = vmatprep.subr.mxu0 0.0
        %6551 = vmatpush1.msra.mxu0 0.0
        %6552 = vmatprep.subr.mxu0 0.0
        %6553 = vmatpush1.msra.mxu0 0.0
        %6554 = vmatprep.subr.mxu0 0.0
        %6555 = vmatpush1.msra.mxu0 0.0
        %6556 = vmatprep.mubr.f32.mxu0 0.0
        %6557 = vmatmul.mubr.f32.gmra.mrb[0].mxu0 %v6490
        %v6558 = vpop.f32.mrb[0].mxu0
        %v6559 = vadd.f32 %v6488, %v6558
        %v6560 = vpop.f32.mrb[0].mxu0
        %6561 = vdwg.mxu0
        %vm6562 = vcmask 253952
        %v6563 = vsel %vm6562, %v6559, 0.0
        %6564 = vadd.xlane.f32.xlu0 %v6563
        %v6565 = vpop.xlane.xlu0 %6564
        %v6566 = vmul.f32 %v6565, %v4340
        %v6567 = vsub.f32 %v6559, %v6566
        %v6568 = vmul.f32 %v6567, %v6567
        %v6569 = vsel %vm6562, %v6568, 0.0
        %6570 = vadd.xlane.f32.xlu0 %v6569
        %v6571 = vpop.xlane.xlu0 %6570
        %v6572 = vmul.f32 %v6571, %v4340
        %v6573 = vadd.f32 %v6572, 1e-05
        %v6574 = vrsqrt.pop %v6573
        %v6575 = vmul.f32 %v6567, %v6574
        %v6576 = vld [vmem:[%s71] sm:$0x1]
        %v6577 = vmul.f32 %v6575, %v6576
        %v6578 = vld [vmem:[%s73] sm:$0x1]
        %v6579 = vadd.f32 %v6577, %v6578
        %v6580 = vld [vmem:[%s75] sm:$0xff]
        %v6581 = vld [vmem:[%s75 + $0x8] sm:$0xff]
        %v6582 = vld [vmem:[%s75 + $0x10] sm:$0xff]
        %v6583 = vld [vmem:[%s75 + $0x18] sm:$0xff]
        %v6584 = vld [vmem:[%s77] sm:$0x1]
        %v6586 = vsel %vm1917, %v6579, 0
        %6588 = vmatprep.subr.mxu0 0.0
        %6589 = vmatpush1.msra.mxu0 %v6580
        %6590 = vmatprep.subr.mxu0 0.0
        %6591 = vmatpush1.msra.mxu0 %v6581
        %6592 = vmatprep.subr.mxu0 0.0
        %6593 = vmatpush1.msra.mxu0 %v6582
        %6594 = vmatprep.subr.mxu0 0.0
        %6595 = vmatpush1.msra.mxu0 %v6583
        %6596 = vmatprep.subr.mxu0 0.0
        %6597 = vmatpush1.msra.mxu0 0.0
        %6598 = vmatprep.subr.mxu0 0.0
        %6599 = vmatpush1.msra.mxu0 0.0
        %6600 = vmatprep.subr.mxu0 0.0
        %6601 = vmatpush1.msra.mxu0 0.0
        %6602 = vmatprep.subr.mxu0 0.0
        %6603 = vmatpush1.msra.mxu0 0.0
        %6604 = vmatprep.subr.mxu0 0.0
        %6605 = vmatpush1.msra.mxu0 0.0
        %6606 = vmatprep.subr.mxu0 0.0
        %6607 = vmatpush1.msra.mxu0 0.0
        %6608 = vmatprep.subr.mxu0 0.0
        %6609 = vmatpush1.msra.mxu0 0.0
        %6610 = vmatprep.subr.mxu0 0.0
        %6611 = vmatpush1.msra.mxu0 0.0
        %6612 = vmatprep.subr.mxu0 0.0
        %6613 = vmatpush1.msra.mxu0 0.0
        %6614 = vmatprep.subr.mxu0 0.0
        %6615 = vmatpush1.msra.mxu0 0.0
        %6616 = vmatprep.subr.mxu0 0.0
        %6617 = vmatpush1.msra.mxu0 0.0
        %6618 = vmatprep.subr.mxu0 0.0
        %6619 = vmatpush1.msra.mxu0 0.0
        %6620 = vmatprep.subr.mxu0 0.0
        %6621 = vmatpush1.msra.mxu0 0.0
        %6622 = vmatprep.subr.mxu0 0.0
        %6623 = vmatpush1.msra.mxu0 0.0
        %6624 = vmatprep.subr.mxu0 0.0
        %6625 = vmatpush1.msra.mxu0 0.0
        %6626 = vmatprep.subr.mxu0 0.0
        %6627 = vmatpush1.msra.mxu0 0.0
        %6628 = vmatprep.subr.mxu0 0.0
        %6629 = vmatpush1.msra.mxu0 0.0
        %6630 = vmatprep.subr.mxu0 0.0
        %6631 = vmatpush1.msra.mxu0 0.0
        %6632 = vmatprep.subr.mxu0 0.0
        %6633 = vmatpush1.msra.mxu0 0.0
        %6634 = vmatprep.subr.mxu0 0.0
        %6635 = vmatpush1.msra.mxu0 0.0
        %6636 = vmatprep.subr.mxu0 0.0
        %6637 = vmatpush1.msra.mxu0 0.0
        %6638 = vmatprep.subr.mxu0 0.0
        %6639 = vmatpush1.msra.mxu0 0.0
        %6640 = vmatprep.subr.mxu0 0.0
        %6641 = vmatpush1.msra.mxu0 0.0
        %6642 = vmatprep.subr.mxu0 0.0
        %6643 = vmatpush1.msra.mxu0 0.0
        %6644 = vmatprep.subr.mxu0 0.0
        %6645 = vmatpush1.msra.mxu0 0.0
        %6646 = vmatprep.subr.mxu0 0.0
        %6647 = vmatpush1.msra.mxu0 0.0
        %6648 = vmatprep.subr.mxu0 0.0
        %6649 = vmatpush1.msra.mxu0 0.0
        %6650 = vmatprep.subr.mxu0 0.0
        %6651 = vmatpush1.msra.mxu0 0.0
        %6652 = vmatprep.mubr.f32.mxu0 0.0
        %6653 = vmatmul.mubr.f32.gmra.mrb[0].mxu0 %v6586
        %v6654 = vpop.f32.mrb[0].mxu0
        %v6655 = vadd.f32 %v6584, %v6654
        %v6656 = vpop.f32.mrb[0].mxu0
        %6657 = vdwg.mxu0
        %v6658 = vmax.f32 %v6655, 0.0
        %v6659 = vld [vmem:[%s79] sm:$0xff]
        %v6660 = vld [vmem:[%s79 + $0x8] sm:$0xff]
        %v6661 = vld [vmem:[%s79 + $0x10] sm:$0xff]
        %v6662 = vld [vmem:[%s79 + $0x18] sm:$0xff]
        %v6663 = vld [vmem:[%s79 + $0x20] sm:$0xff]
        %v6664 = vld [vmem:[%s79 + $0x28] sm:$0xff]
        %v6665 = vld [vmem:[%s79 + $0x30] sm:$0xff]
        %v6666 = vld [vmem:[%s79 + $0x38] sm:$0xff]
        %v6667 = vld [vmem:[%s81] sm:$0x1]
        %v6669 = vsel %vm3310, %v6658, 0
        %6671 = vmatprep.subr.mxu0 0.0
        %6672 = vmatpush1.msra.mxu0 %v6659
        %6673 = vmatprep.subr.mxu0 0.0
        %6674 = vmatpush1.msra.mxu0 %v6660
        %6675 = vmatprep.subr.mxu0 0.0
        %6676 = vmatpush1.msra.mxu0 %v6661
        %6677 = vmatprep.subr.mxu0 0.0
        %6678 = vmatpush1.msra.mxu0 %v6662
        %6679 = vmatprep.subr.mxu0 0.0
        %6680 = vmatpush1.msra.mxu0 %v6663
        %6681 = vmatprep.subr.mxu0 0.0
        %6682 = vmatpush1.msra.mxu0 %v6664
        %6683 = vmatprep.subr.mxu0 0.0
        %6684 = vmatpush1.msra.mxu0 %v6665
        %6685 = vmatprep.subr.mxu0 0.0
        %6686 = vmatpush1.msra.mxu0 %v6666
        %6687 = vmatprep.subr.mxu0 0.0
        %6688 = vmatpush1.msra.mxu0 0.0
        %6689 = vmatprep.subr.mxu0 0.0
        %6690 = vmatpush1.msra.mxu0 0.0
        %6691 = vmatprep.subr.mxu0 0.0
        %6692 = vmatpush1.msra.mxu0 0.0
        %6693 = vmatprep.subr.mxu0 0.0
        %6694 = vmatpush1.msra.mxu0 0.0
        %6695 = vmatprep.subr.mxu0 0.0
        %6696 = vmatpush1.msra.mxu0 0.0
        %6697 = vmatprep.subr.mxu0 0.0
        %6698 = vmatpush1.msra.mxu0 0.0
        %6699 = vmatprep.subr.mxu0 0.0
        %6700 = vmatpush1.msra.mxu0 0.0
        %6701 = vmatprep.subr.mxu0 0.0
        %6702 = vmatpush1.msra.mxu0 0.0
        %6703 = vmatprep.subr.mxu0 0.0
        %6704 = vmatpush1.msra.mxu0 0.0
        %6705 = vmatprep.subr.mxu0 0.0
        %6706 = vmatpush1.msra.mxu0 0.0
        %6707 = vmatprep.subr.mxu0 0.0
        %6708 = vmatpush1.msra.mxu0 0.0
        %6709 = vmatprep.subr.mxu0 0.0
        %6710 = vmatpush1.msra.mxu0 0.0
        %6711 = vmatprep.subr.mxu0 0.0
        %6712 = vmatpush1.msra.mxu0 0.0
        %6713 = vmatprep.subr.mxu0 0.0
        %6714 = vmatpush1.msra.mxu0 0.0
        %6715 = vmatprep.subr.mxu0 0.0
        %6716 = vmatpush1.msra.mxu0 0.0
        %6717 = vmatprep.subr.mxu0 0.0
        %6718 = vmatpush1.msra.mxu0 0.0
        %6719 = vmatprep.subr.mxu0 0.0
        %6720 = vmatpush1.msra.mxu0 0.0
        %6721 = vmatprep.subr.mxu0 0.0
        %6722 = vmatpush1.msra.mxu0 0.0
        %6723 = vmatprep.subr.mxu0 0.0
        %6724 = vmatpush1.msra.mxu0 0.0
        %6725 = vmatprep.subr.mxu0 0.0
        %6726 = vmatpush1.msra.mxu0 0.0
        %6727 = vmatprep.subr.mxu0 0.0
        %6728 = vmatpush1.msra.mxu0 0.0
        %6729 = vmatprep.subr.mxu0 0.0
        %6730 = vmatpush1.msra.mxu0 0.0
        %6731 = vmatprep.subr.mxu0 0.0
        %6732 = vmatpush1.msra.mxu0 0.0
        %6733 = vmatprep.subr.mxu0 0.0
        %6734 = vmatpush1.msra.mxu0 0.0
        %6735 = vmatprep.mubr.f32.mxu0 0.0
        %6736 = vmatmul.mubr.f32.gmra.mrb[0].mxu0 %v6669
        %v6737 = vpop.f32.mrb[0].mxu0
        %v6738 = vadd.f32 %v6667, %v6737
        %v6739 = vpop.f32.mrb[0].mxu0
        %6740 = vdwg.mxu0
        %v6741 = vadd.f32 %v6579, %v6738
        %v6742 = vsel %vm6562, %v6741, 0.0
        %6743 = vadd.xlane.f32.xlu0 %v6742
        %v6744 = vpop.xlane.xlu0 %6743
        %v6745 = vmul.f32 %v6744, %v4340
        %v6746 = vsub.f32 %v6741, %v6745
        %v6747 = vmul.f32 %v6746, %v6746
        %v6748 = vsel %vm6562, %v6747, 0.0
        %6749 = vadd.xlane.f32.xlu0 %v6748
        %v6750 = vpop.xlane.xlu0 %6749
        %v6751 = vmul.f32 %v6750, %v4340
        %v6752 = vadd.f32 %v6751, 1e-05
        %v6753 = vrsqrt.pop %v6752
        %v6754 = vmul.f32 %v6746, %v6753
        %v6755 = vld [vmem:[%s83] sm:$0x1]
        %v6756 = vmul.f32 %v6754, %v6755
        %v6757 = vld [vmem:[%s85] sm:$0x1]
        %v6758 = vadd.f32 %v6756, %v6757
        %6759 = vst.msk [vmem:[%s1449] sm:$0x1] %vm6562, %v6758
        %6760 = vst.msk [vmem:[%s1421] sm:$0xff] %vm1917, %v5597
        %6761 = vst.msk [vmem:[%s1421 + $0x8] sm:$0xff] %vm1917, %v5598
        %6762 = vst.msk [vmem:[%s1421 + $0x10] sm:$0xff] %vm1917, %v5599
        %6763 = vst.msk [vmem:[%s1421 + $0x18] sm:$0xff] %vm1917, %v5600
        %6764 = vst.msk [vmem:[%s1421 + $0x20] sm:$0xff] %vm1917, %v5601
        %6765 = vst.msk [vmem:[%s1421 + $0x28] sm:$0xff] %vm1917, %v5602
        %6766 = vst.msk [vmem:[%s1421 + $0x30] sm:$0xff] %vm1917, %v5603
        %6767 = vst.msk [vmem:[%s1421 + $0x38] sm:$0xff] %vm1917, %v5604
        %p6768 = scmp.lt.s32.totalorder %s106, 1
        %s6769 = scalar_select %p6768, %s106, 1
        %s6770 = scalar_lea.vmem %s87, %s6769
        %s6771 = sand.u32 %s1068, 1
        %s6772 = scalar_lea.sflag [#allocation4], %s6771
        %s6773 = sand.u32 %s1068, 1
        %s6774 = smul.addr %s6773, 64
        %s6775 = scalar_lea.vmem [#allocation8], %s6774
        // Predicated region
        $region205: #{filter_predictor_forward.1} parent=191 // pred_check
          %p6776 = pneg %p1052
        $region206: #{filter_predictor_forward.1} parent=191 // pred_check_branch
          %6778 = sbr.rel (%p6776) target = $region208
        $region207: #{filter_predictor_forward.1} parent=191 // pred_region
          _
        $region208: #{filter_predictor_forward.1} parent=191 // pred_fallthru
          _
        // Predicated region
        $region209: #{filter_predictor_forward.1} parent=191 // pred_check
          %p6779 = pneg %p1078
        $region210: #{filter_predictor_forward.1} parent=191 // pred_check_branch
          %6781 = sbr.rel (%p6779) target = $region212
        $region211: #{filter_predictor_forward.1} parent=191 // pred_region
          %s6783 = ssub.s32 1024, 1024
          %6784 = vsyncadd %s6772, %s6783
          %s6785 = smul.addr %s106, 8
          %s6786 = smul.addr %s6785, 128
          %s6787 = scalar_lea.hbm %s89, %s6786
          %s6788 = sshll.u32 %s6775, 4
          %s6789 = int_to_ptr.vmem [resolvable:$true] %s6788
          %6794 = dma.vmem_to_hbm [thread:$0]  %s6789, 1024, %s6787, %s6772, 128, 128, 8
        $region212: #{filter_predictor_forward.1} parent=191 // pred_fallthru
          _
      $region192: #{filter_predictor_forward.1} parent=5 // pred_fallthru
        _
      %p6795 = scmp.le.s32.totalorder 2, %s101
      // Predicated region
      $region213: #{filter_predictor_forward.1} parent=5 // pred_check
        %p6796 = pneg %p6795
      $region214: #{filter_predictor_forward.1} parent=5 // pred_check_branch
        %6798 = sbr.rel (%p6796) target = $region216
      $region215: #{filter_predictor_forward.1} parent=5 // pred_region
        %s6799 = ssub.s32 %s101, 2
        // Predicated region
        $region217: #{filter_predictor_forward.1} parent=215 // pred_check
          %p6800 = pneg %p1058
        $region218: #{filter_predictor_forward.1} parent=215 // pred_check_branch
          %6802 = sbr.rel (%p6800) target = $region220
        $region219: #{filter_predictor_forward.1} parent=215 // pred_region
          %p6803 = scmp.lt.s32.totalorder %s107, 1
          %s6804 = scalar_select %p6803, %s107, 1
          %s6805 = scalar_lea.vmem %s87, %s6804
        $region220: #{filter_predictor_forward.1} parent=215 // pred_fallthru
          _
        // Predicated region
        $region221: #{filter_predictor_forward.1} parent=215 // pred_check
          %p6806 = pneg %p1084
        $region222: #{filter_predictor_forward.1} parent=215 // pred_check_branch
          %6808 = sbr.rel (%p6806) target = $region224
        $region223: #{filter_predictor_forward.1} parent=215 // pred_region
          %s6809 = sand.u32 %s1069, 1
          %s6810 = scalar_lea.sflag [#allocation4], %s6809
          %s6811 = sand.u32 %s1069, 1
          %s6812 = smul.addr %s6811, 64
          %s6813 = scalar_lea.vmem [#allocation8], %s6812
          %6814 = dma.done %s6810, 1024
        $region224: #{filter_predictor_forward.1} parent=215 // pred_fallthru
          _
      $region216: #{filter_predictor_forward.1} parent=5 // pred_fallthru
        _
    $region6: #{filter_predictor_forward.1} parent=1 // loop_footer
      %s105 = sadd.s32 1, %s101
    $region7: #{filter_predictor_forward.1} parent=1 // loop_footer_branch
      %100 = sbr.rel target = $region3
    $region8: #{filter_predictor_forward.1} parent=1 // loop_exit
      _
    %6815 = vsyncpa [#allocation3], 1
    %s6816 = scalar_lea.sflag [#allocation3], 1
    %6817 = vsyncpa %s6816, 1
    %6818 = vsyncpa [#allocation6], 1
    %6819 = vsyncpa [#allocation4], 1
    %s6820 = scalar_lea.sflag [#allocation4], 1
    %6821 = vsyncpa %s6820, 1

</llo_original>
